<compile_context>
chip_gen: v5e
topology: v5e:2x2
jax: 0.10.0
libtpu: 0.0.40
codegen_flags: <defaults>
</compile_context>

<pallas_src>
import functools
import itertools

import jax
import jax.numpy as jnp
import numpy as np
from jax.experimental import pallas as pl
from jax.experimental.pallas import tpu as pltpu

EPS = 1e-5
LANE = 128
SUBLANE = 8
MATMUL_DTYPE = jnp.bfloat16  # MXU operand dtype; all elementwise / stats math is f32.


def _round_up(n, m=LANE):
    return ((n + m - 1) // m) * m


def _pad_to(a, shape):
    pads = [(0, t - s) for s, t in zip(a.shape, shape)]
    return jnp.pad(a, pads)


# -----------------------------------------------------------------------------
# Kernel helpers
# -----------------------------------------------------------------------------
def _bn(z, g, b, eps, relu):
    # Training-mode BatchNorm (biased variance, like torch) over the row axis.
    # One-pass stats (E[z], E[z^2]) in f32; clamp var at 0 for numerical safety.
    mean = jnp.mean(z, axis=0, keepdims=True)
    var = jnp.maximum(jnp.mean(z * z, axis=0, keepdims=True) - mean * mean, 0.0)
    y = (z - mean) * jax.lax.rsqrt(var + eps) * g + b
    return jnp.maximum(y, 0.0) if relu else y


def _subsample_nhwc(v, s):
    """Static phase-0 stride-s spatial subsample of an (N, H, W, C) value.

    Uses only lane-preserving reshapes + unit-stride slices (no strided slices,
    no gather, no selection matmul)."""
    if s == 1:
        return v
    N, H, W, C = v.shape
    Ho, Wo = H // s, W // s
    # H subsample: regroup leading (non-tiled) dims only, unit-stride slice.
    v = jax.lax.slice_in_dim(v.reshape(N, Ho, s, W, C), 0, 1, axis=2)
    v = v.reshape(N, Ho, W, C)
    # W subsample: split the sublane dim, unit-stride slice, collapse back.
    v = jax.lax.slice_in_dim(v.reshape(N, Ho, Wo, s, C), 0, 1, axis=3)
    return v.reshape(N, Ho, Wo, C)


# -----------------------------------------------------------------------------
# Fused kernel
# -----------------------------------------------------------------------------
def _bottleneck_kernel(*refs, dims, use_proj, stride, eps):
    N, H, W = dims
    if use_proj:
        (x_ref, w1_ref, w2_ref, w3_ref, w4_ref, b4_ref,
         g1_ref, be1_ref, g2_ref, be2_ref, g3_ref, be3_ref,
         out_ref, y1p_ref) = refs
    else:
        (x_ref, w1_ref, w2_ref, w3_ref,
         g1_ref, be1_ref, g2_ref, be2_ref, g3_ref, be3_ref,
         out_ref, y1p_ref) = refs
        w4_ref = b4_ref = None

    cp_in = x_ref.shape[-1]
    cp_h = w1_ref.shape[-1]
    M = N * H * W
    Ho, Wo = H // stride, W // stride
    Mo = N * Ho * Wo

    mm = functools.partial(jnp.dot, preferred_element_type=jnp.float32)

    # Load x once; cast to the MXU dtype once (reused by stage 1 and the skip path).
    x4 = x_ref[...]                                     # (N, H, W, cp_in) f32
    xb = x4.reshape(M, cp_in).astype(MATMUL_DTYPE)

    # ---- stage 1: 1x1 conv + BN + ReLU (conv bias dropped: cancels in training BN) ----
    z1 = mm(xb, w1_ref[...])
    y1 = _bn(z1, g1_ref[...], be1_ref[...], eps, relu=True)

    # Stage-1 activation into a zero-haloed bf16 VMEM scratch.
    # Zero ONLY the 4 halo slabs (interior is overwritten immediately anyway).
    zero_row = jnp.zeros((N, 1) + y1p_ref.shape[2:], dtype=y1p_ref.dtype)
    y1p_ref[:, 0:1, :, :] = zero_row
    y1p_ref[:, H + 1:H + 2, :, :] = zero_row
    zero_col = jnp.zeros((N, H + 2, 1, cp_h), dtype=y1p_ref.dtype)
    y1p_ref[:, :, 0:1, :] = zero_col
    y1p_ref[:, :, W + 1:W + 2, :] = zero_col
    y1p_ref[:, 1:H + 1, 1:W + 1, :] = y1.astype(MATMUL_DTYPE).reshape(N, H, W, cp_h)

    # ---- stage 2: 3x3 conv as 9 accumulating tap matmuls, computed only at the
    #      strided output positions. SSA accumulator (no VMEM read-modify-write);
    #      first tap initializes it. Taps are already bf16 (no in-loop casts). ----
    acc = None
    for t, (dy, dx) in enumerate(itertools.product(range(3), range(3))):
        tap4 = y1p_ref[:, dy:dy + H, dx:dx + W, :]      # (N, H, W, cp_h) bf16
        tap = _subsample_nhwc(tap4, stride).reshape(Mo, cp_h)
        part = mm(tap, w2_ref[t])
        acc = part if acc is None else acc + part

    y2 = _bn(acc, g2_ref[...], be2_ref[...], eps, relu=True)

    # ---- stage 3: 1x1 conv + BN ----
    z3 = mm(y2.astype(MATMUL_DTYPE), w3_ref[...])
    y3 = _bn(z3, g3_ref[...], be3_ref[...], eps, relu=False)

    # ---- skip path: reuse the x tile already resident in VMEM ----
    if use_proj:
        if stride == 1:
            xs_b = xb                                   # already bf16, same rows
        else:
            xs_b = _subsample_nhwc(x4, stride).reshape(Mo, cp_in).astype(MATMUL_DTYPE)
        skip = mm(xs_b, w4_ref[...]) + b4_ref[...]
    else:
        skip = x4.reshape(M, cp_in)  # identity: cin == cout and stride == 1

    out_ref[...] = jnp.maximum(y3 + skip, 0.0)


# -----------------------------------------------------------------------------
# Module wrapper
# -----------------------------------------------------------------------------
class ResBottleNeckPallas:
    def __init__(self, key, input_channels, hidden_channels, out_channels,
                 use_1x1conv=False, strides=1):
        if not use_1x1conv:
            assert input_channels == out_channels and strides == 1, (
                "identity skip requires input_channels == out_channels and strides == 1")
        self.cin, self.ch, self.cout = input_channels, hidden_channels, out_channels
        self.use_1x1conv = use_1x1conv
        self.strides = strides
        ks = jax.random.split(key, 8)
        f32 = jnp.float32
        # conv weights kept in matmul-friendly layouts (1x1: (Cin, Cout); 3x3: HWIO)
        self.w1 = 0.2 * jax.random.normal(ks[0], (input_channels, hidden_channels), f32)
        self.b1 = 0.1 * jax.random.normal(ks[1], (hidden_channels,), f32)
        self.w2 = 0.2 * jax.random.normal(ks[2], (3, 3, hidden_channels, hidden_channels), f32)
        self.b2 = 0.1 * jax.random.normal(ks[3], (hidden_channels,), f32)
        self.w3 = 0.2 * jax.random.normal(ks[4], (hidden_channels, out_channels), f32)
        self.b3 = 0.1 * jax.random.normal(ks[5], (out_channels,), f32)
        if use_1x1conv:
            self.w4 = 0.2 * jax.random.normal(ks[6], (input_channels, out_channels), f32)
            self.b4 = 0.1 * jax.random.normal(ks[7], (out_channels,), f32)
        else:
            self.w4 = self.b4 = None
        # BatchNorm affine params (PyTorch default init: weight=1, bias=0)
        self.g1 = jnp.ones((hidden_channels,), f32); self.be1 = jnp.zeros((hidden_channels,), f32)
        self.g2 = jnp.ones((hidden_channels,), f32); self.be2 = jnp.zeros((hidden_channels,), f32)
        self.g3 = jnp.ones((out_channels,), f32);    self.be3 = jnp.zeros((out_channels,), f32)

    def __call__(self, x_nchw):
        N, cin, H, W = x_nchw.shape
        assert cin == self.cin
        s = self.strides
        if s > 1:
            # TODO(synk): support H % s != 0 (PyTorch's floor((H-1)/s)+1 output size).
            assert H % s == 0 and W % s == 0, "stride must divide H and W"
        Ho, Wo = H // s, W // s
        cp_in, cp_h, cp_out = _round_up(self.cin), _round_up(self.ch), _round_up(self.cout)
        M, Mo = N * H * W, N * Ho * Wo
        w_halo = _round_up(W + 2, SUBLANE)  # sublane-padded halo extent (extra cols never read)

        # NCHW -> NHWC, channels zero-padded to a lane multiple so vregs/stores are dense.
        x = jnp.transpose(x_nchw, (0, 2, 3, 1)).astype(jnp.float32)
        x = _pad_to(x, (N, H, W, cp_in))

        # Weights padded + pre-cast to the MXU dtype; BN affine params stay f32.
        w1 = _pad_to(self.w1, (cp_in, cp_h)).astype(MATMUL_DTYPE)
        w2 = _pad_to(self.w2, (3, 3, cp_h, cp_h)).reshape(9, cp_h, cp_h).astype(MATMUL_DTYPE)
        w3 = _pad_to(self.w3, (cp_h, cp_out)).astype(MATMUL_DTYPE)
        g1 = _pad_to(self.g1.reshape(1, -1), (1, cp_h))
        be1 = _pad_to(self.be1.reshape(1, -1), (1, cp_h))
        g2 = _pad_to(self.g2.reshape(1, -1), (1, cp_h))
        be2 = _pad_to(self.be2.reshape(1, -1), (1, cp_h))
        g3 = _pad_to(self.g3.reshape(1, -1), (1, cp_out))
        be3 = _pad_to(self.be3.reshape(1, -1), (1, cp_out))
        # b1/b2/b3 intentionally not passed: they cancel in training-mode BN.

        args = [x, w1, w2, w3]
        if self.use_1x1conv:
            w4 = _pad_to(self.w4, (cp_in, cp_out)).astype(MATMUL_DTYPE)
            b4 = _pad_to(self.b4.reshape(1, -1), (1, cp_out))
            args += [w4, b4]
        args += [g1, be1, g2, be2, g3, be3]

        kernel = functools.partial(
            _bottleneck_kernel, dims=(N, H, W), use_proj=self.use_1x1conv,
            stride=s, eps=EPS)

        # VMEM budget: actual buffers (inputs + output + halo scratch) with 2x headroom
        # for compiler temporaries / spills; floor at 32 MiB, cap below v7x physical.
        scratch_bytes = N * (H + 2) * w_halo * cp_h * 2          # bf16 halo
        io_bytes = sum(int(a.size) * a.dtype.itemsize for a in args) + Mo * cp_out * 4
        vmem_limit = int(min(48 * 2**20, max(32 * 2**20, 2 * (scratch_bytes + io_bytes))))

        vmem = pltpu.MemorySpace.VMEM
        out2d = pl.pallas_call(
            kernel,
            out_shape=jax.ShapeDtypeStruct((Mo, cp_out), jnp.float32),
            in_specs=[pl.BlockSpec(memory_space=vmem) for _ in args],
            out_specs=pl.BlockSpec(memory_space=vmem),
            scratch_shapes=[
                pltpu.VMEM((N, H + 2, w_halo, cp_h), MATMUL_DTYPE),  # bf16 zero-haloed act
            ],
            compiler_params=pltpu.CompilerParams(vmem_limit_bytes=vmem_limit),
        )(*args)

        out = out2d.reshape(N, Ho, Wo, cp_out)[..., :self.cout]
        return jnp.transpose(out, (0, 3, 1, 2))  # NHWC -> NCHW


# -----------------------------------------------------------------------------
# Pure-JAX reference (mirrors the PyTorch forward, training-mode BatchNorm).
# `matmul_dtype` controls conv-input precision so the kernel's bf16 MXU policy can
# be matched exactly for a tight comparison.
# -----------------------------------------------------------------------------
def _bn_ref(y_nhwc, g, b):
    mean = y_nhwc.mean(axis=(0, 1, 2), keepdims=True)
    var = jnp.square(y_nhwc - mean).mean(axis=(0, 1, 2), keepdims=True)
    return (y_nhwc - mean) * jax.lax.rsqrt(var + EPS) * g + b


def _conv_ref(x_nhwc, w_hwio, b, stride, padding, matmul_dtype):
    y = jax.lax.conv_general_dilated(
        x_nhwc.astype(matmul_dtype), w_hwio.astype(matmul_dtype),
        (stride, stride), padding,
        dimension_numbers=("NHWC", "HWIO", "NHWC"),
        preferred_element_type=jnp.float32)
    return y + b


def reference_forward(m: ResBottleNeckPallas, x_nchw, matmul_dtype=jnp.float32):
    x = jnp.transpose(x_nchw, (0, 2, 3, 1)).astype(jnp.float32)
    w1 = m.w1.reshape(1, 1, m.cin, m.ch)
    w3 = m.w3.reshape(1, 1, m.ch, m.cout)
    y = jax.nn.relu(_bn_ref(_conv_ref(x, w1, m.b1, 1, "VALID", matmul_dtype), m.g1, m.be1))
    y = jax.nn.relu(_bn_ref(_conv_ref(y, m.w2, m.b2, m.strides, [(1, 1), (1, 1)], matmul_dtype),
                            m.g2, m.be2))
    y = _bn_ref(_conv_ref(y, w3, m.b3, 1, "VALID", matmul_dtype), m.g3, m.be3)
    if m.use_1x1conv:
        w4 = m.w4.reshape(1, 1, m.cin, m.cout)
        xs = _conv_ref(x, w4, m.b4, m.strides, "VALID", matmul_dtype)
    else:
        xs = x
    out = jax.nn.relu(y + xs)
    return jnp.transpose(out, (0, 3, 1, 2))


# -----------------------------------------------------------------------------
if __name__ == "__main__":
    key = jax.random.PRNGKey(0)
    k_p1, k_p2, k_x1, k_x2 = jax.random.split(key, 4)

    # Config A: identity skip (use_1x1conv=False, stride=1, cin == cout)
    x_a = jax.random.normal(k_x1, (2, 8, 16, 16), jnp.float32)  # NCHW
    block_a = ResBottleNeckPallas(k_p1, input_channels=8, hidden_channels=4,
                                  out_channels=8, use_1x1conv=False, strides=1)
    out_a = jax.block_until_ready(block_a(x_a))
    assert out_a.shape == (2, 8, 16, 16)
    # Tight check vs. a reference that uses the same bf16 matmul-input policy.
    ref_a = reference_forward(block_a, x_a, matmul_dtype=MATMUL_DTYPE)
    np.testing.assert_allclose(np.asarray(out_a), np.asarray(ref_a), rtol=1e-2, atol=1e-2)
    # Loose sanity check vs. the pure-f32 PyTorch-equivalent reference
    # (slack covers bf16 MXU-input drift; structural bugs would be O(1) errors).
    ref_a32 = reference_forward(block_a, x_a, matmul_dtype=jnp.float32)
    np.testing.assert_allclose(np.asarray(out_a), np.asarray(ref_a32), rtol=0.1, atol=0.15)

    # Config B: projected skip (use_1x1conv=True, stride=2, channel change)
    x_b = jax.random.normal(k_x2, (2, 4, 16, 16), jnp.float32)  # NCHW
    block_b = ResBottleNeckPallas(k_p2, input_channels=4, hidden_channels=4,
                                  out_channels=8, use_1x1conv=True, strides=2)
    out_b = jax.block_until_ready(block_b(x_b))
    assert out_b.shape == (2, 8, 8, 8)
    ref_b = reference_forward(block_b, x_b, matmul_dtype=MATMUL_DTYPE)
    np.testing.assert_allclose(np.asarray(out_b), np.asarray(ref_b), rtol=1e-2, atol=1e-2)
    ref_b32 = reference_forward(block_b, x_b, matmul_dtype=jnp.float32)
    np.testing.assert_allclose(np.asarray(out_b), np.asarray(ref_b32), rtol=0.1, atol=0.15)

    print("KERNEL_OK")
</pallas_src>

<mosaic_0001>
module attributes {stable_mosaic.version = 11 : i64} {
  func.func @_bottleneck_kernel(%arg0: memref<2x16x16x128xf32, #tpu.memory_space<vmem>>, %arg1: memref<128x128xbf16, #tpu.memory_space<vmem>>, %arg2: memref<9x128x128xbf16, #tpu.memory_space<vmem>>, %arg3: memref<128x128xbf16, #tpu.memory_space<vmem>>, %arg4: memref<1x128xf32, #tpu.memory_space<vmem>>, %arg5: memref<1x128xf32, #tpu.memory_space<vmem>>, %arg6: memref<1x128xf32, #tpu.memory_space<vmem>>, %arg7: memref<1x128xf32, #tpu.memory_space<vmem>>, %arg8: memref<1x128xf32, #tpu.memory_space<vmem>>, %arg9: memref<1x128xf32, #tpu.memory_space<vmem>>, %arg10: memref<512x128xf32, #tpu.memory_space<vmem>>, %arg11: memref<2x18x24x128xbf16, #tpu.memory_space<vmem>>) attributes {dimension_semantics = [], scalar_prefetch = 0 : i64, scratch_operands = 1 : i64, tpu.core_type = #tpu.core_type<tc>} {
    %c0 = arith.constant 0 : index
    %c0_0 = arith.constant 0 : index
    %c0_1 = arith.constant 0 : index
    %c0_2 = arith.constant 0 : index
    %0 = vector.load %arg0[%c0, %c0_0, %c0_1, %c0_2] : memref<2x16x16x128xf32, #tpu.memory_space<vmem>>, vector<2x16x16x128xf32>
    %1 = vector.shape_cast %0 : vector<2x16x16x128xf32> to vector<512x128xf32>
    %2 = arith.truncf %1 : vector<512x128xf32> to vector<512x128xbf16>
    %c0_3 = arith.constant 0 : index
    %c0_4 = arith.constant 0 : index
    %3 = vector.load %arg1[%c0_3, %c0_4] : memref<128x128xbf16, #tpu.memory_space<vmem>>, vector<128x128xbf16>
    %cst = arith.constant dense<0.000000e+00> : vector<512x128xf32>
    %4 = tpu.matmul %2, %3, %cst {dimension_numbers = #tpu.dot_dimension_numbers<[1], [0], [0], [1], [0, 0, 1, 1], [], []>} : vector<512x128xbf16>, vector<128x128xbf16>, vector<512x128xf32> -> vector<512x128xf32>
    %c0_5 = arith.constant 0 : index
    %c0_6 = arith.constant 0 : index
    %5 = vector.load %arg4[%c0_5, %c0_6] : memref<1x128xf32, #tpu.memory_space<vmem>>, vector<1x128xf32>
    %c0_7 = arith.constant 0 : index
    %c0_8 = arith.constant 0 : index
    %6 = vector.load %arg5[%c0_7, %c0_8] : memref<1x128xf32, #tpu.memory_space<vmem>>, vector<1x128xf32>
    %cst_9 = arith.constant dense<0.000000e+00> : vector<128xf32>
    %7 = vector.multi_reduction <add>, %4, %cst_9 [0] : vector<512x128xf32> to vector<128xf32>
    %8 = vector.shape_cast %7 : vector<128xf32> to vector<1x128xf32>
    %cst_10 = arith.constant 5.120000e+02 : f32
    %9 = vector.broadcast %cst_10 : f32 to vector<1x128xf32>
    %10 = arith.divf %8, %9 : vector<1x128xf32>
    %11 = arith.mulf %4, %4 : vector<512x128xf32>
    %cst_11 = arith.constant dense<0.000000e+00> : vector<128xf32>
    %12 = vector.multi_reduction <add>, %11, %cst_11 [0] : vector<512x128xf32> to vector<128xf32>
    %13 = vector.shape_cast %12 : vector<128xf32> to vector<1x128xf32>
    %cst_12 = arith.constant 5.120000e+02 : f32
    %14 = vector.broadcast %cst_12 : f32 to vector<1x128xf32>
    %15 = arith.divf %13, %14 : vector<1x128xf32>
    %16 = arith.mulf %10, %10 : vector<1x128xf32>
    %17 = arith.subf %15, %16 : vector<1x128xf32>
    %cst_13 = arith.constant 0.000000e+00 : f32
    %18 = vector.broadcast %cst_13 : f32 to vector<1x128xf32>
    %19 = arith.maximumf %17, %18 : vector<1x128xf32>
    %20 = vector.broadcast %10 : vector<1x128xf32> to vector<512x128xf32>
    %21 = arith.subf %4, %20 : vector<512x128xf32>
    %cst_14 = arith.constant 9.99999974E-6 : f32
    %22 = vector.broadcast %cst_14 : f32 to vector<1x128xf32>
    %23 = arith.addf %19, %22 : vector<1x128xf32>
    %24 = math.rsqrt %23 : vector<1x128xf32>
    %25 = vector.broadcast %24 : vector<1x128xf32> to vector<512x128xf32>
    %26 = arith.mulf %21, %25 : vector<512x128xf32>
    %27 = vector.broadcast %5 : vector<1x128xf32> to vector<512x128xf32>
    %28 = arith.mulf %26, %27 : vector<512x128xf32>
    %29 = vector.broadcast %6 : vector<1x128xf32> to vector<512x128xf32>
    %30 = arith.addf %28, %29 : vector<512x128xf32>
    %cst_15 = arith.constant 0.000000e+00 : f32
    %31 = vector.broadcast %cst_15 : f32 to vector<512x128xf32>
    %32 = arith.maximumf %30, %31 : vector<512x128xf32>
    %cst_16 = arith.constant 0.000000e+00 : bf16
    %33 = vector.broadcast %cst_16 : bf16 to vector<2x1x24x128xbf16>
    %c0_17 = arith.constant 0 : index
    %c0_18 = arith.constant 0 : index
    %c0_19 = arith.constant 0 : index
    %c0_20 = arith.constant 0 : index
    %34 = vector.load %arg11[%c0_17, %c0_18, %c0_19, %c0_20] : memref<2x18x24x128xbf16, #tpu.memory_space<vmem>>, vector<2x1x24x128xbf16>
    tpu.vector_store %arg11[%c0_17, %c0_18, %c0_19, %c0_20], %33 {strides = array<i32>} : memref<2x18x24x128xbf16, #tpu.memory_space<vmem>>, vector<2x1x24x128xbf16>,
    %c0_21 = arith.constant 0 : index
    %c17 = arith.constant 17 : index
    %c0_22 = arith.constant 0 : index
    %c0_23 = arith.constant 0 : index
    %35 = vector.load %arg11[%c0_21, %c17, %c0_22, %c0_23] : memref<2x18x24x128xbf16, #tpu.memory_space<vmem>>, vector<2x1x24x128xbf16>
    tpu.vector_store %arg11[%c0_21, %c17, %c0_22, %c0_23], %33 {strides = array<i32>} : memref<2x18x24x128xbf16, #tpu.memory_space<vmem>>, vector<2x1x24x128xbf16>,
    %cst_24 = arith.constant 0.000000e+00 : bf16
    %36 = vector.broadcast %cst_24 : bf16 to vector<2x18x1x128xbf16>
    %c0_25 = arith.constant 0 : index
    %c0_26 = arith.constant 0 : index
    %c0_27 = arith.constant 0 : index
    %c0_28 = arith.constant 0 : index
    %37 = vector.load %arg11[%c0_25, %c0_26, %c0_27, %c0_28] : memref<2x18x24x128xbf16, #tpu.memory_space<vmem>>, vector<2x18x1x128xbf16>
    tpu.vector_store %arg11[%c0_25, %c0_26, %c0_27, %c0_28], %36 {strides = array<i32>} : memref<2x18x24x128xbf16, #tpu.memory_space<vmem>>, vector<2x18x1x128xbf16>,
    %c0_29 = arith.constant 0 : index
    %c0_30 = arith.constant 0 : index
    %c17_31 = arith.constant 17 : index
    %c0_32 = arith.constant 0 : index
    %38 = vector.load %arg11[%c0_29, %c0_30, %c17_31, %c0_32] : memref<2x18x24x128xbf16, #tpu.memory_space<vmem>>, vector<2x18x1x128xbf16>
    tpu.vector_store %arg11[%c0_29, %c0_30, %c17_31, %c0_32], %36 {strides = array<i32>} : memref<2x18x24x128xbf16, #tpu.memory_space<vmem>>, vector<2x18x1x128xbf16>,
    %39 = arith.truncf %32 : vector<512x128xf32> to vector<512x128xbf16>
    %40 = vector.shape_cast %39 : vector<512x128xbf16> to vector<2x16x16x128xbf16>
    %c0_33 = arith.constant 0 : index
    %c1 = arith.constant 1 : index
    %c1_34 = arith.constant 1 : index
    %c0_35 = arith.constant 0 : index
    %41 = vector.load %arg11[%c0_33, %c1, %c1_34, %c0_35] : memref<2x18x24x128xbf16, #tpu.memory_space<vmem>>, vector<2x16x16x128xbf16>
    tpu.vector_store %arg11[%c0_33, %c1, %c1_34, %c0_35], %40 {strides = array<i32>} : memref<2x18x24x128xbf16, #tpu.memory_space<vmem>>, vector<2x16x16x128xbf16>,
    %c0_36 = arith.constant 0 : index
    %c0_37 = arith.constant 0 : index
    %c0_38 = arith.constant 0 : index
    %c0_39 = arith.constant 0 : index
    %42 = vector.load %arg11[%c0_36, %c0_37, %c0_38, %c0_39] : memref<2x18x24x128xbf16, #tpu.memory_space<vmem>>, vector<2x16x16x128xbf16>
    %43 = vector.shape_cast %42 : vector<2x16x16x128xbf16> to vector<512x128xbf16>
    %c0_40 = arith.constant 0 : index
    %c0_41 = arith.constant 0 : index
    %c0_42 = arith.constant 0 : index
    %44 = vector.load %arg2[%c0_40, %c0_41, %c0_42] : memref<9x128x128xbf16, #tpu.memory_space<vmem>>, vector<1x128x128xbf16>
    %45 = vector.shape_cast %44 : vector<1x128x128xbf16> to vector<128x128xbf16>
    %cst_43 = arith.constant dense<0.000000e+00> : vector<512x128xf32>
    %46 = tpu.matmul %43, %45, %cst_43 {dimension_numbers = #tpu.dot_dimension_numbers<[1], [0], [0], [1], [0, 0, 1, 1], [], []>} : vector<512x128xbf16>, vector<128x128xbf16>, vector<512x128xf32> -> vector<512x128xf32>
    %c0_44 = arith.constant 0 : index
    %c0_45 = arith.constant 0 : index
    %c1_46 = arith.constant 1 : index
    %c0_47 = arith.constant 0 : index
    %47 = vector.load %arg11[%c0_44, %c0_45, %c1_46, %c0_47] : memref<2x18x24x128xbf16, #tpu.memory_space<vmem>>, vector<2x16x16x128xbf16>
    %48 = vector.shape_cast %47 : vector<2x16x16x128xbf16> to vector<512x128xbf16>
    %c1_48 = arith.constant 1 : index
    %c0_49 = arith.constant 0 : index
    %c0_50 = arith.constant 0 : index
    %49 = vector.load %arg2[%c1_48, %c0_49, %c0_50] : memref<9x128x128xbf16, #tpu.memory_space<vmem>>, vector<1x128x128xbf16>
    %50 = vector.shape_cast %49 : vector<1x128x128xbf16> to vector<128x128xbf16>
    %cst_51 = arith.constant dense<0.000000e+00> : vector<512x128xf32>
    %51 = tpu.matmul %48, %50, %cst_51 {dimension_numbers = #tpu.dot_dimension_numbers<[1], [0], [0], [1], [0, 0, 1, 1], [], []>} : vector<512x128xbf16>, vector<128x128xbf16>, vector<512x128xf32> -> vector<512x128xf32>
    %52 = arith.addf %46, %51 : vector<512x128xf32>
    %c0_52 = arith.constant 0 : index
    %c0_53 = arith.constant 0 : index
    %c2 = arith.constant 2 : index
    %c0_54 = arith.constant 0 : index
    %53 = vector.load %arg11[%c0_52, %c0_53, %c2, %c0_54] : memref<2x18x24x128xbf16, #tpu.memory_space<vmem>>, vector<2x16x16x128xbf16>
    %54 = vector.shape_cast %53 : vector<2x16x16x128xbf16> to vector<512x128xbf16>
    %c2_55 = arith.constant 2 : index
    %c0_56 = arith.constant 0 : index
    %c0_57 = arith.constant 0 : index
    %55 = vector.load %arg2[%c2_55, %c0_56, %c0_57] : memref<9x128x128xbf16, #tpu.memory_space<vmem>>, vector<1x128x128xbf16>
    %56 = vector.shape_cast %55 : vector<1x128x128xbf16> to vector<128x128xbf16>
    %cst_58 = arith.constant dense<0.000000e+00> : vector<512x128xf32>
    %57 = tpu.matmul %54, %56, %cst_58 {dimension_numbers = #tpu.dot_dimension_numbers<[1], [0], [0], [1], [0, 0, 1, 1], [], []>} : vector<512x128xbf16>, vector<128x128xbf16>, vector<512x128xf32> -> vector<512x128xf32>
    %58 = arith.addf %52, %57 : vector<512x128xf32>
    %c0_59 = arith.constant 0 : index
    %c1_60 = arith.constant 1 : index
    %c0_61 = arith.constant 0 : index
    %c0_62 = arith.constant 0 : index
    %59 = vector.load %arg11[%c0_59, %c1_60, %c0_61, %c0_62] : memref<2x18x24x128xbf16, #tpu.memory_space<vmem>>, vector<2x16x16x128xbf16>
    %60 = vector.shape_cast %59 : vector<2x16x16x128xbf16> to vector<512x128xbf16>
    %c3 = arith.constant 3 : index
    %c0_63 = arith.constant 0 : index
    %c0_64 = arith.constant 0 : index
    %61 = vector.load %arg2[%c3, %c0_63, %c0_64] : memref<9x128x128xbf16, #tpu.memory_space<vmem>>, vector<1x128x128xbf16>
    %62 = vector.shape_cast %61 : vector<1x128x128xbf16> to vector<128x128xbf16>
    %cst_65 = arith.constant dense<0.000000e+00> : vector<512x128xf32>
    %63 = tpu.matmul %60, %62, %cst_65 {dimension_numbers = #tpu.dot_dimension_numbers<[1], [0], [0], [1], [0, 0, 1, 1], [], []>} : vector<512x128xbf16>, vector<128x128xbf16>, vector<512x128xf32> -> vector<512x128xf32>
    %64 = arith.addf %58, %63 : vector<512x128xf32>
    %c0_66 = arith.constant 0 : index
    %c1_67 = arith.constant 1 : index
    %c1_68 = arith.constant 1 : index
    %c0_69 = arith.constant 0 : index
    %65 = vector.load %arg11[%c0_66, %c1_67, %c1_68, %c0_69] : memref<2x18x24x128xbf16, #tpu.memory_space<vmem>>, vector<2x16x16x128xbf16>
    %66 = vector.shape_cast %65 : vector<2x16x16x128xbf16> to vector<512x128xbf16>
    %c4 = arith.constant 4 : index
    %c0_70 = arith.constant 0 : index
    %c0_71 = arith.constant 0 : index
    %67 = vector.load %arg2[%c4, %c0_70, %c0_71] : memref<9x128x128xbf16, #tpu.memory_space<vmem>>, vector<1x128x128xbf16>
    %68 = vector.shape_cast %67 : vector<1x128x128xbf16> to vector<128x128xbf16>
    %cst_72 = arith.constant dense<0.000000e+00> : vector<512x128xf32>
    %69 = tpu.matmul %66, %68, %cst_72 {dimension_numbers = #tpu.dot_dimension_numbers<[1], [0], [0], [1], [0, 0, 1, 1], [], []>} : vector<512x128xbf16>, vector<128x128xbf16>, vector<512x128xf32> -> vector<512x128xf32>
    %70 = arith.addf %64, %69 : vector<512x128xf32>
    %c0_73 = arith.constant 0 : index
    %c1_74 = arith.constant 1 : index
    %c2_75 = arith.constant 2 : index
    %c0_76 = arith.constant 0 : index
    %71 = vector.load %arg11[%c0_73, %c1_74, %c2_75, %c0_76] : memref<2x18x24x128xbf16, #tpu.memory_space<vmem>>, vector<2x16x16x128xbf16>
    %72 = vector.shape_cast %71 : vector<2x16x16x128xbf16> to vector<512x128xbf16>
    %c5 = arith.constant 5 : index
    %c0_77 = arith.constant 0 : index
    %c0_78 = arith.constant 0 : index
    %73 = vector.load %arg2[%c5, %c0_77, %c0_78] : memref<9x128x128xbf16, #tpu.memory_space<vmem>>, vector<1x128x128xbf16>
    %74 = vector.shape_cast %73 : vector<1x128x128xbf16> to vector<128x128xbf16>
    %cst_79 = arith.constant dense<0.000000e+00> : vector<512x128xf32>
    %75 = tpu.matmul %72, %74, %cst_79 {dimension_numbers = #tpu.dot_dimension_numbers<[1], [0], [0], [1], [0, 0, 1, 1], [], []>} : vector<512x128xbf16>, vector<128x128xbf16>, vector<512x128xf32> -> vector<512x128xf32>
    %76 = arith.addf %70, %75 : vector<512x128xf32>
    %c0_80 = arith.constant 0 : index
    %c2_81 = arith.constant 2 : index
    %c0_82 = arith.constant 0 : index
    %c0_83 = arith.constant 0 : index
    %77 = vector.load %arg11[%c0_80, %c2_81, %c0_82, %c0_83] : memref<2x18x24x128xbf16, #tpu.memory_space<vmem>>, vector<2x16x16x128xbf16>
    %78 = vector.shape_cast %77 : vector<2x16x16x128xbf16> to vector<512x128xbf16>
    %c6 = arith.constant 6 : index
    %c0_84 = arith.constant 0 : index
    %c0_85 = arith.constant 0 : index
    %79 = vector.load %arg2[%c6, %c0_84, %c0_85] : memref<9x128x128xbf16, #tpu.memory_space<vmem>>, vector<1x128x128xbf16>
    %80 = vector.shape_cast %79 : vector<1x128x128xbf16> to vector<128x128xbf16>
    %cst_86 = arith.constant dense<0.000000e+00> : vector<512x128xf32>
    %81 = tpu.matmul %78, %80, %cst_86 {dimension_numbers = #tpu.dot_dimension_numbers<[1], [0], [0], [1], [0, 0, 1, 1], [], []>} : vector<512x128xbf16>, vector<128x128xbf16>, vector<512x128xf32> -> vector<512x128xf32>
    %82 = arith.addf %76, %81 : vector<512x128xf32>
    %c0_87 = arith.constant 0 : index
    %c2_88 = arith.constant 2 : index
    %c1_89 = arith.constant 1 : index
    %c0_90 = arith.constant 0 : index
    %83 = vector.load %arg11[%c0_87, %c2_88, %c1_89, %c0_90] : memref<2x18x24x128xbf16, #tpu.memory_space<vmem>>, vector<2x16x16x128xbf16>
    %84 = vector.shape_cast %83 : vector<2x16x16x128xbf16> to vector<512x128xbf16>
    %c7 = arith.constant 7 : index
    %c0_91 = arith.constant 0 : index
    %c0_92 = arith.constant 0 : index
    %85 = vector.load %arg2[%c7, %c0_91, %c0_92] : memref<9x128x128xbf16, #tpu.memory_space<vmem>>, vector<1x128x128xbf16>
    %86 = vector.shape_cast %85 : vector<1x128x128xbf16> to vector<128x128xbf16>
    %cst_93 = arith.constant dense<0.000000e+00> : vector<512x128xf32>
    %87 = tpu.matmul %84, %86, %cst_93 {dimension_numbers = #tpu.dot_dimension_numbers<[1], [0], [0], [1], [0, 0, 1, 1], [], []>} : vector<512x128xbf16>, vector<128x128xbf16>, vector<512x128xf32> -> vector<512x128xf32>
    %88 = arith.addf %82, %87 : vector<512x128xf32>
    %c0_94 = arith.constant 0 : index
    %c2_95 = arith.constant 2 : index
    %c2_96 = arith.constant 2 : index
    %c0_97 = arith.constant 0 : index
    %89 = vector.load %arg11[%c0_94, %c2_95, %c2_96, %c0_97] : memref<2x18x24x128xbf16, #tpu.memory_space<vmem>>, vector<2x16x16x128xbf16>
    %90 = vector.shape_cast %89 : vector<2x16x16x128xbf16> to vector<512x128xbf16>
    %c8 = arith.constant 8 : index
    %c0_98 = arith.constant 0 : index
    %c0_99 = arith.constant 0 : index
    %91 = vector.load %arg2[%c8, %c0_98, %c0_99] : memref<9x128x128xbf16, #tpu.memory_space<vmem>>, vector<1x128x128xbf16>
    %92 = vector.shape_cast %91 : vector<1x128x128xbf16> to vector<128x128xbf16>
    %cst_100 = arith.constant dense<0.000000e+00> : vector<512x128xf32>
    %93 = tpu.matmul %90, %92, %cst_100 {dimension_numbers = #tpu.dot_dimension_numbers<[1], [0], [0], [1], [0, 0, 1, 1], [], []>} : vector<512x128xbf16>, vector<128x128xbf16>, vector<512x128xf32> -> vector<512x128xf32>
    %94 = arith.addf %88, %93 : vector<512x128xf32>
    %c0_101 = arith.constant 0 : index
    %c0_102 = arith.constant 0 : index
    %95 = vector.load %arg6[%c0_101, %c0_102] : memref<1x128xf32, #tpu.memory_space<vmem>>, vector<1x128xf32>
    %c0_103 = arith.constant 0 : index
    %c0_104 = arith.constant 0 : index
    %96 = vector.load %arg7[%c0_103, %c0_104] : memref<1x128xf32, #tpu.memory_space<vmem>>, vector<1x128xf32>
    %cst_105 = arith.constant dense<0.000000e+00> : vector<128xf32>
    %97 = vector.multi_reduction <add>, %94, %cst_105 [0] : vector<512x128xf32> to vector<128xf32>
    %98 = vector.shape_cast %97 : vector<128xf32> to vector<1x128xf32>
    %cst_106 = arith.constant 5.120000e+02 : f32
    %99 = vector.broadcast %cst_106 : f32 to vector<1x128xf32>
    %100 = arith.divf %98, %99 : vector<1x128xf32>
    %101 = arith.mulf %94, %94 : vector<512x128xf32>
    %cst_107 = arith.constant dense<0.000000e+00> : vector<128xf32>
    %102 = vector.multi_reduction <add>, %101, %cst_107 [0] : vector<512x128xf32> to vector<128xf32>
    %103 = vector.shape_cast %102 : vector<128xf32> to vector<1x128xf32>
    %cst_108 = arith.constant 5.120000e+02 : f32
    %104 = vector.broadcast %cst_108 : f32 to vector<1x128xf32>
    %105 = arith.divf %103, %104 : vector<1x128xf32>
    %106 = arith.mulf %100, %100 : vector<1x128xf32>
    %107 = arith.subf %105, %106 : vector<1x128xf32>
    %cst_109 = arith.constant 0.000000e+00 : f32
    %108 = vector.broadcast %cst_109 : f32 to vector<1x128xf32>
    %109 = arith.maximumf %107, %108 : vector<1x128xf32>
    %110 = vector.broadcast %100 : vector<1x128xf32> to vector<512x128xf32>
    %111 = arith.subf %94, %110 : vector<512x128xf32>
    %cst_110 = arith.constant 9.99999974E-6 : f32
    %112 = vector.broadcast %cst_110 : f32 to vector<1x128xf32>
    %113 = arith.addf %109, %112 : vector<1x128xf32>
    %114 = math.rsqrt %113 : vector<1x128xf32>
    %115 = vector.broadcast %114 : vector<1x128xf32> to vector<512x128xf32>
    %116 = arith.mulf %111, %115 : vector<512x128xf32>
    %117 = vector.broadcast %95 : vector<1x128xf32> to vector<512x128xf32>
    %118 = arith.mulf %116, %117 : vector<512x128xf32>
    %119 = vector.broadcast %96 : vector<1x128xf32> to vector<512x128xf32>
    %120 = arith.addf %118, %119 : vector<512x128xf32>
    %cst_111 = arith.constant 0.000000e+00 : f32
    %121 = vector.broadcast %cst_111 : f32 to vector<512x128xf32>
    %122 = arith.maximumf %120, %121 : vector<512x128xf32>
    %123 = arith.truncf %122 : vector<512x128xf32> to vector<512x128xbf16>
    %c0_112 = arith.constant 0 : index
    %c0_113 = arith.constant 0 : index
    %124 = vector.load %arg3[%c0_112, %c0_113] : memref<128x128xbf16, #tpu.memory_space<vmem>>, vector<128x128xbf16>
    %cst_114 = arith.constant dense<0.000000e+00> : vector<512x128xf32>
    %125 = tpu.matmul %123, %124, %cst_114 {dimension_numbers = #tpu.dot_dimension_numbers<[1], [0], [0], [1], [0, 0, 1, 1], [], []>} : vector<512x128xbf16>, vector<128x128xbf16>, vector<512x128xf32> -> vector<512x128xf32>
    %c0_115 = arith.constant 0 : index
    %c0_116 = arith.constant 0 : index
    %126 = vector.load %arg8[%c0_115, %c0_116] : memref<1x128xf32, #tpu.memory_space<vmem>>, vector<1x128xf32>
    %c0_117 = arith.constant 0 : index
    %c0_118 = arith.constant 0 : index
    %127 = vector.load %arg9[%c0_117, %c0_118] : memref<1x128xf32, #tpu.memory_space<vmem>>, vector<1x128xf32>
    %cst_119 = arith.constant dense<0.000000e+00> : vector<128xf32>
    %128 = vector.multi_reduction <add>, %125, %cst_119 [0] : vector<512x128xf32> to vector<128xf32>
    %129 = vector.shape_cast %128 : vector<128xf32> to vector<1x128xf32>
    %cst_120 = arith.constant 5.120000e+02 : f32
    %130 = vector.broadcast %cst_120 : f32 to vector<1x128xf32>
    %131 = arith.divf %129, %130 : vector<1x128xf32>
    %132 = arith.mulf %125, %125 : vector<512x128xf32>
    %cst_121 = arith.constant dense<0.000000e+00> : vector<128xf32>
    %133 = vector.multi_reduction <add>, %132, %cst_121 [0] : vector<512x128xf32> to vector<128xf32>
    %134 = vector.shape_cast %133 : vector<128xf32> to vector<1x128xf32>
    %cst_122 = arith.constant 5.120000e+02 : f32
    %135 = vector.broadcast %cst_122 : f32 to vector<1x128xf32>
    %136 = arith.divf %134, %135 : vector<1x128xf32>
    %137 = arith.mulf %131, %131 : vector<1x128xf32>
    %138 = arith.subf %136, %137 : vector<1x128xf32>
    %cst_123 = arith.constant 0.000000e+00 : f32
    %139 = vector.broadcast %cst_123 : f32 to vector<1x128xf32>
    %140 = arith.maximumf %138, %139 : vector<1x128xf32>
    %141 = vector.broadcast %131 : vector<1x128xf32> to vector<512x128xf32>
    %142 = arith.subf %125, %141 : vector<512x128xf32>
    %cst_124 = arith.constant 9.99999974E-6 : f32
    %143 = vector.broadcast %cst_124 : f32 to vector<1x128xf32>
    %144 = arith.addf %140, %143 : vector<1x128xf32>
    %145 = math.rsqrt %144 : vector<1x128xf32>
    %146 = vector.broadcast %145 : vector<1x128xf32> to vector<512x128xf32>
    %147 = arith.mulf %142, %146 : vector<512x128xf32>
    %148 = vector.broadcast %126 : vector<1x128xf32> to vector<512x128xf32>
    %149 = arith.mulf %147, %148 : vector<512x128xf32>
    %150 = vector.broadcast %127 : vector<1x128xf32> to vector<512x128xf32>
    %151 = arith.addf %149, %150 : vector<512x128xf32>
    %152 = vector.shape_cast %0 : vector<2x16x16x128xf32> to vector<512x128xf32>
    %153 = arith.addf %151, %152 : vector<512x128xf32>
    %cst_125 = arith.constant 0.000000e+00 : f32
    %154 = vector.broadcast %cst_125 : f32 to vector<512x128xf32>
    %155 = arith.maximumf %153, %154 : vector<512x128xf32>
    %c0_126 = arith.constant 0 : index
    %c0_127 = arith.constant 0 : index
    %156 = vector.load %arg10[%c0_126, %c0_127] : memref<512x128xf32, #tpu.memory_space<vmem>>, vector<512x128xf32>
    tpu.vector_store %arg10[%c0_126, %c0_127], %155 {strides = array<i32>} : memref<512x128xf32, #tpu.memory_space<vmem>>, vector<512x128xf32>,
    return
  }
}

</mosaic_0001>

<llo_original>
// kernel: tpu_custom_call.1
$region0: #{tpu_custom_call.1}
  #allocation0 [shape = 'u32[]', space=smem, size = 0x4, offset = 0x4, fixed_abs, tag = 'smem constant byte address 0x4 - core index']
  #allocation1 [shape = 'u32[72,128]{1,0:T(1,128)}', space=vmem, size = 0x9000, scoped, tag = 'internal scratch']
  #allocation2 [shape = 'bf16[2,18,24,128]{3,2,1,0:T(8,128)(2,1)}', space=vmem, size = 0x36000, scoped, tag = 'scratch operand']
  %s0 = inlined_call_operand.hbm [shape: f32[2,16,16,128], index: 0, kind: input, shape index: {}]
  %s1 = inlined_call_operand.hbm [shape: bf16[128,128], index: 1, kind: input, shape index: {}]
  %s2 = inlined_call_operand.hbm [shape: bf16[9,128,128], index: 2, kind: input, shape index: {}]
  %s3 = inlined_call_operand.hbm [shape: bf16[128,128], index: 3, kind: input, shape index: {}]
  %s4 = inlined_call_operand.vmem [shape: f32[1,128], index: 4, kind: input, shape index: {}]
  %s5 = inlined_call_operand.vmem [shape: f32[1,128], index: 5, kind: input, shape index: {}]
  %s6 = inlined_call_operand.vmem [shape: f32[1,128], index: 6, kind: input, shape index: {}]
  %s7 = inlined_call_operand.vmem [shape: f32[1,128], index: 7, kind: input, shape index: {}]
  %s8 = inlined_call_operand.vmem [shape: f32[1,128], index: 8, kind: input, shape index: {}]
  %s9 = inlined_call_operand.vmem [shape: f32[1,128], index: 9, kind: input, shape index: {}]
  %s10 = inlined_call_operand.hbm [shape: f32[512,128], index: 10, kind: output, shape index: {}]
  %s11 = sld [smem:[#allocation0]]
  $region66: #{tpu_custom_call.1} parent=0
    _
  %s13 = ssub.s32 1, %s11
  %s14 = scalar_select 0, %s13, %s11
  $region1: #{tpu_custom_call.1} parent=0
    #allocation3 [shape = 'u8[262144]{0}', space=vmem, size = 0x40000, scoped, tag = 'input window, operand 0, single buffered']
    #allocation4 [shape = 's32[1]{0}', space=sflag, size = 0x4, scoped, tag = 'scoped memory for tpu_custom_call.1']
    #allocation5 [shape = 's32[1]{0}', space=sflag, size = 0x4, scoped, tag = 'scoped memory for tpu_custom_call.1']
    #allocation6 [shape = 'u8[32768]{0}', space=vmem, size = 0x8000, scoped, tag = 'input window, operand 1, single buffered']
    #allocation7 [shape = 's32[1]{0}', space=sflag, size = 0x4, scoped, tag = 'scoped memory for tpu_custom_call.1']
    #allocation8 [shape = 'u8[294912]{0}', space=vmem, size = 0x48000, scoped, tag = 'input window, operand 2, single buffered']
    #allocation9 [shape = 'u8[32768]{0}', space=vmem, size = 0x8000, scoped, tag = 'input window, operand 3, single buffered']
    #allocation10 [shape = 's32[1]{0}', space=sflag, size = 0x4, scoped, tag = 'scoped memory for tpu_custom_call.1']
    #allocation11 [shape = 'u8[262144]{0}', space=vmem, size = 0x40000, scoped, tag = 'output window, operand 0, single buffered']
    %15 = vsyncpa [#allocation4], 0
    %16 = vsyncpa [#allocation7], 0
    %17 = vsyncpa [#allocation10], 0
    %18 = vsyncpa [#allocation5], 0
    // Predicated region
    $region2: #{tpu_custom_call.1} parent=1 // pred_check
      _
    $region3: #{tpu_custom_call.1} parent=1 // pred_check_branch
      %20 = sbr.rel (0) target = $region5
    $region4: #{tpu_custom_call.1} parent=1 // pred_region
      %22 = vsyncadd [#allocation4], 0
      %s23 = sshll.u32 %s0, 4
      %s24 = int_to_ptr.hbm [resolvable:$true] %s23
      %s25 = sshll.u32 [#allocation3], 4
      %s26 = int_to_ptr.vmem [resolvable:$true] %s25
      %31 = dma.hbm_to_vmem [thread:$0]  %s24, 8192, %s26, [#allocation4], 128, 128, 8
    $region5: #{tpu_custom_call.1} parent=1 // pred_fallthru
      _
    // Predicated region
    $region6: #{tpu_custom_call.1} parent=1 // pred_check
      _
    $region7: #{tpu_custom_call.1} parent=1 // pred_check_branch
      %33 = sbr.rel (0) target = $region9
    $region8: #{tpu_custom_call.1} parent=1 // pred_region
      %35 = vsyncadd [#allocation7], 0
      %s36 = sshll.u32 %s1, 4
      %s37 = int_to_ptr.hbm [resolvable:$true] %s36
      %s38 = sshll.u32 [#allocation6], 4
      %s39 = int_to_ptr.vmem [resolvable:$true] %s38
      %44 = dma.hbm_to_vmem [thread:$0]  %s37, 1024, %s39, [#allocation7], 64, 64, 4
    $region9: #{tpu_custom_call.1} parent=1 // pred_fallthru
      _
    // Predicated region
    $region10: #{tpu_custom_call.1} parent=1 // pred_check
      _
    $region11: #{tpu_custom_call.1} parent=1 // pred_check_branch
      %46 = sbr.rel (0) target = $region13
    $region12: #{tpu_custom_call.1} parent=1 // pred_region
      %48 = vsyncadd [#allocation7], 0
      %s49 = sshll.u32 %s2, 4
      %s50 = int_to_ptr.hbm [resolvable:$true] %s49
      %s51 = sshll.u32 [#allocation8], 4
      %s52 = int_to_ptr.vmem [resolvable:$true] %s51
      %57 = dma.hbm_to_vmem [thread:$0]  %s50, 9216, %s52, [#allocation7], 64, 64, 4
    $region13: #{tpu_custom_call.1} parent=1 // pred_fallthru
      _
    // Predicated region
    $region14: #{tpu_custom_call.1} parent=1 // pred_check
      _
    $region15: #{tpu_custom_call.1} parent=1 // pred_check_branch
      %59 = sbr.rel (0) target = $region17
    $region16: #{tpu_custom_call.1} parent=1 // pred_region
      %61 = vsyncadd [#allocation10], 0
      %s62 = sshll.u32 %s3, 4
      %s63 = int_to_ptr.hbm [resolvable:$true] %s62
      %s64 = sshll.u32 [#allocation9], 4
      %s65 = int_to_ptr.vmem [resolvable:$true] %s64
      %70 = dma.hbm_to_vmem [thread:$0]  %s63, 1024, %s65, [#allocation10], 64, 64, 4
    $region17: #{tpu_custom_call.1} parent=1 // pred_fallthru
      _
    // Predicated region
    $region18: #{tpu_custom_call.1} parent=1 // pred_check
      _
    $region19: #{tpu_custom_call.1} parent=1 // pred_check_branch
      %72 = sbr.rel (0) target = $region21
    $region20: #{tpu_custom_call.1} parent=1 // pred_region
      _
    $region21: #{tpu_custom_call.1} parent=1 // pred_fallthru
      _
    // Predicated region
    $region22: #{tpu_custom_call.1} parent=1 // pred_check
      _
    $region23: #{tpu_custom_call.1} parent=1 // pred_check_branch
      %74 = sbr.rel (0) target = $region25
    $region24: #{tpu_custom_call.1} parent=1 // pred_region
      _
    $region25: #{tpu_custom_call.1} parent=1 // pred_fallthru
      _
    // Predicated region
    $region26: #{tpu_custom_call.1} parent=1 // pred_check
      _
    $region27: #{tpu_custom_call.1} parent=1 // pred_check_branch
      %76 = sbr.rel (0) target = $region29
    $region28: #{tpu_custom_call.1} parent=1 // pred_region
      _
    $region29: #{tpu_custom_call.1} parent=1 // pred_fallthru
      _
    // Predicated region
    $region30: #{tpu_custom_call.1} parent=1 // pred_check
      _
    $region31: #{tpu_custom_call.1} parent=1 // pred_check_branch
      %78 = sbr.rel (0) target = $region33
    $region32: #{tpu_custom_call.1} parent=1 // pred_region
      _
    $region33: #{tpu_custom_call.1} parent=1 // pred_fallthru
      _
    // Predicated region
    $region34: #{tpu_custom_call.1} parent=1 // pred_check
      _
    $region35: #{tpu_custom_call.1} parent=1 // pred_check_branch
      %80 = sbr.rel (0) target = $region37
    $region36: #{tpu_custom_call.1} parent=1 // pred_region
      _
    $region37: #{tpu_custom_call.1} parent=1 // pred_fallthru
      _
    // Predicated region
    $region38: #{tpu_custom_call.1} parent=1 // pred_check
      _
    $region39: #{tpu_custom_call.1} parent=1 // pred_check_branch
      %82 = sbr.rel (0) target = $region41
    $region40: #{tpu_custom_call.1} parent=1 // pred_region
      _
    $region41: #{tpu_custom_call.1} parent=1 // pred_fallthru
      _
    // Predicated region
    $region42: #{tpu_custom_call.1} parent=1 // pred_check
      _
    $region43: #{tpu_custom_call.1} parent=1 // pred_check_branch
      %84 = sbr.rel (0) target = $region45
    $region44: #{tpu_custom_call.1} parent=1 // pred_region
      %86 = dma.done [#allocation4], 8192
    $region45: #{tpu_custom_call.1} parent=1 // pred_fallthru
      _
    // Predicated region
    $region46: #{tpu_custom_call.1} parent=1 // pred_check
      _
    $region47: #{tpu_custom_call.1} parent=1 // pred_check_branch
      %88 = sbr.rel (0) target = $region49
    $region48: #{tpu_custom_call.1} parent=1 // pred_region
      %90 = dma.done [#allocation7], 1024
    $region49: #{tpu_custom_call.1} parent=1 // pred_fallthru
      _
    // Predicated region
    $region50: #{tpu_custom_call.1} parent=1 // pred_check
      _
    $region51: #{tpu_custom_call.1} parent=1 // pred_check_branch
      %92 = sbr.rel (0) target = $region53
    $region52: #{tpu_custom_call.1} parent=1 // pred_region
      %94 = dma.done [#allocation7], 9216
    $region53: #{tpu_custom_call.1} parent=1 // pred_fallthru
      _
    // Predicated region
    $region54: #{tpu_custom_call.1} parent=1 // pred_check
      _
    $region55: #{tpu_custom_call.1} parent=1 // pred_check_branch
      %96 = sbr.rel (0) target = $region57
    $region56: #{tpu_custom_call.1} parent=1 // pred_region
      %98 = dma.done [#allocation10], 1024
    $region57: #{tpu_custom_call.1} parent=1 // pred_fallthru
      _
    %v100 = vld [vmem:[#allocation3] sm:$0xff]
    %v101 = vld [vmem:[#allocation3 + $0x8] sm:$0xff]
    %v102 = vld [vmem:[#allocation3 + $0x10] sm:$0xff]
    %v103 = vld [vmem:[#allocation3 + $0x18] sm:$0xff]
    %v104 = vld [vmem:[#allocation3 + $0x20] sm:$0xff]
    %v105 = vld [vmem:[#allocation3 + $0x28] sm:$0xff]
    %v106 = vld [vmem:[#allocation3 + $0x30] sm:$0xff]
    %v107 = vld [vmem:[#allocation3 + $0x38] sm:$0xff]
    %v108 = vld [vmem:[#allocation3 + $0x40] sm:$0xff]
    %v109 = vld [vmem:[#allocation3 + $0x48] sm:$0xff]
    %v110 = vld [vmem:[#allocation3 + $0x50] sm:$0xff]
    %v111 = vld [vmem:[#allocation3 + $0x58] sm:$0xff]
    %v112 = vld [vmem:[#allocation3 + $0x60] sm:$0xff]
    %v113 = vld [vmem:[#allocation3 + $0x68] sm:$0xff]
    %v114 = vld [vmem:[#allocation3 + $0x70] sm:$0xff]
    %v115 = vld [vmem:[#allocation3 + $0x78] sm:$0xff]
    %v116 = vld [vmem:[#allocation3 + $0x80] sm:$0xff]
    %v117 = vld [vmem:[#allocation3 + $0x88] sm:$0xff]
    %v118 = vld [vmem:[#allocation3 + $0x90] sm:$0xff]
    %v119 = vld [vmem:[#allocation3 + $0x98] sm:$0xff]
    %v120 = vld [vmem:[#allocation3 + $0xa0] sm:$0xff]
    %v121 = vld [vmem:[#allocation3 + $0xa8] sm:$0xff]
    %v122 = vld [vmem:[#allocation3 + $0xb0] sm:$0xff]
    %v123 = vld [vmem:[#allocation3 + $0xb8] sm:$0xff]
    %v124 = vld [vmem:[#allocation3 + $0xc0] sm:$0xff]
    %v125 = vld [vmem:[#allocation3 + $0xc8] sm:$0xff]
    %v126 = vld [vmem:[#allocation3 + $0xd0] sm:$0xff]
    %v127 = vld [vmem:[#allocation3 + $0xd8] sm:$0xff]
    %v128 = vld [vmem:[#allocation3 + $0xe0] sm:$0xff]
    %v129 = vld [vmem:[#allocation3 + $0xe8] sm:$0xff]
    %v130 = vld [vmem:[#allocation3 + $0xf0] sm:$0xff]
    %v131 = vld [vmem:[#allocation3 + $0xf8] sm:$0xff]
    %v132 = vld [vmem:[#allocation3 + $0x100] sm:$0xff]
    %v133 = vld [vmem:[#allocation3 + $0x108] sm:$0xff]
    %v134 = vld [vmem:[#allocation3 + $0x110] sm:$0xff]
    %v135 = vld [vmem:[#allocation3 + $0x118] sm:$0xff]
    %v136 = vld [vmem:[#allocation3 + $0x120] sm:$0xff]
    %v137 = vld [vmem:[#allocation3 + $0x128] sm:$0xff]
    %v138 = vld [vmem:[#allocation3 + $0x130] sm:$0xff]
    %v139 = vld [vmem:[#allocation3 + $0x138] sm:$0xff]
    %v140 = vld [vmem:[#allocation3 + $0x140] sm:$0xff]
    %v141 = vld [vmem:[#allocation3 + $0x148] sm:$0xff]
    %v142 = vld [vmem:[#allocation3 + $0x150] sm:$0xff]
    %v143 = vld [vmem:[#allocation3 + $0x158] sm:$0xff]
    %v144 = vld [vmem:[#allocation3 + $0x160] sm:$0xff]
    %v145 = vld [vmem:[#allocation3 + $0x168] sm:$0xff]
    %v146 = vld [vmem:[#allocation3 + $0x170] sm:$0xff]
    %v147 = vld [vmem:[#allocation3 + $0x178] sm:$0xff]
    %v148 = vld [vmem:[#allocation3 + $0x180] sm:$0xff]
    %v149 = vld [vmem:[#allocation3 + $0x188] sm:$0xff]
    %v150 = vld [vmem:[#allocation3 + $0x190] sm:$0xff]
    %v151 = vld [vmem:[#allocation3 + $0x198] sm:$0xff]
    %v152 = vld [vmem:[#allocation3 + $0x1a0] sm:$0xff]
    %v153 = vld [vmem:[#allocation3 + $0x1a8] sm:$0xff]
    %v154 = vld [vmem:[#allocation3 + $0x1b0] sm:$0xff]
    %v155 = vld [vmem:[#allocation3 + $0x1b8] sm:$0xff]
    %v156 = vld [vmem:[#allocation3 + $0x1c0] sm:$0xff]
    %v157 = vld [vmem:[#allocation3 + $0x1c8] sm:$0xff]
    %v158 = vld [vmem:[#allocation3 + $0x1d0] sm:$0xff]
    %v159 = vld [vmem:[#allocation3 + $0x1d8] sm:$0xff]
    %v160 = vld [vmem:[#allocation3 + $0x1e0] sm:$0xff]
    %v161 = vld [vmem:[#allocation3 + $0x1e8] sm:$0xff]
    %v162 = vld [vmem:[#allocation3 + $0x1f0] sm:$0xff]
    %v163 = vld [vmem:[#allocation3 + $0x1f8] sm:$0xff]
    %v164 = vpack.c.bf16 %v101, %v100
    %v165 = vpack.c.bf16 %v103, %v102
    %v166 = vpack.c.bf16 %v105, %v104
    %v167 = vpack.c.bf16 %v107, %v106
    %v168 = vpack.c.bf16 %v109, %v108
    %v169 = vpack.c.bf16 %v111, %v110
    %v170 = vpack.c.bf16 %v113, %v112
    %v171 = vpack.c.bf16 %v115, %v114
    %v172 = vpack.c.bf16 %v117, %v116
    %v173 = vpack.c.bf16 %v119, %v118
    %v174 = vpack.c.bf16 %v121, %v120
    %v175 = vpack.c.bf16 %v123, %v122
    %v176 = vpack.c.bf16 %v125, %v124
    %v177 = vpack.c.bf16 %v127, %v126
    %v178 = vpack.c.bf16 %v129, %v128
    %v179 = vpack.c.bf16 %v131, %v130
    %v180 = vpack.c.bf16 %v133, %v132
    %v181 = vpack.c.bf16 %v135, %v134
    %v182 = vpack.c.bf16 %v137, %v136
    %v183 = vpack.c.bf16 %v139, %v138
    %v184 = vpack.c.bf16 %v141, %v140
    %v185 = vpack.c.bf16 %v143, %v142
    %v186 = vpack.c.bf16 %v145, %v144
    %v187 = vpack.c.bf16 %v147, %v146
    %v188 = vpack.c.bf16 %v149, %v148
    %v189 = vpack.c.bf16 %v151, %v150
    %v190 = vpack.c.bf16 %v153, %v152
    %v191 = vpack.c.bf16 %v155, %v154
    %v192 = vpack.c.bf16 %v157, %v156
    %v193 = vpack.c.bf16 %v159, %v158
    %v194 = vpack.c.bf16 %v161, %v160
    %v195 = vpack.c.bf16 %v163, %v162
    %v196 = vld [vmem:[#allocation6] sm:$0xf]
    %v197 = vld [vmem:[#allocation6 + $0x4] sm:$0xf]
    %v198 = vld [vmem:[#allocation6 + $0x8] sm:$0xf]
    %v199 = vld [vmem:[#allocation6 + $0xc] sm:$0xf]
    %v200 = vld [vmem:[#allocation6 + $0x10] sm:$0xf]
    %v201 = vld [vmem:[#allocation6 + $0x14] sm:$0xf]
    %v202 = vld [vmem:[#allocation6 + $0x18] sm:$0xf]
    %v203 = vld [vmem:[#allocation6 + $0x1c] sm:$0xf]
    %v204 = vld [vmem:[#allocation6 + $0x20] sm:$0xf]
    %v205 = vld [vmem:[#allocation6 + $0x24] sm:$0xf]
    %v206 = vld [vmem:[#allocation6 + $0x28] sm:$0xf]
    %v207 = vld [vmem:[#allocation6 + $0x2c] sm:$0xf]
    %v208 = vld [vmem:[#allocation6 + $0x30] sm:$0xf]
    %v209 = vld [vmem:[#allocation6 + $0x34] sm:$0xf]
    %v210 = vld [vmem:[#allocation6 + $0x38] sm:$0xf]
    %v211 = vld [vmem:[#allocation6 + $0x3c] sm:$0xf]
    %v228 = vunpack.c.l.b16 %v196
    %v229 = vunpack.c.l.b16 %v197
    %v230 = vunpack.c.l.b16 %v198
    %v231 = vunpack.c.l.b16 %v199
    %v232 = vunpack.c.l.b16 %v200
    %v233 = vunpack.c.l.b16 %v201
    %v234 = vunpack.c.l.b16 %v202
    %v235 = vunpack.c.l.b16 %v203
    %v236 = vunpack.c.l.b16 %v204
    %v237 = vunpack.c.l.b16 %v205
    %v238 = vunpack.c.l.b16 %v206
    %v239 = vunpack.c.l.b16 %v207
    %v240 = vunpack.c.l.b16 %v208
    %v241 = vunpack.c.l.b16 %v209
    %v242 = vunpack.c.l.b16 %v210
    %v243 = vunpack.c.l.b16 %v211
    %v244 = vpack.c.b16 %v229, %v228
    %v245 = vpack.c.b16 %v231, %v230
    %v246 = vpack.c.b16 %v233, %v232
    %v247 = vpack.c.b16 %v235, %v234
    %v248 = vpack.c.b16 %v237, %v236
    %v249 = vpack.c.b16 %v239, %v238
    %v250 = vpack.c.b16 %v241, %v240
    %v251 = vpack.c.b16 %v243, %v242
    %260 = vmatpush.bf16.msra.mxu0 %v251
    %261 = vmatpush.bf16.msra.mxu0 %v250
    %262 = vmatpush.bf16.msra.mxu0 %v249
    %263 = vmatpush.bf16.msra.mxu0 %v248
    %264 = vmatpush.bf16.msra.mxu0 %v247
    %265 = vmatpush.bf16.msra.mxu0 %v246
    %266 = vmatpush.bf16.msra.mxu0 %v245
    %267 = vmatpush.bf16.msra.mxu0 %v244
    %268 = vmatmul.bf16.gmra.mxu0 %v164
    %v269 = vpop.f32.mrf.mxu0
    %v270 = vadd.f32 0.0, %v269
    %v271 = vpop.f32.mrf.mxu0
    %v272 = vadd.f32 0.0, %v271
    %273 = vmatmul.bf16.gmra.mxu0 %v165
    %v274 = vpop.f32.mrf.mxu0
    %v275 = vadd.f32 0.0, %v274
    %v276 = vpop.f32.mrf.mxu0
    %v277 = vadd.f32 0.0, %v276
    %278 = vmatmul.bf16.gmra.mxu0 %v166
    %v279 = vpop.f32.mrf.mxu0
    %v280 = vadd.f32 0.0, %v279
    %v281 = vpop.f32.mrf.mxu0
    %v282 = vadd.f32 0.0, %v281
    %283 = vmatmul.bf16.gmra.mxu0 %v167
    %v284 = vpop.f32.mrf.mxu0
    %v285 = vadd.f32 0.0, %v284
    %v286 = vpop.f32.mrf.mxu0
    %v287 = vadd.f32 0.0, %v286
    %288 = vmatmul.bf16.gmra.mxu0 %v168
    %v289 = vpop.f32.mrf.mxu0
    %v290 = vadd.f32 0.0, %v289
    %v291 = vpop.f32.mrf.mxu0
    %v292 = vadd.f32 0.0, %v291
    %293 = vmatmul.bf16.gmra.mxu0 %v169
    %v294 = vpop.f32.mrf.mxu0
    %v295 = vadd.f32 0.0, %v294
    %v296 = vpop.f32.mrf.mxu0
    %v297 = vadd.f32 0.0, %v296
    %298 = vmatmul.bf16.gmra.mxu0 %v170
    %v299 = vpop.f32.mrf.mxu0
    %v300 = vadd.f32 0.0, %v299
    %v301 = vpop.f32.mrf.mxu0
    %v302 = vadd.f32 0.0, %v301
    %303 = vmatmul.bf16.gmra.mxu0 %v171
    %v304 = vpop.f32.mrf.mxu0
    %v305 = vadd.f32 0.0, %v304
    %v306 = vpop.f32.mrf.mxu0
    %v307 = vadd.f32 0.0, %v306
    %308 = vmatmul.bf16.gmra.mxu0 %v172
    %v309 = vpop.f32.mrf.mxu0
    %v310 = vadd.f32 0.0, %v309
    %v311 = vpop.f32.mrf.mxu0
    %v312 = vadd.f32 0.0, %v311
    %313 = vmatmul.bf16.gmra.mxu0 %v173
    %v314 = vpop.f32.mrf.mxu0
    %v315 = vadd.f32 0.0, %v314
    %v316 = vpop.f32.mrf.mxu0
    %v317 = vadd.f32 0.0, %v316
    %318 = vmatmul.bf16.gmra.mxu0 %v174
    %v319 = vpop.f32.mrf.mxu0
    %v320 = vadd.f32 0.0, %v319
    %v321 = vpop.f32.mrf.mxu0
    %v322 = vadd.f32 0.0, %v321
    %323 = vmatmul.bf16.gmra.mxu0 %v175
    %v324 = vpop.f32.mrf.mxu0
    %v325 = vadd.f32 0.0, %v324
    %v326 = vpop.f32.mrf.mxu0
    %v327 = vadd.f32 0.0, %v326
    %328 = vmatmul.bf16.gmra.mxu0 %v176
    %v329 = vpop.f32.mrf.mxu0
    %v330 = vadd.f32 0.0, %v329
    %v331 = vpop.f32.mrf.mxu0
    %v332 = vadd.f32 0.0, %v331
    %333 = vmatmul.bf16.gmra.mxu0 %v177
    %v334 = vpop.f32.mrf.mxu0
    %v335 = vadd.f32 0.0, %v334
    %v336 = vpop.f32.mrf.mxu0
    %v337 = vadd.f32 0.0, %v336
    %338 = vmatmul.bf16.gmra.mxu0 %v178
    %v339 = vpop.f32.mrf.mxu0
    %v340 = vadd.f32 0.0, %v339
    %v341 = vpop.f32.mrf.mxu0
    %v342 = vadd.f32 0.0, %v341
    %343 = vmatmul.bf16.gmra.mxu0 %v179
    %v344 = vpop.f32.mrf.mxu0
    %v345 = vadd.f32 0.0, %v344
    %v346 = vpop.f32.mrf.mxu0
    %v347 = vadd.f32 0.0, %v346
    %348 = vmatmul.bf16.gmra.mxu0 %v180
    %v349 = vpop.f32.mrf.mxu0
    %v350 = vadd.f32 0.0, %v349
    %v351 = vpop.f32.mrf.mxu0
    %v352 = vadd.f32 0.0, %v351
    %353 = vmatmul.bf16.gmra.mxu0 %v181
    %v354 = vpop.f32.mrf.mxu0
    %v355 = vadd.f32 0.0, %v354
    %v356 = vpop.f32.mrf.mxu0
    %v357 = vadd.f32 0.0, %v356
    %358 = vmatmul.bf16.gmra.mxu0 %v182
    %v359 = vpop.f32.mrf.mxu0
    %v360 = vadd.f32 0.0, %v359
    %v361 = vpop.f32.mrf.mxu0
    %v362 = vadd.f32 0.0, %v361
    %363 = vmatmul.bf16.gmra.mxu0 %v183
    %v364 = vpop.f32.mrf.mxu0
    %v365 = vadd.f32 0.0, %v364
    %v366 = vpop.f32.mrf.mxu0
    %v367 = vadd.f32 0.0, %v366
    %368 = vmatmul.bf16.gmra.mxu0 %v184
    %v369 = vpop.f32.mrf.mxu0
    %v370 = vadd.f32 0.0, %v369
    %v371 = vpop.f32.mrf.mxu0
    %v372 = vadd.f32 0.0, %v371
    %373 = vmatmul.bf16.gmra.mxu0 %v185
    %v374 = vpop.f32.mrf.mxu0
    %v375 = vadd.f32 0.0, %v374
    %v376 = vpop.f32.mrf.mxu0
    %v377 = vadd.f32 0.0, %v376
    %378 = vmatmul.bf16.gmra.mxu0 %v186
    %v379 = vpop.f32.mrf.mxu0
    %v380 = vadd.f32 0.0, %v379
    %v381 = vpop.f32.mrf.mxu0
    %v382 = vadd.f32 0.0, %v381
    %383 = vmatmul.bf16.gmra.mxu0 %v187
    %v384 = vpop.f32.mrf.mxu0
    %v385 = vadd.f32 0.0, %v384
    %v386 = vpop.f32.mrf.mxu0
    %v387 = vadd.f32 0.0, %v386
    %388 = vmatmul.bf16.gmra.mxu0 %v188
    %v389 = vpop.f32.mrf.mxu0
    %v390 = vadd.f32 0.0, %v389
    %v391 = vpop.f32.mrf.mxu0
    %v392 = vadd.f32 0.0, %v391
    %393 = vmatmul.bf16.gmra.mxu0 %v189
    %v394 = vpop.f32.mrf.mxu0
    %v395 = vadd.f32 0.0, %v394
    %v396 = vpop.f32.mrf.mxu0
    %v397 = vadd.f32 0.0, %v396
    %398 = vmatmul.bf16.gmra.mxu0 %v190
    %v399 = vpop.f32.mrf.mxu0
    %v400 = vadd.f32 0.0, %v399
    %v401 = vpop.f32.mrf.mxu0
    %v402 = vadd.f32 0.0, %v401
    %403 = vmatmul.bf16.gmra.mxu0 %v191
    %v404 = vpop.f32.mrf.mxu0
    %v405 = vadd.f32 0.0, %v404
    %v406 = vpop.f32.mrf.mxu0
    %v407 = vadd.f32 0.0, %v406
    %408 = vmatmul.bf16.gmra.mxu0 %v192
    %v409 = vpop.f32.mrf.mxu0
    %v410 = vadd.f32 0.0, %v409
    %v411 = vpop.f32.mrf.mxu0
    %v412 = vadd.f32 0.0, %v411
    %413 = vmatmul.bf16.gmra.mxu0 %v193
    %v414 = vpop.f32.mrf.mxu0
    %v415 = vadd.f32 0.0, %v414
    %v416 = vpop.f32.mrf.mxu0
    %v417 = vadd.f32 0.0, %v416
    %418 = vmatmul.bf16.gmra.mxu0 %v194
    %v419 = vpop.f32.mrf.mxu0
    %v420 = vadd.f32 0.0, %v419
    %v421 = vpop.f32.mrf.mxu0
    %v422 = vadd.f32 0.0, %v421
    %423 = vmatmul.bf16.gmra.mxu0 %v195
    %v424 = vpop.f32.mrf.mxu0
    %v425 = vadd.f32 0.0, %v424
    %v426 = vpop.f32.mrf.mxu0
    %v427 = vadd.f32 0.0, %v426
    %428 = vdwg.mxu0
    %v429 = vld [vmem:[%s4] sm:$0x1]
    %v430 = vld [vmem:[%s5] sm:$0x1]
    %v431 = vadd.f32 %v270, %v272
    %v432 = vadd.f32 %v431, %v275
    %v433 = vadd.f32 %v432, %v277
    %v434 = vadd.f32 %v433, %v280
    %v435 = vadd.f32 %v434, %v282
    %v436 = vadd.f32 %v435, %v285
    %v437 = vadd.f32 %v436, %v287
    %v438 = vadd.f32 %v437, %v290
    %v439 = vadd.f32 %v438, %v292
    %v440 = vadd.f32 %v439, %v295
    %v441 = vadd.f32 %v440, %v297
    %v442 = vadd.f32 %v441, %v300
    %v443 = vadd.f32 %v442, %v302
    %v444 = vadd.f32 %v443, %v305
    %v445 = vadd.f32 %v444, %v307
    %v446 = vadd.f32 %v445, %v310
    %v447 = vadd.f32 %v446, %v312
    %v448 = vadd.f32 %v447, %v315
    %v449 = vadd.f32 %v448, %v317
    %v450 = vadd.f32 %v449, %v320
    %v451 = vadd.f32 %v450, %v322
    %v452 = vadd.f32 %v451, %v325
    %v453 = vadd.f32 %v452, %v327
    %v454 = vadd.f32 %v453, %v330
    %v455 = vadd.f32 %v454, %v332
    %v456 = vadd.f32 %v455, %v335
    %v457 = vadd.f32 %v456, %v337
    %v458 = vadd.f32 %v457, %v340
    %v459 = vadd.f32 %v458, %v342
    %v460 = vadd.f32 %v459, %v345
    %v461 = vadd.f32 %v460, %v347
    %v462 = vadd.f32 %v461, %v350
    %v463 = vadd.f32 %v462, %v352
    %v464 = vadd.f32 %v463, %v355
    %v465 = vadd.f32 %v464, %v357
    %v466 = vadd.f32 %v465, %v360
    %v467 = vadd.f32 %v466, %v362
    %v468 = vadd.f32 %v467, %v365
    %v469 = vadd.f32 %v468, %v367
    %v470 = vadd.f32 %v469, %v370
    %v471 = vadd.f32 %v470, %v372
    %v472 = vadd.f32 %v471, %v375
    %v473 = vadd.f32 %v472, %v377
    %v474 = vadd.f32 %v473, %v380
    %v475 = vadd.f32 %v474, %v382
    %v476 = vadd.f32 %v475, %v385
    %v477 = vadd.f32 %v476, %v387
    %v478 = vadd.f32 %v477, %v390
    %v479 = vadd.f32 %v478, %v392
    %v480 = vadd.f32 %v479, %v395
    %v481 = vadd.f32 %v480, %v397
    %v482 = vadd.f32 %v481, %v400
    %v483 = vadd.f32 %v482, %v402
    %v484 = vadd.f32 %v483, %v405
    %v485 = vadd.f32 %v484, %v407
    %v486 = vadd.f32 %v485, %v410
    %v487 = vadd.f32 %v486, %v412
    %v488 = vadd.f32 %v487, %v415
    %v489 = vadd.f32 %v488, %v417
    %v490 = vadd.f32 %v489, %v420
    %v491 = vadd.f32 %v490, %v422
    %v492 = vadd.f32 %v491, %v425
    %v493 = vadd.f32 %v492, %v427
    %v494 = vrot.slane %v493, 4
    %v495 = vadd.f32 %v493, %v494
    %v496 = vrot.slane %v495, 2
    %v497 = vadd.f32 %v495, %v496
    %v498 = vrot.slane %v497, 1
    %v499 = vadd.f32 %v497, %v498
    %v500 = vrcp.pop 512.0
    %v501 = vmul.f32 512.0, %v500
    %v502 = vsub.f32 1.0, %v501
    %v503 = vmul.f32 %v500, %v502
    %v504 = vadd.f32 %v500, %v503
    %vm505 = vweird.f32 %v500
    %v506 = vsel %vm505, %v500, %v504
    %v507 = vmul.f32 %v499, %v506
    %v508 = vmul.f32 %v270, %v270
    %v509 = vmul.f32 %v272, %v272
    %v510 = vmul.f32 %v275, %v275
    %v511 = vmul.f32 %v277, %v277
    %v512 = vmul.f32 %v280, %v280
    %v513 = vmul.f32 %v282, %v282
    %v514 = vmul.f32 %v285, %v285
    %v515 = vmul.f32 %v287, %v287
    %v516 = vmul.f32 %v290, %v290
    %v517 = vmul.f32 %v292, %v292
    %v518 = vmul.f32 %v295, %v295
    %v519 = vmul.f32 %v297, %v297
    %v520 = vmul.f32 %v300, %v300
    %v521 = vmul.f32 %v302, %v302
    %v522 = vmul.f32 %v305, %v305
    %v523 = vmul.f32 %v307, %v307
    %v524 = vmul.f32 %v310, %v310
    %v525 = vmul.f32 %v312, %v312
    %v526 = vmul.f32 %v315, %v315
    %v527 = vmul.f32 %v317, %v317
    %v528 = vmul.f32 %v320, %v320
    %v529 = vmul.f32 %v322, %v322
    %v530 = vmul.f32 %v325, %v325
    %v531 = vmul.f32 %v327, %v327
    %v532 = vmul.f32 %v330, %v330
    %v533 = vmul.f32 %v332, %v332
    %v534 = vmul.f32 %v335, %v335
    %v535 = vmul.f32 %v337, %v337
    %v536 = vmul.f32 %v340, %v340
    %v537 = vmul.f32 %v342, %v342
    %v538 = vmul.f32 %v345, %v345
    %v539 = vmul.f32 %v347, %v347
    %v540 = vmul.f32 %v350, %v350
    %v541 = vmul.f32 %v352, %v352
    %v542 = vmul.f32 %v355, %v355
    %v543 = vmul.f32 %v357, %v357
    %v544 = vmul.f32 %v360, %v360
    %v545 = vmul.f32 %v362, %v362
    %v546 = vmul.f32 %v365, %v365
    %v547 = vmul.f32 %v367, %v367
    %v548 = vmul.f32 %v370, %v370
    %v549 = vmul.f32 %v372, %v372
    %v550 = vmul.f32 %v375, %v375
    %v551 = vmul.f32 %v377, %v377
    %v552 = vmul.f32 %v380, %v380
    %v553 = vmul.f32 %v382, %v382
    %v554 = vmul.f32 %v385, %v385
    %v555 = vmul.f32 %v387, %v387
    %v556 = vmul.f32 %v390, %v390
    %v557 = vmul.f32 %v392, %v392
    %v558 = vmul.f32 %v395, %v395
    %v559 = vmul.f32 %v397, %v397
    %v560 = vmul.f32 %v400, %v400
    %v561 = vmul.f32 %v402, %v402
    %v562 = vmul.f32 %v405, %v405
    %v563 = vmul.f32 %v407, %v407
    %v564 = vmul.f32 %v410, %v410
    %v565 = vmul.f32 %v412, %v412
    %v566 = vmul.f32 %v415, %v415
    %v567 = vmul.f32 %v417, %v417
    %v568 = vmul.f32 %v420, %v420
    %v569 = vmul.f32 %v422, %v422
    %v570 = vmul.f32 %v425, %v425
    %v571 = vmul.f32 %v427, %v427
    %v572 = vadd.f32 %v508, %v509
    %v573 = vadd.f32 %v572, %v510
    %v574 = vadd.f32 %v573, %v511
    %v575 = vadd.f32 %v574, %v512
    %v576 = vadd.f32 %v575, %v513
    %v577 = vadd.f32 %v576, %v514
    %v578 = vadd.f32 %v577, %v515
    %v579 = vadd.f32 %v578, %v516
    %v580 = vadd.f32 %v579, %v517
    %v581 = vadd.f32 %v580, %v518
    %v582 = vadd.f32 %v581, %v519
    %v583 = vadd.f32 %v582, %v520
    %v584 = vadd.f32 %v583, %v521
    %v585 = vadd.f32 %v584, %v522
    %v586 = vadd.f32 %v585, %v523
    %v587 = vadd.f32 %v586, %v524
    %v588 = vadd.f32 %v587, %v525
    %v589 = vadd.f32 %v588, %v526
    %v590 = vadd.f32 %v589, %v527
    %v591 = vadd.f32 %v590, %v528
    %v592 = vadd.f32 %v591, %v529
    %v593 = vadd.f32 %v592, %v530
    %v594 = vadd.f32 %v593, %v531
    %v595 = vadd.f32 %v594, %v532
    %v596 = vadd.f32 %v595, %v533
    %v597 = vadd.f32 %v596, %v534
    %v598 = vadd.f32 %v597, %v535
    %v599 = vadd.f32 %v598, %v536
    %v600 = vadd.f32 %v599, %v537
    %v601 = vadd.f32 %v600, %v538
    %v602 = vadd.f32 %v601, %v539
    %v603 = vadd.f32 %v602, %v540
    %v604 = vadd.f32 %v603, %v541
    %v605 = vadd.f32 %v604, %v542
    %v606 = vadd.f32 %v605, %v543
    %v607 = vadd.f32 %v606, %v544
    %v608 = vadd.f32 %v607, %v545
    %v609 = vadd.f32 %v608, %v546
    %v610 = vadd.f32 %v609, %v547
    %v611 = vadd.f32 %v610, %v548
    %v612 = vadd.f32 %v611, %v549
    %v613 = vadd.f32 %v612, %v550
    %v614 = vadd.f32 %v613, %v551
    %v615 = vadd.f32 %v614, %v552
    %v616 = vadd.f32 %v615, %v553
    %v617 = vadd.f32 %v616, %v554
    %v618 = vadd.f32 %v617, %v555
    %v619 = vadd.f32 %v618, %v556
    %v620 = vadd.f32 %v619, %v557
    %v621 = vadd.f32 %v620, %v558
    %v622 = vadd.f32 %v621, %v559
    %v623 = vadd.f32 %v622, %v560
    %v624 = vadd.f32 %v623, %v561
    %v625 = vadd.f32 %v624, %v562
    %v626 = vadd.f32 %v625, %v563
    %v627 = vadd.f32 %v626, %v564
    %v628 = vadd.f32 %v627, %v565
    %v629 = vadd.f32 %v628, %v566
    %v630 = vadd.f32 %v629, %v567
    %v631 = vadd.f32 %v630, %v568
    %v632 = vadd.f32 %v631, %v569
    %v633 = vadd.f32 %v632, %v570
    %v634 = vadd.f32 %v633, %v571
    %v635 = vrot.slane %v634, 4
    %v636 = vadd.f32 %v634, %v635
    %v637 = vrot.slane %v636, 2
    %v638 = vadd.f32 %v636, %v637
    %v639 = vrot.slane %v638, 1
    %v640 = vadd.f32 %v638, %v639
    %v641 = vmul.f32 %v640, %v506
    %v642 = vmul.f32 %v507, %v507
    %v643 = vsub.f32 %v641, %v642
    %v644 = vmax.f32 %v643, 0.0
    %v645 = vsub.f32 %v270, %v507
    %v646 = vsub.f32 %v272, %v507
    %v647 = vsub.f32 %v275, %v507
    %v648 = vsub.f32 %v277, %v507
    %v649 = vsub.f32 %v280, %v507
    %v650 = vsub.f32 %v282, %v507
    %v651 = vsub.f32 %v285, %v507
    %v652 = vsub.f32 %v287, %v507
    %v653 = vsub.f32 %v290, %v507
    %v654 = vsub.f32 %v292, %v507
    %v655 = vsub.f32 %v295, %v507
    %v656 = vsub.f32 %v297, %v507
    %v657 = vsub.f32 %v300, %v507
    %v658 = vsub.f32 %v302, %v507
    %v659 = vsub.f32 %v305, %v507
    %v660 = vsub.f32 %v307, %v507
    %v661 = vsub.f32 %v310, %v507
    %v662 = vsub.f32 %v312, %v507
    %v663 = vsub.f32 %v315, %v507
    %v664 = vsub.f32 %v317, %v507
    %v665 = vsub.f32 %v320, %v507
    %v666 = vsub.f32 %v322, %v507
    %v667 = vsub.f32 %v325, %v507
    %v668 = vsub.f32 %v327, %v507
    %v669 = vsub.f32 %v330, %v507
    %v670 = vsub.f32 %v332, %v507
    %v671 = vsub.f32 %v335, %v507
    %v672 = vsub.f32 %v337, %v507
    %v673 = vsub.f32 %v340, %v507
    %v674 = vsub.f32 %v342, %v507
    %v675 = vsub.f32 %v345, %v507
    %v676 = vsub.f32 %v347, %v507
    %v677 = vsub.f32 %v350, %v507
    %v678 = vsub.f32 %v352, %v507
    %v679 = vsub.f32 %v355, %v507
    %v680 = vsub.f32 %v357, %v507
    %v681 = vsub.f32 %v360, %v507
    %v682 = vsub.f32 %v362, %v507
    %v683 = vsub.f32 %v365, %v507
    %v684 = vsub.f32 %v367, %v507
    %v685 = vsub.f32 %v370, %v507
    %v686 = vsub.f32 %v372, %v507
    %v687 = vsub.f32 %v375, %v507
    %v688 = vsub.f32 %v377, %v507
    %v689 = vsub.f32 %v380, %v507
    %v690 = vsub.f32 %v382, %v507
    %v691 = vsub.f32 %v385, %v507
    %v692 = vsub.f32 %v387, %v507
    %v693 = vsub.f32 %v390, %v507
    %v694 = vsub.f32 %v392, %v507
    %v695 = vsub.f32 %v395, %v507
    %v696 = vsub.f32 %v397, %v507
    %v697 = vsub.f32 %v400, %v507
    %v698 = vsub.f32 %v402, %v507
    %v699 = vsub.f32 %v405, %v507
    %v700 = vsub.f32 %v407, %v507
    %v701 = vsub.f32 %v410, %v507
    %v702 = vsub.f32 %v412, %v507
    %v703 = vsub.f32 %v415, %v507
    %v704 = vsub.f32 %v417, %v507
    %v705 = vsub.f32 %v420, %v507
    %v706 = vsub.f32 %v422, %v507
    %v707 = vsub.f32 %v425, %v507
    %v708 = vsub.f32 %v427, %v507
    %v709 = vadd.f32 %v644, 1e-05
    %v710 = vrsqrt.pop %v709
    %v711 = vmul.f32 %v710, %v709
    %v712 = vmul.f32 %v711, %v710
    %v713 = vmul.f32 0.5, %v712
    %v714 = vsub.f32 1.5, %v713
    %v715 = vmul.f32 %v710, %v714
    %vm716 = vweird.f32 %v709
    %vm717 = vweird.f32 %v710
    %vm718 = vmor %vm716, %vm717
    %v719 = vsel %vm718, %v710, %v715
    %v720 = vmul.f32 %v645, %v719
    %v721 = vmul.f32 %v646, %v719
    %v722 = vmul.f32 %v647, %v719
    %v723 = vmul.f32 %v648, %v719
    %v724 = vmul.f32 %v649, %v719
    %v725 = vmul.f32 %v650, %v719
    %v726 = vmul.f32 %v651, %v719
    %v727 = vmul.f32 %v652, %v719
    %v728 = vmul.f32 %v653, %v719
    %v729 = vmul.f32 %v654, %v719
    %v730 = vmul.f32 %v655, %v719
    %v731 = vmul.f32 %v656, %v719
    %v732 = vmul.f32 %v657, %v719
    %v733 = vmul.f32 %v658, %v719
    %v734 = vmul.f32 %v659, %v719
    %v735 = vmul.f32 %v660, %v719
    %v736 = vmul.f32 %v661, %v719
    %v737 = vmul.f32 %v662, %v719
    %v738 = vmul.f32 %v663, %v719
    %v739 = vmul.f32 %v664, %v719
    %v740 = vmul.f32 %v665, %v719
    %v741 = vmul.f32 %v666, %v719
    %v742 = vmul.f32 %v667, %v719
    %v743 = vmul.f32 %v668, %v719
    %v744 = vmul.f32 %v669, %v719
    %v745 = vmul.f32 %v670, %v719
    %v746 = vmul.f32 %v671, %v719
    %v747 = vmul.f32 %v672, %v719
    %v748 = vmul.f32 %v673, %v719
    %v749 = vmul.f32 %v674, %v719
    %v750 = vmul.f32 %v675, %v719
    %v751 = vmul.f32 %v676, %v719
    %v752 = vmul.f32 %v677, %v719
    %v753 = vmul.f32 %v678, %v719
    %v754 = vmul.f32 %v679, %v719
    %v755 = vmul.f32 %v680, %v719
    %v756 = vmul.f32 %v681, %v719
    %v757 = vmul.f32 %v682, %v719
    %v758 = vmul.f32 %v683, %v719
    %v759 = vmul.f32 %v684, %v719
    %v760 = vmul.f32 %v685, %v719
    %v761 = vmul.f32 %v686, %v719
    %v762 = vmul.f32 %v687, %v719
    %v763 = vmul.f32 %v688, %v719
    %v764 = vmul.f32 %v689, %v719
    %v765 = vmul.f32 %v690, %v719
    %v766 = vmul.f32 %v691, %v719
    %v767 = vmul.f32 %v692, %v719
    %v768 = vmul.f32 %v693, %v719
    %v769 = vmul.f32 %v694, %v719
    %v770 = vmul.f32 %v695, %v719
    %v771 = vmul.f32 %v696, %v719
    %v772 = vmul.f32 %v697, %v719
    %v773 = vmul.f32 %v698, %v719
    %v774 = vmul.f32 %v699, %v719
    %v775 = vmul.f32 %v700, %v719
    %v776 = vmul.f32 %v701, %v719
    %v777 = vmul.f32 %v702, %v719
    %v778 = vmul.f32 %v703, %v719
    %v779 = vmul.f32 %v704, %v719
    %v780 = vmul.f32 %v705, %v719
    %v781 = vmul.f32 %v706, %v719
    %v782 = vmul.f32 %v707, %v719
    %v783 = vmul.f32 %v708, %v719
    %v785 = vperm.slane %v429, 0
    %v787 = vmul.f32 %v720, %v785
    %v788 = vmul.f32 %v721, %v785
    %v789 = vmul.f32 %v722, %v785
    %v790 = vmul.f32 %v723, %v785
    %v791 = vmul.f32 %v724, %v785
    %v792 = vmul.f32 %v725, %v785
    %v793 = vmul.f32 %v726, %v785
    %v794 = vmul.f32 %v727, %v785
    %v795 = vmul.f32 %v728, %v785
    %v796 = vmul.f32 %v729, %v785
    %v797 = vmul.f32 %v730, %v785
    %v798 = vmul.f32 %v731, %v785
    %v799 = vmul.f32 %v732, %v785
    %v800 = vmul.f32 %v733, %v785
    %v801 = vmul.f32 %v734, %v785
    %v802 = vmul.f32 %v735, %v785
    %v803 = vmul.f32 %v736, %v785
    %v804 = vmul.f32 %v737, %v785
    %v805 = vmul.f32 %v738, %v785
    %v806 = vmul.f32 %v739, %v785
    %v807 = vmul.f32 %v740, %v785
    %v808 = vmul.f32 %v741, %v785
    %v809 = vmul.f32 %v742, %v785
    %v810 = vmul.f32 %v743, %v785
    %v811 = vmul.f32 %v744, %v785
    %v812 = vmul.f32 %v745, %v785
    %v813 = vmul.f32 %v746, %v785
    %v814 = vmul.f32 %v747, %v785
    %v815 = vmul.f32 %v748, %v785
    %v816 = vmul.f32 %v749, %v785
    %v817 = vmul.f32 %v750, %v785
    %v818 = vmul.f32 %v751, %v785
    %v819 = vmul.f32 %v752, %v785
    %v820 = vmul.f32 %v753, %v785
    %v821 = vmul.f32 %v754, %v785
    %v822 = vmul.f32 %v755, %v785
    %v823 = vmul.f32 %v756, %v785
    %v824 = vmul.f32 %v757, %v785
    %v825 = vmul.f32 %v758, %v785
    %v826 = vmul.f32 %v759, %v785
    %v827 = vmul.f32 %v760, %v785
    %v828 = vmul.f32 %v761, %v785
    %v829 = vmul.f32 %v762, %v785
    %v830 = vmul.f32 %v763, %v785
    %v831 = vmul.f32 %v764, %v785
    %v832 = vmul.f32 %v765, %v785
    %v833 = vmul.f32 %v766, %v785
    %v834 = vmul.f32 %v767, %v785
    %v835 = vmul.f32 %v768, %v785
    %v836 = vmul.f32 %v769, %v785
    %v837 = vmul.f32 %v770, %v785
    %v838 = vmul.f32 %v771, %v785
    %v839 = vmul.f32 %v772, %v785
    %v840 = vmul.f32 %v773, %v785
    %v841 = vmul.f32 %v774, %v785
    %v842 = vmul.f32 %v775, %v785
    %v843 = vmul.f32 %v776, %v785
    %v844 = vmul.f32 %v777, %v785
    %v845 = vmul.f32 %v778, %v785
    %v846 = vmul.f32 %v779, %v785
    %v847 = vmul.f32 %v780, %v785
    %v848 = vmul.f32 %v781, %v785
    %v849 = vmul.f32 %v782, %v785
    %v850 = vmul.f32 %v783, %v785
    %v852 = vperm.slane %v430, 0
    %v854 = vadd.f32 %v787, %v852
    %v855 = vadd.f32 %v788, %v852
    %v856 = vadd.f32 %v789, %v852
    %v857 = vadd.f32 %v790, %v852
    %v858 = vadd.f32 %v791, %v852
    %v859 = vadd.f32 %v792, %v852
    %v860 = vadd.f32 %v793, %v852
    %v861 = vadd.f32 %v794, %v852
    %v862 = vadd.f32 %v795, %v852
    %v863 = vadd.f32 %v796, %v852
    %v864 = vadd.f32 %v797, %v852
    %v865 = vadd.f32 %v798, %v852
    %v866 = vadd.f32 %v799, %v852
    %v867 = vadd.f32 %v800, %v852
    %v868 = vadd.f32 %v801, %v852
    %v869 = vadd.f32 %v802, %v852
    %v870 = vadd.f32 %v803, %v852
    %v871 = vadd.f32 %v804, %v852
    %v872 = vadd.f32 %v805, %v852
    %v873 = vadd.f32 %v806, %v852
    %v874 = vadd.f32 %v807, %v852
    %v875 = vadd.f32 %v808, %v852
    %v876 = vadd.f32 %v809, %v852
    %v877 = vadd.f32 %v810, %v852
    %v878 = vadd.f32 %v811, %v852
    %v879 = vadd.f32 %v812, %v852
    %v880 = vadd.f32 %v813, %v852
    %v881 = vadd.f32 %v814, %v852
    %v882 = vadd.f32 %v815, %v852
    %v883 = vadd.f32 %v816, %v852
    %v884 = vadd.f32 %v817, %v852
    %v885 = vadd.f32 %v818, %v852
    %v886 = vadd.f32 %v819, %v852
    %v887 = vadd.f32 %v820, %v852
    %v888 = vadd.f32 %v821, %v852
    %v889 = vadd.f32 %v822, %v852
    %v890 = vadd.f32 %v823, %v852
    %v891 = vadd.f32 %v824, %v852
    %v892 = vadd.f32 %v825, %v852
    %v893 = vadd.f32 %v826, %v852
    %v894 = vadd.f32 %v827, %v852
    %v895 = vadd.f32 %v828, %v852
    %v896 = vadd.f32 %v829, %v852
    %v897 = vadd.f32 %v830, %v852
    %v898 = vadd.f32 %v831, %v852
    %v899 = vadd.f32 %v832, %v852
    %v900 = vadd.f32 %v833, %v852
    %v901 = vadd.f32 %v834, %v852
    %v902 = vadd.f32 %v835, %v852
    %v903 = vadd.f32 %v836, %v852
    %v904 = vadd.f32 %v837, %v852
    %v905 = vadd.f32 %v838, %v852
    %v906 = vadd.f32 %v839, %v852
    %v907 = vadd.f32 %v840, %v852
    %v908 = vadd.f32 %v841, %v852
    %v909 = vadd.f32 %v842, %v852
    %v910 = vadd.f32 %v843, %v852
    %v911 = vadd.f32 %v844, %v852
    %v912 = vadd.f32 %v845, %v852
    %v913 = vadd.f32 %v846, %v852
    %v914 = vadd.f32 %v847, %v852
    %v915 = vadd.f32 %v848, %v852
    %v916 = vadd.f32 %v849, %v852
    %v917 = vadd.f32 %v850, %v852
    %v918 = vmax.f32 %v854, 0.0
    %v919 = vmax.f32 %v855, 0.0
    %v920 = vmax.f32 %v856, 0.0
    %v921 = vmax.f32 %v857, 0.0
    %v922 = vmax.f32 %v858, 0.0
    %v923 = vmax.f32 %v859, 0.0
    %v924 = vmax.f32 %v860, 0.0
    %v925 = vmax.f32 %v861, 0.0
    %v926 = vmax.f32 %v862, 0.0
    %v927 = vmax.f32 %v863, 0.0
    %v928 = vmax.f32 %v864, 0.0
    %v929 = vmax.f32 %v865, 0.0
    %v930 = vmax.f32 %v866, 0.0
    %v931 = vmax.f32 %v867, 0.0
    %v932 = vmax.f32 %v868, 0.0
    %v933 = vmax.f32 %v869, 0.0
    %v934 = vmax.f32 %v870, 0.0
    %v935 = vmax.f32 %v871, 0.0
    %v936 = vmax.f32 %v872, 0.0
    %v937 = vmax.f32 %v873, 0.0
    %v938 = vmax.f32 %v874, 0.0
    %v939 = vmax.f32 %v875, 0.0
    %v940 = vmax.f32 %v876, 0.0
    %v941 = vmax.f32 %v877, 0.0
    %v942 = vmax.f32 %v878, 0.0
    %v943 = vmax.f32 %v879, 0.0
    %v944 = vmax.f32 %v880, 0.0
    %v945 = vmax.f32 %v881, 0.0
    %v946 = vmax.f32 %v882, 0.0
    %v947 = vmax.f32 %v883, 0.0
    %v948 = vmax.f32 %v884, 0.0
    %v949 = vmax.f32 %v885, 0.0
    %v950 = vmax.f32 %v886, 0.0
    %v951 = vmax.f32 %v887, 0.0
    %v952 = vmax.f32 %v888, 0.0
    %v953 = vmax.f32 %v889, 0.0
    %v954 = vmax.f32 %v890, 0.0
    %v955 = vmax.f32 %v891, 0.0
    %v956 = vmax.f32 %v892, 0.0
    %v957 = vmax.f32 %v893, 0.0
    %v958 = vmax.f32 %v894, 0.0
    %v959 = vmax.f32 %v895, 0.0
    %v960 = vmax.f32 %v896, 0.0
    %v961 = vmax.f32 %v897, 0.0
    %v962 = vmax.f32 %v898, 0.0
    %v963 = vmax.f32 %v899, 0.0
    %v964 = vmax.f32 %v900, 0.0
    %v965 = vmax.f32 %v901, 0.0
    %v966 = vmax.f32 %v902, 0.0
    %v967 = vmax.f32 %v903, 0.0
    %v968 = vmax.f32 %v904, 0.0
    %v969 = vmax.f32 %v905, 0.0
    %v970 = vmax.f32 %v906, 0.0
    %v971 = vmax.f32 %v907, 0.0
    %v972 = vmax.f32 %v908, 0.0
    %v973 = vmax.f32 %v909, 0.0
    %v974 = vmax.f32 %v910, 0.0
    %v975 = vmax.f32 %v911, 0.0
    %v976 = vmax.f32 %v912, 0.0
    %v977 = vmax.f32 %v913, 0.0
    %v978 = vmax.f32 %v914, 0.0
    %v979 = vmax.f32 %v915, 0.0
    %v980 = vmax.f32 %v916, 0.0
    %v981 = vmax.f32 %v917, 0.0
    %982 = vst [vmem:[#allocation2] sm:$0xf] 0
    %983 = vst [vmem:[#allocation2 + $0x4] sm:$0xf] 0
    %984 = vst [vmem:[#allocation2 + $0x8] sm:$0xf] 0
    %985 = vst [vmem:[#allocation2 + $0xd8] sm:$0xf] 0
    %986 = vst [vmem:[#allocation2 + $0xdc] sm:$0xf] 0
    %987 = vst [vmem:[#allocation2 + $0xe0] sm:$0xf] 0
    %s988 = scalar_lea.vmem [#allocation2], 204
    %989 = vst [vmem:[%s988] sm:$0xf] 0
    %990 = vst [vmem:[%s988 + $0x4] sm:$0xf] 0
    %991 = vst [vmem:[%s988 + $0x8] sm:$0xf] 0
    %992 = vst [vmem:[%s988 + $0xd8] sm:$0xf] 0
    %993 = vst [vmem:[%s988 + $0xdc] sm:$0xf] 0
    %994 = vst [vmem:[%s988 + $0xe0] sm:$0xf] 0
    %vm995 = vcmask 1040384
    %vm996 = vsmask.f32 256
    %vm997 = vmand %vm995, %vm996
    %v998 = vld [vmem:[#allocation2] sm:$0x1]
    %v999 = vsel %vm997, 0, %v998
    %1000 = vst [vmem:[#allocation2] sm:$0x1] %v999
    %v1001 = vld [vmem:[#allocation2 + $0xc] sm:$0x1]
    %v1002 = vsel %vm997, 0, %v1001
    %1003 = vst [vmem:[#allocation2 + $0xc] sm:$0x1] %v1002
    %v1004 = vld [vmem:[#allocation2 + $0x18] sm:$0x1]
    %v1005 = vsel %vm997, 0, %v1004
    %1006 = vst [vmem:[#allocation2 + $0x18] sm:$0x1] %v1005
    %v1007 = vld [vmem:[#allocation2 + $0x24] sm:$0x1]
    %v1008 = vsel %vm997, 0, %v1007
    %1009 = vst [vmem:[#allocation2 + $0x24] sm:$0x1] %v1008
    %v1010 = vld [vmem:[#allocation2 + $0x30] sm:$0x1]
    %v1011 = vsel %vm997, 0, %v1010
    %1012 = vst [vmem:[#allocation2 + $0x30] sm:$0x1] %v1011
    %v1013 = vld [vmem:[#allocation2 + $0x3c] sm:$0x1]
    %v1014 = vsel %vm997, 0, %v1013
    %1015 = vst [vmem:[#allocation2 + $0x3c] sm:$0x1] %v1014
    %v1016 = vld [vmem:[#allocation2 + $0x48] sm:$0x1]
    %v1017 = vsel %vm997, 0, %v1016
    %1018 = vst [vmem:[#allocation2 + $0x48] sm:$0x1] %v1017
    %v1019 = vld [vmem:[#allocation2 + $0x54] sm:$0x1]
    %v1020 = vsel %vm997, 0, %v1019
    %1021 = vst [vmem:[#allocation2 + $0x54] sm:$0x1] %v1020
    %v1022 = vld [vmem:[#allocation2 + $0x60] sm:$0x1]
    %v1023 = vsel %vm997, 0, %v1022
    %1024 = vst [vmem:[#allocation2 + $0x60] sm:$0x1] %v1023
    %v1025 = vld [vmem:[#allocation2 + $0x6c] sm:$0x1]
    %v1026 = vsel %vm997, 0, %v1025
    %1027 = vst [vmem:[#allocation2 + $0x6c] sm:$0x1] %v1026
    %v1028 = vld [vmem:[#allocation2 + $0x78] sm:$0x1]
    %v1029 = vsel %vm997, 0, %v1028
    %1030 = vst [vmem:[#allocation2 + $0x78] sm:$0x1] %v1029
    %v1031 = vld [vmem:[#allocation2 + $0x84] sm:$0x1]
    %v1032 = vsel %vm997, 0, %v1031
    %1033 = vst [vmem:[#allocation2 + $0x84] sm:$0x1] %v1032
    %v1034 = vld [vmem:[#allocation2 + $0x90] sm:$0x1]
    %v1035 = vsel %vm997, 0, %v1034
    %1036 = vst [vmem:[#allocation2 + $0x90] sm:$0x1] %v1035
    %v1037 = vld [vmem:[#allocation2 + $0x9c] sm:$0x1]
    %v1038 = vsel %vm997, 0, %v1037
    %1039 = vst [vmem:[#allocation2 + $0x9c] sm:$0x1] %v1038
    %v1040 = vld [vmem:[#allocation2 + $0xa8] sm:$0x1]
    %v1041 = vsel %vm997, 0, %v1040
    %1042 = vst [vmem:[#allocation2 + $0xa8] sm:$0x1] %v1041
    %v1043 = vld [vmem:[#allocation2 + $0xb4] sm:$0x1]
    %v1044 = vsel %vm997, 0, %v1043
    %1045 = vst [vmem:[#allocation2 + $0xb4] sm:$0x1] %v1044
    %v1046 = vld [vmem:[#allocation2 + $0xc0] sm:$0x1]
    %v1047 = vsel %vm997, 0, %v1046
    %1048 = vst [vmem:[#allocation2 + $0xc0] sm:$0x1] %v1047
    %v1049 = vld [vmem:[#allocation2 + $0xcc] sm:$0x1]
    %v1050 = vsel %vm997, 0, %v1049
    %1051 = vst [vmem:[#allocation2 + $0xcc] sm:$0x1] %v1050
    %v1052 = vld [vmem:[#allocation2 + $0xd8] sm:$0x1]
    %v1053 = vsel %vm997, 0, %v1052
    %1054 = vst [vmem:[#allocation2 + $0xd8] sm:$0x1] %v1053
    %v1055 = vld [vmem:[#allocation2 + $0xe4] sm:$0x1]
    %v1056 = vsel %vm997, 0, %v1055
    %1057 = vst [vmem:[#allocation2 + $0xe4] sm:$0x1] %v1056
    %v1058 = vld [vmem:[#allocation2 + $0xf0] sm:$0x1]
    %v1059 = vsel %vm997, 0, %v1058
    %1060 = vst [vmem:[#allocation2 + $0xf0] sm:$0x1] %v1059
    %v1061 = vld [vmem:[#allocation2 + $0xfc] sm:$0x1]
    %v1062 = vsel %vm997, 0, %v1061
    %1063 = vst [vmem:[#allocation2 + $0xfc] sm:$0x1] %v1062
    %v1064 = vld [vmem:[#allocation2 + $0x108] sm:$0x1]
    %v1065 = vsel %vm997, 0, %v1064
    %1066 = vst [vmem:[#allocation2 + $0x108] sm:$0x1] %v1065
    %v1067 = vld [vmem:[#allocation2 + $0x114] sm:$0x1]
    %v1068 = vsel %vm997, 0, %v1067
    %1069 = vst [vmem:[#allocation2 + $0x114] sm:$0x1] %v1068
    %v1070 = vld [vmem:[#allocation2 + $0x120] sm:$0x1]
    %v1071 = vsel %vm997, 0, %v1070
    %1072 = vst [vmem:[#allocation2 + $0x120] sm:$0x1] %v1071
    %v1073 = vld [vmem:[#allocation2 + $0x12c] sm:$0x1]
    %v1074 = vsel %vm997, 0, %v1073
    %1075 = vst [vmem:[#allocation2 + $0x12c] sm:$0x1] %v1074
    %v1076 = vld [vmem:[#allocation2 + $0x138] sm:$0x1]
    %v1077 = vsel %vm997, 0, %v1076
    %1078 = vst [vmem:[#allocation2 + $0x138] sm:$0x1] %v1077
    %v1079 = vld [vmem:[#allocation2 + $0x144] sm:$0x1]
    %v1080 = vsel %vm997, 0, %v1079
    %1081 = vst [vmem:[#allocation2 + $0x144] sm:$0x1] %v1080
    %v1082 = vld [vmem:[#allocation2 + $0x150] sm:$0x1]
    %v1083 = vsel %vm997, 0, %v1082
    %1084 = vst [vmem:[#allocation2 + $0x150] sm:$0x1] %v1083
    %v1085 = vld [vmem:[#allocation2 + $0x15c] sm:$0x1]
    %v1086 = vsel %vm997, 0, %v1085
    %1087 = vst [vmem:[#allocation2 + $0x15c] sm:$0x1] %v1086
    %v1088 = vld [vmem:[#allocation2 + $0x168] sm:$0x1]
    %v1089 = vsel %vm997, 0, %v1088
    %1090 = vst [vmem:[#allocation2 + $0x168] sm:$0x1] %v1089
    %v1091 = vld [vmem:[#allocation2 + $0x174] sm:$0x1]
    %v1092 = vsel %vm997, 0, %v1091
    %1093 = vst [vmem:[#allocation2 + $0x174] sm:$0x1] %v1092
    %v1094 = vld [vmem:[#allocation2 + $0x180] sm:$0x1]
    %v1095 = vsel %vm997, 0, %v1094
    %1096 = vst [vmem:[#allocation2 + $0x180] sm:$0x1] %v1095
    %v1097 = vld [vmem:[#allocation2 + $0x18c] sm:$0x1]
    %v1098 = vsel %vm997, 0, %v1097
    %1099 = vst [vmem:[#allocation2 + $0x18c] sm:$0x1] %v1098
    %v1100 = vld [vmem:[#allocation2 + $0x198] sm:$0x1]
    %v1101 = vsel %vm997, 0, %v1100
    %1102 = vst [vmem:[#allocation2 + $0x198] sm:$0x1] %v1101
    %v1103 = vld [vmem:[#allocation2 + $0x1a4] sm:$0x1]
    %v1104 = vsel %vm997, 0, %v1103
    %1105 = vst [vmem:[#allocation2 + $0x1a4] sm:$0x1] %v1104
    %vm1106 = vsmask.f32 7938
    %vm1107 = vmand %vm995, %vm1106
    %v1108 = vld [vmem:[#allocation2 + $0x8] sm:$0x1]
    %v1109 = vsel %vm1107, 0, %v1108
    %1110 = vst [vmem:[#allocation2 + $0x8] sm:$0x1] %v1109
    %v1111 = vld [vmem:[#allocation2 + $0x14] sm:$0x1]
    %v1112 = vsel %vm1107, 0, %v1111
    %1113 = vst [vmem:[#allocation2 + $0x14] sm:$0x1] %v1112
    %v1114 = vld [vmem:[#allocation2 + $0x20] sm:$0x1]
    %v1115 = vsel %vm1107, 0, %v1114
    %1116 = vst [vmem:[#allocation2 + $0x20] sm:$0x1] %v1115
    %v1117 = vld [vmem:[#allocation2 + $0x2c] sm:$0x1]
    %v1118 = vsel %vm1107, 0, %v1117
    %1119 = vst [vmem:[#allocation2 + $0x2c] sm:$0x1] %v1118
    %v1120 = vld [vmem:[#allocation2 + $0x38] sm:$0x1]
    %v1121 = vsel %vm1107, 0, %v1120
    %1122 = vst [vmem:[#allocation2 + $0x38] sm:$0x1] %v1121
    %v1123 = vld [vmem:[#allocation2 + $0x44] sm:$0x1]
    %v1124 = vsel %vm1107, 0, %v1123
    %1125 = vst [vmem:[#allocation2 + $0x44] sm:$0x1] %v1124
    %v1126 = vld [vmem:[#allocation2 + $0x50] sm:$0x1]
    %v1127 = vsel %vm1107, 0, %v1126
    %1128 = vst [vmem:[#allocation2 + $0x50] sm:$0x1] %v1127
    %v1129 = vld [vmem:[#allocation2 + $0x5c] sm:$0x1]
    %v1130 = vsel %vm1107, 0, %v1129
    %1131 = vst [vmem:[#allocation2 + $0x5c] sm:$0x1] %v1130
    %v1132 = vld [vmem:[#allocation2 + $0x68] sm:$0x1]
    %v1133 = vsel %vm1107, 0, %v1132
    %1134 = vst [vmem:[#allocation2 + $0x68] sm:$0x1] %v1133
    %v1135 = vld [vmem:[#allocation2 + $0x74] sm:$0x1]
    %v1136 = vsel %vm1107, 0, %v1135
    %1137 = vst [vmem:[#allocation2 + $0x74] sm:$0x1] %v1136
    %v1138 = vld [vmem:[#allocation2 + $0x80] sm:$0x1]
    %v1139 = vsel %vm1107, 0, %v1138
    %1140 = vst [vmem:[#allocation2 + $0x80] sm:$0x1] %v1139
    %v1141 = vld [vmem:[#allocation2 + $0x8c] sm:$0x1]
    %v1142 = vsel %vm1107, 0, %v1141
    %1143 = vst [vmem:[#allocation2 + $0x8c] sm:$0x1] %v1142
    %v1144 = vld [vmem:[#allocation2 + $0x98] sm:$0x1]
    %v1145 = vsel %vm1107, 0, %v1144
    %1146 = vst [vmem:[#allocation2 + $0x98] sm:$0x1] %v1145
    %v1147 = vld [vmem:[#allocation2 + $0xa4] sm:$0x1]
    %v1148 = vsel %vm1107, 0, %v1147
    %1149 = vst [vmem:[#allocation2 + $0xa4] sm:$0x1] %v1148
    %v1150 = vld [vmem:[#allocation2 + $0xb0] sm:$0x1]
    %v1151 = vsel %vm1107, 0, %v1150
    %1152 = vst [vmem:[#allocation2 + $0xb0] sm:$0x1] %v1151
    %v1153 = vld [vmem:[#allocation2 + $0xbc] sm:$0x1]
    %v1154 = vsel %vm1107, 0, %v1153
    %1155 = vst [vmem:[#allocation2 + $0xbc] sm:$0x1] %v1154
    %v1156 = vld [vmem:[#allocation2 + $0xc8] sm:$0x1]
    %v1157 = vsel %vm1107, 0, %v1156
    %1158 = vst [vmem:[#allocation2 + $0xc8] sm:$0x1] %v1157
    %v1159 = vld [vmem:[#allocation2 + $0xd4] sm:$0x1]
    %v1160 = vsel %vm1107, 0, %v1159
    %1161 = vst [vmem:[#allocation2 + $0xd4] sm:$0x1] %v1160
    %v1162 = vld [vmem:[#allocation2 + $0xe0] sm:$0x1]
    %v1163 = vsel %vm1107, 0, %v1162
    %1164 = vst [vmem:[#allocation2 + $0xe0] sm:$0x1] %v1163
    %v1165 = vld [vmem:[#allocation2 + $0xec] sm:$0x1]
    %v1166 = vsel %vm1107, 0, %v1165
    %1167 = vst [vmem:[#allocation2 + $0xec] sm:$0x1] %v1166
    %v1168 = vld [vmem:[#allocation2 + $0xf8] sm:$0x1]
    %v1169 = vsel %vm1107, 0, %v1168
    %1170 = vst [vmem:[#allocation2 + $0xf8] sm:$0x1] %v1169
    %v1171 = vld [vmem:[#allocation2 + $0x104] sm:$0x1]
    %v1172 = vsel %vm1107, 0, %v1171
    %1173 = vst [vmem:[#allocation2 + $0x104] sm:$0x1] %v1172
    %v1174 = vld [vmem:[#allocation2 + $0x110] sm:$0x1]
    %v1175 = vsel %vm1107, 0, %v1174
    %1176 = vst [vmem:[#allocation2 + $0x110] sm:$0x1] %v1175
    %v1177 = vld [vmem:[#allocation2 + $0x11c] sm:$0x1]
    %v1178 = vsel %vm1107, 0, %v1177
    %1179 = vst [vmem:[#allocation2 + $0x11c] sm:$0x1] %v1178
    %v1180 = vld [vmem:[#allocation2 + $0x128] sm:$0x1]
    %v1181 = vsel %vm1107, 0, %v1180
    %1182 = vst [vmem:[#allocation2 + $0x128] sm:$0x1] %v1181
    %v1183 = vld [vmem:[#allocation2 + $0x134] sm:$0x1]
    %v1184 = vsel %vm1107, 0, %v1183
    %1185 = vst [vmem:[#allocation2 + $0x134] sm:$0x1] %v1184
    %v1186 = vld [vmem:[#allocation2 + $0x140] sm:$0x1]
    %v1187 = vsel %vm1107, 0, %v1186
    %1188 = vst [vmem:[#allocation2 + $0x140] sm:$0x1] %v1187
    %v1189 = vld [vmem:[#allocation2 + $0x14c] sm:$0x1]
    %v1190 = vsel %vm1107, 0, %v1189
    %1191 = vst [vmem:[#allocation2 + $0x14c] sm:$0x1] %v1190
    %v1192 = vld [vmem:[#allocation2 + $0x158] sm:$0x1]
    %v1193 = vsel %vm1107, 0, %v1192
    %1194 = vst [vmem:[#allocation2 + $0x158] sm:$0x1] %v1193
    %v1195 = vld [vmem:[#allocation2 + $0x164] sm:$0x1]
    %v1196 = vsel %vm1107, 0, %v1195
    %1197 = vst [vmem:[#allocation2 + $0x164] sm:$0x1] %v1196
    %v1198 = vld [vmem:[#allocation2 + $0x170] sm:$0x1]
    %v1199 = vsel %vm1107, 0, %v1198
    %1200 = vst [vmem:[#allocation2 + $0x170] sm:$0x1] %v1199
    %v1201 = vld [vmem:[#allocation2 + $0x17c] sm:$0x1]
    %v1202 = vsel %vm1107, 0, %v1201
    %1203 = vst [vmem:[#allocation2 + $0x17c] sm:$0x1] %v1202
    %v1204 = vld [vmem:[#allocation2 + $0x188] sm:$0x1]
    %v1205 = vsel %vm1107, 0, %v1204
    %1206 = vst [vmem:[#allocation2 + $0x188] sm:$0x1] %v1205
    %v1207 = vld [vmem:[#allocation2 + $0x194] sm:$0x1]
    %v1208 = vsel %vm1107, 0, %v1207
    %1209 = vst [vmem:[#allocation2 + $0x194] sm:$0x1] %v1208
    %v1210 = vld [vmem:[#allocation2 + $0x1a0] sm:$0x1]
    %v1211 = vsel %vm1107, 0, %v1210
    %1212 = vst [vmem:[#allocation2 + $0x1a0] sm:$0x1] %v1211
    %v1213 = vld [vmem:[#allocation2 + $0x1ac] sm:$0x1]
    %v1214 = vsel %vm1107, 0, %v1213
    %1215 = vst [vmem:[#allocation2 + $0x1ac] sm:$0x1] %v1214
    %v1216 = vpack.c.bf16 %v918, %v918
    %v1217 = vpack.c.bf16 %v919, %v919
    %v1218 = vpack.c.bf16 %v920, %v920
    %v1219 = vpack.c.bf16 %v921, %v921
    %v1220 = vpack.c.bf16 %v922, %v922
    %v1221 = vpack.c.bf16 %v923, %v923
    %v1222 = vpack.c.bf16 %v924, %v924
    %v1223 = vpack.c.bf16 %v925, %v925
    %v1224 = vpack.c.bf16 %v926, %v926
    %v1225 = vpack.c.bf16 %v927, %v927
    %v1226 = vpack.c.bf16 %v928, %v928
    %v1227 = vpack.c.bf16 %v929, %v929
    %v1228 = vpack.c.bf16 %v930, %v930
    %v1229 = vpack.c.bf16 %v931, %v931
    %v1230 = vpack.c.bf16 %v932, %v932
    %v1231 = vpack.c.bf16 %v933, %v933
    %v1232 = vpack.c.bf16 %v934, %v934
    %v1233 = vpack.c.bf16 %v935, %v935
    %v1234 = vpack.c.bf16 %v936, %v936
    %v1235 = vpack.c.bf16 %v937, %v937
    %v1236 = vpack.c.bf16 %v938, %v938
    %v1237 = vpack.c.bf16 %v939, %v939
    %v1238 = vpack.c.bf16 %v940, %v940
    %v1239 = vpack.c.bf16 %v941, %v941
    %v1240 = vpack.c.bf16 %v942, %v942
    %v1241 = vpack.c.bf16 %v943, %v943
    %v1242 = vpack.c.bf16 %v944, %v944
    %v1243 = vpack.c.bf16 %v945, %v945
    %v1244 = vpack.c.bf16 %v946, %v946
    %v1245 = vpack.c.bf16 %v947, %v947
    %v1246 = vpack.c.bf16 %v948, %v948
    %v1247 = vpack.c.bf16 %v949, %v949
    %v1248 = vpack.c.bf16 %v950, %v950
    %v1249 = vpack.c.bf16 %v951, %v951
    %v1250 = vpack.c.bf16 %v952, %v952
    %v1251 = vpack.c.bf16 %v953, %v953
    %v1252 = vpack.c.bf16 %v954, %v954
    %v1253 = vpack.c.bf16 %v955, %v955
    %v1254 = vpack.c.bf16 %v956, %v956
    %v1255 = vpack.c.bf16 %v957, %v957
    %v1256 = vpack.c.bf16 %v958, %v958
    %v1257 = vpack.c.bf16 %v959, %v959
    %v1258 = vpack.c.bf16 %v960, %v960
    %v1259 = vpack.c.bf16 %v961, %v961
    %v1260 = vpack.c.bf16 %v962, %v962
    %v1261 = vpack.c.bf16 %v963, %v963
    %v1262 = vpack.c.bf16 %v964, %v964
    %v1263 = vpack.c.bf16 %v965, %v965
    %v1264 = vpack.c.bf16 %v966, %v966
    %v1265 = vpack.c.bf16 %v967, %v967
    %v1266 = vpack.c.bf16 %v968, %v968
    %v1267 = vpack.c.bf16 %v969, %v969
    %v1268 = vpack.c.bf16 %v970, %v970
    %v1269 = vpack.c.bf16 %v971, %v971
    %v1270 = vpack.c.bf16 %v972, %v972
    %v1271 = vpack.c.bf16 %v973, %v973
    %v1272 = vpack.c.bf16 %v974, %v974
    %v1273 = vpack.c.bf16 %v975, %v975
    %v1274 = vpack.c.bf16 %v976, %v976
    %v1275 = vpack.c.bf16 %v977, %v977
    %v1276 = vpack.c.bf16 %v978, %v978
    %v1277 = vpack.c.bf16 %v979, %v979
    %v1278 = vpack.c.bf16 %v980, %v980
    %v1279 = vpack.c.bf16 %v981, %v981
    %vm1280 = vsmask.f32 4368
    %vm1281 = vmor %vm996, %vm1280
    %v1283 = vshrl.u32 %v1216, 16
    %v1285 = vrot.slane %v1283, 7
    %v1286 = vshll.u32 %v1216, 16
    %v1288 = vor.u32 %v1285, %v1286
    %v1289 = vrot.slane %v1285, 4
    %v1291 = vshrl.u32 %v1217, 16
    %v1293 = vrot.slane %v1291, 7
    %v1294 = vshll.u32 %v1217, 16
    %v1296 = vor.u32 %v1293, %v1294
    %v1297 = vsel %vm1281, %v1289, %v1296
    %v1298 = vrot.slane %v1293, 4
    %v1300 = vshrl.u32 %v1218, 16
    %v1302 = vrot.slane %v1300, 7
    %v1303 = vshll.u32 %v1218, 16
    %v1305 = vor.u32 %v1302, %v1303
    %v1306 = vrot.slane %v1302, 4
    %v1308 = vshrl.u32 %v1219, 16
    %v1310 = vrot.slane %v1308, 7
    %v1311 = vshll.u32 %v1219, 16
    %v1313 = vor.u32 %v1310, %v1311
    %v1314 = vsel %vm1281, %v1306, %v1313
    %v1315 = vrot.slane %v1310, 4
    %v1317 = vshrl.u32 %v1220, 16
    %v1319 = vrot.slane %v1317, 7
    %v1320 = vshll.u32 %v1220, 16
    %v1322 = vor.u32 %v1319, %v1320
    %v1323 = vrot.slane %v1319, 4
    %v1325 = vshrl.u32 %v1221, 16
    %v1327 = vrot.slane %v1325, 7
    %v1328 = vshll.u32 %v1221, 16
    %v1330 = vor.u32 %v1327, %v1328
    %v1331 = vsel %vm1281, %v1323, %v1330
    %v1332 = vrot.slane %v1327, 4
    %v1334 = vshrl.u32 %v1222, 16
    %v1336 = vrot.slane %v1334, 7
    %v1337 = vshll.u32 %v1222, 16
    %v1339 = vor.u32 %v1336, %v1337
    %v1340 = vrot.slane %v1336, 4
    %v1342 = vshrl.u32 %v1223, 16
    %v1344 = vrot.slane %v1342, 7
    %v1345 = vshll.u32 %v1223, 16
    %v1347 = vor.u32 %v1344, %v1345
    %v1348 = vsel %vm1281, %v1340, %v1347
    %v1349 = vrot.slane %v1344, 4
    %v1351 = vshrl.u32 %v1224, 16
    %v1353 = vrot.slane %v1351, 7
    %v1354 = vshll.u32 %v1224, 16
    %v1356 = vor.u32 %v1353, %v1354
    %v1357 = vrot.slane %v1353, 4
    %v1359 = vshrl.u32 %v1225, 16
    %v1361 = vrot.slane %v1359, 7
    %v1362 = vshll.u32 %v1225, 16
    %v1364 = vor.u32 %v1361, %v1362
    %v1365 = vsel %vm1281, %v1357, %v1364
    %v1366 = vrot.slane %v1361, 4
    %v1368 = vshrl.u32 %v1226, 16
    %v1370 = vrot.slane %v1368, 7
    %v1371 = vshll.u32 %v1226, 16
    %v1373 = vor.u32 %v1370, %v1371
    %v1374 = vrot.slane %v1370, 4
    %v1376 = vshrl.u32 %v1227, 16
    %v1378 = vrot.slane %v1376, 7
    %v1379 = vshll.u32 %v1227, 16
    %v1381 = vor.u32 %v1378, %v1379
    %v1382 = vsel %vm1281, %v1374, %v1381
    %v1383 = vrot.slane %v1378, 4
    %v1385 = vshrl.u32 %v1228, 16
    %v1387 = vrot.slane %v1385, 7
    %v1388 = vshll.u32 %v1228, 16
    %v1390 = vor.u32 %v1387, %v1388
    %v1391 = vrot.slane %v1387, 4
    %v1393 = vshrl.u32 %v1229, 16
    %v1395 = vrot.slane %v1393, 7
    %v1396 = vshll.u32 %v1229, 16
    %v1398 = vor.u32 %v1395, %v1396
    %v1399 = vsel %vm1281, %v1391, %v1398
    %v1400 = vrot.slane %v1395, 4
    %v1402 = vshrl.u32 %v1230, 16
    %v1404 = vrot.slane %v1402, 7
    %v1405 = vshll.u32 %v1230, 16
    %v1407 = vor.u32 %v1404, %v1405
    %v1408 = vrot.slane %v1404, 4
    %v1410 = vshrl.u32 %v1231, 16
    %v1412 = vrot.slane %v1410, 7
    %v1413 = vshll.u32 %v1231, 16
    %v1415 = vor.u32 %v1412, %v1413
    %v1416 = vsel %vm1281, %v1408, %v1415
    %v1417 = vrot.slane %v1412, 4
    %v1419 = vshrl.u32 %v1232, 16
    %v1421 = vrot.slane %v1419, 7
    %v1422 = vshll.u32 %v1232, 16
    %v1424 = vor.u32 %v1421, %v1422
    %v1425 = vrot.slane %v1421, 4
    %v1427 = vshrl.u32 %v1233, 16
    %v1429 = vrot.slane %v1427, 7
    %v1430 = vshll.u32 %v1233, 16
    %v1432 = vor.u32 %v1429, %v1430
    %v1433 = vsel %vm1281, %v1425, %v1432
    %v1434 = vrot.slane %v1429, 4
    %v1436 = vshrl.u32 %v1234, 16
    %v1438 = vrot.slane %v1436, 7
    %v1439 = vshll.u32 %v1234, 16
    %v1441 = vor.u32 %v1438, %v1439
    %v1442 = vrot.slane %v1438, 4
    %v1444 = vshrl.u32 %v1235, 16
    %v1446 = vrot.slane %v1444, 7
    %v1447 = vshll.u32 %v1235, 16
    %v1449 = vor.u32 %v1446, %v1447
    %v1450 = vsel %vm1281, %v1442, %v1449
    %v1451 = vrot.slane %v1446, 4
    %v1453 = vshrl.u32 %v1236, 16
    %v1455 = vrot.slane %v1453, 7
    %v1456 = vshll.u32 %v1236, 16
    %v1458 = vor.u32 %v1455, %v1456
    %v1459 = vrot.slane %v1455, 4
    %v1461 = vshrl.u32 %v1237, 16
    %v1463 = vrot.slane %v1461, 7
    %v1464 = vshll.u32 %v1237, 16
    %v1466 = vor.u32 %v1463, %v1464
    %v1467 = vsel %vm1281, %v1459, %v1466
    %v1468 = vrot.slane %v1463, 4
    %v1470 = vshrl.u32 %v1238, 16
    %v1472 = vrot.slane %v1470, 7
    %v1473 = vshll.u32 %v1238, 16
    %v1475 = vor.u32 %v1472, %v1473
    %v1476 = vrot.slane %v1472, 4
    %v1478 = vshrl.u32 %v1239, 16
    %v1480 = vrot.slane %v1478, 7
    %v1481 = vshll.u32 %v1239, 16
    %v1483 = vor.u32 %v1480, %v1481
    %v1484 = vsel %vm1281, %v1476, %v1483
    %v1485 = vrot.slane %v1480, 4
    %v1487 = vshrl.u32 %v1240, 16
    %v1489 = vrot.slane %v1487, 7
    %v1490 = vshll.u32 %v1240, 16
    %v1492 = vor.u32 %v1489, %v1490
    %v1493 = vrot.slane %v1489, 4
    %v1495 = vshrl.u32 %v1241, 16
    %v1497 = vrot.slane %v1495, 7
    %v1498 = vshll.u32 %v1241, 16
    %v1500 = vor.u32 %v1497, %v1498
    %v1501 = vsel %vm1281, %v1493, %v1500
    %v1502 = vrot.slane %v1497, 4
    %v1504 = vshrl.u32 %v1242, 16
    %v1506 = vrot.slane %v1504, 7
    %v1507 = vshll.u32 %v1242, 16
    %v1509 = vor.u32 %v1506, %v1507
    %v1510 = vrot.slane %v1506, 4
    %v1512 = vshrl.u32 %v1243, 16
    %v1514 = vrot.slane %v1512, 7
    %v1515 = vshll.u32 %v1243, 16
    %v1517 = vor.u32 %v1514, %v1515
    %v1518 = vsel %vm1281, %v1510, %v1517
    %v1519 = vrot.slane %v1514, 4
    %v1521 = vshrl.u32 %v1244, 16
    %v1523 = vrot.slane %v1521, 7
    %v1524 = vshll.u32 %v1244, 16
    %v1526 = vor.u32 %v1523, %v1524
    %v1527 = vrot.slane %v1523, 4
    %v1529 = vshrl.u32 %v1245, 16
    %v1531 = vrot.slane %v1529, 7
    %v1532 = vshll.u32 %v1245, 16
    %v1534 = vor.u32 %v1531, %v1532
    %v1535 = vsel %vm1281, %v1527, %v1534
    %v1536 = vrot.slane %v1531, 4
    %v1538 = vshrl.u32 %v1246, 16
    %v1540 = vrot.slane %v1538, 7
    %v1541 = vshll.u32 %v1246, 16
    %v1543 = vor.u32 %v1540, %v1541
    %v1544 = vrot.slane %v1540, 4
    %v1546 = vshrl.u32 %v1247, 16
    %v1548 = vrot.slane %v1546, 7
    %v1549 = vshll.u32 %v1247, 16
    %v1551 = vor.u32 %v1548, %v1549
    %v1552 = vsel %vm1281, %v1544, %v1551
    %v1553 = vrot.slane %v1548, 4
    %v1555 = vshrl.u32 %v1248, 16
    %v1557 = vrot.slane %v1555, 7
    %v1558 = vshll.u32 %v1248, 16
    %v1560 = vor.u32 %v1557, %v1558
    %v1561 = vrot.slane %v1557, 4
    %v1563 = vshrl.u32 %v1249, 16
    %v1565 = vrot.slane %v1563, 7
    %v1566 = vshll.u32 %v1249, 16
    %v1568 = vor.u32 %v1565, %v1566
    %v1569 = vsel %vm1281, %v1561, %v1568
    %v1570 = vrot.slane %v1565, 4
    %v1572 = vshrl.u32 %v1250, 16
    %v1574 = vrot.slane %v1572, 7
    %v1575 = vshll.u32 %v1250, 16
    %v1577 = vor.u32 %v1574, %v1575
    %v1578 = vrot.slane %v1574, 4
    %v1580 = vshrl.u32 %v1251, 16
    %v1582 = vrot.slane %v1580, 7
    %v1583 = vshll.u32 %v1251, 16
    %v1585 = vor.u32 %v1582, %v1583
    %v1586 = vsel %vm1281, %v1578, %v1585
    %v1587 = vrot.slane %v1582, 4
    %v1589 = vshrl.u32 %v1252, 16
    %v1591 = vrot.slane %v1589, 7
    %v1592 = vshll.u32 %v1252, 16
    %v1594 = vor.u32 %v1591, %v1592
    %v1595 = vrot.slane %v1591, 4
    %v1597 = vshrl.u32 %v1253, 16
    %v1599 = vrot.slane %v1597, 7
    %v1600 = vshll.u32 %v1253, 16
    %v1602 = vor.u32 %v1599, %v1600
    %v1603 = vsel %vm1281, %v1595, %v1602
    %v1604 = vrot.slane %v1599, 4
    %v1606 = vshrl.u32 %v1254, 16
    %v1608 = vrot.slane %v1606, 7
    %v1609 = vshll.u32 %v1254, 16
    %v1611 = vor.u32 %v1608, %v1609
    %v1612 = vrot.slane %v1608, 4
    %v1614 = vshrl.u32 %v1255, 16
    %v1616 = vrot.slane %v1614, 7
    %v1617 = vshll.u32 %v1255, 16
    %v1619 = vor.u32 %v1616, %v1617
    %v1620 = vsel %vm1281, %v1612, %v1619
    %v1621 = vrot.slane %v1616, 4
    %v1623 = vshrl.u32 %v1256, 16
    %v1625 = vrot.slane %v1623, 7
    %v1626 = vshll.u32 %v1256, 16
    %v1628 = vor.u32 %v1625, %v1626
    %v1629 = vrot.slane %v1625, 4
    %v1631 = vshrl.u32 %v1257, 16
    %v1633 = vrot.slane %v1631, 7
    %v1634 = vshll.u32 %v1257, 16
    %v1636 = vor.u32 %v1633, %v1634
    %v1637 = vsel %vm1281, %v1629, %v1636
    %v1638 = vrot.slane %v1633, 4
    %v1640 = vshrl.u32 %v1258, 16
    %v1642 = vrot.slane %v1640, 7
    %v1643 = vshll.u32 %v1258, 16
    %v1645 = vor.u32 %v1642, %v1643
    %v1646 = vrot.slane %v1642, 4
    %v1648 = vshrl.u32 %v1259, 16
    %v1650 = vrot.slane %v1648, 7
    %v1651 = vshll.u32 %v1259, 16
    %v1653 = vor.u32 %v1650, %v1651
    %v1654 = vsel %vm1281, %v1646, %v1653
    %v1655 = vrot.slane %v1650, 4
    %v1657 = vshrl.u32 %v1260, 16
    %v1659 = vrot.slane %v1657, 7
    %v1660 = vshll.u32 %v1260, 16
    %v1662 = vor.u32 %v1659, %v1660
    %v1663 = vrot.slane %v1659, 4
    %v1665 = vshrl.u32 %v1261, 16
    %v1667 = vrot.slane %v1665, 7
    %v1668 = vshll.u32 %v1261, 16
    %v1670 = vor.u32 %v1667, %v1668
    %v1671 = vsel %vm1281, %v1663, %v1670
    %v1672 = vrot.slane %v1667, 4
    %v1674 = vshrl.u32 %v1262, 16
    %v1676 = vrot.slane %v1674, 7
    %v1677 = vshll.u32 %v1262, 16
    %v1679 = vor.u32 %v1676, %v1677
    %v1680 = vrot.slane %v1676, 4
    %v1682 = vshrl.u32 %v1263, 16
    %v1684 = vrot.slane %v1682, 7
    %v1685 = vshll.u32 %v1263, 16
    %v1687 = vor.u32 %v1684, %v1685
    %v1688 = vsel %vm1281, %v1680, %v1687
    %v1689 = vrot.slane %v1684, 4
    %v1691 = vshrl.u32 %v1264, 16
    %v1693 = vrot.slane %v1691, 7
    %v1694 = vshll.u32 %v1264, 16
    %v1696 = vor.u32 %v1693, %v1694
    %v1697 = vrot.slane %v1693, 4
    %v1699 = vshrl.u32 %v1265, 16
    %v1701 = vrot.slane %v1699, 7
    %v1702 = vshll.u32 %v1265, 16
    %v1704 = vor.u32 %v1701, %v1702
    %v1705 = vsel %vm1281, %v1697, %v1704
    %v1706 = vrot.slane %v1701, 4
    %v1708 = vshrl.u32 %v1266, 16
    %v1710 = vrot.slane %v1708, 7
    %v1711 = vshll.u32 %v1266, 16
    %v1713 = vor.u32 %v1710, %v1711
    %v1714 = vrot.slane %v1710, 4
    %v1716 = vshrl.u32 %v1267, 16
    %v1718 = vrot.slane %v1716, 7
    %v1719 = vshll.u32 %v1267, 16
    %v1721 = vor.u32 %v1718, %v1719
    %v1722 = vsel %vm1281, %v1714, %v1721
    %v1723 = vrot.slane %v1718, 4
    %v1725 = vshrl.u32 %v1268, 16
    %v1727 = vrot.slane %v1725, 7
    %v1728 = vshll.u32 %v1268, 16
    %v1730 = vor.u32 %v1727, %v1728
    %v1731 = vrot.slane %v1727, 4
    %v1733 = vshrl.u32 %v1269, 16
    %v1735 = vrot.slane %v1733, 7
    %v1736 = vshll.u32 %v1269, 16
    %v1738 = vor.u32 %v1735, %v1736
    %v1739 = vsel %vm1281, %v1731, %v1738
    %v1740 = vrot.slane %v1735, 4
    %v1742 = vshrl.u32 %v1270, 16
    %v1744 = vrot.slane %v1742, 7
    %v1745 = vshll.u32 %v1270, 16
    %v1747 = vor.u32 %v1744, %v1745
    %v1748 = vrot.slane %v1744, 4
    %v1750 = vshrl.u32 %v1271, 16
    %v1752 = vrot.slane %v1750, 7
    %v1753 = vshll.u32 %v1271, 16
    %v1755 = vor.u32 %v1752, %v1753
    %v1756 = vsel %vm1281, %v1748, %v1755
    %v1757 = vrot.slane %v1752, 4
    %v1759 = vshrl.u32 %v1272, 16
    %v1761 = vrot.slane %v1759, 7
    %v1762 = vshll.u32 %v1272, 16
    %v1764 = vor.u32 %v1761, %v1762
    %v1765 = vrot.slane %v1761, 4
    %v1767 = vshrl.u32 %v1273, 16
    %v1769 = vrot.slane %v1767, 7
    %v1770 = vshll.u32 %v1273, 16
    %v1772 = vor.u32 %v1769, %v1770
    %v1773 = vsel %vm1281, %v1765, %v1772
    %v1774 = vrot.slane %v1769, 4
    %v1776 = vshrl.u32 %v1274, 16
    %v1778 = vrot.slane %v1776, 7
    %v1779 = vshll.u32 %v1274, 16
    %v1781 = vor.u32 %v1778, %v1779
    %v1782 = vrot.slane %v1778, 4
    %v1784 = vshrl.u32 %v1275, 16
    %v1786 = vrot.slane %v1784, 7
    %v1787 = vshll.u32 %v1275, 16
    %v1789 = vor.u32 %v1786, %v1787
    %v1790 = vsel %vm1281, %v1782, %v1789
    %v1791 = vrot.slane %v1786, 4
    %v1793 = vshrl.u32 %v1276, 16
    %v1795 = vrot.slane %v1793, 7
    %v1796 = vshll.u32 %v1276, 16
    %v1798 = vor.u32 %v1795, %v1796
    %v1799 = vrot.slane %v1795, 4
    %v1801 = vshrl.u32 %v1277, 16
    %v1803 = vrot.slane %v1801, 7
    %v1804 = vshll.u32 %v1277, 16
    %v1806 = vor.u32 %v1803, %v1804
    %v1807 = vsel %vm1281, %v1799, %v1806
    %v1808 = vrot.slane %v1803, 4
    %v1810 = vshrl.u32 %v1278, 16
    %v1812 = vrot.slane %v1810, 7
    %v1813 = vshll.u32 %v1278, 16
    %v1815 = vor.u32 %v1812, %v1813
    %v1816 = vrot.slane %v1812, 4
    %v1818 = vshrl.u32 %v1279, 16
    %v1820 = vrot.slane %v1818, 7
    %v1821 = vshll.u32 %v1279, 16
    %v1823 = vor.u32 %v1820, %v1821
    %v1824 = vsel %vm1281, %v1816, %v1823
    %v1825 = vrot.slane %v1820, 4
    %s1922 = scalar_lea.vmem [#allocation2], 12
    %vm1923 = vcmask 1043456
    %vm1924 = vmand %vm1923, %vm1106
    %v1925 = vld [vmem:[%s1922] sm:$0xf]
    %v1926 = vsel %vm1924, %v1288, %v1925
    %1927 = vst [vmem:[%s1922] sm:$0xf] %v1926
    %1928 = vst [vmem:[%s1922 + $0x4] sm:$0xf] %v1297
    %v1929 = vld [vmem:[%s1922 + $0x8] sm:$0x1]
    %v1930 = vsel %vm997, %v1298, %v1929
    %1931 = vst [vmem:[%s1922 + $0x8] sm:$0x1] %v1930
    %v1932 = vld [vmem:[%s1922 + $0xc] sm:$0xf]
    %v1933 = vsel %vm1924, %v1305, %v1932
    %1934 = vst [vmem:[%s1922 + $0xc] sm:$0xf] %v1933
    %1935 = vst [vmem:[%s1922 + $0x10] sm:$0xf] %v1314
    %v1936 = vld [vmem:[%s1922 + $0x14] sm:$0x1]
    %v1937 = vsel %vm997, %v1315, %v1936
    %1938 = vst [vmem:[%s1922 + $0x14] sm:$0x1] %v1937
    %v1939 = vld [vmem:[%s1922 + $0x18] sm:$0xf]
    %v1940 = vsel %vm1924, %v1322, %v1939
    %1941 = vst [vmem:[%s1922 + $0x18] sm:$0xf] %v1940
    %1942 = vst [vmem:[%s1922 + $0x1c] sm:$0xf] %v1331
    %v1943 = vld [vmem:[%s1922 + $0x20] sm:$0x1]
    %v1944 = vsel %vm997, %v1332, %v1943
    %1945 = vst [vmem:[%s1922 + $0x20] sm:$0x1] %v1944
    %v1946 = vld [vmem:[%s1922 + $0x24] sm:$0xf]
    %v1947 = vsel %vm1924, %v1339, %v1946
    %1948 = vst [vmem:[%s1922 + $0x24] sm:$0xf] %v1947
    %1949 = vst [vmem:[%s1922 + $0x28] sm:$0xf] %v1348
    %v1950 = vld [vmem:[%s1922 + $0x2c] sm:$0x1]
    %v1951 = vsel %vm997, %v1349, %v1950
    %1952 = vst [vmem:[%s1922 + $0x2c] sm:$0x1] %v1951
    %v1953 = vld [vmem:[%s1922 + $0x30] sm:$0xf]
    %v1954 = vsel %vm1924, %v1356, %v1953
    %1955 = vst [vmem:[%s1922 + $0x30] sm:$0xf] %v1954
    %1956 = vst [vmem:[%s1922 + $0x34] sm:$0xf] %v1365
    %v1957 = vld [vmem:[%s1922 + $0x38] sm:$0x1]
    %v1958 = vsel %vm997, %v1366, %v1957
    %1959 = vst [vmem:[%s1922 + $0x38] sm:$0x1] %v1958
    %v1960 = vld [vmem:[%s1922 + $0x3c] sm:$0xf]
    %v1961 = vsel %vm1924, %v1373, %v1960
    %1962 = vst [vmem:[%s1922 + $0x3c] sm:$0xf] %v1961
    %1963 = vst [vmem:[%s1922 + $0x40] sm:$0xf] %v1382
    %v1964 = vld [vmem:[%s1922 + $0x44] sm:$0x1]
    %v1965 = vsel %vm997, %v1383, %v1964
    %1966 = vst [vmem:[%s1922 + $0x44] sm:$0x1] %v1965
    %v1967 = vld [vmem:[%s1922 + $0x48] sm:$0xf]
    %v1968 = vsel %vm1924, %v1390, %v1967
    %1969 = vst [vmem:[%s1922 + $0x48] sm:$0xf] %v1968
    %1970 = vst [vmem:[%s1922 + $0x4c] sm:$0xf] %v1399
    %v1971 = vld [vmem:[%s1922 + $0x50] sm:$0x1]
    %v1972 = vsel %vm997, %v1400, %v1971
    %1973 = vst [vmem:[%s1922 + $0x50] sm:$0x1] %v1972
    %v1974 = vld [vmem:[%s1922 + $0x54] sm:$0xf]
    %v1975 = vsel %vm1924, %v1407, %v1974
    %1976 = vst [vmem:[%s1922 + $0x54] sm:$0xf] %v1975
    %1977 = vst [vmem:[%s1922 + $0x58] sm:$0xf] %v1416
    %v1978 = vld [vmem:[%s1922 + $0x5c] sm:$0x1]
    %v1979 = vsel %vm997, %v1417, %v1978
    %1980 = vst [vmem:[%s1922 + $0x5c] sm:$0x1] %v1979
    %v1981 = vld [vmem:[%s1922 + $0x60] sm:$0xf]
    %v1982 = vsel %vm1924, %v1424, %v1981
    %1983 = vst [vmem:[%s1922 + $0x60] sm:$0xf] %v1982
    %1984 = vst [vmem:[%s1922 + $0x64] sm:$0xf] %v1433
    %v1985 = vld [vmem:[%s1922 + $0x68] sm:$0x1]
    %v1986 = vsel %vm997, %v1434, %v1985
    %1987 = vst [vmem:[%s1922 + $0x68] sm:$0x1] %v1986
    %v1988 = vld [vmem:[%s1922 + $0x6c] sm:$0xf]
    %v1989 = vsel %vm1924, %v1441, %v1988
    %1990 = vst [vmem:[%s1922 + $0x6c] sm:$0xf] %v1989
    %1991 = vst [vmem:[%s1922 + $0x70] sm:$0xf] %v1450
    %v1992 = vld [vmem:[%s1922 + $0x74] sm:$0x1]
    %v1993 = vsel %vm997, %v1451, %v1992
    %1994 = vst [vmem:[%s1922 + $0x74] sm:$0x1] %v1993
    %v1995 = vld [vmem:[%s1922 + $0x78] sm:$0xf]
    %v1996 = vsel %vm1924, %v1458, %v1995
    %1997 = vst [vmem:[%s1922 + $0x78] sm:$0xf] %v1996
    %1998 = vst [vmem:[%s1922 + $0x7c] sm:$0xf] %v1467
    %v1999 = vld [vmem:[%s1922 + $0x80] sm:$0x1]
    %v2000 = vsel %vm997, %v1468, %v1999
    %2001 = vst [vmem:[%s1922 + $0x80] sm:$0x1] %v2000
    %v2002 = vld [vmem:[%s1922 + $0x84] sm:$0xf]
    %v2003 = vsel %vm1924, %v1475, %v2002
    %2004 = vst [vmem:[%s1922 + $0x84] sm:$0xf] %v2003
    %2005 = vst [vmem:[%s1922 + $0x88] sm:$0xf] %v1484
    %v2006 = vld [vmem:[%s1922 + $0x8c] sm:$0x1]
    %v2007 = vsel %vm997, %v1485, %v2006
    %2008 = vst [vmem:[%s1922 + $0x8c] sm:$0x1] %v2007
    %v2009 = vld [vmem:[%s1922 + $0x90] sm:$0xf]
    %v2010 = vsel %vm1924, %v1492, %v2009
    %2011 = vst [vmem:[%s1922 + $0x90] sm:$0xf] %v2010
    %2012 = vst [vmem:[%s1922 + $0x94] sm:$0xf] %v1501
    %v2013 = vld [vmem:[%s1922 + $0x98] sm:$0x1]
    %v2014 = vsel %vm997, %v1502, %v2013
    %2015 = vst [vmem:[%s1922 + $0x98] sm:$0x1] %v2014
    %v2016 = vld [vmem:[%s1922 + $0x9c] sm:$0xf]
    %v2017 = vsel %vm1924, %v1509, %v2016
    %2018 = vst [vmem:[%s1922 + $0x9c] sm:$0xf] %v2017
    %2019 = vst [vmem:[%s1922 + $0xa0] sm:$0xf] %v1518
    %v2020 = vld [vmem:[%s1922 + $0xa4] sm:$0x1]
    %v2021 = vsel %vm997, %v1519, %v2020
    %2022 = vst [vmem:[%s1922 + $0xa4] sm:$0x1] %v2021
    %v2023 = vld [vmem:[%s1922 + $0xa8] sm:$0xf]
    %v2024 = vsel %vm1924, %v1526, %v2023
    %2025 = vst [vmem:[%s1922 + $0xa8] sm:$0xf] %v2024
    %2026 = vst [vmem:[%s1922 + $0xac] sm:$0xf] %v1535
    %v2027 = vld [vmem:[%s1922 + $0xb0] sm:$0x1]
    %v2028 = vsel %vm997, %v1536, %v2027
    %2029 = vst [vmem:[%s1922 + $0xb0] sm:$0x1] %v2028
    %v2030 = vld [vmem:[%s1922 + $0xb4] sm:$0xf]
    %v2031 = vsel %vm1924, %v1543, %v2030
    %2032 = vst [vmem:[%s1922 + $0xb4] sm:$0xf] %v2031
    %2033 = vst [vmem:[%s1922 + $0xb8] sm:$0xf] %v1552
    %v2034 = vld [vmem:[%s1922 + $0xbc] sm:$0x1]
    %v2035 = vsel %vm997, %v1553, %v2034
    %2036 = vst [vmem:[%s1922 + $0xbc] sm:$0x1] %v2035
    %v2037 = vld [vmem:[%s1922 + $0xd8] sm:$0xf]
    %v2038 = vsel %vm1924, %v1560, %v2037
    %2039 = vst [vmem:[%s1922 + $0xd8] sm:$0xf] %v2038
    %2040 = vst [vmem:[%s1922 + $0xdc] sm:$0xf] %v1569
    %v2041 = vld [vmem:[%s1922 + $0xe0] sm:$0x1]
    %v2042 = vsel %vm997, %v1570, %v2041
    %2043 = vst [vmem:[%s1922 + $0xe0] sm:$0x1] %v2042
    %v2044 = vld [vmem:[%s1922 + $0xe4] sm:$0xf]
    %v2045 = vsel %vm1924, %v1577, %v2044
    %2046 = vst [vmem:[%s1922 + $0xe4] sm:$0xf] %v2045
    %2047 = vst [vmem:[%s1922 + $0xe8] sm:$0xf] %v1586
    %v2048 = vld [vmem:[%s1922 + $0xec] sm:$0x1]
    %v2049 = vsel %vm997, %v1587, %v2048
    %2050 = vst [vmem:[%s1922 + $0xec] sm:$0x1] %v2049
    %v2051 = vld [vmem:[%s1922 + $0xf0] sm:$0xf]
    %v2052 = vsel %vm1924, %v1594, %v2051
    %2053 = vst [vmem:[%s1922 + $0xf0] sm:$0xf] %v2052
    %2054 = vst [vmem:[%s1922 + $0xf4] sm:$0xf] %v1603
    %v2055 = vld [vmem:[%s1922 + $0xf8] sm:$0x1]
    %v2056 = vsel %vm997, %v1604, %v2055
    %2057 = vst [vmem:[%s1922 + $0xf8] sm:$0x1] %v2056
    %v2058 = vld [vmem:[%s1922 + $0xfc] sm:$0xf]
    %v2059 = vsel %vm1924, %v1611, %v2058
    %2060 = vst [vmem:[%s1922 + $0xfc] sm:$0xf] %v2059
    %2061 = vst [vmem:[%s1922 + $0x100] sm:$0xf] %v1620
    %v2062 = vld [vmem:[%s1922 + $0x104] sm:$0x1]
    %v2063 = vsel %vm997, %v1621, %v2062
    %2064 = vst [vmem:[%s1922 + $0x104] sm:$0x1] %v2063
    %v2065 = vld [vmem:[%s1922 + $0x108] sm:$0xf]
    %v2066 = vsel %vm1924, %v1628, %v2065
    %2067 = vst [vmem:[%s1922 + $0x108] sm:$0xf] %v2066
    %2068 = vst [vmem:[%s1922 + $0x10c] sm:$0xf] %v1637
    %v2069 = vld [vmem:[%s1922 + $0x110] sm:$0x1]
    %v2070 = vsel %vm997, %v1638, %v2069
    %2071 = vst [vmem:[%s1922 + $0x110] sm:$0x1] %v2070
    %v2072 = vld [vmem:[%s1922 + $0x114] sm:$0xf]
    %v2073 = vsel %vm1924, %v1645, %v2072
    %2074 = vst [vmem:[%s1922 + $0x114] sm:$0xf] %v2073
    %2075 = vst [vmem:[%s1922 + $0x118] sm:$0xf] %v1654
    %v2076 = vld [vmem:[%s1922 + $0x11c] sm:$0x1]
    %v2077 = vsel %vm997, %v1655, %v2076
    %2078 = vst [vmem:[%s1922 + $0x11c] sm:$0x1] %v2077
    %v2079 = vld [vmem:[%s1922 + $0x120] sm:$0xf]
    %v2080 = vsel %vm1924, %v1662, %v2079
    %2081 = vst [vmem:[%s1922 + $0x120] sm:$0xf] %v2080
    %2082 = vst [vmem:[%s1922 + $0x124] sm:$0xf] %v1671
    %v2083 = vld [vmem:[%s1922 + $0x128] sm:$0x1]
    %v2084 = vsel %vm997, %v1672, %v2083
    %2085 = vst [vmem:[%s1922 + $0x128] sm:$0x1] %v2084
    %v2086 = vld [vmem:[%s1922 + $0x12c] sm:$0xf]
    %v2087 = vsel %vm1924, %v1679, %v2086
    %2088 = vst [vmem:[%s1922 + $0x12c] sm:$0xf] %v2087
    %2089 = vst [vmem:[%s1922 + $0x130] sm:$0xf] %v1688
    %v2090 = vld [vmem:[%s1922 + $0x134] sm:$0x1]
    %v2091 = vsel %vm997, %v1689, %v2090
    %2092 = vst [vmem:[%s1922 + $0x134] sm:$0x1] %v2091
    %v2093 = vld [vmem:[%s1922 + $0x138] sm:$0xf]
    %v2094 = vsel %vm1924, %v1696, %v2093
    %2095 = vst [vmem:[%s1922 + $0x138] sm:$0xf] %v2094
    %2096 = vst [vmem:[%s1922 + $0x13c] sm:$0xf] %v1705
    %v2097 = vld [vmem:[%s1922 + $0x140] sm:$0x1]
    %v2098 = vsel %vm997, %v1706, %v2097
    %2099 = vst [vmem:[%s1922 + $0x140] sm:$0x1] %v2098
    %v2100 = vld [vmem:[%s1922 + $0x144] sm:$0xf]
    %v2101 = vsel %vm1924, %v1713, %v2100
    %2102 = vst [vmem:[%s1922 + $0x144] sm:$0xf] %v2101
    %2103 = vst [vmem:[%s1922 + $0x148] sm:$0xf] %v1722
    %v2104 = vld [vmem:[%s1922 + $0x14c] sm:$0x1]
    %v2105 = vsel %vm997, %v1723, %v2104
    %2106 = vst [vmem:[%s1922 + $0x14c] sm:$0x1] %v2105
    %v2107 = vld [vmem:[%s1922 + $0x150] sm:$0xf]
    %v2108 = vsel %vm1924, %v1730, %v2107
    %2109 = vst [vmem:[%s1922 + $0x150] sm:$0xf] %v2108
    %2110 = vst [vmem:[%s1922 + $0x154] sm:$0xf] %v1739
    %v2111 = vld [vmem:[%s1922 + $0x158] sm:$0x1]
    %v2112 = vsel %vm997, %v1740, %v2111
    %2113 = vst [vmem:[%s1922 + $0x158] sm:$0x1] %v2112
    %v2114 = vld [vmem:[%s1922 + $0x15c] sm:$0xf]
    %v2115 = vsel %vm1924, %v1747, %v2114
    %2116 = vst [vmem:[%s1922 + $0x15c] sm:$0xf] %v2115
    %2117 = vst [vmem:[%s1922 + $0x160] sm:$0xf] %v1756
    %v2118 = vld [vmem:[%s1922 + $0x164] sm:$0x1]
    %v2119 = vsel %vm997, %v1757, %v2118
    %2120 = vst [vmem:[%s1922 + $0x164] sm:$0x1] %v2119
    %v2121 = vld [vmem:[%s1922 + $0x168] sm:$0xf]
    %v2122 = vsel %vm1924, %v1764, %v2121
    %2123 = vst [vmem:[%s1922 + $0x168] sm:$0xf] %v2122
    %2124 = vst [vmem:[%s1922 + $0x16c] sm:$0xf] %v1773
    %v2125 = vld [vmem:[%s1922 + $0x170] sm:$0x1]
    %v2126 = vsel %vm997, %v1774, %v2125
    %2127 = vst [vmem:[%s1922 + $0x170] sm:$0x1] %v2126
    %v2128 = vld [vmem:[%s1922 + $0x174] sm:$0xf]
    %v2129 = vsel %vm1924, %v1781, %v2128
    %2130 = vst [vmem:[%s1922 + $0x174] sm:$0xf] %v2129
    %2131 = vst [vmem:[%s1922 + $0x178] sm:$0xf] %v1790
    %v2132 = vld [vmem:[%s1922 + $0x17c] sm:$0x1]
    %v2133 = vsel %vm997, %v1791, %v2132
    %2134 = vst [vmem:[%s1922 + $0x17c] sm:$0x1] %v2133
    %v2135 = vld [vmem:[%s1922 + $0x180] sm:$0xf]
    %v2136 = vsel %vm1924, %v1798, %v2135
    %2137 = vst [vmem:[%s1922 + $0x180] sm:$0xf] %v2136
    %2138 = vst [vmem:[%s1922 + $0x184] sm:$0xf] %v1807
    %v2139 = vld [vmem:[%s1922 + $0x188] sm:$0x1]
    %v2140 = vsel %vm997, %v1808, %v2139
    %2141 = vst [vmem:[%s1922 + $0x188] sm:$0x1] %v2140
    %v2142 = vld [vmem:[%s1922 + $0x18c] sm:$0xf]
    %v2143 = vsel %vm1924, %v1815, %v2142
    %2144 = vst [vmem:[%s1922 + $0x18c] sm:$0xf] %v2143
    %2145 = vst [vmem:[%s1922 + $0x190] sm:$0xf] %v1824
    %v2146 = vld [vmem:[%s1922 + $0x194] sm:$0x1]
    %v2147 = vsel %vm997, %v1825, %v2146
    %2148 = vst [vmem:[%s1922 + $0x194] sm:$0x1] %v2147
    %v2149 = vld [vmem:[#allocation2] sm:$0xf]
    %v2150 = vld [vmem:[#allocation2 + $0x4] sm:$0xf]
    %v2151 = vld [vmem:[#allocation2 + $0xc] sm:$0xf]
    %v2152 = vld [vmem:[#allocation2 + $0x10] sm:$0xf]
    %v2153 = vld [vmem:[#allocation2 + $0x18] sm:$0xf]
    %v2154 = vld [vmem:[#allocation2 + $0x1c] sm:$0xf]
    %v2155 = vld [vmem:[#allocation2 + $0x24] sm:$0xf]
    %v2156 = vld [vmem:[#allocation2 + $0x28] sm:$0xf]
    %v2157 = vld [vmem:[#allocation2 + $0x30] sm:$0xf]
    %v2158 = vld [vmem:[#allocation2 + $0x34] sm:$0xf]
    %v2159 = vld [vmem:[#allocation2 + $0x3c] sm:$0xf]
    %v2160 = vld [vmem:[#allocation2 + $0x40] sm:$0xf]
    %v2161 = vld [vmem:[#allocation2 + $0x48] sm:$0xf]
    %v2162 = vld [vmem:[#allocation2 + $0x4c] sm:$0xf]
    %v2163 = vld [vmem:[#allocation2 + $0x54] sm:$0xf]
    %v2164 = vld [vmem:[#allocation2 + $0x58] sm:$0xf]
    %v2165 = vld [vmem:[#allocation2 + $0x60] sm:$0xf]
    %v2166 = vld [vmem:[#allocation2 + $0x64] sm:$0xf]
    %v2167 = vld [vmem:[#allocation2 + $0x6c] sm:$0xf]
    %v2168 = vld [vmem:[#allocation2 + $0x70] sm:$0xf]
    %v2169 = vld [vmem:[#allocation2 + $0x78] sm:$0xf]
    %v2170 = vld [vmem:[#allocation2 + $0x7c] sm:$0xf]
    %v2171 = vld [vmem:[#allocation2 + $0x84] sm:$0xf]
    %v2172 = vld [vmem:[#allocation2 + $0x88] sm:$0xf]
    %v2173 = vld [vmem:[#allocation2 + $0x90] sm:$0xf]
    %v2174 = vld [vmem:[#allocation2 + $0x94] sm:$0xf]
    %v2175 = vld [vmem:[#allocation2 + $0x9c] sm:$0xf]
    %v2176 = vld [vmem:[#allocation2 + $0xa0] sm:$0xf]
    %v2177 = vld [vmem:[#allocation2 + $0xa8] sm:$0xf]
    %v2178 = vld [vmem:[#allocation2 + $0xac] sm:$0xf]
    %v2179 = vld [vmem:[#allocation2 + $0xb4] sm:$0xf]
    %v2180 = vld [vmem:[#allocation2 + $0xb8] sm:$0xf]
    %v2181 = vld [vmem:[#allocation2 + $0xd8] sm:$0xf]
    %v2182 = vld [vmem:[#allocation2 + $0xdc] sm:$0xf]
    %v2183 = vld [vmem:[#allocation2 + $0xe4] sm:$0xf]
    %v2184 = vld [vmem:[#allocation2 + $0xe8] sm:$0xf]
    %v2185 = vld [vmem:[#allocation2 + $0xf0] sm:$0xf]
    %v2186 = vld [vmem:[#allocation2 + $0xf4] sm:$0xf]
    %v2187 = vld [vmem:[#allocation2 + $0xfc] sm:$0xf]
    %v2188 = vld [vmem:[#allocation2 + $0x100] sm:$0xf]
    %v2189 = vld [vmem:[#allocation2 + $0x108] sm:$0xf]
    %v2190 = vld [vmem:[#allocation2 + $0x10c] sm:$0xf]
    %v2191 = vld [vmem:[#allocation2 + $0x114] sm:$0xf]
    %v2192 = vld [vmem:[#allocation2 + $0x118] sm:$0xf]
    %v2193 = vld [vmem:[#allocation2 + $0x120] sm:$0xf]
    %v2194 = vld [vmem:[#allocation2 + $0x124] sm:$0xf]
    %v2195 = vld [vmem:[#allocation2 + $0x12c] sm:$0xf]
    %v2196 = vld [vmem:[#allocation2 + $0x130] sm:$0xf]
    %v2197 = vld [vmem:[#allocation2 + $0x138] sm:$0xf]
    %v2198 = vld [vmem:[#allocation2 + $0x13c] sm:$0xf]
    %v2199 = vld [vmem:[#allocation2 + $0x144] sm:$0xf]
    %v2200 = vld [vmem:[#allocation2 + $0x148] sm:$0xf]
    %v2201 = vld [vmem:[#allocation2 + $0x150] sm:$0xf]
    %v2202 = vld [vmem:[#allocation2 + $0x154] sm:$0xf]
    %v2203 = vld [vmem:[#allocation2 + $0x15c] sm:$0xf]
    %v2204 = vld [vmem:[#allocation2 + $0x160] sm:$0xf]
    %v2205 = vld [vmem:[#allocation2 + $0x168] sm:$0xf]
    %v2206 = vld [vmem:[#allocation2 + $0x16c] sm:$0xf]
    %v2207 = vld [vmem:[#allocation2 + $0x174] sm:$0xf]
    %v2208 = vld [vmem:[#allocation2 + $0x178] sm:$0xf]
    %v2209 = vld [vmem:[#allocation2 + $0x180] sm:$0xf]
    %v2210 = vld [vmem:[#allocation2 + $0x184] sm:$0xf]
    %v2211 = vld [vmem:[#allocation2 + $0x18c] sm:$0xf]
    %v2212 = vld [vmem:[#allocation2 + $0x190] sm:$0xf]
    %v2213 = vld [vmem:[#allocation8] sm:$0xf]
    %v2214 = vld [vmem:[#allocation8 + $0x4] sm:$0xf]
    %v2215 = vld [vmem:[#allocation8 + $0x8] sm:$0xf]
    %v2216 = vld [vmem:[#allocation8 + $0xc] sm:$0xf]
    %v2217 = vld [vmem:[#allocation8 + $0x10] sm:$0xf]
    %v2218 = vld [vmem:[#allocation8 + $0x14] sm:$0xf]
    %v2219 = vld [vmem:[#allocation8 + $0x18] sm:$0xf]
    %v2220 = vld [vmem:[#allocation8 + $0x1c] sm:$0xf]
    %v2221 = vld [vmem:[#allocation8 + $0x20] sm:$0xf]
    %v2222 = vld [vmem:[#allocation8 + $0x24] sm:$0xf]
    %v2223 = vld [vmem:[#allocation8 + $0x28] sm:$0xf]
    %v2224 = vld [vmem:[#allocation8 + $0x2c] sm:$0xf]
    %v2225 = vld [vmem:[#allocation8 + $0x30] sm:$0xf]
    %v2226 = vld [vmem:[#allocation8 + $0x34] sm:$0xf]
    %v2227 = vld [vmem:[#allocation8 + $0x38] sm:$0xf]
    %v2228 = vld [vmem:[#allocation8 + $0x3c] sm:$0xf]
    %v2229 = vld [vmem:[#allocation2 + $0x8] sm:$0x1]
    %v2230 = vld [vmem:[#allocation2 + $0x14] sm:$0x1]
    %v2231 = vld [vmem:[#allocation2 + $0x20] sm:$0x1]
    %v2232 = vld [vmem:[#allocation2 + $0x2c] sm:$0x1]
    %v2233 = vld [vmem:[#allocation2 + $0x38] sm:$0x1]
    %v2234 = vld [vmem:[#allocation2 + $0x44] sm:$0x1]
    %v2235 = vld [vmem:[#allocation2 + $0x50] sm:$0x1]
    %v2236 = vld [vmem:[#allocation2 + $0x5c] sm:$0x1]
    %v2237 = vld [vmem:[#allocation2 + $0x68] sm:$0x1]
    %v2238 = vld [vmem:[#allocation2 + $0x74] sm:$0x1]
    %v2239 = vld [vmem:[#allocation2 + $0x80] sm:$0x1]
    %v2240 = vld [vmem:[#allocation2 + $0x8c] sm:$0x1]
    %v2241 = vld [vmem:[#allocation2 + $0x98] sm:$0x1]
    %v2242 = vld [vmem:[#allocation2 + $0xa4] sm:$0x1]
    %v2243 = vld [vmem:[#allocation2 + $0xb0] sm:$0x1]
    %v2244 = vld [vmem:[#allocation2 + $0xbc] sm:$0x1]
    %v2245 = vld [vmem:[#allocation2 + $0xe0] sm:$0x1]
    %v2246 = vld [vmem:[#allocation2 + $0xec] sm:$0x1]
    %v2247 = vld [vmem:[#allocation2 + $0xf8] sm:$0x1]
    %v2248 = vld [vmem:[#allocation2 + $0x104] sm:$0x1]
    %v2249 = vld [vmem:[#allocation2 + $0x110] sm:$0x1]
    %v2250 = vld [vmem:[#allocation2 + $0x11c] sm:$0x1]
    %v2251 = vld [vmem:[#allocation2 + $0x128] sm:$0x1]
    %v2252 = vld [vmem:[#allocation2 + $0x134] sm:$0x1]
    %v2253 = vld [vmem:[#allocation2 + $0x140] sm:$0x1]
    %v2254 = vld [vmem:[#allocation2 + $0x14c] sm:$0x1]
    %v2255 = vld [vmem:[#allocation2 + $0x158] sm:$0x1]
    %v2256 = vld [vmem:[#allocation2 + $0x164] sm:$0x1]
    %v2257 = vld [vmem:[#allocation2 + $0x170] sm:$0x1]
    %v2258 = vld [vmem:[#allocation2 + $0x17c] sm:$0x1]
    %v2259 = vld [vmem:[#allocation2 + $0x188] sm:$0x1]
    %v2260 = vld [vmem:[#allocation2 + $0x194] sm:$0x1]
    %vm2261 = vsmask.f32 3328
    %vm2262 = vsmask.f32 7440
    %vm2263 = vmor %vm2261, %vm2262
    %v2265 = vshrl.u32 %v2149, 16
    %v2267 = vrot.slane %v2265, 4
    %v2268 = vshll.u32 %v2149, 16
    %v2270 = vrot.slane %v2268, 5
    %v2271 = vor.u32 %v2267, %v2270
    %v2272 = vrot.slane %v2271, 4
    %v2274 = vshll.u32 %v2150, 16
    %v2276 = vrot.slane %v2274, 5
    %v2277 = vsel %vm2263, %v2272, %v2276
    %v2278 = vshrl.u32 %v2150, 16
    %v2280 = vrot.slane %v2278, 4
    %v2281 = vor.u32 %v2280, %v2276
    %v2282 = vrot.slane %v2281, 4
    %v2284 = vshll.u32 %v2229, 16
    %v2286 = vrot.slane %v2284, 5
    %v2287 = vsel %vm2263, %v2282, %v2286
    %v2289 = vshrl.u32 %v2151, 16
    %v2291 = vrot.slane %v2289, 4
    %v2292 = vshll.u32 %v2151, 16
    %v2294 = vrot.slane %v2292, 5
    %v2295 = vor.u32 %v2291, %v2294
    %v2296 = vrot.slane %v2295, 4
    %v2298 = vshll.u32 %v2152, 16
    %v2300 = vrot.slane %v2298, 5
    %v2301 = vsel %vm2263, %v2296, %v2300
    %v2302 = vshrl.u32 %v2152, 16
    %v2304 = vrot.slane %v2302, 4
    %v2305 = vor.u32 %v2304, %v2300
    %v2306 = vrot.slane %v2305, 4
    %v2308 = vshll.u32 %v2230, 16
    %v2310 = vrot.slane %v2308, 5
    %v2311 = vsel %vm2263, %v2306, %v2310
    %v2313 = vshrl.u32 %v2153, 16
    %v2315 = vrot.slane %v2313, 4
    %v2316 = vshll.u32 %v2153, 16
    %v2318 = vrot.slane %v2316, 5
    %v2319 = vor.u32 %v2315, %v2318
    %v2320 = vrot.slane %v2319, 4
    %v2322 = vshll.u32 %v2154, 16
    %v2324 = vrot.slane %v2322, 5
    %v2325 = vsel %vm2263, %v2320, %v2324
    %v2326 = vshrl.u32 %v2154, 16
    %v2328 = vrot.slane %v2326, 4
    %v2329 = vor.u32 %v2328, %v2324
    %v2330 = vrot.slane %v2329, 4
    %v2332 = vshll.u32 %v2231, 16
    %v2334 = vrot.slane %v2332, 5
    %v2335 = vsel %vm2263, %v2330, %v2334
    %v2337 = vshrl.u32 %v2155, 16
    %v2339 = vrot.slane %v2337, 4
    %v2340 = vshll.u32 %v2155, 16
    %v2342 = vrot.slane %v2340, 5
    %v2343 = vor.u32 %v2339, %v2342
    %v2344 = vrot.slane %v2343, 4
    %v2346 = vshll.u32 %v2156, 16
    %v2348 = vrot.slane %v2346, 5
    %v2349 = vsel %vm2263, %v2344, %v2348
    %v2350 = vshrl.u32 %v2156, 16
    %v2352 = vrot.slane %v2350, 4
    %v2353 = vor.u32 %v2352, %v2348
    %v2354 = vrot.slane %v2353, 4
    %v2356 = vshll.u32 %v2232, 16
    %v2358 = vrot.slane %v2356, 5
    %v2359 = vsel %vm2263, %v2354, %v2358
    %v2361 = vshrl.u32 %v2157, 16
    %v2363 = vrot.slane %v2361, 4
    %v2364 = vshll.u32 %v2157, 16
    %v2366 = vrot.slane %v2364, 5
    %v2367 = vor.u32 %v2363, %v2366
    %v2368 = vrot.slane %v2367, 4
    %v2370 = vshll.u32 %v2158, 16
    %v2372 = vrot.slane %v2370, 5
    %v2373 = vsel %vm2263, %v2368, %v2372
    %v2374 = vshrl.u32 %v2158, 16
    %v2376 = vrot.slane %v2374, 4
    %v2377 = vor.u32 %v2376, %v2372
    %v2378 = vrot.slane %v2377, 4
    %v2380 = vshll.u32 %v2233, 16
    %v2382 = vrot.slane %v2380, 5
    %v2383 = vsel %vm2263, %v2378, %v2382
    %v2385 = vshrl.u32 %v2159, 16
    %v2387 = vrot.slane %v2385, 4
    %v2388 = vshll.u32 %v2159, 16
    %v2390 = vrot.slane %v2388, 5
    %v2391 = vor.u32 %v2387, %v2390
    %v2392 = vrot.slane %v2391, 4
    %v2394 = vshll.u32 %v2160, 16
    %v2396 = vrot.slane %v2394, 5
    %v2397 = vsel %vm2263, %v2392, %v2396
    %v2398 = vshrl.u32 %v2160, 16
    %v2400 = vrot.slane %v2398, 4
    %v2401 = vor.u32 %v2400, %v2396
    %v2402 = vrot.slane %v2401, 4
    %v2404 = vshll.u32 %v2234, 16
    %v2406 = vrot.slane %v2404, 5
    %v2407 = vsel %vm2263, %v2402, %v2406
    %v2409 = vshrl.u32 %v2161, 16
    %v2411 = vrot.slane %v2409, 4
    %v2412 = vshll.u32 %v2161, 16
    %v2414 = vrot.slane %v2412, 5
    %v2415 = vor.u32 %v2411, %v2414
    %v2416 = vrot.slane %v2415, 4
    %v2418 = vshll.u32 %v2162, 16
    %v2420 = vrot.slane %v2418, 5
    %v2421 = vsel %vm2263, %v2416, %v2420
    %v2422 = vshrl.u32 %v2162, 16
    %v2424 = vrot.slane %v2422, 4
    %v2425 = vor.u32 %v2424, %v2420
    %v2426 = vrot.slane %v2425, 4
    %v2428 = vshll.u32 %v2235, 16
    %v2430 = vrot.slane %v2428, 5
    %v2431 = vsel %vm2263, %v2426, %v2430
    %v2433 = vshrl.u32 %v2163, 16
    %v2435 = vrot.slane %v2433, 4
    %v2436 = vshll.u32 %v2163, 16
    %v2438 = vrot.slane %v2436, 5
    %v2439 = vor.u32 %v2435, %v2438
    %v2440 = vrot.slane %v2439, 4
    %v2442 = vshll.u32 %v2164, 16
    %v2444 = vrot.slane %v2442, 5
    %v2445 = vsel %vm2263, %v2440, %v2444
    %v2446 = vshrl.u32 %v2164, 16
    %v2448 = vrot.slane %v2446, 4
    %v2449 = vor.u32 %v2448, %v2444
    %v2450 = vrot.slane %v2449, 4
    %v2452 = vshll.u32 %v2236, 16
    %v2454 = vrot.slane %v2452, 5
    %v2455 = vsel %vm2263, %v2450, %v2454
    %v2457 = vshrl.u32 %v2165, 16
    %v2459 = vrot.slane %v2457, 4
    %v2460 = vshll.u32 %v2165, 16
    %v2462 = vrot.slane %v2460, 5
    %v2463 = vor.u32 %v2459, %v2462
    %v2464 = vrot.slane %v2463, 4
    %v2466 = vshll.u32 %v2166, 16
    %v2468 = vrot.slane %v2466, 5
    %v2469 = vsel %vm2263, %v2464, %v2468
    %v2470 = vshrl.u32 %v2166, 16
    %v2472 = vrot.slane %v2470, 4
    %v2473 = vor.u32 %v2472, %v2468
    %v2474 = vrot.slane %v2473, 4
    %v2476 = vshll.u32 %v2237, 16
    %v2478 = vrot.slane %v2476, 5
    %v2479 = vsel %vm2263, %v2474, %v2478
    %v2481 = vshrl.u32 %v2167, 16
    %v2483 = vrot.slane %v2481, 4
    %v2484 = vshll.u32 %v2167, 16
    %v2486 = vrot.slane %v2484, 5
    %v2487 = vor.u32 %v2483, %v2486
    %v2488 = vrot.slane %v2487, 4
    %v2490 = vshll.u32 %v2168, 16
    %v2492 = vrot.slane %v2490, 5
    %v2493 = vsel %vm2263, %v2488, %v2492
    %v2494 = vshrl.u32 %v2168, 16
    %v2496 = vrot.slane %v2494, 4
    %v2497 = vor.u32 %v2496, %v2492
    %v2498 = vrot.slane %v2497, 4
    %v2500 = vshll.u32 %v2238, 16
    %v2502 = vrot.slane %v2500, 5
    %v2503 = vsel %vm2263, %v2498, %v2502
    %v2505 = vshrl.u32 %v2169, 16
    %v2507 = vrot.slane %v2505, 4
    %v2508 = vshll.u32 %v2169, 16
    %v2510 = vrot.slane %v2508, 5
    %v2511 = vor.u32 %v2507, %v2510
    %v2512 = vrot.slane %v2511, 4
    %v2514 = vshll.u32 %v2170, 16
    %v2516 = vrot.slane %v2514, 5
    %v2517 = vsel %vm2263, %v2512, %v2516
    %v2518 = vshrl.u32 %v2170, 16
    %v2520 = vrot.slane %v2518, 4
    %v2521 = vor.u32 %v2520, %v2516
    %v2522 = vrot.slane %v2521, 4
    %v2524 = vshll.u32 %v2239, 16
    %v2526 = vrot.slane %v2524, 5
    %v2527 = vsel %vm2263, %v2522, %v2526
    %v2529 = vshrl.u32 %v2171, 16
    %v2531 = vrot.slane %v2529, 4
    %v2532 = vshll.u32 %v2171, 16
    %v2534 = vrot.slane %v2532, 5
    %v2535 = vor.u32 %v2531, %v2534
    %v2536 = vrot.slane %v2535, 4
    %v2538 = vshll.u32 %v2172, 16
    %v2540 = vrot.slane %v2538, 5
    %v2541 = vsel %vm2263, %v2536, %v2540
    %v2542 = vshrl.u32 %v2172, 16
    %v2544 = vrot.slane %v2542, 4
    %v2545 = vor.u32 %v2544, %v2540
    %v2546 = vrot.slane %v2545, 4
    %v2548 = vshll.u32 %v2240, 16
    %v2550 = vrot.slane %v2548, 5
    %v2551 = vsel %vm2263, %v2546, %v2550
    %v2553 = vshrl.u32 %v2173, 16
    %v2555 = vrot.slane %v2553, 4
    %v2556 = vshll.u32 %v2173, 16
    %v2558 = vrot.slane %v2556, 5
    %v2559 = vor.u32 %v2555, %v2558
    %v2560 = vrot.slane %v2559, 4
    %v2562 = vshll.u32 %v2174, 16
    %v2564 = vrot.slane %v2562, 5
    %v2565 = vsel %vm2263, %v2560, %v2564
    %v2566 = vshrl.u32 %v2174, 16
    %v2568 = vrot.slane %v2566, 4
    %v2569 = vor.u32 %v2568, %v2564
    %v2570 = vrot.slane %v2569, 4
    %v2572 = vshll.u32 %v2241, 16
    %v2574 = vrot.slane %v2572, 5
    %v2575 = vsel %vm2263, %v2570, %v2574
    %v2577 = vshrl.u32 %v2175, 16
    %v2579 = vrot.slane %v2577, 4
    %v2580 = vshll.u32 %v2175, 16
    %v2582 = vrot.slane %v2580, 5
    %v2583 = vor.u32 %v2579, %v2582
    %v2584 = vrot.slane %v2583, 4
    %v2586 = vshll.u32 %v2176, 16
    %v2588 = vrot.slane %v2586, 5
    %v2589 = vsel %vm2263, %v2584, %v2588
    %v2590 = vshrl.u32 %v2176, 16
    %v2592 = vrot.slane %v2590, 4
    %v2593 = vor.u32 %v2592, %v2588
    %v2594 = vrot.slane %v2593, 4
    %v2596 = vshll.u32 %v2242, 16
    %v2598 = vrot.slane %v2596, 5
    %v2599 = vsel %vm2263, %v2594, %v2598
    %v2601 = vshrl.u32 %v2177, 16
    %v2603 = vrot.slane %v2601, 4
    %v2604 = vshll.u32 %v2177, 16
    %v2606 = vrot.slane %v2604, 5
    %v2607 = vor.u32 %v2603, %v2606
    %v2608 = vrot.slane %v2607, 4
    %v2610 = vshll.u32 %v2178, 16
    %v2612 = vrot.slane %v2610, 5
    %v2613 = vsel %vm2263, %v2608, %v2612
    %v2614 = vshrl.u32 %v2178, 16
    %v2616 = vrot.slane %v2614, 4
    %v2617 = vor.u32 %v2616, %v2612
    %v2618 = vrot.slane %v2617, 4
    %v2620 = vshll.u32 %v2243, 16
    %v2622 = vrot.slane %v2620, 5
    %v2623 = vsel %vm2263, %v2618, %v2622
    %v2625 = vshrl.u32 %v2179, 16
    %v2627 = vrot.slane %v2625, 4
    %v2628 = vshll.u32 %v2179, 16
    %v2630 = vrot.slane %v2628, 5
    %v2631 = vor.u32 %v2627, %v2630
    %v2632 = vrot.slane %v2631, 4
    %v2634 = vshll.u32 %v2180, 16
    %v2636 = vrot.slane %v2634, 5
    %v2637 = vsel %vm2263, %v2632, %v2636
    %v2638 = vshrl.u32 %v2180, 16
    %v2640 = vrot.slane %v2638, 4
    %v2641 = vor.u32 %v2640, %v2636
    %v2642 = vrot.slane %v2641, 4
    %v2644 = vshll.u32 %v2244, 16
    %v2646 = vrot.slane %v2644, 5
    %v2647 = vsel %vm2263, %v2642, %v2646
    %v2649 = vshrl.u32 %v2181, 16
    %v2651 = vrot.slane %v2649, 4
    %v2652 = vshll.u32 %v2181, 16
    %v2654 = vrot.slane %v2652, 5
    %v2655 = vor.u32 %v2651, %v2654
    %v2656 = vrot.slane %v2655, 4
    %v2658 = vshll.u32 %v2182, 16
    %v2660 = vrot.slane %v2658, 5
    %v2661 = vsel %vm2263, %v2656, %v2660
    %v2662 = vshrl.u32 %v2182, 16
    %v2664 = vrot.slane %v2662, 4
    %v2665 = vor.u32 %v2664, %v2660
    %v2666 = vrot.slane %v2665, 4
    %v2668 = vshll.u32 %v2245, 16
    %v2670 = vrot.slane %v2668, 5
    %v2671 = vsel %vm2263, %v2666, %v2670
    %v2673 = vshrl.u32 %v2183, 16
    %v2675 = vrot.slane %v2673, 4
    %v2676 = vshll.u32 %v2183, 16
    %v2678 = vrot.slane %v2676, 5
    %v2679 = vor.u32 %v2675, %v2678
    %v2680 = vrot.slane %v2679, 4
    %v2682 = vshll.u32 %v2184, 16
    %v2684 = vrot.slane %v2682, 5
    %v2685 = vsel %vm2263, %v2680, %v2684
    %v2686 = vshrl.u32 %v2184, 16
    %v2688 = vrot.slane %v2686, 4
    %v2689 = vor.u32 %v2688, %v2684
    %v2690 = vrot.slane %v2689, 4
    %v2692 = vshll.u32 %v2246, 16
    %v2694 = vrot.slane %v2692, 5
    %v2695 = vsel %vm2263, %v2690, %v2694
    %v2697 = vshrl.u32 %v2185, 16
    %v2699 = vrot.slane %v2697, 4
    %v2700 = vshll.u32 %v2185, 16
    %v2702 = vrot.slane %v2700, 5
    %v2703 = vor.u32 %v2699, %v2702
    %v2704 = vrot.slane %v2703, 4
    %v2706 = vshll.u32 %v2186, 16
    %v2708 = vrot.slane %v2706, 5
    %v2709 = vsel %vm2263, %v2704, %v2708
    %v2710 = vshrl.u32 %v2186, 16
    %v2712 = vrot.slane %v2710, 4
    %v2713 = vor.u32 %v2712, %v2708
    %v2714 = vrot.slane %v2713, 4
    %v2716 = vshll.u32 %v2247, 16
    %v2718 = vrot.slane %v2716, 5
    %v2719 = vsel %vm2263, %v2714, %v2718
    %v2721 = vshrl.u32 %v2187, 16
    %v2723 = vrot.slane %v2721, 4
    %v2724 = vshll.u32 %v2187, 16
    %v2726 = vrot.slane %v2724, 5
    %v2727 = vor.u32 %v2723, %v2726
    %v2728 = vrot.slane %v2727, 4
    %v2730 = vshll.u32 %v2188, 16
    %v2732 = vrot.slane %v2730, 5
    %v2733 = vsel %vm2263, %v2728, %v2732
    %v2734 = vshrl.u32 %v2188, 16
    %v2736 = vrot.slane %v2734, 4
    %v2737 = vor.u32 %v2736, %v2732
    %v2738 = vrot.slane %v2737, 4
    %v2740 = vshll.u32 %v2248, 16
    %v2742 = vrot.slane %v2740, 5
    %v2743 = vsel %vm2263, %v2738, %v2742
    %v2745 = vshrl.u32 %v2189, 16
    %v2747 = vrot.slane %v2745, 4
    %v2748 = vshll.u32 %v2189, 16
    %v2750 = vrot.slane %v2748, 5
    %v2751 = vor.u32 %v2747, %v2750
    %v2752 = vrot.slane %v2751, 4
    %v2754 = vshll.u32 %v2190, 16
    %v2756 = vrot.slane %v2754, 5
    %v2757 = vsel %vm2263, %v2752, %v2756
    %v2758 = vshrl.u32 %v2190, 16
    %v2760 = vrot.slane %v2758, 4
    %v2761 = vor.u32 %v2760, %v2756
    %v2762 = vrot.slane %v2761, 4
    %v2764 = vshll.u32 %v2249, 16
    %v2766 = vrot.slane %v2764, 5
    %v2767 = vsel %vm2263, %v2762, %v2766
    %v2769 = vshrl.u32 %v2191, 16
    %v2771 = vrot.slane %v2769, 4
    %v2772 = vshll.u32 %v2191, 16
    %v2774 = vrot.slane %v2772, 5
    %v2775 = vor.u32 %v2771, %v2774
    %v2776 = vrot.slane %v2775, 4
    %v2778 = vshll.u32 %v2192, 16
    %v2780 = vrot.slane %v2778, 5
    %v2781 = vsel %vm2263, %v2776, %v2780
    %v2782 = vshrl.u32 %v2192, 16
    %v2784 = vrot.slane %v2782, 4
    %v2785 = vor.u32 %v2784, %v2780
    %v2786 = vrot.slane %v2785, 4
    %v2788 = vshll.u32 %v2250, 16
    %v2790 = vrot.slane %v2788, 5
    %v2791 = vsel %vm2263, %v2786, %v2790
    %v2793 = vshrl.u32 %v2193, 16
    %v2795 = vrot.slane %v2793, 4
    %v2796 = vshll.u32 %v2193, 16
    %v2798 = vrot.slane %v2796, 5
    %v2799 = vor.u32 %v2795, %v2798
    %v2800 = vrot.slane %v2799, 4
    %v2802 = vshll.u32 %v2194, 16
    %v2804 = vrot.slane %v2802, 5
    %v2805 = vsel %vm2263, %v2800, %v2804
    %v2806 = vshrl.u32 %v2194, 16
    %v2808 = vrot.slane %v2806, 4
    %v2809 = vor.u32 %v2808, %v2804
    %v2810 = vrot.slane %v2809, 4
    %v2812 = vshll.u32 %v2251, 16
    %v2814 = vrot.slane %v2812, 5
    %v2815 = vsel %vm2263, %v2810, %v2814
    %v2817 = vshrl.u32 %v2195, 16
    %v2819 = vrot.slane %v2817, 4
    %v2820 = vshll.u32 %v2195, 16
    %v2822 = vrot.slane %v2820, 5
    %v2823 = vor.u32 %v2819, %v2822
    %v2824 = vrot.slane %v2823, 4
    %v2826 = vshll.u32 %v2196, 16
    %v2828 = vrot.slane %v2826, 5
    %v2829 = vsel %vm2263, %v2824, %v2828
    %v2830 = vshrl.u32 %v2196, 16
    %v2832 = vrot.slane %v2830, 4
    %v2833 = vor.u32 %v2832, %v2828
    %v2834 = vrot.slane %v2833, 4
    %v2836 = vshll.u32 %v2252, 16
    %v2838 = vrot.slane %v2836, 5
    %v2839 = vsel %vm2263, %v2834, %v2838
    %v2841 = vshrl.u32 %v2197, 16
    %v2843 = vrot.slane %v2841, 4
    %v2844 = vshll.u32 %v2197, 16
    %v2846 = vrot.slane %v2844, 5
    %v2847 = vor.u32 %v2843, %v2846
    %v2848 = vrot.slane %v2847, 4
    %v2850 = vshll.u32 %v2198, 16
    %v2852 = vrot.slane %v2850, 5
    %v2853 = vsel %vm2263, %v2848, %v2852
    %v2854 = vshrl.u32 %v2198, 16
    %v2856 = vrot.slane %v2854, 4
    %v2857 = vor.u32 %v2856, %v2852
    %v2858 = vrot.slane %v2857, 4
    %v2860 = vshll.u32 %v2253, 16
    %v2862 = vrot.slane %v2860, 5
    %v2863 = vsel %vm2263, %v2858, %v2862
    %v2865 = vshrl.u32 %v2199, 16
    %v2867 = vrot.slane %v2865, 4
    %v2868 = vshll.u32 %v2199, 16
    %v2870 = vrot.slane %v2868, 5
    %v2871 = vor.u32 %v2867, %v2870
    %v2872 = vrot.slane %v2871, 4
    %v2874 = vshll.u32 %v2200, 16
    %v2876 = vrot.slane %v2874, 5
    %v2877 = vsel %vm2263, %v2872, %v2876
    %v2878 = vshrl.u32 %v2200, 16
    %v2880 = vrot.slane %v2878, 4
    %v2881 = vor.u32 %v2880, %v2876
    %v2882 = vrot.slane %v2881, 4
    %v2884 = vshll.u32 %v2254, 16
    %v2886 = vrot.slane %v2884, 5
    %v2887 = vsel %vm2263, %v2882, %v2886
    %v2889 = vshrl.u32 %v2201, 16
    %v2891 = vrot.slane %v2889, 4
    %v2892 = vshll.u32 %v2201, 16
    %v2894 = vrot.slane %v2892, 5
    %v2895 = vor.u32 %v2891, %v2894
    %v2896 = vrot.slane %v2895, 4
    %v2898 = vshll.u32 %v2202, 16
    %v2900 = vrot.slane %v2898, 5
    %v2901 = vsel %vm2263, %v2896, %v2900
    %v2902 = vshrl.u32 %v2202, 16
    %v2904 = vrot.slane %v2902, 4
    %v2905 = vor.u32 %v2904, %v2900
    %v2906 = vrot.slane %v2905, 4
    %v2908 = vshll.u32 %v2255, 16
    %v2910 = vrot.slane %v2908, 5
    %v2911 = vsel %vm2263, %v2906, %v2910
    %v2913 = vshrl.u32 %v2203, 16
    %v2915 = vrot.slane %v2913, 4
    %v2916 = vshll.u32 %v2203, 16
    %v2918 = vrot.slane %v2916, 5
    %v2919 = vor.u32 %v2915, %v2918
    %v2920 = vrot.slane %v2919, 4
    %v2922 = vshll.u32 %v2204, 16
    %v2924 = vrot.slane %v2922, 5
    %v2925 = vsel %vm2263, %v2920, %v2924
    %v2926 = vshrl.u32 %v2204, 16
    %v2928 = vrot.slane %v2926, 4
    %v2929 = vor.u32 %v2928, %v2924
    %v2930 = vrot.slane %v2929, 4
    %v2932 = vshll.u32 %v2256, 16
    %v2934 = vrot.slane %v2932, 5
    %v2935 = vsel %vm2263, %v2930, %v2934
    %v2937 = vshrl.u32 %v2205, 16
    %v2939 = vrot.slane %v2937, 4
    %v2940 = vshll.u32 %v2205, 16
    %v2942 = vrot.slane %v2940, 5
    %v2943 = vor.u32 %v2939, %v2942
    %v2944 = vrot.slane %v2943, 4
    %v2946 = vshll.u32 %v2206, 16
    %v2948 = vrot.slane %v2946, 5
    %v2949 = vsel %vm2263, %v2944, %v2948
    %v2950 = vshrl.u32 %v2206, 16
    %v2952 = vrot.slane %v2950, 4
    %v2953 = vor.u32 %v2952, %v2948
    %v2954 = vrot.slane %v2953, 4
    %v2956 = vshll.u32 %v2257, 16
    %v2958 = vrot.slane %v2956, 5
    %v2959 = vsel %vm2263, %v2954, %v2958
    %v2961 = vshrl.u32 %v2207, 16
    %v2963 = vrot.slane %v2961, 4
    %v2964 = vshll.u32 %v2207, 16
    %v2966 = vrot.slane %v2964, 5
    %v2967 = vor.u32 %v2963, %v2966
    %v2968 = vrot.slane %v2967, 4
    %v2970 = vshll.u32 %v2208, 16
    %v2972 = vrot.slane %v2970, 5
    %v2973 = vsel %vm2263, %v2968, %v2972
    %v2974 = vshrl.u32 %v2208, 16
    %v2976 = vrot.slane %v2974, 4
    %v2977 = vor.u32 %v2976, %v2972
    %v2978 = vrot.slane %v2977, 4
    %v2980 = vshll.u32 %v2258, 16
    %v2982 = vrot.slane %v2980, 5
    %v2983 = vsel %vm2263, %v2978, %v2982
    %v2985 = vshrl.u32 %v2209, 16
    %v2987 = vrot.slane %v2985, 4
    %v2988 = vshll.u32 %v2209, 16
    %v2990 = vrot.slane %v2988, 5
    %v2991 = vor.u32 %v2987, %v2990
    %v2992 = vrot.slane %v2991, 4
    %v2994 = vshll.u32 %v2210, 16
    %v2996 = vrot.slane %v2994, 5
    %v2997 = vsel %vm2263, %v2992, %v2996
    %v2998 = vshrl.u32 %v2210, 16
    %v3000 = vrot.slane %v2998, 4
    %v3001 = vor.u32 %v3000, %v2996
    %v3002 = vrot.slane %v3001, 4
    %v3004 = vshll.u32 %v2259, 16
    %v3006 = vrot.slane %v3004, 5
    %v3007 = vsel %vm2263, %v3002, %v3006
    %v3009 = vshrl.u32 %v2211, 16
    %v3011 = vrot.slane %v3009, 4
    %v3012 = vshll.u32 %v2211, 16
    %v3014 = vrot.slane %v3012, 5
    %v3015 = vor.u32 %v3011, %v3014
    %v3016 = vrot.slane %v3015, 4
    %v3018 = vshll.u32 %v2212, 16
    %v3020 = vrot.slane %v3018, 5
    %v3021 = vsel %vm2263, %v3016, %v3020
    %v3022 = vshrl.u32 %v2212, 16
    %v3024 = vrot.slane %v3022, 4
    %v3025 = vor.u32 %v3024, %v3020
    %v3026 = vrot.slane %v3025, 4
    %v3028 = vshll.u32 %v2260, 16
    %v3030 = vrot.slane %v3028, 5
    %v3031 = vsel %vm2263, %v3026, %v3030
    %s3032 = scalar_lea.vmem [#allocation8], 64
    %v3033 = vld [vmem:[%s3032] sm:$0xf]
    %v3034 = vld [vmem:[%s3032 + $0x4] sm:$0xf]
    %v3035 = vld [vmem:[%s3032 + $0x8] sm:$0xf]
    %v3036 = vld [vmem:[%s3032 + $0xc] sm:$0xf]
    %v3037 = vld [vmem:[%s3032 + $0x10] sm:$0xf]
    %v3038 = vld [vmem:[%s3032 + $0x14] sm:$0xf]
    %v3039 = vld [vmem:[%s3032 + $0x18] sm:$0xf]
    %v3040 = vld [vmem:[%s3032 + $0x1c] sm:$0xf]
    %v3041 = vld [vmem:[%s3032 + $0x20] sm:$0xf]
    %v3042 = vld [vmem:[%s3032 + $0x24] sm:$0xf]
    %v3043 = vld [vmem:[%s3032 + $0x28] sm:$0xf]
    %v3044 = vld [vmem:[%s3032 + $0x2c] sm:$0xf]
    %v3045 = vld [vmem:[%s3032 + $0x30] sm:$0xf]
    %v3046 = vld [vmem:[%s3032 + $0x34] sm:$0xf]
    %v3047 = vld [vmem:[%s3032 + $0x38] sm:$0xf]
    %v3048 = vld [vmem:[%s3032 + $0x3c] sm:$0xf]
    %v3049 = vunpack.c.l.b16 %v2277
    %v3050 = vunpack.c.l.b16 %v2287
    %v3051 = vunpack.c.l.b16 %v2301
    %v3052 = vunpack.c.l.b16 %v2311
    %v3053 = vunpack.c.l.b16 %v2325
    %v3054 = vunpack.c.l.b16 %v2335
    %v3055 = vunpack.c.l.b16 %v2349
    %v3056 = vunpack.c.l.b16 %v2359
    %v3057 = vunpack.c.l.b16 %v2373
    %v3058 = vunpack.c.l.b16 %v2383
    %v3059 = vunpack.c.l.b16 %v2397
    %v3060 = vunpack.c.l.b16 %v2407
    %v3061 = vunpack.c.l.b16 %v2421
    %v3062 = vunpack.c.l.b16 %v2431
    %v3063 = vunpack.c.l.b16 %v2445
    %v3064 = vunpack.c.l.b16 %v2455
    %v3065 = vunpack.c.l.b16 %v2469
    %v3066 = vunpack.c.l.b16 %v2479
    %v3067 = vunpack.c.l.b16 %v2493
    %v3068 = vunpack.c.l.b16 %v2503
    %v3069 = vunpack.c.l.b16 %v2517
    %v3070 = vunpack.c.l.b16 %v2527
    %v3071 = vunpack.c.l.b16 %v2541
    %v3072 = vunpack.c.l.b16 %v2551
    %v3073 = vunpack.c.l.b16 %v2565
    %v3074 = vunpack.c.l.b16 %v2575
    %v3075 = vunpack.c.l.b16 %v2589
    %v3076 = vunpack.c.l.b16 %v2599
    %v3077 = vunpack.c.l.b16 %v2613
    %v3078 = vunpack.c.l.b16 %v2623
    %v3079 = vunpack.c.l.b16 %v2637
    %v3080 = vunpack.c.l.b16 %v2647
    %v3081 = vunpack.c.l.b16 %v2661
    %v3082 = vunpack.c.l.b16 %v2671
    %v3083 = vunpack.c.l.b16 %v2685
    %v3084 = vunpack.c.l.b16 %v2695
    %v3085 = vunpack.c.l.b16 %v2709
    %v3086 = vunpack.c.l.b16 %v2719
    %v3087 = vunpack.c.l.b16 %v2733
    %v3088 = vunpack.c.l.b16 %v2743
    %v3089 = vunpack.c.l.b16 %v2757
    %v3090 = vunpack.c.l.b16 %v2767
    %v3091 = vunpack.c.l.b16 %v2781
    %v3092 = vunpack.c.l.b16 %v2791
    %v3093 = vunpack.c.l.b16 %v2805
    %v3094 = vunpack.c.l.b16 %v2815
    %v3095 = vunpack.c.l.b16 %v2829
    %v3096 = vunpack.c.l.b16 %v2839
    %v3097 = vunpack.c.l.b16 %v2853
    %v3098 = vunpack.c.l.b16 %v2863
    %v3099 = vunpack.c.l.b16 %v2877
    %v3100 = vunpack.c.l.b16 %v2887
    %v3101 = vunpack.c.l.b16 %v2901
    %v3102 = vunpack.c.l.b16 %v2911
    %v3103 = vunpack.c.l.b16 %v2925
    %v3104 = vunpack.c.l.b16 %v2935
    %v3105 = vunpack.c.l.b16 %v2949
    %v3106 = vunpack.c.l.b16 %v2959
    %v3107 = vunpack.c.l.b16 %v2973
    %v3108 = vunpack.c.l.b16 %v2983
    %v3109 = vunpack.c.l.b16 %v2997
    %v3110 = vunpack.c.l.b16 %v3007
    %v3111 = vunpack.c.l.b16 %v3021
    %v3112 = vunpack.c.l.b16 %v3031
    %v3113 = vpack.c.b16 %v3050, %v3049
    %v3114 = vpack.c.b16 %v3052, %v3051
    %v3115 = vpack.c.b16 %v3054, %v3053
    %v3116 = vpack.c.b16 %v3056, %v3055
    %v3117 = vpack.c.b16 %v3058, %v3057
    %v3118 = vpack.c.b16 %v3060, %v3059
    %v3119 = vpack.c.b16 %v3062, %v3061
    %v3120 = vpack.c.b16 %v3064, %v3063
    %v3121 = vpack.c.b16 %v3066, %v3065
    %v3122 = vpack.c.b16 %v3068, %v3067
    %v3123 = vpack.c.b16 %v3070, %v3069
    %v3124 = vpack.c.b16 %v3072, %v3071
    %v3125 = vpack.c.b16 %v3074, %v3073
    %v3126 = vpack.c.b16 %v3076, %v3075
    %v3127 = vpack.c.b16 %v3078, %v3077
    %v3128 = vpack.c.b16 %v3080, %v3079
    %v3129 = vpack.c.b16 %v3082, %v3081
    %v3130 = vpack.c.b16 %v3084, %v3083
    %v3131 = vpack.c.b16 %v3086, %v3085
    %v3132 = vpack.c.b16 %v3088, %v3087
    %v3133 = vpack.c.b16 %v3090, %v3089
    %v3134 = vpack.c.b16 %v3092, %v3091
    %v3135 = vpack.c.b16 %v3094, %v3093
    %v3136 = vpack.c.b16 %v3096, %v3095
    %v3137 = vpack.c.b16 %v3098, %v3097
    %v3138 = vpack.c.b16 %v3100, %v3099
    %v3139 = vpack.c.b16 %v3102, %v3101
    %v3140 = vpack.c.b16 %v3104, %v3103
    %v3141 = vpack.c.b16 %v3106, %v3105
    %v3142 = vpack.c.b16 %v3108, %v3107
    %v3143 = vpack.c.b16 %v3110, %v3109
    %v3144 = vpack.c.b16 %v3112, %v3111
    %v3193 = vunpack.c.l.b16 %v3033
    %v3194 = vunpack.c.l.b16 %v3034
    %v3195 = vunpack.c.l.b16 %v3035
    %v3196 = vunpack.c.l.b16 %v3036
    %v3197 = vunpack.c.l.b16 %v3037
    %v3198 = vunpack.c.l.b16 %v3038
    %v3199 = vunpack.c.l.b16 %v3039
    %v3200 = vunpack.c.l.b16 %v3040
    %v3201 = vunpack.c.l.b16 %v3041
    %v3202 = vunpack.c.l.b16 %v3042
    %v3203 = vunpack.c.l.b16 %v3043
    %v3204 = vunpack.c.l.b16 %v3044
    %v3205 = vunpack.c.l.b16 %v3045
    %v3206 = vunpack.c.l.b16 %v3046
    %v3207 = vunpack.c.l.b16 %v3047
    %v3208 = vunpack.c.l.b16 %v3048
    %v3209 = vpack.c.b16 %v3194, %v3193
    %v3210 = vpack.c.b16 %v3196, %v3195
    %v3211 = vpack.c.b16 %v3198, %v3197
    %v3212 = vpack.c.b16 %v3200, %v3199
    %v3213 = vpack.c.b16 %v3202, %v3201
    %v3214 = vpack.c.b16 %v3204, %v3203
    %v3215 = vpack.c.b16 %v3206, %v3205
    %v3216 = vpack.c.b16 %v3208, %v3207
    %3225 = vmatpush.bf16.msra.mxu0 %v3216
    %3226 = vmatpush.bf16.msra.mxu0 %v3215
    %3227 = vmatpush.bf16.msra.mxu0 %v3214
    %3228 = vmatpush.bf16.msra.mxu0 %v3213
    %3229 = vmatpush.bf16.msra.mxu0 %v3212
    %3230 = vmatpush.bf16.msra.mxu0 %v3211
    %3231 = vmatpush.bf16.msra.mxu0 %v3210
    %3232 = vmatpush.bf16.msra.mxu0 %v3209
    %3233 = vmatmul.bf16.gmra.mxu0 %v3113
    %v3234 = vpop.f32.mrf.mxu0
    %v3235 = vadd.f32 0.0, %v3234
    %v3236 = vpop.f32.mrf.mxu0
    %v3237 = vadd.f32 0.0, %v3236
    %3238 = vmatmul.bf16.gmra.mxu0 %v3114
    %v3239 = vpop.f32.mrf.mxu0
    %v3240 = vadd.f32 0.0, %v3239
    %v3241 = vpop.f32.mrf.mxu0
    %v3242 = vadd.f32 0.0, %v3241
    %3243 = vmatmul.bf16.gmra.mxu0 %v3115
    %v3244 = vpop.f32.mrf.mxu0
    %v3245 = vadd.f32 0.0, %v3244
    %v3246 = vpop.f32.mrf.mxu0
    %v3247 = vadd.f32 0.0, %v3246
    %3248 = vmatmul.bf16.gmra.mxu0 %v3116
    %v3249 = vpop.f32.mrf.mxu0
    %v3250 = vadd.f32 0.0, %v3249
    %v3251 = vpop.f32.mrf.mxu0
    %v3252 = vadd.f32 0.0, %v3251
    %3253 = vmatmul.bf16.gmra.mxu0 %v3117
    %v3254 = vpop.f32.mrf.mxu0
    %v3255 = vadd.f32 0.0, %v3254
    %v3256 = vpop.f32.mrf.mxu0
    %v3257 = vadd.f32 0.0, %v3256
    %3258 = vmatmul.bf16.gmra.mxu0 %v3118
    %v3259 = vpop.f32.mrf.mxu0
    %v3260 = vadd.f32 0.0, %v3259
    %v3261 = vpop.f32.mrf.mxu0
    %v3262 = vadd.f32 0.0, %v3261
    %3263 = vmatmul.bf16.gmra.mxu0 %v3119
    %v3264 = vpop.f32.mrf.mxu0
    %v3265 = vadd.f32 0.0, %v3264
    %v3266 = vpop.f32.mrf.mxu0
    %v3267 = vadd.f32 0.0, %v3266
    %3268 = vmatmul.bf16.gmra.mxu0 %v3120
    %v3269 = vpop.f32.mrf.mxu0
    %v3270 = vadd.f32 0.0, %v3269
    %v3271 = vpop.f32.mrf.mxu0
    %v3272 = vadd.f32 0.0, %v3271
    %3273 = vmatmul.bf16.gmra.mxu0 %v3121
    %v3274 = vpop.f32.mrf.mxu0
    %v3275 = vadd.f32 0.0, %v3274
    %v3276 = vpop.f32.mrf.mxu0
    %v3277 = vadd.f32 0.0, %v3276
    %3278 = vmatmul.bf16.gmra.mxu0 %v3122
    %v3279 = vpop.f32.mrf.mxu0
    %v3280 = vadd.f32 0.0, %v3279
    %v3281 = vpop.f32.mrf.mxu0
    %v3282 = vadd.f32 0.0, %v3281
    %3283 = vmatmul.bf16.gmra.mxu0 %v3123
    %v3284 = vpop.f32.mrf.mxu0
    %v3285 = vadd.f32 0.0, %v3284
    %v3286 = vpop.f32.mrf.mxu0
    %v3287 = vadd.f32 0.0, %v3286
    %3288 = vmatmul.bf16.gmra.mxu0 %v3124
    %v3289 = vpop.f32.mrf.mxu0
    %v3290 = vadd.f32 0.0, %v3289
    %v3291 = vpop.f32.mrf.mxu0
    %v3292 = vadd.f32 0.0, %v3291
    %3293 = vmatmul.bf16.gmra.mxu0 %v3125
    %v3294 = vpop.f32.mrf.mxu0
    %v3295 = vadd.f32 0.0, %v3294
    %v3296 = vpop.f32.mrf.mxu0
    %v3297 = vadd.f32 0.0, %v3296
    %3298 = vmatmul.bf16.gmra.mxu0 %v3126
    %v3299 = vpop.f32.mrf.mxu0
    %v3300 = vadd.f32 0.0, %v3299
    %v3301 = vpop.f32.mrf.mxu0
    %v3302 = vadd.f32 0.0, %v3301
    %3303 = vmatmul.bf16.gmra.mxu0 %v3127
    %v3304 = vpop.f32.mrf.mxu0
    %v3305 = vadd.f32 0.0, %v3304
    %v3306 = vpop.f32.mrf.mxu0
    %v3307 = vadd.f32 0.0, %v3306
    %3308 = vmatmul.bf16.gmra.mxu0 %v3128
    %v3309 = vpop.f32.mrf.mxu0
    %v3310 = vadd.f32 0.0, %v3309
    %v3311 = vpop.f32.mrf.mxu0
    %v3312 = vadd.f32 0.0, %v3311
    %3313 = vmatmul.bf16.gmra.mxu0 %v3129
    %v3314 = vpop.f32.mrf.mxu0
    %v3315 = vadd.f32 0.0, %v3314
    %v3316 = vpop.f32.mrf.mxu0
    %v3317 = vadd.f32 0.0, %v3316
    %3318 = vmatmul.bf16.gmra.mxu0 %v3130
    %v3319 = vpop.f32.mrf.mxu0
    %v3320 = vadd.f32 0.0, %v3319
    %v3321 = vpop.f32.mrf.mxu0
    %v3322 = vadd.f32 0.0, %v3321
    %3323 = vmatmul.bf16.gmra.mxu0 %v3131
    %v3324 = vpop.f32.mrf.mxu0
    %v3325 = vadd.f32 0.0, %v3324
    %v3326 = vpop.f32.mrf.mxu0
    %v3327 = vadd.f32 0.0, %v3326
    %3328 = vmatmul.bf16.gmra.mxu0 %v3132
    %v3329 = vpop.f32.mrf.mxu0
    %v3330 = vadd.f32 0.0, %v3329
    %v3331 = vpop.f32.mrf.mxu0
    %v3332 = vadd.f32 0.0, %v3331
    %3333 = vmatmul.bf16.gmra.mxu0 %v3133
    %v3334 = vpop.f32.mrf.mxu0
    %v3335 = vadd.f32 0.0, %v3334
    %v3336 = vpop.f32.mrf.mxu0
    %v3337 = vadd.f32 0.0, %v3336
    %3338 = vmatmul.bf16.gmra.mxu0 %v3134
    %v3339 = vpop.f32.mrf.mxu0
    %v3340 = vadd.f32 0.0, %v3339
    %v3341 = vpop.f32.mrf.mxu0
    %v3342 = vadd.f32 0.0, %v3341
    %3343 = vmatmul.bf16.gmra.mxu0 %v3135
    %v3344 = vpop.f32.mrf.mxu0
    %v3345 = vadd.f32 0.0, %v3344
    %v3346 = vpop.f32.mrf.mxu0
    %v3347 = vadd.f32 0.0, %v3346
    %3348 = vmatmul.bf16.gmra.mxu0 %v3136
    %v3349 = vpop.f32.mrf.mxu0
    %v3350 = vadd.f32 0.0, %v3349
    %v3351 = vpop.f32.mrf.mxu0
    %v3352 = vadd.f32 0.0, %v3351
    %3353 = vmatmul.bf16.gmra.mxu0 %v3137
    %v3354 = vpop.f32.mrf.mxu0
    %v3355 = vadd.f32 0.0, %v3354
    %v3356 = vpop.f32.mrf.mxu0
    %v3357 = vadd.f32 0.0, %v3356
    %3358 = vmatmul.bf16.gmra.mxu0 %v3138
    %v3359 = vpop.f32.mrf.mxu0
    %v3360 = vadd.f32 0.0, %v3359
    %v3361 = vpop.f32.mrf.mxu0
    %v3362 = vadd.f32 0.0, %v3361
    %3363 = vmatmul.bf16.gmra.mxu0 %v3139
    %v3364 = vpop.f32.mrf.mxu0
    %v3365 = vadd.f32 0.0, %v3364
    %v3366 = vpop.f32.mrf.mxu0
    %v3367 = vadd.f32 0.0, %v3366
    %3368 = vmatmul.bf16.gmra.mxu0 %v3140
    %v3369 = vpop.f32.mrf.mxu0
    %v3370 = vadd.f32 0.0, %v3369
    %v3371 = vpop.f32.mrf.mxu0
    %v3372 = vadd.f32 0.0, %v3371
    %3373 = vmatmul.bf16.gmra.mxu0 %v3141
    %v3374 = vpop.f32.mrf.mxu0
    %v3375 = vadd.f32 0.0, %v3374
    %v3376 = vpop.f32.mrf.mxu0
    %v3377 = vadd.f32 0.0, %v3376
    %3378 = vmatmul.bf16.gmra.mxu0 %v3142
    %v3379 = vpop.f32.mrf.mxu0
    %v3380 = vadd.f32 0.0, %v3379
    %v3381 = vpop.f32.mrf.mxu0
    %v3382 = vadd.f32 0.0, %v3381
    %3383 = vmatmul.bf16.gmra.mxu0 %v3143
    %v3384 = vpop.f32.mrf.mxu0
    %v3385 = vadd.f32 0.0, %v3384
    %v3386 = vpop.f32.mrf.mxu0
    %v3387 = vadd.f32 0.0, %v3386
    %3388 = vmatmul.bf16.gmra.mxu0 %v3144
    %v3389 = vpop.f32.mrf.mxu0
    %v3390 = vadd.f32 0.0, %v3389
    %v3391 = vpop.f32.mrf.mxu0
    %v3392 = vadd.f32 0.0, %v3391
    %3393 = vdwg.mxu0
    %v3458 = vunpack.c.l.b16 %v2149
    %v3459 = vunpack.c.l.b16 %v2150
    %v3460 = vunpack.c.l.b16 %v2151
    %v3461 = vunpack.c.l.b16 %v2152
    %v3462 = vunpack.c.l.b16 %v2153
    %v3463 = vunpack.c.l.b16 %v2154
    %v3464 = vunpack.c.l.b16 %v2155
    %v3465 = vunpack.c.l.b16 %v2156
    %v3466 = vunpack.c.l.b16 %v2157
    %v3467 = vunpack.c.l.b16 %v2158
    %v3468 = vunpack.c.l.b16 %v2159
    %v3469 = vunpack.c.l.b16 %v2160
    %v3470 = vunpack.c.l.b16 %v2161
    %v3471 = vunpack.c.l.b16 %v2162
    %v3472 = vunpack.c.l.b16 %v2163
    %v3473 = vunpack.c.l.b16 %v2164
    %v3474 = vunpack.c.l.b16 %v2165
    %v3475 = vunpack.c.l.b16 %v2166
    %v3476 = vunpack.c.l.b16 %v2167
    %v3477 = vunpack.c.l.b16 %v2168
    %v3478 = vunpack.c.l.b16 %v2169
    %v3479 = vunpack.c.l.b16 %v2170
    %v3480 = vunpack.c.l.b16 %v2171
    %v3481 = vunpack.c.l.b16 %v2172
    %v3482 = vunpack.c.l.b16 %v2173
    %v3483 = vunpack.c.l.b16 %v2174
    %v3484 = vunpack.c.l.b16 %v2175
    %v3485 = vunpack.c.l.b16 %v2176
    %v3486 = vunpack.c.l.b16 %v2177
    %v3487 = vunpack.c.l.b16 %v2178
    %v3488 = vunpack.c.l.b16 %v2179
    %v3489 = vunpack.c.l.b16 %v2180
    %v3490 = vunpack.c.l.b16 %v2181
    %v3491 = vunpack.c.l.b16 %v2182
    %v3492 = vunpack.c.l.b16 %v2183
    %v3493 = vunpack.c.l.b16 %v2184
    %v3494 = vunpack.c.l.b16 %v2185
    %v3495 = vunpack.c.l.b16 %v2186
    %v3496 = vunpack.c.l.b16 %v2187
    %v3497 = vunpack.c.l.b16 %v2188
    %v3498 = vunpack.c.l.b16 %v2189
    %v3499 = vunpack.c.l.b16 %v2190
    %v3500 = vunpack.c.l.b16 %v2191
    %v3501 = vunpack.c.l.b16 %v2192
    %v3502 = vunpack.c.l.b16 %v2193
    %v3503 = vunpack.c.l.b16 %v2194
    %v3504 = vunpack.c.l.b16 %v2195
    %v3505 = vunpack.c.l.b16 %v2196
    %v3506 = vunpack.c.l.b16 %v2197
    %v3507 = vunpack.c.l.b16 %v2198
    %v3508 = vunpack.c.l.b16 %v2199
    %v3509 = vunpack.c.l.b16 %v2200
    %v3510 = vunpack.c.l.b16 %v2201
    %v3511 = vunpack.c.l.b16 %v2202
    %v3512 = vunpack.c.l.b16 %v2203
    %v3513 = vunpack.c.l.b16 %v2204
    %v3514 = vunpack.c.l.b16 %v2205
    %v3515 = vunpack.c.l.b16 %v2206
    %v3516 = vunpack.c.l.b16 %v2207
    %v3517 = vunpack.c.l.b16 %v2208
    %v3518 = vunpack.c.l.b16 %v2209
    %v3519 = vunpack.c.l.b16 %v2210
    %v3520 = vunpack.c.l.b16 %v2211
    %v3521 = vunpack.c.l.b16 %v2212
    %v3522 = vpack.c.b16 %v3459, %v3458
    %v3523 = vpack.c.b16 %v3461, %v3460
    %v3524 = vpack.c.b16 %v3463, %v3462
    %v3525 = vpack.c.b16 %v3465, %v3464
    %v3526 = vpack.c.b16 %v3467, %v3466
    %v3527 = vpack.c.b16 %v3469, %v3468
    %v3528 = vpack.c.b16 %v3471, %v3470
    %v3529 = vpack.c.b16 %v3473, %v3472
    %v3530 = vpack.c.b16 %v3475, %v3474
    %v3531 = vpack.c.b16 %v3477, %v3476
    %v3532 = vpack.c.b16 %v3479, %v3478
    %v3533 = vpack.c.b16 %v3481, %v3480
    %v3534 = vpack.c.b16 %v3483, %v3482
    %v3535 = vpack.c.b16 %v3485, %v3484
    %v3536 = vpack.c.b16 %v3487, %v3486
    %v3537 = vpack.c.b16 %v3489, %v3488
    %v3538 = vpack.c.b16 %v3491, %v3490
    %v3539 = vpack.c.b16 %v3493, %v3492
    %v3540 = vpack.c.b16 %v3495, %v3494
    %v3541 = vpack.c.b16 %v3497, %v3496
    %v3542 = vpack.c.b16 %v3499, %v3498
    %v3543 = vpack.c.b16 %v3501, %v3500
    %v3544 = vpack.c.b16 %v3503, %v3502
    %v3545 = vpack.c.b16 %v3505, %v3504
    %v3546 = vpack.c.b16 %v3507, %v3506
    %v3547 = vpack.c.b16 %v3509, %v3508
    %v3548 = vpack.c.b16 %v3511, %v3510
    %v3549 = vpack.c.b16 %v3513, %v3512
    %v3550 = vpack.c.b16 %v3515, %v3514
    %v3551 = vpack.c.b16 %v3517, %v3516
    %v3552 = vpack.c.b16 %v3519, %v3518
    %v3553 = vpack.c.b16 %v3521, %v3520
    %v3602 = vunpack.c.l.b16 %v2213
    %v3603 = vunpack.c.l.b16 %v2214
    %v3604 = vunpack.c.l.b16 %v2215
    %v3605 = vunpack.c.l.b16 %v2216
    %v3606 = vunpack.c.l.b16 %v2217
    %v3607 = vunpack.c.l.b16 %v2218
    %v3608 = vunpack.c.l.b16 %v2219
    %v3609 = vunpack.c.l.b16 %v2220
    %v3610 = vunpack.c.l.b16 %v2221
    %v3611 = vunpack.c.l.b16 %v2222
    %v3612 = vunpack.c.l.b16 %v2223
    %v3613 = vunpack.c.l.b16 %v2224
    %v3614 = vunpack.c.l.b16 %v2225
    %v3615 = vunpack.c.l.b16 %v2226
    %v3616 = vunpack.c.l.b16 %v2227
    %v3617 = vunpack.c.l.b16 %v2228
    %v3618 = vpack.c.b16 %v3603, %v3602
    %v3619 = vpack.c.b16 %v3605, %v3604
    %v3620 = vpack.c.b16 %v3607, %v3606
    %v3621 = vpack.c.b16 %v3609, %v3608
    %v3622 = vpack.c.b16 %v3611, %v3610
    %v3623 = vpack.c.b16 %v3613, %v3612
    %v3624 = vpack.c.b16 %v3615, %v3614
    %v3625 = vpack.c.b16 %v3617, %v3616
    %3634 = vmatpush.bf16.msra.mxu0 %v3625
    %3635 = vmatpush.bf16.msra.mxu0 %v3624
    %3636 = vmatpush.bf16.msra.mxu0 %v3623
    %3637 = vmatpush.bf16.msra.mxu0 %v3622
    %3638 = vmatpush.bf16.msra.mxu0 %v3621
    %3639 = vmatpush.bf16.msra.mxu0 %v3620
    %3640 = vmatpush.bf16.msra.mxu0 %v3619
    %3641 = vmatpush.bf16.msra.mxu0 %v3618
    %3642 = vmatmul.bf16.gmra.mxu0 %v3522
    %v3643 = vpop.f32.mrf.mxu0
    %v3644 = vadd.f32 %v3235, %v3643
    %v3645 = vpop.f32.mrf.mxu0
    %v3646 = vadd.f32 %v3237, %v3645
    %3647 = vmatmul.bf16.gmra.mxu0 %v3523
    %v3648 = vpop.f32.mrf.mxu0
    %v3649 = vadd.f32 %v3240, %v3648
    %v3650 = vpop.f32.mrf.mxu0
    %v3651 = vadd.f32 %v3242, %v3650
    %3652 = vmatmul.bf16.gmra.mxu0 %v3524
    %v3653 = vpop.f32.mrf.mxu0
    %v3654 = vadd.f32 %v3245, %v3653
    %v3655 = vpop.f32.mrf.mxu0
    %v3656 = vadd.f32 %v3247, %v3655
    %3657 = vmatmul.bf16.gmra.mxu0 %v3525
    %v3658 = vpop.f32.mrf.mxu0
    %v3659 = vadd.f32 %v3250, %v3658
    %v3660 = vpop.f32.mrf.mxu0
    %v3661 = vadd.f32 %v3252, %v3660
    %3662 = vmatmul.bf16.gmra.mxu0 %v3526
    %v3663 = vpop.f32.mrf.mxu0
    %v3664 = vadd.f32 %v3255, %v3663
    %v3665 = vpop.f32.mrf.mxu0
    %v3666 = vadd.f32 %v3257, %v3665
    %3667 = vmatmul.bf16.gmra.mxu0 %v3527
    %v3668 = vpop.f32.mrf.mxu0
    %v3669 = vadd.f32 %v3260, %v3668
    %v3670 = vpop.f32.mrf.mxu0
    %v3671 = vadd.f32 %v3262, %v3670
    %3672 = vmatmul.bf16.gmra.mxu0 %v3528
    %v3673 = vpop.f32.mrf.mxu0
    %v3674 = vadd.f32 %v3265, %v3673
    %v3675 = vpop.f32.mrf.mxu0
    %v3676 = vadd.f32 %v3267, %v3675
    %3677 = vmatmul.bf16.gmra.mxu0 %v3529
    %v3678 = vpop.f32.mrf.mxu0
    %v3679 = vadd.f32 %v3270, %v3678
    %v3680 = vpop.f32.mrf.mxu0
    %v3681 = vadd.f32 %v3272, %v3680
    %3682 = vmatmul.bf16.gmra.mxu0 %v3530
    %v3683 = vpop.f32.mrf.mxu0
    %v3684 = vadd.f32 %v3275, %v3683
    %v3685 = vpop.f32.mrf.mxu0
    %v3686 = vadd.f32 %v3277, %v3685
    %3687 = vmatmul.bf16.gmra.mxu0 %v3531
    %v3688 = vpop.f32.mrf.mxu0
    %v3689 = vadd.f32 %v3280, %v3688
    %v3690 = vpop.f32.mrf.mxu0
    %v3691 = vadd.f32 %v3282, %v3690
    %3692 = vmatmul.bf16.gmra.mxu0 %v3532
    %v3693 = vpop.f32.mrf.mxu0
    %v3694 = vadd.f32 %v3285, %v3693
    %v3695 = vpop.f32.mrf.mxu0
    %v3696 = vadd.f32 %v3287, %v3695
    %3697 = vmatmul.bf16.gmra.mxu0 %v3533
    %v3698 = vpop.f32.mrf.mxu0
    %v3699 = vadd.f32 %v3290, %v3698
    %v3700 = vpop.f32.mrf.mxu0
    %v3701 = vadd.f32 %v3292, %v3700
    %3702 = vmatmul.bf16.gmra.mxu0 %v3534
    %v3703 = vpop.f32.mrf.mxu0
    %v3704 = vadd.f32 %v3295, %v3703
    %v3705 = vpop.f32.mrf.mxu0
    %v3706 = vadd.f32 %v3297, %v3705
    %3707 = vmatmul.bf16.gmra.mxu0 %v3535
    %v3708 = vpop.f32.mrf.mxu0
    %v3709 = vadd.f32 %v3300, %v3708
    %v3710 = vpop.f32.mrf.mxu0
    %v3711 = vadd.f32 %v3302, %v3710
    %3712 = vmatmul.bf16.gmra.mxu0 %v3536
    %v3713 = vpop.f32.mrf.mxu0
    %v3714 = vadd.f32 %v3305, %v3713
    %v3715 = vpop.f32.mrf.mxu0
    %v3716 = vadd.f32 %v3307, %v3715
    %3717 = vmatmul.bf16.gmra.mxu0 %v3537
    %v3718 = vpop.f32.mrf.mxu0
    %v3719 = vadd.f32 %v3310, %v3718
    %v3720 = vpop.f32.mrf.mxu0
    %v3721 = vadd.f32 %v3312, %v3720
    %3722 = vmatmul.bf16.gmra.mxu0 %v3538
    %v3723 = vpop.f32.mrf.mxu0
    %v3724 = vadd.f32 %v3315, %v3723
    %v3725 = vpop.f32.mrf.mxu0
    %v3726 = vadd.f32 %v3317, %v3725
    %3727 = vmatmul.bf16.gmra.mxu0 %v3539
    %v3728 = vpop.f32.mrf.mxu0
    %v3729 = vadd.f32 %v3320, %v3728
    %v3730 = vpop.f32.mrf.mxu0
    %v3731 = vadd.f32 %v3322, %v3730
    %3732 = vmatmul.bf16.gmra.mxu0 %v3540
    %v3733 = vpop.f32.mrf.mxu0
    %v3734 = vadd.f32 %v3325, %v3733
    %v3735 = vpop.f32.mrf.mxu0
    %v3736 = vadd.f32 %v3327, %v3735
    %3737 = vmatmul.bf16.gmra.mxu0 %v3541
    %v3738 = vpop.f32.mrf.mxu0
    %v3739 = vadd.f32 %v3330, %v3738
    %v3740 = vpop.f32.mrf.mxu0
    %v3741 = vadd.f32 %v3332, %v3740
    %3742 = vmatmul.bf16.gmra.mxu0 %v3542
    %v3743 = vpop.f32.mrf.mxu0
    %v3744 = vadd.f32 %v3335, %v3743
    %v3745 = vpop.f32.mrf.mxu0
    %v3746 = vadd.f32 %v3337, %v3745
    %3747 = vmatmul.bf16.gmra.mxu0 %v3543
    %v3748 = vpop.f32.mrf.mxu0
    %v3749 = vadd.f32 %v3340, %v3748
    %v3750 = vpop.f32.mrf.mxu0
    %v3751 = vadd.f32 %v3342, %v3750
    %3752 = vmatmul.bf16.gmra.mxu0 %v3544
    %v3753 = vpop.f32.mrf.mxu0
    %v3754 = vadd.f32 %v3345, %v3753
    %v3755 = vpop.f32.mrf.mxu0
    %v3756 = vadd.f32 %v3347, %v3755
    %3757 = vmatmul.bf16.gmra.mxu0 %v3545
    %v3758 = vpop.f32.mrf.mxu0
    %v3759 = vadd.f32 %v3350, %v3758
    %v3760 = vpop.f32.mrf.mxu0
    %v3761 = vadd.f32 %v3352, %v3760
    %3762 = vmatmul.bf16.gmra.mxu0 %v3546
    %v3763 = vpop.f32.mrf.mxu0
    %v3764 = vadd.f32 %v3355, %v3763
    %v3765 = vpop.f32.mrf.mxu0
    %v3766 = vadd.f32 %v3357, %v3765
    %3767 = vmatmul.bf16.gmra.mxu0 %v3547
    %v3768 = vpop.f32.mrf.mxu0
    %v3769 = vadd.f32 %v3360, %v3768
    %v3770 = vpop.f32.mrf.mxu0
    %v3771 = vadd.f32 %v3362, %v3770
    %3772 = vmatmul.bf16.gmra.mxu0 %v3548
    %v3773 = vpop.f32.mrf.mxu0
    %v3774 = vadd.f32 %v3365, %v3773
    %v3775 = vpop.f32.mrf.mxu0
    %v3776 = vadd.f32 %v3367, %v3775
    %3777 = vmatmul.bf16.gmra.mxu0 %v3549
    %v3778 = vpop.f32.mrf.mxu0
    %v3779 = vadd.f32 %v3370, %v3778
    %v3780 = vpop.f32.mrf.mxu0
    %v3781 = vadd.f32 %v3372, %v3780
    %3782 = vmatmul.bf16.gmra.mxu0 %v3550
    %v3783 = vpop.f32.mrf.mxu0
    %v3784 = vadd.f32 %v3375, %v3783
    %v3785 = vpop.f32.mrf.mxu0
    %v3786 = vadd.f32 %v3377, %v3785
    %3787 = vmatmul.bf16.gmra.mxu0 %v3551
    %v3788 = vpop.f32.mrf.mxu0
    %v3789 = vadd.f32 %v3380, %v3788
    %v3790 = vpop.f32.mrf.mxu0
    %v3791 = vadd.f32 %v3382, %v3790
    %3792 = vmatmul.bf16.gmra.mxu0 %v3552
    %v3793 = vpop.f32.mrf.mxu0
    %v3794 = vadd.f32 %v3385, %v3793
    %v3795 = vpop.f32.mrf.mxu0
    %v3796 = vadd.f32 %v3387, %v3795
    %3797 = vmatmul.bf16.gmra.mxu0 %v3553
    %v3798 = vpop.f32.mrf.mxu0
    %v3799 = vadd.f32 %v3390, %v3798
    %v3800 = vpop.f32.mrf.mxu0
    %v3801 = vadd.f32 %v3392, %v3800
    %3802 = vdwg.mxu0
    %v3803 = vld [vmem:[#allocation2] sm:$0xe]
    %v3804 = vld [vmem:[#allocation2 + $0xc] sm:$0xe]
    %v3805 = vld [vmem:[#allocation2 + $0x18] sm:$0xe]
    %v3806 = vld [vmem:[#allocation2 + $0x24] sm:$0xe]
    %v3807 = vld [vmem:[#allocation2 + $0x30] sm:$0xe]
    %v3808 = vld [vmem:[#allocation2 + $0x3c] sm:$0xe]
    %v3809 = vld [vmem:[#allocation2 + $0x48] sm:$0xe]
    %v3810 = vld [vmem:[#allocation2 + $0x54] sm:$0xe]
    %v3811 = vld [vmem:[#allocation2 + $0x60] sm:$0xe]
    %v3812 = vld [vmem:[#allocation2 + $0x6c] sm:$0xe]
    %v3813 = vld [vmem:[#allocation2 + $0x78] sm:$0xe]
    %v3814 = vld [vmem:[#allocation2 + $0x84] sm:$0xe]
    %v3815 = vld [vmem:[#allocation2 + $0x90] sm:$0xe]
    %v3816 = vld [vmem:[#allocation2 + $0x9c] sm:$0xe]
    %v3817 = vld [vmem:[#allocation2 + $0xa8] sm:$0xe]
    %v3818 = vld [vmem:[#allocation2 + $0xb4] sm:$0xe]
    %v3819 = vld [vmem:[#allocation2 + $0xd8] sm:$0xe]
    %v3820 = vld [vmem:[#allocation2 + $0xe4] sm:$0xe]
    %v3821 = vld [vmem:[#allocation2 + $0xf0] sm:$0xe]
    %v3822 = vld [vmem:[#allocation2 + $0xfc] sm:$0xe]
    %v3823 = vld [vmem:[#allocation2 + $0x108] sm:$0xe]
    %v3824 = vld [vmem:[#allocation2 + $0x114] sm:$0xe]
    %v3825 = vld [vmem:[#allocation2 + $0x120] sm:$0xe]
    %v3826 = vld [vmem:[#allocation2 + $0x12c] sm:$0xe]
    %v3827 = vld [vmem:[#allocation2 + $0x138] sm:$0xe]
    %v3828 = vld [vmem:[#allocation2 + $0x144] sm:$0xe]
    %v3829 = vld [vmem:[#allocation2 + $0x150] sm:$0xe]
    %v3830 = vld [vmem:[#allocation2 + $0x15c] sm:$0xe]
    %v3831 = vld [vmem:[#allocation2 + $0x168] sm:$0xe]
    %v3832 = vld [vmem:[#allocation2 + $0x174] sm:$0xe]
    %v3833 = vld [vmem:[#allocation2 + $0x180] sm:$0xe]
    %v3834 = vld [vmem:[#allocation2 + $0x18c] sm:$0xe]
    %vm3899 = vcmask 1042432
    %vm3900 = vcmask 1046532
    %vm3901 = vmor %vm3899, %vm3900
    %v3902 = vrot.slane %v3803, 5
    %v3903 = vrot.slane %v3902, 4
    %v3904 = vrot.slane %v2150, 5
    %v3905 = vsel %vm3901, %v3903, %v3904
    %v3906 = vrot.slane %v3904, 4
    %v3907 = vrot.slane %v2229, 5
    %v3908 = vsel %vm3901, %v3906, %v3907
    %v3909 = vrot.slane %v3804, 5
    %v3910 = vrot.slane %v3909, 4
    %v3911 = vrot.slane %v2152, 5
    %v3912 = vsel %vm3901, %v3910, %v3911
    %v3913 = vrot.slane %v3911, 4
    %v3914 = vrot.slane %v2230, 5
    %v3915 = vsel %vm3901, %v3913, %v3914
    %v3916 = vrot.slane %v3805, 5
    %v3917 = vrot.slane %v3916, 4
    %v3918 = vrot.slane %v2154, 5
    %v3919 = vsel %vm3901, %v3917, %v3918
    %v3920 = vrot.slane %v3918, 4
    %v3921 = vrot.slane %v2231, 5
    %v3922 = vsel %vm3901, %v3920, %v3921
    %v3923 = vrot.slane %v3806, 5
    %v3924 = vrot.slane %v3923, 4
    %v3925 = vrot.slane %v2156, 5
    %v3926 = vsel %vm3901, %v3924, %v3925
    %v3927 = vrot.slane %v3925, 4
    %v3928 = vrot.slane %v2232, 5
    %v3929 = vsel %vm3901, %v3927, %v3928
    %v3930 = vrot.slane %v3807, 5
    %v3931 = vrot.slane %v3930, 4
    %v3932 = vrot.slane %v2158, 5
    %v3933 = vsel %vm3901, %v3931, %v3932
    %v3934 = vrot.slane %v3932, 4
    %v3935 = vrot.slane %v2233, 5
    %v3936 = vsel %vm3901, %v3934, %v3935
    %v3937 = vrot.slane %v3808, 5
    %v3938 = vrot.slane %v3937, 4
    %v3939 = vrot.slane %v2160, 5
    %v3940 = vsel %vm3901, %v3938, %v3939
    %v3941 = vrot.slane %v3939, 4
    %v3942 = vrot.slane %v2234, 5
    %v3943 = vsel %vm3901, %v3941, %v3942
    %v3944 = vrot.slane %v3809, 5
    %v3945 = vrot.slane %v3944, 4
    %v3946 = vrot.slane %v2162, 5
    %v3947 = vsel %vm3901, %v3945, %v3946
    %v3948 = vrot.slane %v3946, 4
    %v3949 = vrot.slane %v2235, 5
    %v3950 = vsel %vm3901, %v3948, %v3949
    %v3951 = vrot.slane %v3810, 5
    %v3952 = vrot.slane %v3951, 4
    %v3953 = vrot.slane %v2164, 5
    %v3954 = vsel %vm3901, %v3952, %v3953
    %v3955 = vrot.slane %v3953, 4
    %v3956 = vrot.slane %v2236, 5
    %v3957 = vsel %vm3901, %v3955, %v3956
    %v3958 = vrot.slane %v3811, 5
    %v3959 = vrot.slane %v3958, 4
    %v3960 = vrot.slane %v2166, 5
    %v3961 = vsel %vm3901, %v3959, %v3960
    %v3962 = vrot.slane %v3960, 4
    %v3963 = vrot.slane %v2237, 5
    %v3964 = vsel %vm3901, %v3962, %v3963
    %v3965 = vrot.slane %v3812, 5
    %v3966 = vrot.slane %v3965, 4
    %v3967 = vrot.slane %v2168, 5
    %v3968 = vsel %vm3901, %v3966, %v3967
    %v3969 = vrot.slane %v3967, 4
    %v3970 = vrot.slane %v2238, 5
    %v3971 = vsel %vm3901, %v3969, %v3970
    %v3972 = vrot.slane %v3813, 5
    %v3973 = vrot.slane %v3972, 4
    %v3974 = vrot.slane %v2170, 5
    %v3975 = vsel %vm3901, %v3973, %v3974
    %v3976 = vrot.slane %v3974, 4
    %v3977 = vrot.slane %v2239, 5
    %v3978 = vsel %vm3901, %v3976, %v3977
    %v3979 = vrot.slane %v3814, 5
    %v3980 = vrot.slane %v3979, 4
    %v3981 = vrot.slane %v2172, 5
    %v3982 = vsel %vm3901, %v3980, %v3981
    %v3983 = vrot.slane %v3981, 4
    %v3984 = vrot.slane %v2240, 5
    %v3985 = vsel %vm3901, %v3983, %v3984
    %v3986 = vrot.slane %v3815, 5
    %v3987 = vrot.slane %v3986, 4
    %v3988 = vrot.slane %v2174, 5
    %v3989 = vsel %vm3901, %v3987, %v3988
    %v3990 = vrot.slane %v3988, 4
    %v3991 = vrot.slane %v2241, 5
    %v3992 = vsel %vm3901, %v3990, %v3991
    %v3993 = vrot.slane %v3816, 5
    %v3994 = vrot.slane %v3993, 4
    %v3995 = vrot.slane %v2176, 5
    %v3996 = vsel %vm3901, %v3994, %v3995
    %v3997 = vrot.slane %v3995, 4
    %v3998 = vrot.slane %v2242, 5
    %v3999 = vsel %vm3901, %v3997, %v3998
    %v4000 = vrot.slane %v3817, 5
    %v4001 = vrot.slane %v4000, 4
    %v4002 = vrot.slane %v2178, 5
    %v4003 = vsel %vm3901, %v4001, %v4002
    %v4004 = vrot.slane %v4002, 4
    %v4005 = vrot.slane %v2243, 5
    %v4006 = vsel %vm3901, %v4004, %v4005
    %v4007 = vrot.slane %v3818, 5
    %v4008 = vrot.slane %v4007, 4
    %v4009 = vrot.slane %v2180, 5
    %v4010 = vsel %vm3901, %v4008, %v4009
    %v4011 = vrot.slane %v4009, 4
    %v4012 = vrot.slane %v2244, 5
    %v4013 = vsel %vm3901, %v4011, %v4012
    %v4014 = vrot.slane %v3819, 5
    %v4015 = vrot.slane %v4014, 4
    %v4016 = vrot.slane %v2182, 5
    %v4017 = vsel %vm3901, %v4015, %v4016
    %v4018 = vrot.slane %v4016, 4
    %v4019 = vrot.slane %v2245, 5
    %v4020 = vsel %vm3901, %v4018, %v4019
    %v4021 = vrot.slane %v3820, 5
    %v4022 = vrot.slane %v4021, 4
    %v4023 = vrot.slane %v2184, 5
    %v4024 = vsel %vm3901, %v4022, %v4023
    %v4025 = vrot.slane %v4023, 4
    %v4026 = vrot.slane %v2246, 5
    %v4027 = vsel %vm3901, %v4025, %v4026
    %v4028 = vrot.slane %v3821, 5
    %v4029 = vrot.slane %v4028, 4
    %v4030 = vrot.slane %v2186, 5
    %v4031 = vsel %vm3901, %v4029, %v4030
    %v4032 = vrot.slane %v4030, 4
    %v4033 = vrot.slane %v2247, 5
    %v4034 = vsel %vm3901, %v4032, %v4033
    %v4035 = vrot.slane %v3822, 5
    %v4036 = vrot.slane %v4035, 4
    %v4037 = vrot.slane %v2188, 5
    %v4038 = vsel %vm3901, %v4036, %v4037
    %v4039 = vrot.slane %v4037, 4
    %v4040 = vrot.slane %v2248, 5
    %v4041 = vsel %vm3901, %v4039, %v4040
    %v4042 = vrot.slane %v3823, 5
    %v4043 = vrot.slane %v4042, 4
    %v4044 = vrot.slane %v2190, 5
    %v4045 = vsel %vm3901, %v4043, %v4044
    %v4046 = vrot.slane %v4044, 4
    %v4047 = vrot.slane %v2249, 5
    %v4048 = vsel %vm3901, %v4046, %v4047
    %v4049 = vrot.slane %v3824, 5
    %v4050 = vrot.slane %v4049, 4
    %v4051 = vrot.slane %v2192, 5
    %v4052 = vsel %vm3901, %v4050, %v4051
    %v4053 = vrot.slane %v4051, 4
    %v4054 = vrot.slane %v2250, 5
    %v4055 = vsel %vm3901, %v4053, %v4054
    %v4056 = vrot.slane %v3825, 5
    %v4057 = vrot.slane %v4056, 4
    %v4058 = vrot.slane %v2194, 5
    %v4059 = vsel %vm3901, %v4057, %v4058
    %v4060 = vrot.slane %v4058, 4
    %v4061 = vrot.slane %v2251, 5
    %v4062 = vsel %vm3901, %v4060, %v4061
    %v4063 = vrot.slane %v3826, 5
    %v4064 = vrot.slane %v4063, 4
    %v4065 = vrot.slane %v2196, 5
    %v4066 = vsel %vm3901, %v4064, %v4065
    %v4067 = vrot.slane %v4065, 4
    %v4068 = vrot.slane %v2252, 5
    %v4069 = vsel %vm3901, %v4067, %v4068
    %v4070 = vrot.slane %v3827, 5
    %v4071 = vrot.slane %v4070, 4
    %v4072 = vrot.slane %v2198, 5
    %v4073 = vsel %vm3901, %v4071, %v4072
    %v4074 = vrot.slane %v4072, 4
    %v4075 = vrot.slane %v2253, 5
    %v4076 = vsel %vm3901, %v4074, %v4075
    %v4077 = vrot.slane %v3828, 5
    %v4078 = vrot.slane %v4077, 4
    %v4079 = vrot.slane %v2200, 5
    %v4080 = vsel %vm3901, %v4078, %v4079
    %v4081 = vrot.slane %v4079, 4
    %v4082 = vrot.slane %v2254, 5
    %v4083 = vsel %vm3901, %v4081, %v4082
    %v4084 = vrot.slane %v3829, 5
    %v4085 = vrot.slane %v4084, 4
    %v4086 = vrot.slane %v2202, 5
    %v4087 = vsel %vm3901, %v4085, %v4086
    %v4088 = vrot.slane %v4086, 4
    %v4089 = vrot.slane %v2255, 5
    %v4090 = vsel %vm3901, %v4088, %v4089
    %v4091 = vrot.slane %v3830, 5
    %v4092 = vrot.slane %v4091, 4
    %v4093 = vrot.slane %v2204, 5
    %v4094 = vsel %vm3901, %v4092, %v4093
    %v4095 = vrot.slane %v4093, 4
    %v4096 = vrot.slane %v2256, 5
    %v4097 = vsel %vm3901, %v4095, %v4096
    %v4098 = vrot.slane %v3831, 5
    %v4099 = vrot.slane %v4098, 4
    %v4100 = vrot.slane %v2206, 5
    %v4101 = vsel %vm3901, %v4099, %v4100
    %v4102 = vrot.slane %v4100, 4
    %v4103 = vrot.slane %v2257, 5
    %v4104 = vsel %vm3901, %v4102, %v4103
    %v4105 = vrot.slane %v3832, 5
    %v4106 = vrot.slane %v4105, 4
    %v4107 = vrot.slane %v2208, 5
    %v4108 = vsel %vm3901, %v4106, %v4107
    %v4109 = vrot.slane %v4107, 4
    %v4110 = vrot.slane %v2258, 5
    %v4111 = vsel %vm3901, %v4109, %v4110
    %v4112 = vrot.slane %v3833, 5
    %v4113 = vrot.slane %v4112, 4
    %v4114 = vrot.slane %v2210, 5
    %v4115 = vsel %vm3901, %v4113, %v4114
    %v4116 = vrot.slane %v4114, 4
    %v4117 = vrot.slane %v2259, 5
    %v4118 = vsel %vm3901, %v4116, %v4117
    %v4119 = vrot.slane %v3834, 5
    %v4120 = vrot.slane %v4119, 4
    %v4121 = vrot.slane %v2212, 5
    %v4122 = vsel %vm3901, %v4120, %v4121
    %v4123 = vrot.slane %v4121, 4
    %v4124 = vrot.slane %v2260, 5
    %v4125 = vsel %vm3901, %v4123, %v4124
    %s4126 = scalar_lea.vmem [#allocation8], 128
    %v4127 = vld [vmem:[%s4126] sm:$0xf]
    %v4128 = vld [vmem:[%s4126 + $0x4] sm:$0xf]
    %v4129 = vld [vmem:[%s4126 + $0x8] sm:$0xf]
    %v4130 = vld [vmem:[%s4126 + $0xc] sm:$0xf]
    %v4131 = vld [vmem:[%s4126 + $0x10] sm:$0xf]
    %v4132 = vld [vmem:[%s4126 + $0x14] sm:$0xf]
    %v4133 = vld [vmem:[%s4126 + $0x18] sm:$0xf]
    %v4134 = vld [vmem:[%s4126 + $0x1c] sm:$0xf]
    %v4135 = vld [vmem:[%s4126 + $0x20] sm:$0xf]
    %v4136 = vld [vmem:[%s4126 + $0x24] sm:$0xf]
    %v4137 = vld [vmem:[%s4126 + $0x28] sm:$0xf]
    %v4138 = vld [vmem:[%s4126 + $0x2c] sm:$0xf]
    %v4139 = vld [vmem:[%s4126 + $0x30] sm:$0xf]
    %v4140 = vld [vmem:[%s4126 + $0x34] sm:$0xf]
    %v4141 = vld [vmem:[%s4126 + $0x38] sm:$0xf]
    %v4142 = vld [vmem:[%s4126 + $0x3c] sm:$0xf]
    %v4143 = vunpack.c.l.b16 %v3905
    %v4144 = vunpack.c.l.b16 %v3908
    %v4145 = vunpack.c.l.b16 %v3912
    %v4146 = vunpack.c.l.b16 %v3915
    %v4147 = vunpack.c.l.b16 %v3919
    %v4148 = vunpack.c.l.b16 %v3922
    %v4149 = vunpack.c.l.b16 %v3926
    %v4150 = vunpack.c.l.b16 %v3929
    %v4151 = vunpack.c.l.b16 %v3933
    %v4152 = vunpack.c.l.b16 %v3936
    %v4153 = vunpack.c.l.b16 %v3940
    %v4154 = vunpack.c.l.b16 %v3943
    %v4155 = vunpack.c.l.b16 %v3947
    %v4156 = vunpack.c.l.b16 %v3950
    %v4157 = vunpack.c.l.b16 %v3954
    %v4158 = vunpack.c.l.b16 %v3957
    %v4159 = vunpack.c.l.b16 %v3961
    %v4160 = vunpack.c.l.b16 %v3964
    %v4161 = vunpack.c.l.b16 %v3968
    %v4162 = vunpack.c.l.b16 %v3971
    %v4163 = vunpack.c.l.b16 %v3975
    %v4164 = vunpack.c.l.b16 %v3978
    %v4165 = vunpack.c.l.b16 %v3982
    %v4166 = vunpack.c.l.b16 %v3985
    %v4167 = vunpack.c.l.b16 %v3989
    %v4168 = vunpack.c.l.b16 %v3992
    %v4169 = vunpack.c.l.b16 %v3996
    %v4170 = vunpack.c.l.b16 %v3999
    %v4171 = vunpack.c.l.b16 %v4003
    %v4172 = vunpack.c.l.b16 %v4006
    %v4173 = vunpack.c.l.b16 %v4010
    %v4174 = vunpack.c.l.b16 %v4013
    %v4175 = vunpack.c.l.b16 %v4017
    %v4176 = vunpack.c.l.b16 %v4020
    %v4177 = vunpack.c.l.b16 %v4024
    %v4178 = vunpack.c.l.b16 %v4027
    %v4179 = vunpack.c.l.b16 %v4031
    %v4180 = vunpack.c.l.b16 %v4034
    %v4181 = vunpack.c.l.b16 %v4038
    %v4182 = vunpack.c.l.b16 %v4041
    %v4183 = vunpack.c.l.b16 %v4045
    %v4184 = vunpack.c.l.b16 %v4048
    %v4185 = vunpack.c.l.b16 %v4052
    %v4186 = vunpack.c.l.b16 %v4055
    %v4187 = vunpack.c.l.b16 %v4059
    %v4188 = vunpack.c.l.b16 %v4062
    %v4189 = vunpack.c.l.b16 %v4066
    %v4190 = vunpack.c.l.b16 %v4069
    %v4191 = vunpack.c.l.b16 %v4073
    %v4192 = vunpack.c.l.b16 %v4076
    %v4193 = vunpack.c.l.b16 %v4080
    %v4194 = vunpack.c.l.b16 %v4083
    %v4195 = vunpack.c.l.b16 %v4087
    %v4196 = vunpack.c.l.b16 %v4090
    %v4197 = vunpack.c.l.b16 %v4094
    %v4198 = vunpack.c.l.b16 %v4097
    %v4199 = vunpack.c.l.b16 %v4101
    %v4200 = vunpack.c.l.b16 %v4104
    %v4201 = vunpack.c.l.b16 %v4108
    %v4202 = vunpack.c.l.b16 %v4111
    %v4203 = vunpack.c.l.b16 %v4115
    %v4204 = vunpack.c.l.b16 %v4118
    %v4205 = vunpack.c.l.b16 %v4122
    %v4206 = vunpack.c.l.b16 %v4125
    %v4207 = vpack.c.b16 %v4144, %v4143
    %v4208 = vpack.c.b16 %v4146, %v4145
    %v4209 = vpack.c.b16 %v4148, %v4147
    %v4210 = vpack.c.b16 %v4150, %v4149
    %v4211 = vpack.c.b16 %v4152, %v4151
    %v4212 = vpack.c.b16 %v4154, %v4153
    %v4213 = vpack.c.b16 %v4156, %v4155
    %v4214 = vpack.c.b16 %v4158, %v4157
    %v4215 = vpack.c.b16 %v4160, %v4159
    %v4216 = vpack.c.b16 %v4162, %v4161
    %v4217 = vpack.c.b16 %v4164, %v4163
    %v4218 = vpack.c.b16 %v4166, %v4165
    %v4219 = vpack.c.b16 %v4168, %v4167
    %v4220 = vpack.c.b16 %v4170, %v4169
    %v4221 = vpack.c.b16 %v4172, %v4171
    %v4222 = vpack.c.b16 %v4174, %v4173
    %v4223 = vpack.c.b16 %v4176, %v4175
    %v4224 = vpack.c.b16 %v4178, %v4177
    %v4225 = vpack.c.b16 %v4180, %v4179
    %v4226 = vpack.c.b16 %v4182, %v4181
    %v4227 = vpack.c.b16 %v4184, %v4183
    %v4228 = vpack.c.b16 %v4186, %v4185
    %v4229 = vpack.c.b16 %v4188, %v4187
    %v4230 = vpack.c.b16 %v4190, %v4189
    %v4231 = vpack.c.b16 %v4192, %v4191
    %v4232 = vpack.c.b16 %v4194, %v4193
    %v4233 = vpack.c.b16 %v4196, %v4195
    %v4234 = vpack.c.b16 %v4198, %v4197
    %v4235 = vpack.c.b16 %v4200, %v4199
    %v4236 = vpack.c.b16 %v4202, %v4201
    %v4237 = vpack.c.b16 %v4204, %v4203
    %v4238 = vpack.c.b16 %v4206, %v4205
    %v4287 = vunpack.c.l.b16 %v4127
    %v4288 = vunpack.c.l.b16 %v4128
    %v4289 = vunpack.c.l.b16 %v4129
    %v4290 = vunpack.c.l.b16 %v4130
    %v4291 = vunpack.c.l.b16 %v4131
    %v4292 = vunpack.c.l.b16 %v4132
    %v4293 = vunpack.c.l.b16 %v4133
    %v4294 = vunpack.c.l.b16 %v4134
    %v4295 = vunpack.c.l.b16 %v4135
    %v4296 = vunpack.c.l.b16 %v4136
    %v4297 = vunpack.c.l.b16 %v4137
    %v4298 = vunpack.c.l.b16 %v4138
    %v4299 = vunpack.c.l.b16 %v4139
    %v4300 = vunpack.c.l.b16 %v4140
    %v4301 = vunpack.c.l.b16 %v4141
    %v4302 = vunpack.c.l.b16 %v4142
    %v4303 = vpack.c.b16 %v4288, %v4287
    %v4304 = vpack.c.b16 %v4290, %v4289
    %v4305 = vpack.c.b16 %v4292, %v4291
    %v4306 = vpack.c.b16 %v4294, %v4293
    %v4307 = vpack.c.b16 %v4296, %v4295
    %v4308 = vpack.c.b16 %v4298, %v4297
    %v4309 = vpack.c.b16 %v4300, %v4299
    %v4310 = vpack.c.b16 %v4302, %v4301
    %4319 = vmatpush.bf16.msra.mxu0 %v4310
    %4320 = vmatpush.bf16.msra.mxu0 %v4309
    %4321 = vmatpush.bf16.msra.mxu0 %v4308
    %4322 = vmatpush.bf16.msra.mxu0 %v4307
    %4323 = vmatpush.bf16.msra.mxu0 %v4306
    %4324 = vmatpush.bf16.msra.mxu0 %v4305
    %4325 = vmatpush.bf16.msra.mxu0 %v4304
    %4326 = vmatpush.bf16.msra.mxu0 %v4303
    %4327 = vmatmul.bf16.gmra.mxu0 %v4207
    %v4328 = vpop.f32.mrf.mxu0
    %v4329 = vadd.f32 0.0, %v4328
    %v4330 = vpop.f32.mrf.mxu0
    %v4331 = vadd.f32 0.0, %v4330
    %4332 = vmatmul.bf16.gmra.mxu0 %v4208
    %v4333 = vpop.f32.mrf.mxu0
    %v4334 = vadd.f32 0.0, %v4333
    %v4335 = vpop.f32.mrf.mxu0
    %v4336 = vadd.f32 0.0, %v4335
    %4337 = vmatmul.bf16.gmra.mxu0 %v4209
    %v4338 = vpop.f32.mrf.mxu0
    %v4339 = vadd.f32 0.0, %v4338
    %v4340 = vpop.f32.mrf.mxu0
    %v4341 = vadd.f32 0.0, %v4340
    %4342 = vmatmul.bf16.gmra.mxu0 %v4210
    %v4343 = vpop.f32.mrf.mxu0
    %v4344 = vadd.f32 0.0, %v4343
    %v4345 = vpop.f32.mrf.mxu0
    %v4346 = vadd.f32 0.0, %v4345
    %4347 = vmatmul.bf16.gmra.mxu0 %v4211
    %v4348 = vpop.f32.mrf.mxu0
    %v4349 = vadd.f32 0.0, %v4348
    %v4350 = vpop.f32.mrf.mxu0
    %v4351 = vadd.f32 0.0, %v4350
    %4352 = vmatmul.bf16.gmra.mxu0 %v4212
    %v4353 = vpop.f32.mrf.mxu0
    %v4354 = vadd.f32 0.0, %v4353
    %v4355 = vpop.f32.mrf.mxu0
    %v4356 = vadd.f32 0.0, %v4355
    %4357 = vmatmul.bf16.gmra.mxu0 %v4213
    %v4358 = vpop.f32.mrf.mxu0
    %v4359 = vadd.f32 0.0, %v4358
    %v4360 = vpop.f32.mrf.mxu0
    %v4361 = vadd.f32 0.0, %v4360
    %4362 = vmatmul.bf16.gmra.mxu0 %v4214
    %v4363 = vpop.f32.mrf.mxu0
    %v4364 = vadd.f32 0.0, %v4363
    %v4365 = vpop.f32.mrf.mxu0
    %v4366 = vadd.f32 0.0, %v4365
    %4367 = vmatmul.bf16.gmra.mxu0 %v4215
    %v4368 = vpop.f32.mrf.mxu0
    %v4369 = vadd.f32 0.0, %v4368
    %v4370 = vpop.f32.mrf.mxu0
    %v4371 = vadd.f32 0.0, %v4370
    %4372 = vmatmul.bf16.gmra.mxu0 %v4216
    %v4373 = vpop.f32.mrf.mxu0
    %v4374 = vadd.f32 0.0, %v4373
    %v4375 = vpop.f32.mrf.mxu0
    %v4376 = vadd.f32 0.0, %v4375
    %4377 = vmatmul.bf16.gmra.mxu0 %v4217
    %v4378 = vpop.f32.mrf.mxu0
    %v4379 = vadd.f32 0.0, %v4378
    %v4380 = vpop.f32.mrf.mxu0
    %v4381 = vadd.f32 0.0, %v4380
    %4382 = vmatmul.bf16.gmra.mxu0 %v4218
    %v4383 = vpop.f32.mrf.mxu0
    %v4384 = vadd.f32 0.0, %v4383
    %v4385 = vpop.f32.mrf.mxu0
    %v4386 = vadd.f32 0.0, %v4385
    %4387 = vmatmul.bf16.gmra.mxu0 %v4219
    %v4388 = vpop.f32.mrf.mxu0
    %v4389 = vadd.f32 0.0, %v4388
    %v4390 = vpop.f32.mrf.mxu0
    %v4391 = vadd.f32 0.0, %v4390
    %4392 = vmatmul.bf16.gmra.mxu0 %v4220
    %v4393 = vpop.f32.mrf.mxu0
    %v4394 = vadd.f32 0.0, %v4393
    %v4395 = vpop.f32.mrf.mxu0
    %v4396 = vadd.f32 0.0, %v4395
    %4397 = vmatmul.bf16.gmra.mxu0 %v4221
    %v4398 = vpop.f32.mrf.mxu0
    %v4399 = vadd.f32 0.0, %v4398
    %v4400 = vpop.f32.mrf.mxu0
    %v4401 = vadd.f32 0.0, %v4400
    %4402 = vmatmul.bf16.gmra.mxu0 %v4222
    %v4403 = vpop.f32.mrf.mxu0
    %v4404 = vadd.f32 0.0, %v4403
    %v4405 = vpop.f32.mrf.mxu0
    %v4406 = vadd.f32 0.0, %v4405
    %4407 = vmatmul.bf16.gmra.mxu0 %v4223
    %v4408 = vpop.f32.mrf.mxu0
    %v4409 = vadd.f32 0.0, %v4408
    %v4410 = vpop.f32.mrf.mxu0
    %v4411 = vadd.f32 0.0, %v4410
    %4412 = vmatmul.bf16.gmra.mxu0 %v4224
    %v4413 = vpop.f32.mrf.mxu0
    %v4414 = vadd.f32 0.0, %v4413
    %v4415 = vpop.f32.mrf.mxu0
    %v4416 = vadd.f32 0.0, %v4415
    %4417 = vmatmul.bf16.gmra.mxu0 %v4225
    %v4418 = vpop.f32.mrf.mxu0
    %v4419 = vadd.f32 0.0, %v4418
    %v4420 = vpop.f32.mrf.mxu0
    %v4421 = vadd.f32 0.0, %v4420
    %4422 = vmatmul.bf16.gmra.mxu0 %v4226
    %v4423 = vpop.f32.mrf.mxu0
    %v4424 = vadd.f32 0.0, %v4423
    %v4425 = vpop.f32.mrf.mxu0
    %v4426 = vadd.f32 0.0, %v4425
    %4427 = vmatmul.bf16.gmra.mxu0 %v4227
    %v4428 = vpop.f32.mrf.mxu0
    %v4429 = vadd.f32 0.0, %v4428
    %v4430 = vpop.f32.mrf.mxu0
    %v4431 = vadd.f32 0.0, %v4430
    %4432 = vmatmul.bf16.gmra.mxu0 %v4228
    %v4433 = vpop.f32.mrf.mxu0
    %v4434 = vadd.f32 0.0, %v4433
    %v4435 = vpop.f32.mrf.mxu0
    %v4436 = vadd.f32 0.0, %v4435
    %4437 = vmatmul.bf16.gmra.mxu0 %v4229
    %v4438 = vpop.f32.mrf.mxu0
    %v4439 = vadd.f32 0.0, %v4438
    %v4440 = vpop.f32.mrf.mxu0
    %v4441 = vadd.f32 0.0, %v4440
    %4442 = vmatmul.bf16.gmra.mxu0 %v4230
    %v4443 = vpop.f32.mrf.mxu0
    %v4444 = vadd.f32 0.0, %v4443
    %v4445 = vpop.f32.mrf.mxu0
    %v4446 = vadd.f32 0.0, %v4445
    %4447 = vmatmul.bf16.gmra.mxu0 %v4231
    %v4448 = vpop.f32.mrf.mxu0
    %v4449 = vadd.f32 0.0, %v4448
    %v4450 = vpop.f32.mrf.mxu0
    %v4451 = vadd.f32 0.0, %v4450
    %4452 = vmatmul.bf16.gmra.mxu0 %v4232
    %v4453 = vpop.f32.mrf.mxu0
    %v4454 = vadd.f32 0.0, %v4453
    %v4455 = vpop.f32.mrf.mxu0
    %v4456 = vadd.f32 0.0, %v4455
    %4457 = vmatmul.bf16.gmra.mxu0 %v4233
    %v4458 = vpop.f32.mrf.mxu0
    %v4459 = vadd.f32 0.0, %v4458
    %v4460 = vpop.f32.mrf.mxu0
    %v4461 = vadd.f32 0.0, %v4460
    %4462 = vmatmul.bf16.gmra.mxu0 %v4234
    %v4463 = vpop.f32.mrf.mxu0
    %v4464 = vadd.f32 0.0, %v4463
    %v4465 = vpop.f32.mrf.mxu0
    %v4466 = vadd.f32 0.0, %v4465
    %4467 = vmatmul.bf16.gmra.mxu0 %v4235
    %v4468 = vpop.f32.mrf.mxu0
    %v4469 = vadd.f32 0.0, %v4468
    %v4470 = vpop.f32.mrf.mxu0
    %v4471 = vadd.f32 0.0, %v4470
    %4472 = vmatmul.bf16.gmra.mxu0 %v4236
    %v4473 = vpop.f32.mrf.mxu0
    %v4474 = vadd.f32 0.0, %v4473
    %v4475 = vpop.f32.mrf.mxu0
    %v4476 = vadd.f32 0.0, %v4475
    %4477 = vmatmul.bf16.gmra.mxu0 %v4237
    %v4478 = vpop.f32.mrf.mxu0
    %v4479 = vadd.f32 0.0, %v4478
    %v4480 = vpop.f32.mrf.mxu0
    %v4481 = vadd.f32 0.0, %v4480
    %4482 = vmatmul.bf16.gmra.mxu0 %v4238
    %v4483 = vpop.f32.mrf.mxu0
    %v4484 = vadd.f32 0.0, %v4483
    %v4485 = vpop.f32.mrf.mxu0
    %v4486 = vadd.f32 0.0, %v4485
    %4487 = vdwg.mxu0
    %v4488 = vadd.f32 %v3644, %v4329
    %v4489 = vadd.f32 %v3646, %v4331
    %v4490 = vadd.f32 %v3649, %v4334
    %v4491 = vadd.f32 %v3651, %v4336
    %v4492 = vadd.f32 %v3654, %v4339
    %v4493 = vadd.f32 %v3656, %v4341
    %v4494 = vadd.f32 %v3659, %v4344
    %v4495 = vadd.f32 %v3661, %v4346
    %v4496 = vadd.f32 %v3664, %v4349
    %v4497 = vadd.f32 %v3666, %v4351
    %v4498 = vadd.f32 %v3669, %v4354
    %v4499 = vadd.f32 %v3671, %v4356
    %v4500 = vadd.f32 %v3674, %v4359
    %v4501 = vadd.f32 %v3676, %v4361
    %v4502 = vadd.f32 %v3679, %v4364
    %v4503 = vadd.f32 %v3681, %v4366
    %v4504 = vadd.f32 %v3684, %v4369
    %v4505 = vadd.f32 %v3686, %v4371
    %v4506 = vadd.f32 %v3689, %v4374
    %v4507 = vadd.f32 %v3691, %v4376
    %v4508 = vadd.f32 %v3694, %v4379
    %v4509 = vadd.f32 %v3696, %v4381
    %v4510 = vadd.f32 %v3699, %v4384
    %v4511 = vadd.f32 %v3701, %v4386
    %v4512 = vadd.f32 %v3704, %v4389
    %v4513 = vadd.f32 %v3706, %v4391
    %v4514 = vadd.f32 %v3709, %v4394
    %v4515 = vadd.f32 %v3711, %v4396
    %v4516 = vadd.f32 %v3714, %v4399
    %v4517 = vadd.f32 %v3716, %v4401
    %v4518 = vadd.f32 %v3719, %v4404
    %v4519 = vadd.f32 %v3721, %v4406
    %v4520 = vadd.f32 %v3724, %v4409
    %v4521 = vadd.f32 %v3726, %v4411
    %v4522 = vadd.f32 %v3729, %v4414
    %v4523 = vadd.f32 %v3731, %v4416
    %v4524 = vadd.f32 %v3734, %v4419
    %v4525 = vadd.f32 %v3736, %v4421
    %v4526 = vadd.f32 %v3739, %v4424
    %v4527 = vadd.f32 %v3741, %v4426
    %v4528 = vadd.f32 %v3744, %v4429
    %v4529 = vadd.f32 %v3746, %v4431
    %v4530 = vadd.f32 %v3749, %v4434
    %v4531 = vadd.f32 %v3751, %v4436
    %v4532 = vadd.f32 %v3754, %v4439
    %v4533 = vadd.f32 %v3756, %v4441
    %v4534 = vadd.f32 %v3759, %v4444
    %v4535 = vadd.f32 %v3761, %v4446
    %v4536 = vadd.f32 %v3764, %v4449
    %v4537 = vadd.f32 %v3766, %v4451
    %v4538 = vadd.f32 %v3769, %v4454
    %v4539 = vadd.f32 %v3771, %v4456
    %v4540 = vadd.f32 %v3774, %v4459
    %v4541 = vadd.f32 %v3776, %v4461
    %v4542 = vadd.f32 %v3779, %v4464
    %v4543 = vadd.f32 %v3781, %v4466
    %v4544 = vadd.f32 %v3784, %v4469
    %v4545 = vadd.f32 %v3786, %v4471
    %v4546 = vadd.f32 %v3789, %v4474
    %v4547 = vadd.f32 %v3791, %v4476
    %v4548 = vadd.f32 %v3794, %v4479
    %v4549 = vadd.f32 %v3796, %v4481
    %v4550 = vadd.f32 %v3799, %v4484
    %v4551 = vadd.f32 %v3801, %v4486
    %v4552 = vld [vmem:[%s1922] sm:$0xf]
    %v4553 = vld [vmem:[%s1922 + $0x4] sm:$0xf]
    %v4554 = vld [vmem:[%s1922 + $0xc] sm:$0xf]
    %v4555 = vld [vmem:[%s1922 + $0x10] sm:$0xf]
    %v4556 = vld [vmem:[%s1922 + $0x18] sm:$0xf]
    %v4557 = vld [vmem:[%s1922 + $0x1c] sm:$0xf]
    %v4558 = vld [vmem:[%s1922 + $0x24] sm:$0xf]
    %v4559 = vld [vmem:[%s1922 + $0x28] sm:$0xf]
    %v4560 = vld [vmem:[%s1922 + $0x30] sm:$0xf]
    %v4561 = vld [vmem:[%s1922 + $0x34] sm:$0xf]
    %v4562 = vld [vmem:[%s1922 + $0x3c] sm:$0xf]
    %v4563 = vld [vmem:[%s1922 + $0x40] sm:$0xf]
    %v4564 = vld [vmem:[%s1922 + $0x48] sm:$0xf]
    %v4565 = vld [vmem:[%s1922 + $0x4c] sm:$0xf]
    %v4566 = vld [vmem:[%s1922 + $0x54] sm:$0xf]
    %v4567 = vld [vmem:[%s1922 + $0x58] sm:$0xf]
    %v4568 = vld [vmem:[%s1922 + $0x60] sm:$0xf]
    %v4569 = vld [vmem:[%s1922 + $0x64] sm:$0xf]
    %v4570 = vld [vmem:[%s1922 + $0x6c] sm:$0xf]
    %v4571 = vld [vmem:[%s1922 + $0x70] sm:$0xf]
    %v4572 = vld [vmem:[%s1922 + $0x78] sm:$0xf]
    %v4573 = vld [vmem:[%s1922 + $0x7c] sm:$0xf]
    %v4574 = vld [vmem:[%s1922 + $0x84] sm:$0xf]
    %v4575 = vld [vmem:[%s1922 + $0x88] sm:$0xf]
    %v4576 = vld [vmem:[%s1922 + $0x90] sm:$0xf]
    %v4577 = vld [vmem:[%s1922 + $0x94] sm:$0xf]
    %v4578 = vld [vmem:[%s1922 + $0x9c] sm:$0xf]
    %v4579 = vld [vmem:[%s1922 + $0xa0] sm:$0xf]
    %v4580 = vld [vmem:[%s1922 + $0xa8] sm:$0xf]
    %v4581 = vld [vmem:[%s1922 + $0xac] sm:$0xf]
    %v4582 = vld [vmem:[%s1922 + $0xb4] sm:$0xf]
    %v4583 = vld [vmem:[%s1922 + $0xb8] sm:$0xf]
    %v4584 = vld [vmem:[%s1922 + $0xd8] sm:$0xf]
    %v4585 = vld [vmem:[%s1922 + $0xdc] sm:$0xf]
    %v4586 = vld [vmem:[%s1922 + $0xe4] sm:$0xf]
    %v4587 = vld [vmem:[%s1922 + $0xe8] sm:$0xf]
    %v4588 = vld [vmem:[%s1922 + $0xf0] sm:$0xf]
    %v4589 = vld [vmem:[%s1922 + $0xf4] sm:$0xf]
    %v4590 = vld [vmem:[%s1922 + $0xfc] sm:$0xf]
    %v4591 = vld [vmem:[%s1922 + $0x100] sm:$0xf]
    %v4592 = vld [vmem:[%s1922 + $0x108] sm:$0xf]
    %v4593 = vld [vmem:[%s1922 + $0x10c] sm:$0xf]
    %v4594 = vld [vmem:[%s1922 + $0x114] sm:$0xf]
    %v4595 = vld [vmem:[%s1922 + $0x118] sm:$0xf]
    %v4596 = vld [vmem:[%s1922 + $0x120] sm:$0xf]
    %v4597 = vld [vmem:[%s1922 + $0x124] sm:$0xf]
    %v4598 = vld [vmem:[%s1922 + $0x12c] sm:$0xf]
    %v4599 = vld [vmem:[%s1922 + $0x130] sm:$0xf]
    %v4600 = vld [vmem:[%s1922 + $0x138] sm:$0xf]
    %v4601 = vld [vmem:[%s1922 + $0x13c] sm:$0xf]
    %v4602 = vld [vmem:[%s1922 + $0x144] sm:$0xf]
    %v4603 = vld [vmem:[%s1922 + $0x148] sm:$0xf]
    %v4604 = vld [vmem:[%s1922 + $0x150] sm:$0xf]
    %v4605 = vld [vmem:[%s1922 + $0x154] sm:$0xf]
    %v4606 = vld [vmem:[%s1922 + $0x15c] sm:$0xf]
    %v4607 = vld [vmem:[%s1922 + $0x160] sm:$0xf]
    %v4608 = vld [vmem:[%s1922 + $0x168] sm:$0xf]
    %v4609 = vld [vmem:[%s1922 + $0x16c] sm:$0xf]
    %v4610 = vld [vmem:[%s1922 + $0x174] sm:$0xf]
    %v4611 = vld [vmem:[%s1922 + $0x178] sm:$0xf]
    %v4612 = vld [vmem:[%s1922 + $0x180] sm:$0xf]
    %v4613 = vld [vmem:[%s1922 + $0x184] sm:$0xf]
    %v4614 = vld [vmem:[%s1922 + $0x18c] sm:$0xf]
    %v4615 = vld [vmem:[%s1922 + $0x190] sm:$0xf]
    %s4616 = scalar_lea.vmem [#allocation8], 192
    %v4617 = vld [vmem:[%s4616] sm:$0xf]
    %v4618 = vld [vmem:[%s4616 + $0x4] sm:$0xf]
    %v4619 = vld [vmem:[%s4616 + $0x8] sm:$0xf]
    %v4620 = vld [vmem:[%s4616 + $0xc] sm:$0xf]
    %v4621 = vld [vmem:[%s4616 + $0x10] sm:$0xf]
    %v4622 = vld [vmem:[%s4616 + $0x14] sm:$0xf]
    %v4623 = vld [vmem:[%s4616 + $0x18] sm:$0xf]
    %v4624 = vld [vmem:[%s4616 + $0x1c] sm:$0xf]
    %v4625 = vld [vmem:[%s4616 + $0x20] sm:$0xf]
    %v4626 = vld [vmem:[%s4616 + $0x24] sm:$0xf]
    %v4627 = vld [vmem:[%s4616 + $0x28] sm:$0xf]
    %v4628 = vld [vmem:[%s4616 + $0x2c] sm:$0xf]
    %v4629 = vld [vmem:[%s4616 + $0x30] sm:$0xf]
    %v4630 = vld [vmem:[%s4616 + $0x34] sm:$0xf]
    %v4631 = vld [vmem:[%s4616 + $0x38] sm:$0xf]
    %v4632 = vld [vmem:[%s4616 + $0x3c] sm:$0xf]
    %v4697 = vunpack.c.l.b16 %v4552
    %v4698 = vunpack.c.l.b16 %v4553
    %v4699 = vunpack.c.l.b16 %v4554
    %v4700 = vunpack.c.l.b16 %v4555
    %v4701 = vunpack.c.l.b16 %v4556
    %v4702 = vunpack.c.l.b16 %v4557
    %v4703 = vunpack.c.l.b16 %v4558
    %v4704 = vunpack.c.l.b16 %v4559
    %v4705 = vunpack.c.l.b16 %v4560
    %v4706 = vunpack.c.l.b16 %v4561
    %v4707 = vunpack.c.l.b16 %v4562
    %v4708 = vunpack.c.l.b16 %v4563
    %v4709 = vunpack.c.l.b16 %v4564
    %v4710 = vunpack.c.l.b16 %v4565
    %v4711 = vunpack.c.l.b16 %v4566
    %v4712 = vunpack.c.l.b16 %v4567
    %v4713 = vunpack.c.l.b16 %v4568
    %v4714 = vunpack.c.l.b16 %v4569
    %v4715 = vunpack.c.l.b16 %v4570
    %v4716 = vunpack.c.l.b16 %v4571
    %v4717 = vunpack.c.l.b16 %v4572
    %v4718 = vunpack.c.l.b16 %v4573
    %v4719 = vunpack.c.l.b16 %v4574
    %v4720 = vunpack.c.l.b16 %v4575
    %v4721 = vunpack.c.l.b16 %v4576
    %v4722 = vunpack.c.l.b16 %v4577
    %v4723 = vunpack.c.l.b16 %v4578
    %v4724 = vunpack.c.l.b16 %v4579
    %v4725 = vunpack.c.l.b16 %v4580
    %v4726 = vunpack.c.l.b16 %v4581
    %v4727 = vunpack.c.l.b16 %v4582
    %v4728 = vunpack.c.l.b16 %v4583
    %v4729 = vunpack.c.l.b16 %v4584
    %v4730 = vunpack.c.l.b16 %v4585
    %v4731 = vunpack.c.l.b16 %v4586
    %v4732 = vunpack.c.l.b16 %v4587
    %v4733 = vunpack.c.l.b16 %v4588
    %v4734 = vunpack.c.l.b16 %v4589
    %v4735 = vunpack.c.l.b16 %v4590
    %v4736 = vunpack.c.l.b16 %v4591
    %v4737 = vunpack.c.l.b16 %v4592
    %v4738 = vunpack.c.l.b16 %v4593
    %v4739 = vunpack.c.l.b16 %v4594
    %v4740 = vunpack.c.l.b16 %v4595
    %v4741 = vunpack.c.l.b16 %v4596
    %v4742 = vunpack.c.l.b16 %v4597
    %v4743 = vunpack.c.l.b16 %v4598
    %v4744 = vunpack.c.l.b16 %v4599
    %v4745 = vunpack.c.l.b16 %v4600
    %v4746 = vunpack.c.l.b16 %v4601
    %v4747 = vunpack.c.l.b16 %v4602
    %v4748 = vunpack.c.l.b16 %v4603
    %v4749 = vunpack.c.l.b16 %v4604
    %v4750 = vunpack.c.l.b16 %v4605
    %v4751 = vunpack.c.l.b16 %v4606
    %v4752 = vunpack.c.l.b16 %v4607
    %v4753 = vunpack.c.l.b16 %v4608
    %v4754 = vunpack.c.l.b16 %v4609
    %v4755 = vunpack.c.l.b16 %v4610
    %v4756 = vunpack.c.l.b16 %v4611
    %v4757 = vunpack.c.l.b16 %v4612
    %v4758 = vunpack.c.l.b16 %v4613
    %v4759 = vunpack.c.l.b16 %v4614
    %v4760 = vunpack.c.l.b16 %v4615
    %v4761 = vpack.c.b16 %v4698, %v4697
    %v4762 = vpack.c.b16 %v4700, %v4699
    %v4763 = vpack.c.b16 %v4702, %v4701
    %v4764 = vpack.c.b16 %v4704, %v4703
    %v4765 = vpack.c.b16 %v4706, %v4705
    %v4766 = vpack.c.b16 %v4708, %v4707
    %v4767 = vpack.c.b16 %v4710, %v4709
    %v4768 = vpack.c.b16 %v4712, %v4711
    %v4769 = vpack.c.b16 %v4714, %v4713
    %v4770 = vpack.c.b16 %v4716, %v4715
    %v4771 = vpack.c.b16 %v4718, %v4717
    %v4772 = vpack.c.b16 %v4720, %v4719
    %v4773 = vpack.c.b16 %v4722, %v4721
    %v4774 = vpack.c.b16 %v4724, %v4723
    %v4775 = vpack.c.b16 %v4726, %v4725
    %v4776 = vpack.c.b16 %v4728, %v4727
    %v4777 = vpack.c.b16 %v4730, %v4729
    %v4778 = vpack.c.b16 %v4732, %v4731
    %v4779 = vpack.c.b16 %v4734, %v4733
    %v4780 = vpack.c.b16 %v4736, %v4735
    %v4781 = vpack.c.b16 %v4738, %v4737
    %v4782 = vpack.c.b16 %v4740, %v4739
    %v4783 = vpack.c.b16 %v4742, %v4741
    %v4784 = vpack.c.b16 %v4744, %v4743
    %v4785 = vpack.c.b16 %v4746, %v4745
    %v4786 = vpack.c.b16 %v4748, %v4747
    %v4787 = vpack.c.b16 %v4750, %v4749
    %v4788 = vpack.c.b16 %v4752, %v4751
    %v4789 = vpack.c.b16 %v4754, %v4753
    %v4790 = vpack.c.b16 %v4756, %v4755
    %v4791 = vpack.c.b16 %v4758, %v4757
    %v4792 = vpack.c.b16 %v4760, %v4759
    %v4841 = vunpack.c.l.b16 %v4617
    %v4842 = vunpack.c.l.b16 %v4618
    %v4843 = vunpack.c.l.b16 %v4619
    %v4844 = vunpack.c.l.b16 %v4620
    %v4845 = vunpack.c.l.b16 %v4621
    %v4846 = vunpack.c.l.b16 %v4622
    %v4847 = vunpack.c.l.b16 %v4623
    %v4848 = vunpack.c.l.b16 %v4624
    %v4849 = vunpack.c.l.b16 %v4625
    %v4850 = vunpack.c.l.b16 %v4626
    %v4851 = vunpack.c.l.b16 %v4627
    %v4852 = vunpack.c.l.b16 %v4628
    %v4853 = vunpack.c.l.b16 %v4629
    %v4854 = vunpack.c.l.b16 %v4630
    %v4855 = vunpack.c.l.b16 %v4631
    %v4856 = vunpack.c.l.b16 %v4632
    %v4857 = vpack.c.b16 %v4842, %v4841
    %v4858 = vpack.c.b16 %v4844, %v4843
    %v4859 = vpack.c.b16 %v4846, %v4845
    %v4860 = vpack.c.b16 %v4848, %v4847
    %v4861 = vpack.c.b16 %v4850, %v4849
    %v4862 = vpack.c.b16 %v4852, %v4851
    %v4863 = vpack.c.b16 %v4854, %v4853
    %v4864 = vpack.c.b16 %v4856, %v4855
    %4873 = vmatpush.bf16.msra.mxu0 %v4864
    %4874 = vmatpush.bf16.msra.mxu0 %v4863
    %4875 = vmatpush.bf16.msra.mxu0 %v4862
    %4876 = vmatpush.bf16.msra.mxu0 %v4861
    %4877 = vmatpush.bf16.msra.mxu0 %v4860
    %4878 = vmatpush.bf16.msra.mxu0 %v4859
    %4879 = vmatpush.bf16.msra.mxu0 %v4858
    %4880 = vmatpush.bf16.msra.mxu0 %v4857
    %4881 = vmatmul.bf16.gmra.mxu0 %v4761
    %v4882 = vpop.f32.mrf.mxu0
    %v4883 = vadd.f32 0.0, %v4882
    %v4884 = vpop.f32.mrf.mxu0
    %v4885 = vadd.f32 0.0, %v4884
    %4886 = vmatmul.bf16.gmra.mxu0 %v4762
    %v4887 = vpop.f32.mrf.mxu0
    %v4888 = vadd.f32 0.0, %v4887
    %v4889 = vpop.f32.mrf.mxu0
    %v4890 = vadd.f32 0.0, %v4889
    %4891 = vmatmul.bf16.gmra.mxu0 %v4763
    %v4892 = vpop.f32.mrf.mxu0
    %v4893 = vadd.f32 0.0, %v4892
    %v4894 = vpop.f32.mrf.mxu0
    %v4895 = vadd.f32 0.0, %v4894
    %4896 = vmatmul.bf16.gmra.mxu0 %v4764
    %v4897 = vpop.f32.mrf.mxu0
    %v4898 = vadd.f32 0.0, %v4897
    %v4899 = vpop.f32.mrf.mxu0
    %v4900 = vadd.f32 0.0, %v4899
    %4901 = vmatmul.bf16.gmra.mxu0 %v4765
    %v4902 = vpop.f32.mrf.mxu0
    %v4903 = vadd.f32 0.0, %v4902
    %v4904 = vpop.f32.mrf.mxu0
    %v4905 = vadd.f32 0.0, %v4904
    %4906 = vmatmul.bf16.gmra.mxu0 %v4766
    %v4907 = vpop.f32.mrf.mxu0
    %v4908 = vadd.f32 0.0, %v4907
    %v4909 = vpop.f32.mrf.mxu0
    %v4910 = vadd.f32 0.0, %v4909
    %4911 = vmatmul.bf16.gmra.mxu0 %v4767
    %v4912 = vpop.f32.mrf.mxu0
    %v4913 = vadd.f32 0.0, %v4912
    %v4914 = vpop.f32.mrf.mxu0
    %v4915 = vadd.f32 0.0, %v4914
    %4916 = vmatmul.bf16.gmra.mxu0 %v4768
    %v4917 = vpop.f32.mrf.mxu0
    %v4918 = vadd.f32 0.0, %v4917
    %v4919 = vpop.f32.mrf.mxu0
    %v4920 = vadd.f32 0.0, %v4919
    %4921 = vmatmul.bf16.gmra.mxu0 %v4769
    %v4922 = vpop.f32.mrf.mxu0
    %v4923 = vadd.f32 0.0, %v4922
    %v4924 = vpop.f32.mrf.mxu0
    %v4925 = vadd.f32 0.0, %v4924
    %4926 = vmatmul.bf16.gmra.mxu0 %v4770
    %v4927 = vpop.f32.mrf.mxu0
    %v4928 = vadd.f32 0.0, %v4927
    %v4929 = vpop.f32.mrf.mxu0
    %v4930 = vadd.f32 0.0, %v4929
    %4931 = vmatmul.bf16.gmra.mxu0 %v4771
    %v4932 = vpop.f32.mrf.mxu0
    %v4933 = vadd.f32 0.0, %v4932
    %v4934 = vpop.f32.mrf.mxu0
    %v4935 = vadd.f32 0.0, %v4934
    %4936 = vmatmul.bf16.gmra.mxu0 %v4772
    %v4937 = vpop.f32.mrf.mxu0
    %v4938 = vadd.f32 0.0, %v4937
    %v4939 = vpop.f32.mrf.mxu0
    %v4940 = vadd.f32 0.0, %v4939
    %4941 = vmatmul.bf16.gmra.mxu0 %v4773
    %v4942 = vpop.f32.mrf.mxu0
    %v4943 = vadd.f32 0.0, %v4942
    %v4944 = vpop.f32.mrf.mxu0
    %v4945 = vadd.f32 0.0, %v4944
    %4946 = vmatmul.bf16.gmra.mxu0 %v4774
    %v4947 = vpop.f32.mrf.mxu0
    %v4948 = vadd.f32 0.0, %v4947
    %v4949 = vpop.f32.mrf.mxu0
    %v4950 = vadd.f32 0.0, %v4949
    %4951 = vmatmul.bf16.gmra.mxu0 %v4775
    %v4952 = vpop.f32.mrf.mxu0
    %v4953 = vadd.f32 0.0, %v4952
    %v4954 = vpop.f32.mrf.mxu0
    %v4955 = vadd.f32 0.0, %v4954
    %4956 = vmatmul.bf16.gmra.mxu0 %v4776
    %v4957 = vpop.f32.mrf.mxu0
    %v4958 = vadd.f32 0.0, %v4957
    %v4959 = vpop.f32.mrf.mxu0
    %v4960 = vadd.f32 0.0, %v4959
    %4961 = vmatmul.bf16.gmra.mxu0 %v4777
    %v4962 = vpop.f32.mrf.mxu0
    %v4963 = vadd.f32 0.0, %v4962
    %v4964 = vpop.f32.mrf.mxu0
    %v4965 = vadd.f32 0.0, %v4964
    %4966 = vmatmul.bf16.gmra.mxu0 %v4778
    %v4967 = vpop.f32.mrf.mxu0
    %v4968 = vadd.f32 0.0, %v4967
    %v4969 = vpop.f32.mrf.mxu0
    %v4970 = vadd.f32 0.0, %v4969
    %4971 = vmatmul.bf16.gmra.mxu0 %v4779
    %v4972 = vpop.f32.mrf.mxu0
    %v4973 = vadd.f32 0.0, %v4972
    %v4974 = vpop.f32.mrf.mxu0
    %v4975 = vadd.f32 0.0, %v4974
    %4976 = vmatmul.bf16.gmra.mxu0 %v4780
    %v4977 = vpop.f32.mrf.mxu0
    %v4978 = vadd.f32 0.0, %v4977
    %v4979 = vpop.f32.mrf.mxu0
    %v4980 = vadd.f32 0.0, %v4979
    %4981 = vmatmul.bf16.gmra.mxu0 %v4781
    %v4982 = vpop.f32.mrf.mxu0
    %v4983 = vadd.f32 0.0, %v4982
    %v4984 = vpop.f32.mrf.mxu0
    %v4985 = vadd.f32 0.0, %v4984
    %4986 = vmatmul.bf16.gmra.mxu0 %v4782
    %v4987 = vpop.f32.mrf.mxu0
    %v4988 = vadd.f32 0.0, %v4987
    %v4989 = vpop.f32.mrf.mxu0
    %v4990 = vadd.f32 0.0, %v4989
    %4991 = vmatmul.bf16.gmra.mxu0 %v4783
    %v4992 = vpop.f32.mrf.mxu0
    %v4993 = vadd.f32 0.0, %v4992
    %v4994 = vpop.f32.mrf.mxu0
    %v4995 = vadd.f32 0.0, %v4994
    %4996 = vmatmul.bf16.gmra.mxu0 %v4784
    %v4997 = vpop.f32.mrf.mxu0
    %v4998 = vadd.f32 0.0, %v4997
    %v4999 = vpop.f32.mrf.mxu0
    %v5000 = vadd.f32 0.0, %v4999
    %5001 = vmatmul.bf16.gmra.mxu0 %v4785
    %v5002 = vpop.f32.mrf.mxu0
    %v5003 = vadd.f32 0.0, %v5002
    %v5004 = vpop.f32.mrf.mxu0
    %v5005 = vadd.f32 0.0, %v5004
    %5006 = vmatmul.bf16.gmra.mxu0 %v4786
    %v5007 = vpop.f32.mrf.mxu0
    %v5008 = vadd.f32 0.0, %v5007
    %v5009 = vpop.f32.mrf.mxu0
    %v5010 = vadd.f32 0.0, %v5009
    %5011 = vmatmul.bf16.gmra.mxu0 %v4787
    %v5012 = vpop.f32.mrf.mxu0
    %v5013 = vadd.f32 0.0, %v5012
    %v5014 = vpop.f32.mrf.mxu0
    %v5015 = vadd.f32 0.0, %v5014
    %5016 = vmatmul.bf16.gmra.mxu0 %v4788
    %v5017 = vpop.f32.mrf.mxu0
    %v5018 = vadd.f32 0.0, %v5017
    %v5019 = vpop.f32.mrf.mxu0
    %v5020 = vadd.f32 0.0, %v5019
    %5021 = vmatmul.bf16.gmra.mxu0 %v4789
    %v5022 = vpop.f32.mrf.mxu0
    %v5023 = vadd.f32 0.0, %v5022
    %v5024 = vpop.f32.mrf.mxu0
    %v5025 = vadd.f32 0.0, %v5024
    %5026 = vmatmul.bf16.gmra.mxu0 %v4790
    %v5027 = vpop.f32.mrf.mxu0
    %v5028 = vadd.f32 0.0, %v5027
    %v5029 = vpop.f32.mrf.mxu0
    %v5030 = vadd.f32 0.0, %v5029
    %5031 = vmatmul.bf16.gmra.mxu0 %v4791
    %v5032 = vpop.f32.mrf.mxu0
    %v5033 = vadd.f32 0.0, %v5032
    %v5034 = vpop.f32.mrf.mxu0
    %v5035 = vadd.f32 0.0, %v5034
    %5036 = vmatmul.bf16.gmra.mxu0 %v4792
    %v5037 = vpop.f32.mrf.mxu0
    %v5038 = vadd.f32 0.0, %v5037
    %v5039 = vpop.f32.mrf.mxu0
    %v5040 = vadd.f32 0.0, %v5039
    %5041 = vdwg.mxu0
    %v5042 = vadd.f32 %v4488, %v4883
    %v5043 = vadd.f32 %v4489, %v4885
    %v5044 = vadd.f32 %v4490, %v4888
    %v5045 = vadd.f32 %v4491, %v4890
    %v5046 = vadd.f32 %v4492, %v4893
    %v5047 = vadd.f32 %v4493, %v4895
    %v5048 = vadd.f32 %v4494, %v4898
    %v5049 = vadd.f32 %v4495, %v4900
    %v5050 = vadd.f32 %v4496, %v4903
    %v5051 = vadd.f32 %v4497, %v4905
    %v5052 = vadd.f32 %v4498, %v4908
    %v5053 = vadd.f32 %v4499, %v4910
    %v5054 = vadd.f32 %v4500, %v4913
    %v5055 = vadd.f32 %v4501, %v4915
    %v5056 = vadd.f32 %v4502, %v4918
    %v5057 = vadd.f32 %v4503, %v4920
    %v5058 = vadd.f32 %v4504, %v4923
    %v5059 = vadd.f32 %v4505, %v4925
    %v5060 = vadd.f32 %v4506, %v4928
    %v5061 = vadd.f32 %v4507, %v4930
    %v5062 = vadd.f32 %v4508, %v4933
    %v5063 = vadd.f32 %v4509, %v4935
    %v5064 = vadd.f32 %v4510, %v4938
    %v5065 = vadd.f32 %v4511, %v4940
    %v5066 = vadd.f32 %v4512, %v4943
    %v5067 = vadd.f32 %v4513, %v4945
    %v5068 = vadd.f32 %v4514, %v4948
    %v5069 = vadd.f32 %v4515, %v4950
    %v5070 = vadd.f32 %v4516, %v4953
    %v5071 = vadd.f32 %v4517, %v4955
    %v5072 = vadd.f32 %v4518, %v4958
    %v5073 = vadd.f32 %v4519, %v4960
    %v5074 = vadd.f32 %v4520, %v4963
    %v5075 = vadd.f32 %v4521, %v4965
    %v5076 = vadd.f32 %v4522, %v4968
    %v5077 = vadd.f32 %v4523, %v4970
    %v5078 = vadd.f32 %v4524, %v4973
    %v5079 = vadd.f32 %v4525, %v4975
    %v5080 = vadd.f32 %v4526, %v4978
    %v5081 = vadd.f32 %v4527, %v4980
    %v5082 = vadd.f32 %v4528, %v4983
    %v5083 = vadd.f32 %v4529, %v4985
    %v5084 = vadd.f32 %v4530, %v4988
    %v5085 = vadd.f32 %v4531, %v4990
    %v5086 = vadd.f32 %v4532, %v4993
    %v5087 = vadd.f32 %v4533, %v4995
    %v5088 = vadd.f32 %v4534, %v4998
    %v5089 = vadd.f32 %v4535, %v5000
    %v5090 = vadd.f32 %v4536, %v5003
    %v5091 = vadd.f32 %v4537, %v5005
    %v5092 = vadd.f32 %v4538, %v5008
    %v5093 = vadd.f32 %v4539, %v5010
    %v5094 = vadd.f32 %v4540, %v5013
    %v5095 = vadd.f32 %v4541, %v5015
    %v5096 = vadd.f32 %v4542, %v5018
    %v5097 = vadd.f32 %v4543, %v5020
    %v5098 = vadd.f32 %v4544, %v5023
    %v5099 = vadd.f32 %v4545, %v5025
    %v5100 = vadd.f32 %v4546, %v5028
    %v5101 = vadd.f32 %v4547, %v5030
    %v5102 = vadd.f32 %v4548, %v5033
    %v5103 = vadd.f32 %v4549, %v5035
    %v5104 = vadd.f32 %v4550, %v5038
    %v5105 = vadd.f32 %v4551, %v5040
    %v5106 = vld [vmem:[%s1922] sm:$0xf]
    %v5107 = vld [vmem:[%s1922 + $0x4] sm:$0xf]
    %v5108 = vld [vmem:[%s1922 + $0x8] sm:$0x1]
    %v5109 = vld [vmem:[%s1922 + $0xc] sm:$0xf]
    %v5110 = vld [vmem:[%s1922 + $0x10] sm:$0xf]
    %v5111 = vld [vmem:[%s1922 + $0x14] sm:$0x1]
    %v5112 = vld [vmem:[%s1922 + $0x18] sm:$0xf]
    %v5113 = vld [vmem:[%s1922 + $0x1c] sm:$0xf]
    %v5114 = vld [vmem:[%s1922 + $0x20] sm:$0x1]
    %v5115 = vld [vmem:[%s1922 + $0x24] sm:$0xf]
    %v5116 = vld [vmem:[%s1922 + $0x28] sm:$0xf]
    %v5117 = vld [vmem:[%s1922 + $0x2c] sm:$0x1]
    %v5118 = vld [vmem:[%s1922 + $0x30] sm:$0xf]
    %v5119 = vld [vmem:[%s1922 + $0x34] sm:$0xf]
    %v5120 = vld [vmem:[%s1922 + $0x38] sm:$0x1]
    %v5121 = vld [vmem:[%s1922 + $0x3c] sm:$0xf]
    %v5122 = vld [vmem:[%s1922 + $0x40] sm:$0xf]
    %v5123 = vld [vmem:[%s1922 + $0x44] sm:$0x1]
    %v5124 = vld [vmem:[%s1922 + $0x48] sm:$0xf]
    %v5125 = vld [vmem:[%s1922 + $0x4c] sm:$0xf]
    %v5126 = vld [vmem:[%s1922 + $0x50] sm:$0x1]
    %v5127 = vld [vmem:[%s1922 + $0x54] sm:$0xf]
    %v5128 = vld [vmem:[%s1922 + $0x58] sm:$0xf]
    %v5129 = vld [vmem:[%s1922 + $0x5c] sm:$0x1]
    %v5130 = vld [vmem:[%s1922 + $0x60] sm:$0xf]
    %v5131 = vld [vmem:[%s1922 + $0x64] sm:$0xf]
    %v5132 = vld [vmem:[%s1922 + $0x68] sm:$0x1]
    %v5133 = vld [vmem:[%s1922 + $0x6c] sm:$0xf]
    %v5134 = vld [vmem:[%s1922 + $0x70] sm:$0xf]
    %v5135 = vld [vmem:[%s1922 + $0x74] sm:$0x1]
    %v5136 = vld [vmem:[%s1922 + $0x78] sm:$0xf]
    %v5137 = vld [vmem:[%s1922 + $0x7c] sm:$0xf]
    %v5138 = vld [vmem:[%s1922 + $0x80] sm:$0x1]
    %v5139 = vld [vmem:[%s1922 + $0x84] sm:$0xf]
    %v5140 = vld [vmem:[%s1922 + $0x88] sm:$0xf]
    %v5141 = vld [vmem:[%s1922 + $0x8c] sm:$0x1]
    %v5142 = vld [vmem:[%s1922 + $0x90] sm:$0xf]
    %v5143 = vld [vmem:[%s1922 + $0x94] sm:$0xf]
    %v5144 = vld [vmem:[%s1922 + $0x98] sm:$0x1]
    %v5145 = vld [vmem:[%s1922 + $0x9c] sm:$0xf]
    %v5146 = vld [vmem:[%s1922 + $0xa0] sm:$0xf]
    %v5147 = vld [vmem:[%s1922 + $0xa4] sm:$0x1]
    %v5148 = vld [vmem:[%s1922 + $0xa8] sm:$0xf]
    %v5149 = vld [vmem:[%s1922 + $0xac] sm:$0xf]
    %v5150 = vld [vmem:[%s1922 + $0xb0] sm:$0x1]
    %v5151 = vld [vmem:[%s1922 + $0xb4] sm:$0xf]
    %v5152 = vld [vmem:[%s1922 + $0xb8] sm:$0xf]
    %v5153 = vld [vmem:[%s1922 + $0xbc] sm:$0x1]
    %v5154 = vld [vmem:[%s1922 + $0xd8] sm:$0xf]
    %v5155 = vld [vmem:[%s1922 + $0xdc] sm:$0xf]
    %v5156 = vld [vmem:[%s1922 + $0xe0] sm:$0x1]
    %v5157 = vld [vmem:[%s1922 + $0xe4] sm:$0xf]
    %v5158 = vld [vmem:[%s1922 + $0xe8] sm:$0xf]
    %v5159 = vld [vmem:[%s1922 + $0xec] sm:$0x1]
    %v5160 = vld [vmem:[%s1922 + $0xf0] sm:$0xf]
    %v5161 = vld [vmem:[%s1922 + $0xf4] sm:$0xf]
    %v5162 = vld [vmem:[%s1922 + $0xf8] sm:$0x1]
    %v5163 = vld [vmem:[%s1922 + $0xfc] sm:$0xf]
    %v5164 = vld [vmem:[%s1922 + $0x100] sm:$0xf]
    %v5165 = vld [vmem:[%s1922 + $0x104] sm:$0x1]
    %v5166 = vld [vmem:[%s1922 + $0x108] sm:$0xf]
    %v5167 = vld [vmem:[%s1922 + $0x10c] sm:$0xf]
    %v5168 = vld [vmem:[%s1922 + $0x110] sm:$0x1]
    %v5169 = vld [vmem:[%s1922 + $0x114] sm:$0xf]
    %v5170 = vld [vmem:[%s1922 + $0x118] sm:$0xf]
    %v5171 = vld [vmem:[%s1922 + $0x11c] sm:$0x1]
    %v5172 = vld [vmem:[%s1922 + $0x120] sm:$0xf]
    %v5173 = vld [vmem:[%s1922 + $0x124] sm:$0xf]
    %v5174 = vld [vmem:[%s1922 + $0x128] sm:$0x1]
    %v5175 = vld [vmem:[%s1922 + $0x12c] sm:$0xf]
    %v5176 = vld [vmem:[%s1922 + $0x130] sm:$0xf]
    %v5177 = vld [vmem:[%s1922 + $0x134] sm:$0x1]
    %v5178 = vld [vmem:[%s1922 + $0x138] sm:$0xf]
    %v5179 = vld [vmem:[%s1922 + $0x13c] sm:$0xf]
    %v5180 = vld [vmem:[%s1922 + $0x140] sm:$0x1]
    %v5181 = vld [vmem:[%s1922 + $0x144] sm:$0xf]
    %v5182 = vld [vmem:[%s1922 + $0x148] sm:$0xf]
    %v5183 = vld [vmem:[%s1922 + $0x14c] sm:$0x1]
    %v5184 = vld [vmem:[%s1922 + $0x150] sm:$0xf]
    %v5185 = vld [vmem:[%s1922 + $0x154] sm:$0xf]
    %v5186 = vld [vmem:[%s1922 + $0x158] sm:$0x1]
    %v5187 = vld [vmem:[%s1922 + $0x15c] sm:$0xf]
    %v5188 = vld [vmem:[%s1922 + $0x160] sm:$0xf]
    %v5189 = vld [vmem:[%s1922 + $0x164] sm:$0x1]
    %v5190 = vld [vmem:[%s1922 + $0x168] sm:$0xf]
    %v5191 = vld [vmem:[%s1922 + $0x16c] sm:$0xf]
    %v5192 = vld [vmem:[%s1922 + $0x170] sm:$0x1]
    %v5193 = vld [vmem:[%s1922 + $0x174] sm:$0xf]
    %v5194 = vld [vmem:[%s1922 + $0x178] sm:$0xf]
    %v5195 = vld [vmem:[%s1922 + $0x17c] sm:$0x1]
    %v5196 = vld [vmem:[%s1922 + $0x180] sm:$0xf]
    %v5197 = vld [vmem:[%s1922 + $0x184] sm:$0xf]
    %v5198 = vld [vmem:[%s1922 + $0x188] sm:$0x1]
    %v5199 = vld [vmem:[%s1922 + $0x18c] sm:$0xf]
    %v5200 = vld [vmem:[%s1922 + $0x190] sm:$0xf]
    %v5201 = vld [vmem:[%s1922 + $0x194] sm:$0x1]
    %v5203 = vshrl.u32 %v5106, 16
    %v5205 = vrot.slane %v5203, 4
    %v5206 = vshll.u32 %v5106, 16
    %v5208 = vrot.slane %v5206, 5
    %v5209 = vor.u32 %v5205, %v5208
    %v5210 = vrot.slane %v5209, 4
    %v5212 = vshll.u32 %v5107, 16
    %v5214 = vrot.slane %v5212, 5
    %v5215 = vsel %vm2263, %v5210, %v5214
    %v5216 = vshrl.u32 %v5107, 16
    %v5218 = vrot.slane %v5216, 4
    %v5219 = vor.u32 %v5218, %v5214
    %v5220 = vrot.slane %v5219, 4
    %v5222 = vshll.u32 %v5108, 16
    %v5224 = vrot.slane %v5222, 5
    %v5225 = vsel %vm2263, %v5220, %v5224
    %v5227 = vshrl.u32 %v5109, 16
    %v5229 = vrot.slane %v5227, 4
    %v5230 = vshll.u32 %v5109, 16
    %v5232 = vrot.slane %v5230, 5
    %v5233 = vor.u32 %v5229, %v5232
    %v5234 = vrot.slane %v5233, 4
    %v5236 = vshll.u32 %v5110, 16
    %v5238 = vrot.slane %v5236, 5
    %v5239 = vsel %vm2263, %v5234, %v5238
    %v5240 = vshrl.u32 %v5110, 16
    %v5242 = vrot.slane %v5240, 4
    %v5243 = vor.u32 %v5242, %v5238
    %v5244 = vrot.slane %v5243, 4
    %v5246 = vshll.u32 %v5111, 16
    %v5248 = vrot.slane %v5246, 5
    %v5249 = vsel %vm2263, %v5244, %v5248
    %v5251 = vshrl.u32 %v5112, 16
    %v5253 = vrot.slane %v5251, 4
    %v5254 = vshll.u32 %v5112, 16
    %v5256 = vrot.slane %v5254, 5
    %v5257 = vor.u32 %v5253, %v5256
    %v5258 = vrot.slane %v5257, 4
    %v5260 = vshll.u32 %v5113, 16
    %v5262 = vrot.slane %v5260, 5
    %v5263 = vsel %vm2263, %v5258, %v5262
    %v5264 = vshrl.u32 %v5113, 16
    %v5266 = vrot.slane %v5264, 4
    %v5267 = vor.u32 %v5266, %v5262
    %v5268 = vrot.slane %v5267, 4
    %v5270 = vshll.u32 %v5114, 16
    %v5272 = vrot.slane %v5270, 5
    %v5273 = vsel %vm2263, %v5268, %v5272
    %v5275 = vshrl.u32 %v5115, 16
    %v5277 = vrot.slane %v5275, 4
    %v5278 = vshll.u32 %v5115, 16
    %v5280 = vrot.slane %v5278, 5
    %v5281 = vor.u32 %v5277, %v5280
    %v5282 = vrot.slane %v5281, 4
    %v5284 = vshll.u32 %v5116, 16
    %v5286 = vrot.slane %v5284, 5
    %v5287 = vsel %vm2263, %v5282, %v5286
    %v5288 = vshrl.u32 %v5116, 16
    %v5290 = vrot.slane %v5288, 4
    %v5291 = vor.u32 %v5290, %v5286
    %v5292 = vrot.slane %v5291, 4
    %v5294 = vshll.u32 %v5117, 16
    %v5296 = vrot.slane %v5294, 5
    %v5297 = vsel %vm2263, %v5292, %v5296
    %v5299 = vshrl.u32 %v5118, 16
    %v5301 = vrot.slane %v5299, 4
    %v5302 = vshll.u32 %v5118, 16
    %v5304 = vrot.slane %v5302, 5
    %v5305 = vor.u32 %v5301, %v5304
    %v5306 = vrot.slane %v5305, 4
    %v5308 = vshll.u32 %v5119, 16
    %v5310 = vrot.slane %v5308, 5
    %v5311 = vsel %vm2263, %v5306, %v5310
    %v5312 = vshrl.u32 %v5119, 16
    %v5314 = vrot.slane %v5312, 4
    %v5315 = vor.u32 %v5314, %v5310
    %v5316 = vrot.slane %v5315, 4
    %v5318 = vshll.u32 %v5120, 16
    %v5320 = vrot.slane %v5318, 5
    %v5321 = vsel %vm2263, %v5316, %v5320
    %v5323 = vshrl.u32 %v5121, 16
    %v5325 = vrot.slane %v5323, 4
    %v5326 = vshll.u32 %v5121, 16
    %v5328 = vrot.slane %v5326, 5
    %v5329 = vor.u32 %v5325, %v5328
    %v5330 = vrot.slane %v5329, 4
    %v5332 = vshll.u32 %v5122, 16
    %v5334 = vrot.slane %v5332, 5
    %v5335 = vsel %vm2263, %v5330, %v5334
    %v5336 = vshrl.u32 %v5122, 16
    %v5338 = vrot.slane %v5336, 4
    %v5339 = vor.u32 %v5338, %v5334
    %v5340 = vrot.slane %v5339, 4
    %v5342 = vshll.u32 %v5123, 16
    %v5344 = vrot.slane %v5342, 5
    %v5345 = vsel %vm2263, %v5340, %v5344
    %v5347 = vshrl.u32 %v5124, 16
    %v5349 = vrot.slane %v5347, 4
    %v5350 = vshll.u32 %v5124, 16
    %v5352 = vrot.slane %v5350, 5
    %v5353 = vor.u32 %v5349, %v5352
    %v5354 = vrot.slane %v5353, 4
    %v5356 = vshll.u32 %v5125, 16
    %v5358 = vrot.slane %v5356, 5
    %v5359 = vsel %vm2263, %v5354, %v5358
    %v5360 = vshrl.u32 %v5125, 16
    %v5362 = vrot.slane %v5360, 4
    %v5363 = vor.u32 %v5362, %v5358
    %v5364 = vrot.slane %v5363, 4
    %v5366 = vshll.u32 %v5126, 16
    %v5368 = vrot.slane %v5366, 5
    %v5369 = vsel %vm2263, %v5364, %v5368
    %v5371 = vshrl.u32 %v5127, 16
    %v5373 = vrot.slane %v5371, 4
    %v5374 = vshll.u32 %v5127, 16
    %v5376 = vrot.slane %v5374, 5
    %v5377 = vor.u32 %v5373, %v5376
    %v5378 = vrot.slane %v5377, 4
    %v5380 = vshll.u32 %v5128, 16
    %v5382 = vrot.slane %v5380, 5
    %v5383 = vsel %vm2263, %v5378, %v5382
    %v5384 = vshrl.u32 %v5128, 16
    %v5386 = vrot.slane %v5384, 4
    %v5387 = vor.u32 %v5386, %v5382
    %v5388 = vrot.slane %v5387, 4
    %v5390 = vshll.u32 %v5129, 16
    %v5392 = vrot.slane %v5390, 5
    %v5393 = vsel %vm2263, %v5388, %v5392
    %v5395 = vshrl.u32 %v5130, 16
    %v5397 = vrot.slane %v5395, 4
    %v5398 = vshll.u32 %v5130, 16
    %v5400 = vrot.slane %v5398, 5
    %v5401 = vor.u32 %v5397, %v5400
    %v5402 = vrot.slane %v5401, 4
    %v5404 = vshll.u32 %v5131, 16
    %v5406 = vrot.slane %v5404, 5
    %v5407 = vsel %vm2263, %v5402, %v5406
    %v5408 = vshrl.u32 %v5131, 16
    %v5410 = vrot.slane %v5408, 4
    %v5411 = vor.u32 %v5410, %v5406
    %v5412 = vrot.slane %v5411, 4
    %v5414 = vshll.u32 %v5132, 16
    %v5416 = vrot.slane %v5414, 5
    %v5417 = vsel %vm2263, %v5412, %v5416
    %v5419 = vshrl.u32 %v5133, 16
    %v5421 = vrot.slane %v5419, 4
    %v5422 = vshll.u32 %v5133, 16
    %v5424 = vrot.slane %v5422, 5
    %v5425 = vor.u32 %v5421, %v5424
    %v5426 = vrot.slane %v5425, 4
    %v5428 = vshll.u32 %v5134, 16
    %v5430 = vrot.slane %v5428, 5
    %v5431 = vsel %vm2263, %v5426, %v5430
    %v5432 = vshrl.u32 %v5134, 16
    %v5434 = vrot.slane %v5432, 4
    %v5435 = vor.u32 %v5434, %v5430
    %v5436 = vrot.slane %v5435, 4
    %v5438 = vshll.u32 %v5135, 16
    %v5440 = vrot.slane %v5438, 5
    %v5441 = vsel %vm2263, %v5436, %v5440
    %v5443 = vshrl.u32 %v5136, 16
    %v5445 = vrot.slane %v5443, 4
    %v5446 = vshll.u32 %v5136, 16
    %v5448 = vrot.slane %v5446, 5
    %v5449 = vor.u32 %v5445, %v5448
    %v5450 = vrot.slane %v5449, 4
    %v5452 = vshll.u32 %v5137, 16
    %v5454 = vrot.slane %v5452, 5
    %v5455 = vsel %vm2263, %v5450, %v5454
    %v5456 = vshrl.u32 %v5137, 16
    %v5458 = vrot.slane %v5456, 4
    %v5459 = vor.u32 %v5458, %v5454
    %v5460 = vrot.slane %v5459, 4
    %v5462 = vshll.u32 %v5138, 16
    %v5464 = vrot.slane %v5462, 5
    %v5465 = vsel %vm2263, %v5460, %v5464
    %v5467 = vshrl.u32 %v5139, 16
    %v5469 = vrot.slane %v5467, 4
    %v5470 = vshll.u32 %v5139, 16
    %v5472 = vrot.slane %v5470, 5
    %v5473 = vor.u32 %v5469, %v5472
    %v5474 = vrot.slane %v5473, 4
    %v5476 = vshll.u32 %v5140, 16
    %v5478 = vrot.slane %v5476, 5
    %v5479 = vsel %vm2263, %v5474, %v5478
    %v5480 = vshrl.u32 %v5140, 16
    %v5482 = vrot.slane %v5480, 4
    %v5483 = vor.u32 %v5482, %v5478
    %v5484 = vrot.slane %v5483, 4
    %v5486 = vshll.u32 %v5141, 16
    %v5488 = vrot.slane %v5486, 5
    %v5489 = vsel %vm2263, %v5484, %v5488
    %v5491 = vshrl.u32 %v5142, 16
    %v5493 = vrot.slane %v5491, 4
    %v5494 = vshll.u32 %v5142, 16
    %v5496 = vrot.slane %v5494, 5
    %v5497 = vor.u32 %v5493, %v5496
    %v5498 = vrot.slane %v5497, 4
    %v5500 = vshll.u32 %v5143, 16
    %v5502 = vrot.slane %v5500, 5
    %v5503 = vsel %vm2263, %v5498, %v5502
    %v5504 = vshrl.u32 %v5143, 16
    %v5506 = vrot.slane %v5504, 4
    %v5507 = vor.u32 %v5506, %v5502
    %v5508 = vrot.slane %v5507, 4
    %v5510 = vshll.u32 %v5144, 16
    %v5512 = vrot.slane %v5510, 5
    %v5513 = vsel %vm2263, %v5508, %v5512
    %v5515 = vshrl.u32 %v5145, 16
    %v5517 = vrot.slane %v5515, 4
    %v5518 = vshll.u32 %v5145, 16
    %v5520 = vrot.slane %v5518, 5
    %v5521 = vor.u32 %v5517, %v5520
    %v5522 = vrot.slane %v5521, 4
    %v5524 = vshll.u32 %v5146, 16
    %v5526 = vrot.slane %v5524, 5
    %v5527 = vsel %vm2263, %v5522, %v5526
    %v5528 = vshrl.u32 %v5146, 16
    %v5530 = vrot.slane %v5528, 4
    %v5531 = vor.u32 %v5530, %v5526
    %v5532 = vrot.slane %v5531, 4
    %v5534 = vshll.u32 %v5147, 16
    %v5536 = vrot.slane %v5534, 5
    %v5537 = vsel %vm2263, %v5532, %v5536
    %v5539 = vshrl.u32 %v5148, 16
    %v5541 = vrot.slane %v5539, 4
    %v5542 = vshll.u32 %v5148, 16
    %v5544 = vrot.slane %v5542, 5
    %v5545 = vor.u32 %v5541, %v5544
    %v5546 = vrot.slane %v5545, 4
    %v5548 = vshll.u32 %v5149, 16
    %v5550 = vrot.slane %v5548, 5
    %v5551 = vsel %vm2263, %v5546, %v5550
    %v5552 = vshrl.u32 %v5149, 16
    %v5554 = vrot.slane %v5552, 4
    %v5555 = vor.u32 %v5554, %v5550
    %v5556 = vrot.slane %v5555, 4
    %v5558 = vshll.u32 %v5150, 16
    %v5560 = vrot.slane %v5558, 5
    %v5561 = vsel %vm2263, %v5556, %v5560
    %v5563 = vshrl.u32 %v5151, 16
    %v5565 = vrot.slane %v5563, 4
    %v5566 = vshll.u32 %v5151, 16
    %v5568 = vrot.slane %v5566, 5
    %v5569 = vor.u32 %v5565, %v5568
    %v5570 = vrot.slane %v5569, 4
    %v5572 = vshll.u32 %v5152, 16
    %v5574 = vrot.slane %v5572, 5
    %v5575 = vsel %vm2263, %v5570, %v5574
    %v5576 = vshrl.u32 %v5152, 16
    %v5578 = vrot.slane %v5576, 4
    %v5579 = vor.u32 %v5578, %v5574
    %v5580 = vrot.slane %v5579, 4
    %v5582 = vshll.u32 %v5153, 16
    %v5584 = vrot.slane %v5582, 5
    %v5585 = vsel %vm2263, %v5580, %v5584
    %v5587 = vshrl.u32 %v5154, 16
    %v5589 = vrot.slane %v5587, 4
    %v5590 = vshll.u32 %v5154, 16
    %v5592 = vrot.slane %v5590, 5
    %v5593 = vor.u32 %v5589, %v5592
    %v5594 = vrot.slane %v5593, 4
    %v5596 = vshll.u32 %v5155, 16
    %v5598 = vrot.slane %v5596, 5
    %v5599 = vsel %vm2263, %v5594, %v5598
    %v5600 = vshrl.u32 %v5155, 16
    %v5602 = vrot.slane %v5600, 4
    %v5603 = vor.u32 %v5602, %v5598
    %v5604 = vrot.slane %v5603, 4
    %v5606 = vshll.u32 %v5156, 16
    %v5608 = vrot.slane %v5606, 5
    %v5609 = vsel %vm2263, %v5604, %v5608
    %v5611 = vshrl.u32 %v5157, 16
    %v5613 = vrot.slane %v5611, 4
    %v5614 = vshll.u32 %v5157, 16
    %v5616 = vrot.slane %v5614, 5
    %v5617 = vor.u32 %v5613, %v5616
    %v5618 = vrot.slane %v5617, 4
    %v5620 = vshll.u32 %v5158, 16
    %v5622 = vrot.slane %v5620, 5
    %v5623 = vsel %vm2263, %v5618, %v5622
    %v5624 = vshrl.u32 %v5158, 16
    %v5626 = vrot.slane %v5624, 4
    %v5627 = vor.u32 %v5626, %v5622
    %v5628 = vrot.slane %v5627, 4
    %v5630 = vshll.u32 %v5159, 16
    %v5632 = vrot.slane %v5630, 5
    %v5633 = vsel %vm2263, %v5628, %v5632
    %v5635 = vshrl.u32 %v5160, 16
    %v5637 = vrot.slane %v5635, 4
    %v5638 = vshll.u32 %v5160, 16
    %v5640 = vrot.slane %v5638, 5
    %v5641 = vor.u32 %v5637, %v5640
    %v5642 = vrot.slane %v5641, 4
    %v5644 = vshll.u32 %v5161, 16
    %v5646 = vrot.slane %v5644, 5
    %v5647 = vsel %vm2263, %v5642, %v5646
    %v5648 = vshrl.u32 %v5161, 16
    %v5650 = vrot.slane %v5648, 4
    %v5651 = vor.u32 %v5650, %v5646
    %v5652 = vrot.slane %v5651, 4
    %v5654 = vshll.u32 %v5162, 16
    %v5656 = vrot.slane %v5654, 5
    %v5657 = vsel %vm2263, %v5652, %v5656
    %v5659 = vshrl.u32 %v5163, 16
    %v5661 = vrot.slane %v5659, 4
    %v5662 = vshll.u32 %v5163, 16
    %v5664 = vrot.slane %v5662, 5
    %v5665 = vor.u32 %v5661, %v5664
    %v5666 = vrot.slane %v5665, 4
    %v5668 = vshll.u32 %v5164, 16
    %v5670 = vrot.slane %v5668, 5
    %v5671 = vsel %vm2263, %v5666, %v5670
    %v5672 = vshrl.u32 %v5164, 16
    %v5674 = vrot.slane %v5672, 4
    %v5675 = vor.u32 %v5674, %v5670
    %v5676 = vrot.slane %v5675, 4
    %v5678 = vshll.u32 %v5165, 16
    %v5680 = vrot.slane %v5678, 5
    %v5681 = vsel %vm2263, %v5676, %v5680
    %v5683 = vshrl.u32 %v5166, 16
    %v5685 = vrot.slane %v5683, 4
    %v5686 = vshll.u32 %v5166, 16
    %v5688 = vrot.slane %v5686, 5
    %v5689 = vor.u32 %v5685, %v5688
    %v5690 = vrot.slane %v5689, 4
    %v5692 = vshll.u32 %v5167, 16
    %v5694 = vrot.slane %v5692, 5
    %v5695 = vsel %vm2263, %v5690, %v5694
    %v5696 = vshrl.u32 %v5167, 16
    %v5698 = vrot.slane %v5696, 4
    %v5699 = vor.u32 %v5698, %v5694
    %v5700 = vrot.slane %v5699, 4
    %v5702 = vshll.u32 %v5168, 16
    %v5704 = vrot.slane %v5702, 5
    %v5705 = vsel %vm2263, %v5700, %v5704
    %v5707 = vshrl.u32 %v5169, 16
    %v5709 = vrot.slane %v5707, 4
    %v5710 = vshll.u32 %v5169, 16
    %v5712 = vrot.slane %v5710, 5
    %v5713 = vor.u32 %v5709, %v5712
    %v5714 = vrot.slane %v5713, 4
    %v5716 = vshll.u32 %v5170, 16
    %v5718 = vrot.slane %v5716, 5
    %v5719 = vsel %vm2263, %v5714, %v5718
    %v5720 = vshrl.u32 %v5170, 16
    %v5722 = vrot.slane %v5720, 4
    %v5723 = vor.u32 %v5722, %v5718
    %v5724 = vrot.slane %v5723, 4
    %v5726 = vshll.u32 %v5171, 16
    %v5728 = vrot.slane %v5726, 5
    %v5729 = vsel %vm2263, %v5724, %v5728
    %v5731 = vshrl.u32 %v5172, 16
    %v5733 = vrot.slane %v5731, 4
    %v5734 = vshll.u32 %v5172, 16
    %v5736 = vrot.slane %v5734, 5
    %v5737 = vor.u32 %v5733, %v5736
    %v5738 = vrot.slane %v5737, 4
    %v5740 = vshll.u32 %v5173, 16
    %v5742 = vrot.slane %v5740, 5
    %v5743 = vsel %vm2263, %v5738, %v5742
    %v5744 = vshrl.u32 %v5173, 16
    %v5746 = vrot.slane %v5744, 4
    %v5747 = vor.u32 %v5746, %v5742
    %v5748 = vrot.slane %v5747, 4
    %v5750 = vshll.u32 %v5174, 16
    %v5752 = vrot.slane %v5750, 5
    %v5753 = vsel %vm2263, %v5748, %v5752
    %v5755 = vshrl.u32 %v5175, 16
    %v5757 = vrot.slane %v5755, 4
    %v5758 = vshll.u32 %v5175, 16
    %v5760 = vrot.slane %v5758, 5
    %v5761 = vor.u32 %v5757, %v5760
    %v5762 = vrot.slane %v5761, 4
    %v5764 = vshll.u32 %v5176, 16
    %v5766 = vrot.slane %v5764, 5
    %v5767 = vsel %vm2263, %v5762, %v5766
    %v5768 = vshrl.u32 %v5176, 16
    %v5770 = vrot.slane %v5768, 4
    %v5771 = vor.u32 %v5770, %v5766
    %v5772 = vrot.slane %v5771, 4
    %v5774 = vshll.u32 %v5177, 16
    %v5776 = vrot.slane %v5774, 5
    %v5777 = vsel %vm2263, %v5772, %v5776
    %v5779 = vshrl.u32 %v5178, 16
    %v5781 = vrot.slane %v5779, 4
    %v5782 = vshll.u32 %v5178, 16
    %v5784 = vrot.slane %v5782, 5
    %v5785 = vor.u32 %v5781, %v5784
    %v5786 = vrot.slane %v5785, 4
    %v5788 = vshll.u32 %v5179, 16
    %v5790 = vrot.slane %v5788, 5
    %v5791 = vsel %vm2263, %v5786, %v5790
    %v5792 = vshrl.u32 %v5179, 16
    %v5794 = vrot.slane %v5792, 4
    %v5795 = vor.u32 %v5794, %v5790
    %v5796 = vrot.slane %v5795, 4
    %v5798 = vshll.u32 %v5180, 16
    %v5800 = vrot.slane %v5798, 5
    %v5801 = vsel %vm2263, %v5796, %v5800
    %v5803 = vshrl.u32 %v5181, 16
    %v5805 = vrot.slane %v5803, 4
    %v5806 = vshll.u32 %v5181, 16
    %v5808 = vrot.slane %v5806, 5
    %v5809 = vor.u32 %v5805, %v5808
    %v5810 = vrot.slane %v5809, 4
    %v5812 = vshll.u32 %v5182, 16
    %v5814 = vrot.slane %v5812, 5
    %v5815 = vsel %vm2263, %v5810, %v5814
    %v5816 = vshrl.u32 %v5182, 16
    %v5818 = vrot.slane %v5816, 4
    %v5819 = vor.u32 %v5818, %v5814
    %v5820 = vrot.slane %v5819, 4
    %v5822 = vshll.u32 %v5183, 16
    %v5824 = vrot.slane %v5822, 5
    %v5825 = vsel %vm2263, %v5820, %v5824
    %v5827 = vshrl.u32 %v5184, 16
    %v5829 = vrot.slane %v5827, 4
    %v5830 = vshll.u32 %v5184, 16
    %v5832 = vrot.slane %v5830, 5
    %v5833 = vor.u32 %v5829, %v5832
    %v5834 = vrot.slane %v5833, 4
    %v5836 = vshll.u32 %v5185, 16
    %v5838 = vrot.slane %v5836, 5
    %v5839 = vsel %vm2263, %v5834, %v5838
    %v5840 = vshrl.u32 %v5185, 16
    %v5842 = vrot.slane %v5840, 4
    %v5843 = vor.u32 %v5842, %v5838
    %v5844 = vrot.slane %v5843, 4
    %v5846 = vshll.u32 %v5186, 16
    %v5848 = vrot.slane %v5846, 5
    %v5849 = vsel %vm2263, %v5844, %v5848
    %v5851 = vshrl.u32 %v5187, 16
    %v5853 = vrot.slane %v5851, 4
    %v5854 = vshll.u32 %v5187, 16
    %v5856 = vrot.slane %v5854, 5
    %v5857 = vor.u32 %v5853, %v5856
    %v5858 = vrot.slane %v5857, 4
    %v5860 = vshll.u32 %v5188, 16
    %v5862 = vrot.slane %v5860, 5
    %v5863 = vsel %vm2263, %v5858, %v5862
    %v5864 = vshrl.u32 %v5188, 16
    %v5866 = vrot.slane %v5864, 4
    %v5867 = vor.u32 %v5866, %v5862
    %v5868 = vrot.slane %v5867, 4
    %v5870 = vshll.u32 %v5189, 16
    %v5872 = vrot.slane %v5870, 5
    %v5873 = vsel %vm2263, %v5868, %v5872
    %v5875 = vshrl.u32 %v5190, 16
    %v5877 = vrot.slane %v5875, 4
    %v5878 = vshll.u32 %v5190, 16
    %v5880 = vrot.slane %v5878, 5
    %v5881 = vor.u32 %v5877, %v5880
    %v5882 = vrot.slane %v5881, 4
    %v5884 = vshll.u32 %v5191, 16
    %v5886 = vrot.slane %v5884, 5
    %v5887 = vsel %vm2263, %v5882, %v5886
    %v5888 = vshrl.u32 %v5191, 16
    %v5890 = vrot.slane %v5888, 4
    %v5891 = vor.u32 %v5890, %v5886
    %v5892 = vrot.slane %v5891, 4
    %v5894 = vshll.u32 %v5192, 16
    %v5896 = vrot.slane %v5894, 5
    %v5897 = vsel %vm2263, %v5892, %v5896
    %v5899 = vshrl.u32 %v5193, 16
    %v5901 = vrot.slane %v5899, 4
    %v5902 = vshll.u32 %v5193, 16
    %v5904 = vrot.slane %v5902, 5
    %v5905 = vor.u32 %v5901, %v5904
    %v5906 = vrot.slane %v5905, 4
    %v5908 = vshll.u32 %v5194, 16
    %v5910 = vrot.slane %v5908, 5
    %v5911 = vsel %vm2263, %v5906, %v5910
    %v5912 = vshrl.u32 %v5194, 16
    %v5914 = vrot.slane %v5912, 4
    %v5915 = vor.u32 %v5914, %v5910
    %v5916 = vrot.slane %v5915, 4
    %v5918 = vshll.u32 %v5195, 16
    %v5920 = vrot.slane %v5918, 5
    %v5921 = vsel %vm2263, %v5916, %v5920
    %v5923 = vshrl.u32 %v5196, 16
    %v5925 = vrot.slane %v5923, 4
    %v5926 = vshll.u32 %v5196, 16
    %v5928 = vrot.slane %v5926, 5
    %v5929 = vor.u32 %v5925, %v5928
    %v5930 = vrot.slane %v5929, 4
    %v5932 = vshll.u32 %v5197, 16
    %v5934 = vrot.slane %v5932, 5
    %v5935 = vsel %vm2263, %v5930, %v5934
    %v5936 = vshrl.u32 %v5197, 16
    %v5938 = vrot.slane %v5936, 4
    %v5939 = vor.u32 %v5938, %v5934
    %v5940 = vrot.slane %v5939, 4
    %v5942 = vshll.u32 %v5198, 16
    %v5944 = vrot.slane %v5942, 5
    %v5945 = vsel %vm2263, %v5940, %v5944
    %v5947 = vshrl.u32 %v5199, 16
    %v5949 = vrot.slane %v5947, 4
    %v5950 = vshll.u32 %v5199, 16
    %v5952 = vrot.slane %v5950, 5
    %v5953 = vor.u32 %v5949, %v5952
    %v5954 = vrot.slane %v5953, 4
    %v5956 = vshll.u32 %v5200, 16
    %v5958 = vrot.slane %v5956, 5
    %v5959 = vsel %vm2263, %v5954, %v5958
    %v5960 = vshrl.u32 %v5200, 16
    %v5962 = vrot.slane %v5960, 4
    %v5963 = vor.u32 %v5962, %v5958
    %v5964 = vrot.slane %v5963, 4
    %v5966 = vshll.u32 %v5201, 16
    %v5968 = vrot.slane %v5966, 5
    %v5969 = vsel %vm2263, %v5964, %v5968
    %s5970 = scalar_lea.vmem [#allocation8], 256
    %v5971 = vld [vmem:[%s5970] sm:$0xf]
    %v5972 = vld [vmem:[%s5970 + $0x4] sm:$0xf]
    %v5973 = vld [vmem:[%s5970 + $0x8] sm:$0xf]
    %v5974 = vld [vmem:[%s5970 + $0xc] sm:$0xf]
    %v5975 = vld [vmem:[%s5970 + $0x10] sm:$0xf]
    %v5976 = vld [vmem:[%s5970 + $0x14] sm:$0xf]
    %v5977 = vld [vmem:[%s5970 + $0x18] sm:$0xf]
    %v5978 = vld [vmem:[%s5970 + $0x1c] sm:$0xf]
    %v5979 = vld [vmem:[%s5970 + $0x20] sm:$0xf]
    %v5980 = vld [vmem:[%s5970 + $0x24] sm:$0xf]
    %v5981 = vld [vmem:[%s5970 + $0x28] sm:$0xf]
    %v5982 = vld [vmem:[%s5970 + $0x2c] sm:$0xf]
    %v5983 = vld [vmem:[%s5970 + $0x30] sm:$0xf]
    %v5984 = vld [vmem:[%s5970 + $0x34] sm:$0xf]
    %v5985 = vld [vmem:[%s5970 + $0x38] sm:$0xf]
    %v5986 = vld [vmem:[%s5970 + $0x3c] sm:$0xf]
    %v5987 = vunpack.c.l.b16 %v5215
    %v5988 = vunpack.c.l.b16 %v5225
    %v5989 = vunpack.c.l.b16 %v5239
    %v5990 = vunpack.c.l.b16 %v5249
    %v5991 = vunpack.c.l.b16 %v5263
    %v5992 = vunpack.c.l.b16 %v5273
    %v5993 = vunpack.c.l.b16 %v5287
    %v5994 = vunpack.c.l.b16 %v5297
    %v5995 = vunpack.c.l.b16 %v5311
    %v5996 = vunpack.c.l.b16 %v5321
    %v5997 = vunpack.c.l.b16 %v5335
    %v5998 = vunpack.c.l.b16 %v5345
    %v5999 = vunpack.c.l.b16 %v5359
    %v6000 = vunpack.c.l.b16 %v5369
    %v6001 = vunpack.c.l.b16 %v5383
    %v6002 = vunpack.c.l.b16 %v5393
    %v6003 = vunpack.c.l.b16 %v5407
    %v6004 = vunpack.c.l.b16 %v5417
    %v6005 = vunpack.c.l.b16 %v5431
    %v6006 = vunpack.c.l.b16 %v5441
    %v6007 = vunpack.c.l.b16 %v5455
    %v6008 = vunpack.c.l.b16 %v5465
    %v6009 = vunpack.c.l.b16 %v5479
    %v6010 = vunpack.c.l.b16 %v5489
    %v6011 = vunpack.c.l.b16 %v5503
    %v6012 = vunpack.c.l.b16 %v5513
    %v6013 = vunpack.c.l.b16 %v5527
    %v6014 = vunpack.c.l.b16 %v5537
    %v6015 = vunpack.c.l.b16 %v5551
    %v6016 = vunpack.c.l.b16 %v5561
    %v6017 = vunpack.c.l.b16 %v5575
    %v6018 = vunpack.c.l.b16 %v5585
    %v6019 = vunpack.c.l.b16 %v5599
    %v6020 = vunpack.c.l.b16 %v5609
    %v6021 = vunpack.c.l.b16 %v5623
    %v6022 = vunpack.c.l.b16 %v5633
    %v6023 = vunpack.c.l.b16 %v5647
    %v6024 = vunpack.c.l.b16 %v5657
    %v6025 = vunpack.c.l.b16 %v5671
    %v6026 = vunpack.c.l.b16 %v5681
    %v6027 = vunpack.c.l.b16 %v5695
    %v6028 = vunpack.c.l.b16 %v5705
    %v6029 = vunpack.c.l.b16 %v5719
    %v6030 = vunpack.c.l.b16 %v5729
    %v6031 = vunpack.c.l.b16 %v5743
    %v6032 = vunpack.c.l.b16 %v5753
    %v6033 = vunpack.c.l.b16 %v5767
    %v6034 = vunpack.c.l.b16 %v5777
    %v6035 = vunpack.c.l.b16 %v5791
    %v6036 = vunpack.c.l.b16 %v5801
    %v6037 = vunpack.c.l.b16 %v5815
    %v6038 = vunpack.c.l.b16 %v5825
    %v6039 = vunpack.c.l.b16 %v5839
    %v6040 = vunpack.c.l.b16 %v5849
    %v6041 = vunpack.c.l.b16 %v5863
    %v6042 = vunpack.c.l.b16 %v5873
    %v6043 = vunpack.c.l.b16 %v5887
    %v6044 = vunpack.c.l.b16 %v5897
    %v6045 = vunpack.c.l.b16 %v5911
    %v6046 = vunpack.c.l.b16 %v5921
    %v6047 = vunpack.c.l.b16 %v5935
    %v6048 = vunpack.c.l.b16 %v5945
    %v6049 = vunpack.c.l.b16 %v5959
    %v6050 = vunpack.c.l.b16 %v5969
    %v6051 = vpack.c.b16 %v5988, %v5987
    %v6052 = vpack.c.b16 %v5990, %v5989
    %v6053 = vpack.c.b16 %v5992, %v5991
    %v6054 = vpack.c.b16 %v5994, %v5993
    %v6055 = vpack.c.b16 %v5996, %v5995
    %v6056 = vpack.c.b16 %v5998, %v5997
    %v6057 = vpack.c.b16 %v6000, %v5999
    %v6058 = vpack.c.b16 %v6002, %v6001
    %v6059 = vpack.c.b16 %v6004, %v6003
    %v6060 = vpack.c.b16 %v6006, %v6005
    %v6061 = vpack.c.b16 %v6008, %v6007
    %v6062 = vpack.c.b16 %v6010, %v6009
    %v6063 = vpack.c.b16 %v6012, %v6011
    %v6064 = vpack.c.b16 %v6014, %v6013
    %v6065 = vpack.c.b16 %v6016, %v6015
    %v6066 = vpack.c.b16 %v6018, %v6017
    %v6067 = vpack.c.b16 %v6020, %v6019
    %v6068 = vpack.c.b16 %v6022, %v6021
    %v6069 = vpack.c.b16 %v6024, %v6023
    %v6070 = vpack.c.b16 %v6026, %v6025
    %v6071 = vpack.c.b16 %v6028, %v6027
    %v6072 = vpack.c.b16 %v6030, %v6029
    %v6073 = vpack.c.b16 %v6032, %v6031
    %v6074 = vpack.c.b16 %v6034, %v6033
    %v6075 = vpack.c.b16 %v6036, %v6035
    %v6076 = vpack.c.b16 %v6038, %v6037
    %v6077 = vpack.c.b16 %v6040, %v6039
    %v6078 = vpack.c.b16 %v6042, %v6041
    %v6079 = vpack.c.b16 %v6044, %v6043
    %v6080 = vpack.c.b16 %v6046, %v6045
    %v6081 = vpack.c.b16 %v6048, %v6047
    %v6082 = vpack.c.b16 %v6050, %v6049
    %v6131 = vunpack.c.l.b16 %v5971
    %v6132 = vunpack.c.l.b16 %v5972
    %v6133 = vunpack.c.l.b16 %v5973
    %v6134 = vunpack.c.l.b16 %v5974
    %v6135 = vunpack.c.l.b16 %v5975
    %v6136 = vunpack.c.l.b16 %v5976
    %v6137 = vunpack.c.l.b16 %v5977
    %v6138 = vunpack.c.l.b16 %v5978
    %v6139 = vunpack.c.l.b16 %v5979
    %v6140 = vunpack.c.l.b16 %v5980
    %v6141 = vunpack.c.l.b16 %v5981
    %v6142 = vunpack.c.l.b16 %v5982
    %v6143 = vunpack.c.l.b16 %v5983
    %v6144 = vunpack.c.l.b16 %v5984
    %v6145 = vunpack.c.l.b16 %v5985
    %v6146 = vunpack.c.l.b16 %v5986
    %v6147 = vpack.c.b16 %v6132, %v6131
    %v6148 = vpack.c.b16 %v6134, %v6133
    %v6149 = vpack.c.b16 %v6136, %v6135
    %v6150 = vpack.c.b16 %v6138, %v6137
    %v6151 = vpack.c.b16 %v6140, %v6139
    %v6152 = vpack.c.b16 %v6142, %v6141
    %v6153 = vpack.c.b16 %v6144, %v6143
    %v6154 = vpack.c.b16 %v6146, %v6145
    %6163 = vmatpush.bf16.msra.mxu0 %v6154
    %6164 = vmatpush.bf16.msra.mxu0 %v6153
    %6165 = vmatpush.bf16.msra.mxu0 %v6152
    %6166 = vmatpush.bf16.msra.mxu0 %v6151
    %6167 = vmatpush.bf16.msra.mxu0 %v6150
    %6168 = vmatpush.bf16.msra.mxu0 %v6149
    %6169 = vmatpush.bf16.msra.mxu0 %v6148
    %6170 = vmatpush.bf16.msra.mxu0 %v6147
    %6171 = vmatmul.bf16.gmra.mxu0 %v6051
    %v6172 = vpop.f32.mrf.mxu0
    %v6173 = vadd.f32 0.0, %v6172
    %v6174 = vpop.f32.mrf.mxu0
    %v6175 = vadd.f32 0.0, %v6174
    %6176 = vmatmul.bf16.gmra.mxu0 %v6052
    %v6177 = vpop.f32.mrf.mxu0
    %v6178 = vadd.f32 0.0, %v6177
    %v6179 = vpop.f32.mrf.mxu0
    %v6180 = vadd.f32 0.0, %v6179
    %6181 = vmatmul.bf16.gmra.mxu0 %v6053
    %v6182 = vpop.f32.mrf.mxu0
    %v6183 = vadd.f32 0.0, %v6182
    %v6184 = vpop.f32.mrf.mxu0
    %v6185 = vadd.f32 0.0, %v6184
    %6186 = vmatmul.bf16.gmra.mxu0 %v6054
    %v6187 = vpop.f32.mrf.mxu0
    %v6188 = vadd.f32 0.0, %v6187
    %v6189 = vpop.f32.mrf.mxu0
    %v6190 = vadd.f32 0.0, %v6189
    %6191 = vmatmul.bf16.gmra.mxu0 %v6055
    %v6192 = vpop.f32.mrf.mxu0
    %v6193 = vadd.f32 0.0, %v6192
    %v6194 = vpop.f32.mrf.mxu0
    %v6195 = vadd.f32 0.0, %v6194
    %6196 = vmatmul.bf16.gmra.mxu0 %v6056
    %v6197 = vpop.f32.mrf.mxu0
    %v6198 = vadd.f32 0.0, %v6197
    %v6199 = vpop.f32.mrf.mxu0
    %v6200 = vadd.f32 0.0, %v6199
    %6201 = vmatmul.bf16.gmra.mxu0 %v6057
    %v6202 = vpop.f32.mrf.mxu0
    %v6203 = vadd.f32 0.0, %v6202
    %v6204 = vpop.f32.mrf.mxu0
    %v6205 = vadd.f32 0.0, %v6204
    %6206 = vmatmul.bf16.gmra.mxu0 %v6058
    %v6207 = vpop.f32.mrf.mxu0
    %v6208 = vadd.f32 0.0, %v6207
    %v6209 = vpop.f32.mrf.mxu0
    %v6210 = vadd.f32 0.0, %v6209
    %6211 = vmatmul.bf16.gmra.mxu0 %v6059
    %v6212 = vpop.f32.mrf.mxu0
    %v6213 = vadd.f32 0.0, %v6212
    %v6214 = vpop.f32.mrf.mxu0
    %v6215 = vadd.f32 0.0, %v6214
    %6216 = vmatmul.bf16.gmra.mxu0 %v6060
    %v6217 = vpop.f32.mrf.mxu0
    %v6218 = vadd.f32 0.0, %v6217
    %v6219 = vpop.f32.mrf.mxu0
    %v6220 = vadd.f32 0.0, %v6219
    %6221 = vmatmul.bf16.gmra.mxu0 %v6061
    %v6222 = vpop.f32.mrf.mxu0
    %v6223 = vadd.f32 0.0, %v6222
    %v6224 = vpop.f32.mrf.mxu0
    %v6225 = vadd.f32 0.0, %v6224
    %6226 = vmatmul.bf16.gmra.mxu0 %v6062
    %v6227 = vpop.f32.mrf.mxu0
    %v6228 = vadd.f32 0.0, %v6227
    %v6229 = vpop.f32.mrf.mxu0
    %v6230 = vadd.f32 0.0, %v6229
    %6231 = vmatmul.bf16.gmra.mxu0 %v6063
    %v6232 = vpop.f32.mrf.mxu0
    %v6233 = vadd.f32 0.0, %v6232
    %v6234 = vpop.f32.mrf.mxu0
    %v6235 = vadd.f32 0.0, %v6234
    %6236 = vmatmul.bf16.gmra.mxu0 %v6064
    %v6237 = vpop.f32.mrf.mxu0
    %v6238 = vadd.f32 0.0, %v6237
    %v6239 = vpop.f32.mrf.mxu0
    %v6240 = vadd.f32 0.0, %v6239
    %6241 = vmatmul.bf16.gmra.mxu0 %v6065
    %v6242 = vpop.f32.mrf.mxu0
    %v6243 = vadd.f32 0.0, %v6242
    %v6244 = vpop.f32.mrf.mxu0
    %v6245 = vadd.f32 0.0, %v6244
    %6246 = vmatmul.bf16.gmra.mxu0 %v6066
    %v6247 = vpop.f32.mrf.mxu0
    %v6248 = vadd.f32 0.0, %v6247
    %v6249 = vpop.f32.mrf.mxu0
    %v6250 = vadd.f32 0.0, %v6249
    %6251 = vmatmul.bf16.gmra.mxu0 %v6067
    %v6252 = vpop.f32.mrf.mxu0
    %v6253 = vadd.f32 0.0, %v6252
    %v6254 = vpop.f32.mrf.mxu0
    %v6255 = vadd.f32 0.0, %v6254
    %6256 = vmatmul.bf16.gmra.mxu0 %v6068
    %v6257 = vpop.f32.mrf.mxu0
    %v6258 = vadd.f32 0.0, %v6257
    %v6259 = vpop.f32.mrf.mxu0
    %v6260 = vadd.f32 0.0, %v6259
    %6261 = vmatmul.bf16.gmra.mxu0 %v6069
    %v6262 = vpop.f32.mrf.mxu0
    %v6263 = vadd.f32 0.0, %v6262
    %v6264 = vpop.f32.mrf.mxu0
    %v6265 = vadd.f32 0.0, %v6264
    %6266 = vmatmul.bf16.gmra.mxu0 %v6070
    %v6267 = vpop.f32.mrf.mxu0
    %v6268 = vadd.f32 0.0, %v6267
    %v6269 = vpop.f32.mrf.mxu0
    %v6270 = vadd.f32 0.0, %v6269
    %6271 = vmatmul.bf16.gmra.mxu0 %v6071
    %v6272 = vpop.f32.mrf.mxu0
    %v6273 = vadd.f32 0.0, %v6272
    %v6274 = vpop.f32.mrf.mxu0
    %v6275 = vadd.f32 0.0, %v6274
    %6276 = vmatmul.bf16.gmra.mxu0 %v6072
    %v6277 = vpop.f32.mrf.mxu0
    %v6278 = vadd.f32 0.0, %v6277
    %v6279 = vpop.f32.mrf.mxu0
    %v6280 = vadd.f32 0.0, %v6279
    %6281 = vmatmul.bf16.gmra.mxu0 %v6073
    %v6282 = vpop.f32.mrf.mxu0
    %v6283 = vadd.f32 0.0, %v6282
    %v6284 = vpop.f32.mrf.mxu0
    %v6285 = vadd.f32 0.0, %v6284
    %6286 = vmatmul.bf16.gmra.mxu0 %v6074
    %v6287 = vpop.f32.mrf.mxu0
    %v6288 = vadd.f32 0.0, %v6287
    %v6289 = vpop.f32.mrf.mxu0
    %v6290 = vadd.f32 0.0, %v6289
    %6291 = vmatmul.bf16.gmra.mxu0 %v6075
    %v6292 = vpop.f32.mrf.mxu0
    %v6293 = vadd.f32 0.0, %v6292
    %v6294 = vpop.f32.mrf.mxu0
    %v6295 = vadd.f32 0.0, %v6294
    %6296 = vmatmul.bf16.gmra.mxu0 %v6076
    %v6297 = vpop.f32.mrf.mxu0
    %v6298 = vadd.f32 0.0, %v6297
    %v6299 = vpop.f32.mrf.mxu0
    %v6300 = vadd.f32 0.0, %v6299
    %6301 = vmatmul.bf16.gmra.mxu0 %v6077
    %v6302 = vpop.f32.mrf.mxu0
    %v6303 = vadd.f32 0.0, %v6302
    %v6304 = vpop.f32.mrf.mxu0
    %v6305 = vadd.f32 0.0, %v6304
    %6306 = vmatmul.bf16.gmra.mxu0 %v6078
    %v6307 = vpop.f32.mrf.mxu0
    %v6308 = vadd.f32 0.0, %v6307
    %v6309 = vpop.f32.mrf.mxu0
    %v6310 = vadd.f32 0.0, %v6309
    %6311 = vmatmul.bf16.gmra.mxu0 %v6079
    %v6312 = vpop.f32.mrf.mxu0
    %v6313 = vadd.f32 0.0, %v6312
    %v6314 = vpop.f32.mrf.mxu0
    %v6315 = vadd.f32 0.0, %v6314
    %6316 = vmatmul.bf16.gmra.mxu0 %v6080
    %v6317 = vpop.f32.mrf.mxu0
    %v6318 = vadd.f32 0.0, %v6317
    %v6319 = vpop.f32.mrf.mxu0
    %v6320 = vadd.f32 0.0, %v6319
    %6321 = vmatmul.bf16.gmra.mxu0 %v6081
    %v6322 = vpop.f32.mrf.mxu0
    %v6323 = vadd.f32 0.0, %v6322
    %v6324 = vpop.f32.mrf.mxu0
    %v6325 = vadd.f32 0.0, %v6324
    %6326 = vmatmul.bf16.gmra.mxu0 %v6082
    %v6327 = vpop.f32.mrf.mxu0
    %v6328 = vadd.f32 0.0, %v6327
    %v6329 = vpop.f32.mrf.mxu0
    %v6330 = vadd.f32 0.0, %v6329
    %6331 = vdwg.mxu0
    %v6332 = vadd.f32 %v5042, %v6173
    %v6333 = vadd.f32 %v5043, %v6175
    %v6334 = vadd.f32 %v5044, %v6178
    %v6335 = vadd.f32 %v5045, %v6180
    %v6336 = vadd.f32 %v5046, %v6183
    %v6337 = vadd.f32 %v5047, %v6185
    %v6338 = vadd.f32 %v5048, %v6188
    %v6339 = vadd.f32 %v5049, %v6190
    %v6340 = vadd.f32 %v5050, %v6193
    %v6341 = vadd.f32 %v5051, %v6195
    %v6342 = vadd.f32 %v5052, %v6198
    %v6343 = vadd.f32 %v5053, %v6200
    %v6344 = vadd.f32 %v5054, %v6203
    %v6345 = vadd.f32 %v5055, %v6205
    %v6346 = vadd.f32 %v5056, %v6208
    %v6347 = vadd.f32 %v5057, %v6210
    %v6348 = vadd.f32 %v5058, %v6213
    %v6349 = vadd.f32 %v5059, %v6215
    %v6350 = vadd.f32 %v5060, %v6218
    %v6351 = vadd.f32 %v5061, %v6220
    %v6352 = vadd.f32 %v5062, %v6223
    %v6353 = vadd.f32 %v5063, %v6225
    %v6354 = vadd.f32 %v5064, %v6228
    %v6355 = vadd.f32 %v5065, %v6230
    %v6356 = vadd.f32 %v5066, %v6233
    %v6357 = vadd.f32 %v5067, %v6235
    %v6358 = vadd.f32 %v5068, %v6238
    %v6359 = vadd.f32 %v5069, %v6240
    %v6360 = vadd.f32 %v5070, %v6243
    %v6361 = vadd.f32 %v5071, %v6245
    %v6362 = vadd.f32 %v5072, %v6248
    %v6363 = vadd.f32 %v5073, %v6250
    %v6364 = vadd.f32 %v5074, %v6253
    %v6365 = vadd.f32 %v5075, %v6255
    %v6366 = vadd.f32 %v5076, %v6258
    %v6367 = vadd.f32 %v5077, %v6260
    %v6368 = vadd.f32 %v5078, %v6263
    %v6369 = vadd.f32 %v5079, %v6265
    %v6370 = vadd.f32 %v5080, %v6268
    %v6371 = vadd.f32 %v5081, %v6270
    %v6372 = vadd.f32 %v5082, %v6273
    %v6373 = vadd.f32 %v5083, %v6275
    %v6374 = vadd.f32 %v5084, %v6278
    %v6375 = vadd.f32 %v5085, %v6280
    %v6376 = vadd.f32 %v5086, %v6283
    %v6377 = vadd.f32 %v5087, %v6285
    %v6378 = vadd.f32 %v5088, %v6288
    %v6379 = vadd.f32 %v5089, %v6290
    %v6380 = vadd.f32 %v5090, %v6293
    %v6381 = vadd.f32 %v5091, %v6295
    %v6382 = vadd.f32 %v5092, %v6298
    %v6383 = vadd.f32 %v5093, %v6300
    %v6384 = vadd.f32 %v5094, %v6303
    %v6385 = vadd.f32 %v5095, %v6305
    %v6386 = vadd.f32 %v5096, %v6308
    %v6387 = vadd.f32 %v5097, %v6310
    %v6388 = vadd.f32 %v5098, %v6313
    %v6389 = vadd.f32 %v5099, %v6315
    %v6390 = vadd.f32 %v5100, %v6318
    %v6391 = vadd.f32 %v5101, %v6320
    %v6392 = vadd.f32 %v5102, %v6323
    %v6393 = vadd.f32 %v5103, %v6325
    %v6394 = vadd.f32 %v5104, %v6328
    %v6395 = vadd.f32 %v5105, %v6330
    %v6396 = vld [vmem:[%s1922] sm:$0xe]
    %v6397 = vld [vmem:[%s1922 + $0xc] sm:$0xe]
    %v6398 = vld [vmem:[%s1922 + $0x18] sm:$0xe]
    %v6399 = vld [vmem:[%s1922 + $0x24] sm:$0xe]
    %v6400 = vld [vmem:[%s1922 + $0x30] sm:$0xe]
    %v6401 = vld [vmem:[%s1922 + $0x3c] sm:$0xe]
    %v6402 = vld [vmem:[%s1922 + $0x48] sm:$0xe]
    %v6403 = vld [vmem:[%s1922 + $0x54] sm:$0xe]
    %v6404 = vld [vmem:[%s1922 + $0x60] sm:$0xe]
    %v6405 = vld [vmem:[%s1922 + $0x6c] sm:$0xe]
    %v6406 = vld [vmem:[%s1922 + $0x78] sm:$0xe]
    %v6407 = vld [vmem:[%s1922 + $0x84] sm:$0xe]
    %v6408 = vld [vmem:[%s1922 + $0x90] sm:$0xe]
    %v6409 = vld [vmem:[%s1922 + $0x9c] sm:$0xe]
    %v6410 = vld [vmem:[%s1922 + $0xa8] sm:$0xe]
    %v6411 = vld [vmem:[%s1922 + $0xb4] sm:$0xe]
    %v6412 = vld [vmem:[%s1922 + $0xd8] sm:$0xe]
    %v6413 = vld [vmem:[%s1922 + $0xe4] sm:$0xe]
    %v6414 = vld [vmem:[%s1922 + $0xf0] sm:$0xe]
    %v6415 = vld [vmem:[%s1922 + $0xfc] sm:$0xe]
    %v6416 = vld [vmem:[%s1922 + $0x108] sm:$0xe]
    %v6417 = vld [vmem:[%s1922 + $0x114] sm:$0xe]
    %v6418 = vld [vmem:[%s1922 + $0x120] sm:$0xe]
    %v6419 = vld [vmem:[%s1922 + $0x12c] sm:$0xe]
    %v6420 = vld [vmem:[%s1922 + $0x138] sm:$0xe]
    %v6421 = vld [vmem:[%s1922 + $0x144] sm:$0xe]
    %v6422 = vld [vmem:[%s1922 + $0x150] sm:$0xe]
    %v6423 = vld [vmem:[%s1922 + $0x15c] sm:$0xe]
    %v6424 = vld [vmem:[%s1922 + $0x168] sm:$0xe]
    %v6425 = vld [vmem:[%s1922 + $0x174] sm:$0xe]
    %v6426 = vld [vmem:[%s1922 + $0x180] sm:$0xe]
    %v6427 = vld [vmem:[%s1922 + $0x18c] sm:$0xe]
    %v6524 = vrot.slane %v6396, 5
    %v6525 = vrot.slane %v6524, 4
    %v6526 = vrot.slane %v5107, 5
    %v6527 = vsel %vm3901, %v6525, %v6526
    %v6528 = vrot.slane %v6526, 4
    %v6529 = vrot.slane %v5108, 5
    %v6530 = vsel %vm3901, %v6528, %v6529
    %v6531 = vrot.slane %v6397, 5
    %v6532 = vrot.slane %v6531, 4
    %v6533 = vrot.slane %v5110, 5
    %v6534 = vsel %vm3901, %v6532, %v6533
    %v6535 = vrot.slane %v6533, 4
    %v6536 = vrot.slane %v5111, 5
    %v6537 = vsel %vm3901, %v6535, %v6536
    %v6538 = vrot.slane %v6398, 5
    %v6539 = vrot.slane %v6538, 4
    %v6540 = vrot.slane %v5113, 5
    %v6541 = vsel %vm3901, %v6539, %v6540
    %v6542 = vrot.slane %v6540, 4
    %v6543 = vrot.slane %v5114, 5
    %v6544 = vsel %vm3901, %v6542, %v6543
    %v6545 = vrot.slane %v6399, 5
    %v6546 = vrot.slane %v6545, 4
    %v6547 = vrot.slane %v5116, 5
    %v6548 = vsel %vm3901, %v6546, %v6547
    %v6549 = vrot.slane %v6547, 4
    %v6550 = vrot.slane %v5117, 5
    %v6551 = vsel %vm3901, %v6549, %v6550
    %v6552 = vrot.slane %v6400, 5
    %v6553 = vrot.slane %v6552, 4
    %v6554 = vrot.slane %v5119, 5
    %v6555 = vsel %vm3901, %v6553, %v6554
    %v6556 = vrot.slane %v6554, 4
    %v6557 = vrot.slane %v5120, 5
    %v6558 = vsel %vm3901, %v6556, %v6557
    %v6559 = vrot.slane %v6401, 5
    %v6560 = vrot.slane %v6559, 4
    %v6561 = vrot.slane %v5122, 5
    %v6562 = vsel %vm3901, %v6560, %v6561
    %v6563 = vrot.slane %v6561, 4
    %v6564 = vrot.slane %v5123, 5
    %v6565 = vsel %vm3901, %v6563, %v6564
    %v6566 = vrot.slane %v6402, 5
    %v6567 = vrot.slane %v6566, 4
    %v6568 = vrot.slane %v5125, 5
    %v6569 = vsel %vm3901, %v6567, %v6568
    %v6570 = vrot.slane %v6568, 4
    %v6571 = vrot.slane %v5126, 5
    %v6572 = vsel %vm3901, %v6570, %v6571
    %v6573 = vrot.slane %v6403, 5
    %v6574 = vrot.slane %v6573, 4
    %v6575 = vrot.slane %v5128, 5
    %v6576 = vsel %vm3901, %v6574, %v6575
    %v6577 = vrot.slane %v6575, 4
    %v6578 = vrot.slane %v5129, 5
    %v6579 = vsel %vm3901, %v6577, %v6578
    %v6580 = vrot.slane %v6404, 5
    %v6581 = vrot.slane %v6580, 4
    %v6582 = vrot.slane %v5131, 5
    %v6583 = vsel %vm3901, %v6581, %v6582
    %v6584 = vrot.slane %v6582, 4
    %v6585 = vrot.slane %v5132, 5
    %v6586 = vsel %vm3901, %v6584, %v6585
    %v6587 = vrot.slane %v6405, 5
    %v6588 = vrot.slane %v6587, 4
    %v6589 = vrot.slane %v5134, 5
    %v6590 = vsel %vm3901, %v6588, %v6589
    %v6591 = vrot.slane %v6589, 4
    %v6592 = vrot.slane %v5135, 5
    %v6593 = vsel %vm3901, %v6591, %v6592
    %v6594 = vrot.slane %v6406, 5
    %v6595 = vrot.slane %v6594, 4
    %v6596 = vrot.slane %v5137, 5
    %v6597 = vsel %vm3901, %v6595, %v6596
    %v6598 = vrot.slane %v6596, 4
    %v6599 = vrot.slane %v5138, 5
    %v6600 = vsel %vm3901, %v6598, %v6599
    %v6601 = vrot.slane %v6407, 5
    %v6602 = vrot.slane %v6601, 4
    %v6603 = vrot.slane %v5140, 5
    %v6604 = vsel %vm3901, %v6602, %v6603
    %v6605 = vrot.slane %v6603, 4
    %v6606 = vrot.slane %v5141, 5
    %v6607 = vsel %vm3901, %v6605, %v6606
    %v6608 = vrot.slane %v6408, 5
    %v6609 = vrot.slane %v6608, 4
    %v6610 = vrot.slane %v5143, 5
    %v6611 = vsel %vm3901, %v6609, %v6610
    %v6612 = vrot.slane %v6610, 4
    %v6613 = vrot.slane %v5144, 5
    %v6614 = vsel %vm3901, %v6612, %v6613
    %v6615 = vrot.slane %v6409, 5
    %v6616 = vrot.slane %v6615, 4
    %v6617 = vrot.slane %v5146, 5
    %v6618 = vsel %vm3901, %v6616, %v6617
    %v6619 = vrot.slane %v6617, 4
    %v6620 = vrot.slane %v5147, 5
    %v6621 = vsel %vm3901, %v6619, %v6620
    %v6622 = vrot.slane %v6410, 5
    %v6623 = vrot.slane %v6622, 4
    %v6624 = vrot.slane %v5149, 5
    %v6625 = vsel %vm3901, %v6623, %v6624
    %v6626 = vrot.slane %v6624, 4
    %v6627 = vrot.slane %v5150, 5
    %v6628 = vsel %vm3901, %v6626, %v6627
    %v6629 = vrot.slane %v6411, 5
    %v6630 = vrot.slane %v6629, 4
    %v6631 = vrot.slane %v5152, 5
    %v6632 = vsel %vm3901, %v6630, %v6631
    %v6633 = vrot.slane %v6631, 4
    %v6634 = vrot.slane %v5153, 5
    %v6635 = vsel %vm3901, %v6633, %v6634
    %v6636 = vrot.slane %v6412, 5
    %v6637 = vrot.slane %v6636, 4
    %v6638 = vrot.slane %v5155, 5
    %v6639 = vsel %vm3901, %v6637, %v6638
    %v6640 = vrot.slane %v6638, 4
    %v6641 = vrot.slane %v5156, 5
    %v6642 = vsel %vm3901, %v6640, %v6641
    %v6643 = vrot.slane %v6413, 5
    %v6644 = vrot.slane %v6643, 4
    %v6645 = vrot.slane %v5158, 5
    %v6646 = vsel %vm3901, %v6644, %v6645
    %v6647 = vrot.slane %v6645, 4
    %v6648 = vrot.slane %v5159, 5
    %v6649 = vsel %vm3901, %v6647, %v6648
    %v6650 = vrot.slane %v6414, 5
    %v6651 = vrot.slane %v6650, 4
    %v6652 = vrot.slane %v5161, 5
    %v6653 = vsel %vm3901, %v6651, %v6652
    %v6654 = vrot.slane %v6652, 4
    %v6655 = vrot.slane %v5162, 5
    %v6656 = vsel %vm3901, %v6654, %v6655
    %v6657 = vrot.slane %v6415, 5
    %v6658 = vrot.slane %v6657, 4
    %v6659 = vrot.slane %v5164, 5
    %v6660 = vsel %vm3901, %v6658, %v6659
    %v6661 = vrot.slane %v6659, 4
    %v6662 = vrot.slane %v5165, 5
    %v6663 = vsel %vm3901, %v6661, %v6662
    %v6664 = vrot.slane %v6416, 5
    %v6665 = vrot.slane %v6664, 4
    %v6666 = vrot.slane %v5167, 5
    %v6667 = vsel %vm3901, %v6665, %v6666
    %v6668 = vrot.slane %v6666, 4
    %v6669 = vrot.slane %v5168, 5
    %v6670 = vsel %vm3901, %v6668, %v6669
    %v6671 = vrot.slane %v6417, 5
    %v6672 = vrot.slane %v6671, 4
    %v6673 = vrot.slane %v5170, 5
    %v6674 = vsel %vm3901, %v6672, %v6673
    %v6675 = vrot.slane %v6673, 4
    %v6676 = vrot.slane %v5171, 5
    %v6677 = vsel %vm3901, %v6675, %v6676
    %v6678 = vrot.slane %v6418, 5
    %v6679 = vrot.slane %v6678, 4
    %v6680 = vrot.slane %v5173, 5
    %v6681 = vsel %vm3901, %v6679, %v6680
    %v6682 = vrot.slane %v6680, 4
    %v6683 = vrot.slane %v5174, 5
    %v6684 = vsel %vm3901, %v6682, %v6683
    %v6685 = vrot.slane %v6419, 5
    %v6686 = vrot.slane %v6685, 4
    %v6687 = vrot.slane %v5176, 5
    %v6688 = vsel %vm3901, %v6686, %v6687
    %v6689 = vrot.slane %v6687, 4
    %v6690 = vrot.slane %v5177, 5
    %v6691 = vsel %vm3901, %v6689, %v6690
    %v6692 = vrot.slane %v6420, 5
    %v6693 = vrot.slane %v6692, 4
    %v6694 = vrot.slane %v5179, 5
    %v6695 = vsel %vm3901, %v6693, %v6694
    %v6696 = vrot.slane %v6694, 4
    %v6697 = vrot.slane %v5180, 5
    %v6698 = vsel %vm3901, %v6696, %v6697
    %v6699 = vrot.slane %v6421, 5
    %v6700 = vrot.slane %v6699, 4
    %v6701 = vrot.slane %v5182, 5
    %v6702 = vsel %vm3901, %v6700, %v6701
    %v6703 = vrot.slane %v6701, 4
    %v6704 = vrot.slane %v5183, 5
    %v6705 = vsel %vm3901, %v6703, %v6704
    %v6706 = vrot.slane %v6422, 5
    %v6707 = vrot.slane %v6706, 4
    %v6708 = vrot.slane %v5185, 5
    %v6709 = vsel %vm3901, %v6707, %v6708
    %v6710 = vrot.slane %v6708, 4
    %v6711 = vrot.slane %v5186, 5
    %v6712 = vsel %vm3901, %v6710, %v6711
    %v6713 = vrot.slane %v6423, 5
    %v6714 = vrot.slane %v6713, 4
    %v6715 = vrot.slane %v5188, 5
    %v6716 = vsel %vm3901, %v6714, %v6715
    %v6717 = vrot.slane %v6715, 4
    %v6718 = vrot.slane %v5189, 5
    %v6719 = vsel %vm3901, %v6717, %v6718
    %v6720 = vrot.slane %v6424, 5
    %v6721 = vrot.slane %v6720, 4
    %v6722 = vrot.slane %v5191, 5
    %v6723 = vsel %vm3901, %v6721, %v6722
    %v6724 = vrot.slane %v6722, 4
    %v6725 = vrot.slane %v5192, 5
    %v6726 = vsel %vm3901, %v6724, %v6725
    %v6727 = vrot.slane %v6425, 5
    %v6728 = vrot.slane %v6727, 4
    %v6729 = vrot.slane %v5194, 5
    %v6730 = vsel %vm3901, %v6728, %v6729
    %v6731 = vrot.slane %v6729, 4
    %v6732 = vrot.slane %v5195, 5
    %v6733 = vsel %vm3901, %v6731, %v6732
    %v6734 = vrot.slane %v6426, 5
    %v6735 = vrot.slane %v6734, 4
    %v6736 = vrot.slane %v5197, 5
    %v6737 = vsel %vm3901, %v6735, %v6736
    %v6738 = vrot.slane %v6736, 4
    %v6739 = vrot.slane %v5198, 5
    %v6740 = vsel %vm3901, %v6738, %v6739
    %v6741 = vrot.slane %v6427, 5
    %v6742 = vrot.slane %v6741, 4
    %v6743 = vrot.slane %v5200, 5
    %v6744 = vsel %vm3901, %v6742, %v6743
    %v6745 = vrot.slane %v6743, 4
    %v6746 = vrot.slane %v5201, 5
    %v6747 = vsel %vm3901, %v6745, %v6746
    %s6748 = scalar_lea.vmem [#allocation8], 320
    %v6749 = vld [vmem:[%s6748] sm:$0xf]
    %v6750 = vld [vmem:[%s6748 + $0x4] sm:$0xf]
    %v6751 = vld [vmem:[%s6748 + $0x8] sm:$0xf]
    %v6752 = vld [vmem:[%s6748 + $0xc] sm:$0xf]
    %v6753 = vld [vmem:[%s6748 + $0x10] sm:$0xf]
    %v6754 = vld [vmem:[%s6748 + $0x14] sm:$0xf]
    %v6755 = vld [vmem:[%s6748 + $0x18] sm:$0xf]
    %v6756 = vld [vmem:[%s6748 + $0x1c] sm:$0xf]
    %v6757 = vld [vmem:[%s6748 + $0x20] sm:$0xf]
    %v6758 = vld [vmem:[%s6748 + $0x24] sm:$0xf]
    %v6759 = vld [vmem:[%s6748 + $0x28] sm:$0xf]
    %v6760 = vld [vmem:[%s6748 + $0x2c] sm:$0xf]
    %v6761 = vld [vmem:[%s6748 + $0x30] sm:$0xf]
    %v6762 = vld [vmem:[%s6748 + $0x34] sm:$0xf]
    %v6763 = vld [vmem:[%s6748 + $0x38] sm:$0xf]
    %v6764 = vld [vmem:[%s6748 + $0x3c] sm:$0xf]
    %v6765 = vunpack.c.l.b16 %v6527
    %v6766 = vunpack.c.l.b16 %v6530
    %v6767 = vunpack.c.l.b16 %v6534
    %v6768 = vunpack.c.l.b16 %v6537
    %v6769 = vunpack.c.l.b16 %v6541
    %v6770 = vunpack.c.l.b16 %v6544
    %v6771 = vunpack.c.l.b16 %v6548
    %v6772 = vunpack.c.l.b16 %v6551
    %v6773 = vunpack.c.l.b16 %v6555
    %v6774 = vunpack.c.l.b16 %v6558
    %v6775 = vunpack.c.l.b16 %v6562
    %v6776 = vunpack.c.l.b16 %v6565
    %v6777 = vunpack.c.l.b16 %v6569
    %v6778 = vunpack.c.l.b16 %v6572
    %v6779 = vunpack.c.l.b16 %v6576
    %v6780 = vunpack.c.l.b16 %v6579
    %v6781 = vunpack.c.l.b16 %v6583
    %v6782 = vunpack.c.l.b16 %v6586
    %v6783 = vunpack.c.l.b16 %v6590
    %v6784 = vunpack.c.l.b16 %v6593
    %v6785 = vunpack.c.l.b16 %v6597
    %v6786 = vunpack.c.l.b16 %v6600
    %v6787 = vunpack.c.l.b16 %v6604
    %v6788 = vunpack.c.l.b16 %v6607
    %v6789 = vunpack.c.l.b16 %v6611
    %v6790 = vunpack.c.l.b16 %v6614
    %v6791 = vunpack.c.l.b16 %v6618
    %v6792 = vunpack.c.l.b16 %v6621
    %v6793 = vunpack.c.l.b16 %v6625
    %v6794 = vunpack.c.l.b16 %v6628
    %v6795 = vunpack.c.l.b16 %v6632
    %v6796 = vunpack.c.l.b16 %v6635
    %v6797 = vunpack.c.l.b16 %v6639
    %v6798 = vunpack.c.l.b16 %v6642
    %v6799 = vunpack.c.l.b16 %v6646
    %v6800 = vunpack.c.l.b16 %v6649
    %v6801 = vunpack.c.l.b16 %v6653
    %v6802 = vunpack.c.l.b16 %v6656
    %v6803 = vunpack.c.l.b16 %v6660
    %v6804 = vunpack.c.l.b16 %v6663
    %v6805 = vunpack.c.l.b16 %v6667
    %v6806 = vunpack.c.l.b16 %v6670
    %v6807 = vunpack.c.l.b16 %v6674
    %v6808 = vunpack.c.l.b16 %v6677
    %v6809 = vunpack.c.l.b16 %v6681
    %v6810 = vunpack.c.l.b16 %v6684
    %v6811 = vunpack.c.l.b16 %v6688
    %v6812 = vunpack.c.l.b16 %v6691
    %v6813 = vunpack.c.l.b16 %v6695
    %v6814 = vunpack.c.l.b16 %v6698
    %v6815 = vunpack.c.l.b16 %v6702
    %v6816 = vunpack.c.l.b16 %v6705
    %v6817 = vunpack.c.l.b16 %v6709
    %v6818 = vunpack.c.l.b16 %v6712
    %v6819 = vunpack.c.l.b16 %v6716
    %v6820 = vunpack.c.l.b16 %v6719
    %v6821 = vunpack.c.l.b16 %v6723
    %v6822 = vunpack.c.l.b16 %v6726
    %v6823 = vunpack.c.l.b16 %v6730
    %v6824 = vunpack.c.l.b16 %v6733
    %v6825 = vunpack.c.l.b16 %v6737
    %v6826 = vunpack.c.l.b16 %v6740
    %v6827 = vunpack.c.l.b16 %v6744
    %v6828 = vunpack.c.l.b16 %v6747
    %v6829 = vpack.c.b16 %v6766, %v6765
    %v6830 = vpack.c.b16 %v6768, %v6767
    %v6831 = vpack.c.b16 %v6770, %v6769
    %v6832 = vpack.c.b16 %v6772, %v6771
    %v6833 = vpack.c.b16 %v6774, %v6773
    %v6834 = vpack.c.b16 %v6776, %v6775
    %v6835 = vpack.c.b16 %v6778, %v6777
    %v6836 = vpack.c.b16 %v6780, %v6779
    %v6837 = vpack.c.b16 %v6782, %v6781
    %v6838 = vpack.c.b16 %v6784, %v6783
    %v6839 = vpack.c.b16 %v6786, %v6785
    %v6840 = vpack.c.b16 %v6788, %v6787
    %v6841 = vpack.c.b16 %v6790, %v6789
    %v6842 = vpack.c.b16 %v6792, %v6791
    %v6843 = vpack.c.b16 %v6794, %v6793
    %v6844 = vpack.c.b16 %v6796, %v6795
    %v6845 = vpack.c.b16 %v6798, %v6797
    %v6846 = vpack.c.b16 %v6800, %v6799
    %v6847 = vpack.c.b16 %v6802, %v6801
    %v6848 = vpack.c.b16 %v6804, %v6803
    %v6849 = vpack.c.b16 %v6806, %v6805
    %v6850 = vpack.c.b16 %v6808, %v6807
    %v6851 = vpack.c.b16 %v6810, %v6809
    %v6852 = vpack.c.b16 %v6812, %v6811
    %v6853 = vpack.c.b16 %v6814, %v6813
    %v6854 = vpack.c.b16 %v6816, %v6815
    %v6855 = vpack.c.b16 %v6818, %v6817
    %v6856 = vpack.c.b16 %v6820, %v6819
    %v6857 = vpack.c.b16 %v6822, %v6821
    %v6858 = vpack.c.b16 %v6824, %v6823
    %v6859 = vpack.c.b16 %v6826, %v6825
    %v6860 = vpack.c.b16 %v6828, %v6827
    %v6909 = vunpack.c.l.b16 %v6749
    %v6910 = vunpack.c.l.b16 %v6750
    %v6911 = vunpack.c.l.b16 %v6751
    %v6912 = vunpack.c.l.b16 %v6752
    %v6913 = vunpack.c.l.b16 %v6753
    %v6914 = vunpack.c.l.b16 %v6754
    %v6915 = vunpack.c.l.b16 %v6755
    %v6916 = vunpack.c.l.b16 %v6756
    %v6917 = vunpack.c.l.b16 %v6757
    %v6918 = vunpack.c.l.b16 %v6758
    %v6919 = vunpack.c.l.b16 %v6759
    %v6920 = vunpack.c.l.b16 %v6760
    %v6921 = vunpack.c.l.b16 %v6761
    %v6922 = vunpack.c.l.b16 %v6762
    %v6923 = vunpack.c.l.b16 %v6763
    %v6924 = vunpack.c.l.b16 %v6764
    %v6925 = vpack.c.b16 %v6910, %v6909
    %v6926 = vpack.c.b16 %v6912, %v6911
    %v6927 = vpack.c.b16 %v6914, %v6913
    %v6928 = vpack.c.b16 %v6916, %v6915
    %v6929 = vpack.c.b16 %v6918, %v6917
    %v6930 = vpack.c.b16 %v6920, %v6919
    %v6931 = vpack.c.b16 %v6922, %v6921
    %v6932 = vpack.c.b16 %v6924, %v6923
    %6941 = vmatpush.bf16.msra.mxu0 %v6932
    %6942 = vmatpush.bf16.msra.mxu0 %v6931
    %6943 = vmatpush.bf16.msra.mxu0 %v6930
    %6944 = vmatpush.bf16.msra.mxu0 %v6929
    %6945 = vmatpush.bf16.msra.mxu0 %v6928
    %6946 = vmatpush.bf16.msra.mxu0 %v6927
    %6947 = vmatpush.bf16.msra.mxu0 %v6926
    %6948 = vmatpush.bf16.msra.mxu0 %v6925
    %6949 = vmatmul.bf16.gmra.mxu0 %v6829
    %v6950 = vpop.f32.mrf.mxu0
    %v6951 = vadd.f32 0.0, %v6950
    %v6952 = vpop.f32.mrf.mxu0
    %v6953 = vadd.f32 0.0, %v6952
    %6954 = vmatmul.bf16.gmra.mxu0 %v6830
    %v6955 = vpop.f32.mrf.mxu0
    %v6956 = vadd.f32 0.0, %v6955
    %v6957 = vpop.f32.mrf.mxu0
    %v6958 = vadd.f32 0.0, %v6957
    %6959 = vmatmul.bf16.gmra.mxu0 %v6831
    %v6960 = vpop.f32.mrf.mxu0
    %v6961 = vadd.f32 0.0, %v6960
    %v6962 = vpop.f32.mrf.mxu0
    %v6963 = vadd.f32 0.0, %v6962
    %6964 = vmatmul.bf16.gmra.mxu0 %v6832
    %v6965 = vpop.f32.mrf.mxu0
    %v6966 = vadd.f32 0.0, %v6965
    %v6967 = vpop.f32.mrf.mxu0
    %v6968 = vadd.f32 0.0, %v6967
    %6969 = vmatmul.bf16.gmra.mxu0 %v6833
    %v6970 = vpop.f32.mrf.mxu0
    %v6971 = vadd.f32 0.0, %v6970
    %v6972 = vpop.f32.mrf.mxu0
    %v6973 = vadd.f32 0.0, %v6972
    %6974 = vmatmul.bf16.gmra.mxu0 %v6834
    %v6975 = vpop.f32.mrf.mxu0
    %v6976 = vadd.f32 0.0, %v6975
    %v6977 = vpop.f32.mrf.mxu0
    %v6978 = vadd.f32 0.0, %v6977
    %6979 = vmatmul.bf16.gmra.mxu0 %v6835
    %v6980 = vpop.f32.mrf.mxu0
    %v6981 = vadd.f32 0.0, %v6980
    %v6982 = vpop.f32.mrf.mxu0
    %v6983 = vadd.f32 0.0, %v6982
    %6984 = vmatmul.bf16.gmra.mxu0 %v6836
    %v6985 = vpop.f32.mrf.mxu0
    %v6986 = vadd.f32 0.0, %v6985
    %v6987 = vpop.f32.mrf.mxu0
    %v6988 = vadd.f32 0.0, %v6987
    %6989 = vmatmul.bf16.gmra.mxu0 %v6837
    %v6990 = vpop.f32.mrf.mxu0
    %v6991 = vadd.f32 0.0, %v6990
    %v6992 = vpop.f32.mrf.mxu0
    %v6993 = vadd.f32 0.0, %v6992
    %6994 = vmatmul.bf16.gmra.mxu0 %v6838
    %v6995 = vpop.f32.mrf.mxu0
    %v6996 = vadd.f32 0.0, %v6995
    %v6997 = vpop.f32.mrf.mxu0
    %v6998 = vadd.f32 0.0, %v6997
    %6999 = vmatmul.bf16.gmra.mxu0 %v6839
    %v7000 = vpop.f32.mrf.mxu0
    %v7001 = vadd.f32 0.0, %v7000
    %v7002 = vpop.f32.mrf.mxu0
    %v7003 = vadd.f32 0.0, %v7002
    %7004 = vmatmul.bf16.gmra.mxu0 %v6840
    %v7005 = vpop.f32.mrf.mxu0
    %v7006 = vadd.f32 0.0, %v7005
    %v7007 = vpop.f32.mrf.mxu0
    %v7008 = vadd.f32 0.0, %v7007
    %7009 = vmatmul.bf16.gmra.mxu0 %v6841
    %v7010 = vpop.f32.mrf.mxu0
    %v7011 = vadd.f32 0.0, %v7010
    %v7012 = vpop.f32.mrf.mxu0
    %v7013 = vadd.f32 0.0, %v7012
    %7014 = vmatmul.bf16.gmra.mxu0 %v6842
    %v7015 = vpop.f32.mrf.mxu0
    %v7016 = vadd.f32 0.0, %v7015
    %v7017 = vpop.f32.mrf.mxu0
    %v7018 = vadd.f32 0.0, %v7017
    %7019 = vmatmul.bf16.gmra.mxu0 %v6843
    %v7020 = vpop.f32.mrf.mxu0
    %v7021 = vadd.f32 0.0, %v7020
    %v7022 = vpop.f32.mrf.mxu0
    %v7023 = vadd.f32 0.0, %v7022
    %7024 = vmatmul.bf16.gmra.mxu0 %v6844
    %v7025 = vpop.f32.mrf.mxu0
    %v7026 = vadd.f32 0.0, %v7025
    %v7027 = vpop.f32.mrf.mxu0
    %v7028 = vadd.f32 0.0, %v7027
    %7029 = vmatmul.bf16.gmra.mxu0 %v6845
    %v7030 = vpop.f32.mrf.mxu0
    %v7031 = vadd.f32 0.0, %v7030
    %v7032 = vpop.f32.mrf.mxu0
    %v7033 = vadd.f32 0.0, %v7032
    %7034 = vmatmul.bf16.gmra.mxu0 %v6846
    %v7035 = vpop.f32.mrf.mxu0
    %v7036 = vadd.f32 0.0, %v7035
    %v7037 = vpop.f32.mrf.mxu0
    %v7038 = vadd.f32 0.0, %v7037
    %7039 = vmatmul.bf16.gmra.mxu0 %v6847
    %v7040 = vpop.f32.mrf.mxu0
    %v7041 = vadd.f32 0.0, %v7040
    %v7042 = vpop.f32.mrf.mxu0
    %v7043 = vadd.f32 0.0, %v7042
    %7044 = vmatmul.bf16.gmra.mxu0 %v6848
    %v7045 = vpop.f32.mrf.mxu0
    %v7046 = vadd.f32 0.0, %v7045
    %v7047 = vpop.f32.mrf.mxu0
    %v7048 = vadd.f32 0.0, %v7047
    %7049 = vmatmul.bf16.gmra.mxu0 %v6849
    %v7050 = vpop.f32.mrf.mxu0
    %v7051 = vadd.f32 0.0, %v7050
    %v7052 = vpop.f32.mrf.mxu0
    %v7053 = vadd.f32 0.0, %v7052
    %7054 = vmatmul.bf16.gmra.mxu0 %v6850
    %v7055 = vpop.f32.mrf.mxu0
    %v7056 = vadd.f32 0.0, %v7055
    %v7057 = vpop.f32.mrf.mxu0
    %v7058 = vadd.f32 0.0, %v7057
    %7059 = vmatmul.bf16.gmra.mxu0 %v6851
    %v7060 = vpop.f32.mrf.mxu0
    %v7061 = vadd.f32 0.0, %v7060
    %v7062 = vpop.f32.mrf.mxu0
    %v7063 = vadd.f32 0.0, %v7062
    %7064 = vmatmul.bf16.gmra.mxu0 %v6852
    %v7065 = vpop.f32.mrf.mxu0
    %v7066 = vadd.f32 0.0, %v7065
    %v7067 = vpop.f32.mrf.mxu0
    %v7068 = vadd.f32 0.0, %v7067
    %7069 = vmatmul.bf16.gmra.mxu0 %v6853
    %v7070 = vpop.f32.mrf.mxu0
    %v7071 = vadd.f32 0.0, %v7070
    %v7072 = vpop.f32.mrf.mxu0
    %v7073 = vadd.f32 0.0, %v7072
    %7074 = vmatmul.bf16.gmra.mxu0 %v6854
    %v7075 = vpop.f32.mrf.mxu0
    %v7076 = vadd.f32 0.0, %v7075
    %v7077 = vpop.f32.mrf.mxu0
    %v7078 = vadd.f32 0.0, %v7077
    %7079 = vmatmul.bf16.gmra.mxu0 %v6855
    %v7080 = vpop.f32.mrf.mxu0
    %v7081 = vadd.f32 0.0, %v7080
    %v7082 = vpop.f32.mrf.mxu0
    %v7083 = vadd.f32 0.0, %v7082
    %7084 = vmatmul.bf16.gmra.mxu0 %v6856
    %v7085 = vpop.f32.mrf.mxu0
    %v7086 = vadd.f32 0.0, %v7085
    %v7087 = vpop.f32.mrf.mxu0
    %v7088 = vadd.f32 0.0, %v7087
    %7089 = vmatmul.bf16.gmra.mxu0 %v6857
    %v7090 = vpop.f32.mrf.mxu0
    %v7091 = vadd.f32 0.0, %v7090
    %v7092 = vpop.f32.mrf.mxu0
    %v7093 = vadd.f32 0.0, %v7092
    %7094 = vmatmul.bf16.gmra.mxu0 %v6858
    %v7095 = vpop.f32.mrf.mxu0
    %v7096 = vadd.f32 0.0, %v7095
    %v7097 = vpop.f32.mrf.mxu0
    %v7098 = vadd.f32 0.0, %v7097
    %7099 = vmatmul.bf16.gmra.mxu0 %v6859
    %v7100 = vpop.f32.mrf.mxu0
    %v7101 = vadd.f32 0.0, %v7100
    %v7102 = vpop.f32.mrf.mxu0
    %v7103 = vadd.f32 0.0, %v7102
    %7104 = vmatmul.bf16.gmra.mxu0 %v6860
    %v7105 = vpop.f32.mrf.mxu0
    %v7106 = vadd.f32 0.0, %v7105
    %v7107 = vpop.f32.mrf.mxu0
    %v7108 = vadd.f32 0.0, %v7107
    %7109 = vdwg.mxu0
    %v7110 = vadd.f32 %v6332, %v6951
    %v7111 = vadd.f32 %v6333, %v6953
    %v7112 = vadd.f32 %v6334, %v6956
    %v7113 = vadd.f32 %v6335, %v6958
    %v7114 = vadd.f32 %v6336, %v6961
    %v7115 = vadd.f32 %v6337, %v6963
    %v7116 = vadd.f32 %v6338, %v6966
    %v7117 = vadd.f32 %v6339, %v6968
    %v7118 = vadd.f32 %v6340, %v6971
    %v7119 = vadd.f32 %v6341, %v6973
    %v7120 = vadd.f32 %v6342, %v6976
    %v7121 = vadd.f32 %v6343, %v6978
    %v7122 = vadd.f32 %v6344, %v6981
    %v7123 = vadd.f32 %v6345, %v6983
    %v7124 = vadd.f32 %v6346, %v6986
    %v7125 = vadd.f32 %v6347, %v6988
    %v7126 = vadd.f32 %v6348, %v6991
    %v7127 = vadd.f32 %v6349, %v6993
    %v7128 = vadd.f32 %v6350, %v6996
    %v7129 = vadd.f32 %v6351, %v6998
    %v7130 = vadd.f32 %v6352, %v7001
    %v7131 = vadd.f32 %v6353, %v7003
    %v7132 = vadd.f32 %v6354, %v7006
    %v7133 = vadd.f32 %v6355, %v7008
    %v7134 = vadd.f32 %v6356, %v7011
    %v7135 = vadd.f32 %v6357, %v7013
    %v7136 = vadd.f32 %v6358, %v7016
    %v7137 = vadd.f32 %v6359, %v7018
    %v7138 = vadd.f32 %v6360, %v7021
    %v7139 = vadd.f32 %v6361, %v7023
    %v7140 = vadd.f32 %v6362, %v7026
    %v7141 = vadd.f32 %v6363, %v7028
    %v7142 = vadd.f32 %v6364, %v7031
    %v7143 = vadd.f32 %v6365, %v7033
    %v7144 = vadd.f32 %v6366, %v7036
    %v7145 = vadd.f32 %v6367, %v7038
    %v7146 = vadd.f32 %v6368, %v7041
    %v7147 = vadd.f32 %v6369, %v7043
    %v7148 = vadd.f32 %v6370, %v7046
    %v7149 = vadd.f32 %v6371, %v7048
    %v7150 = vadd.f32 %v6372, %v7051
    %v7151 = vadd.f32 %v6373, %v7053
    %v7152 = vadd.f32 %v6374, %v7056
    %v7153 = vadd.f32 %v6375, %v7058
    %v7154 = vadd.f32 %v6376, %v7061
    %v7155 = vadd.f32 %v6377, %v7063
    %v7156 = vadd.f32 %v6378, %v7066
    %v7157 = vadd.f32 %v6379, %v7068
    %v7158 = vadd.f32 %v6380, %v7071
    %v7159 = vadd.f32 %v6381, %v7073
    %v7160 = vadd.f32 %v6382, %v7076
    %v7161 = vadd.f32 %v6383, %v7078
    %v7162 = vadd.f32 %v6384, %v7081
    %v7163 = vadd.f32 %v6385, %v7083
    %v7164 = vadd.f32 %v6386, %v7086
    %v7165 = vadd.f32 %v6387, %v7088
    %v7166 = vadd.f32 %v6388, %v7091
    %v7167 = vadd.f32 %v6389, %v7093
    %v7168 = vadd.f32 %v6390, %v7096
    %v7169 = vadd.f32 %v6391, %v7098
    %v7170 = vadd.f32 %v6392, %v7101
    %v7171 = vadd.f32 %v6393, %v7103
    %v7172 = vadd.f32 %v6394, %v7106
    %v7173 = vadd.f32 %v6395, %v7108
    %s7174 = scalar_lea.vmem [#allocation2], 24
    %v7175 = vld [vmem:[%s7174] sm:$0xf]
    %v7176 = vld [vmem:[%s7174 + $0x4] sm:$0xf]
    %v7177 = vld [vmem:[%s7174 + $0xc] sm:$0xf]
    %v7178 = vld [vmem:[%s7174 + $0x10] sm:$0xf]
    %v7179 = vld [vmem:[%s7174 + $0x18] sm:$0xf]
    %v7180 = vld [vmem:[%s7174 + $0x1c] sm:$0xf]
    %v7181 = vld [vmem:[%s7174 + $0x24] sm:$0xf]
    %v7182 = vld [vmem:[%s7174 + $0x28] sm:$0xf]
    %v7183 = vld [vmem:[%s7174 + $0x30] sm:$0xf]
    %v7184 = vld [vmem:[%s7174 + $0x34] sm:$0xf]
    %v7185 = vld [vmem:[%s7174 + $0x3c] sm:$0xf]
    %v7186 = vld [vmem:[%s7174 + $0x40] sm:$0xf]
    %v7187 = vld [vmem:[%s7174 + $0x48] sm:$0xf]
    %v7188 = vld [vmem:[%s7174 + $0x4c] sm:$0xf]
    %v7189 = vld [vmem:[%s7174 + $0x54] sm:$0xf]
    %v7190 = vld [vmem:[%s7174 + $0x58] sm:$0xf]
    %v7191 = vld [vmem:[%s7174 + $0x60] sm:$0xf]
    %v7192 = vld [vmem:[%s7174 + $0x64] sm:$0xf]
    %v7193 = vld [vmem:[%s7174 + $0x6c] sm:$0xf]
    %v7194 = vld [vmem:[%s7174 + $0x70] sm:$0xf]
    %v7195 = vld [vmem:[%s7174 + $0x78] sm:$0xf]
    %v7196 = vld [vmem:[%s7174 + $0x7c] sm:$0xf]
    %v7197 = vld [vmem:[%s7174 + $0x84] sm:$0xf]
    %v7198 = vld [vmem:[%s7174 + $0x88] sm:$0xf]
    %v7199 = vld [vmem:[%s7174 + $0x90] sm:$0xf]
    %v7200 = vld [vmem:[%s7174 + $0x94] sm:$0xf]
    %v7201 = vld [vmem:[%s7174 + $0x9c] sm:$0xf]
    %v7202 = vld [vmem:[%s7174 + $0xa0] sm:$0xf]
    %v7203 = vld [vmem:[%s7174 + $0xa8] sm:$0xf]
    %v7204 = vld [vmem:[%s7174 + $0xac] sm:$0xf]
    %v7205 = vld [vmem:[%s7174 + $0xb4] sm:$0xf]
    %v7206 = vld [vmem:[%s7174 + $0xb8] sm:$0xf]
    %v7207 = vld [vmem:[%s7174 + $0xd8] sm:$0xf]
    %v7208 = vld [vmem:[%s7174 + $0xdc] sm:$0xf]
    %v7209 = vld [vmem:[%s7174 + $0xe4] sm:$0xf]
    %v7210 = vld [vmem:[%s7174 + $0xe8] sm:$0xf]
    %v7211 = vld [vmem:[%s7174 + $0xf0] sm:$0xf]
    %v7212 = vld [vmem:[%s7174 + $0xf4] sm:$0xf]
    %v7213 = vld [vmem:[%s7174 + $0xfc] sm:$0xf]
    %v7214 = vld [vmem:[%s7174 + $0x100] sm:$0xf]
    %v7215 = vld [vmem:[%s7174 + $0x108] sm:$0xf]
    %v7216 = vld [vmem:[%s7174 + $0x10c] sm:$0xf]
    %v7217 = vld [vmem:[%s7174 + $0x114] sm:$0xf]
    %v7218 = vld [vmem:[%s7174 + $0x118] sm:$0xf]
    %v7219 = vld [vmem:[%s7174 + $0x120] sm:$0xf]
    %v7220 = vld [vmem:[%s7174 + $0x124] sm:$0xf]
    %v7221 = vld [vmem:[%s7174 + $0x12c] sm:$0xf]
    %v7222 = vld [vmem:[%s7174 + $0x130] sm:$0xf]
    %v7223 = vld [vmem:[%s7174 + $0x138] sm:$0xf]
    %v7224 = vld [vmem:[%s7174 + $0x13c] sm:$0xf]
    %v7225 = vld [vmem:[%s7174 + $0x144] sm:$0xf]
    %v7226 = vld [vmem:[%s7174 + $0x148] sm:$0xf]
    %v7227 = vld [vmem:[%s7174 + $0x150] sm:$0xf]
    %v7228 = vld [vmem:[%s7174 + $0x154] sm:$0xf]
    %v7229 = vld [vmem:[%s7174 + $0x15c] sm:$0xf]
    %v7230 = vld [vmem:[%s7174 + $0x160] sm:$0xf]
    %v7231 = vld [vmem:[%s7174 + $0x168] sm:$0xf]
    %v7232 = vld [vmem:[%s7174 + $0x16c] sm:$0xf]
    %v7233 = vld [vmem:[%s7174 + $0x174] sm:$0xf]
    %v7234 = vld [vmem:[%s7174 + $0x178] sm:$0xf]
    %v7235 = vld [vmem:[%s7174 + $0x180] sm:$0xf]
    %v7236 = vld [vmem:[%s7174 + $0x184] sm:$0xf]
    %v7237 = vld [vmem:[%s7174 + $0x18c] sm:$0xf]
    %v7238 = vld [vmem:[%s7174 + $0x190] sm:$0xf]
    %s7239 = scalar_lea.vmem [#allocation8], 384
    %v7240 = vld [vmem:[%s7239] sm:$0xf]
    %v7241 = vld [vmem:[%s7239 + $0x4] sm:$0xf]
    %v7242 = vld [vmem:[%s7239 + $0x8] sm:$0xf]
    %v7243 = vld [vmem:[%s7239 + $0xc] sm:$0xf]
    %v7244 = vld [vmem:[%s7239 + $0x10] sm:$0xf]
    %v7245 = vld [vmem:[%s7239 + $0x14] sm:$0xf]
    %v7246 = vld [vmem:[%s7239 + $0x18] sm:$0xf]
    %v7247 = vld [vmem:[%s7239 + $0x1c] sm:$0xf]
    %v7248 = vld [vmem:[%s7239 + $0x20] sm:$0xf]
    %v7249 = vld [vmem:[%s7239 + $0x24] sm:$0xf]
    %v7250 = vld [vmem:[%s7239 + $0x28] sm:$0xf]
    %v7251 = vld [vmem:[%s7239 + $0x2c] sm:$0xf]
    %v7252 = vld [vmem:[%s7239 + $0x30] sm:$0xf]
    %v7253 = vld [vmem:[%s7239 + $0x34] sm:$0xf]
    %v7254 = vld [vmem:[%s7239 + $0x38] sm:$0xf]
    %v7255 = vld [vmem:[%s7239 + $0x3c] sm:$0xf]
    %v7320 = vunpack.c.l.b16 %v7175
    %v7321 = vunpack.c.l.b16 %v7176
    %v7322 = vunpack.c.l.b16 %v7177
    %v7323 = vunpack.c.l.b16 %v7178
    %v7324 = vunpack.c.l.b16 %v7179
    %v7325 = vunpack.c.l.b16 %v7180
    %v7326 = vunpack.c.l.b16 %v7181
    %v7327 = vunpack.c.l.b16 %v7182
    %v7328 = vunpack.c.l.b16 %v7183
    %v7329 = vunpack.c.l.b16 %v7184
    %v7330 = vunpack.c.l.b16 %v7185
    %v7331 = vunpack.c.l.b16 %v7186
    %v7332 = vunpack.c.l.b16 %v7187
    %v7333 = vunpack.c.l.b16 %v7188
    %v7334 = vunpack.c.l.b16 %v7189
    %v7335 = vunpack.c.l.b16 %v7190
    %v7336 = vunpack.c.l.b16 %v7191
    %v7337 = vunpack.c.l.b16 %v7192
    %v7338 = vunpack.c.l.b16 %v7193
    %v7339 = vunpack.c.l.b16 %v7194
    %v7340 = vunpack.c.l.b16 %v7195
    %v7341 = vunpack.c.l.b16 %v7196
    %v7342 = vunpack.c.l.b16 %v7197
    %v7343 = vunpack.c.l.b16 %v7198
    %v7344 = vunpack.c.l.b16 %v7199
    %v7345 = vunpack.c.l.b16 %v7200
    %v7346 = vunpack.c.l.b16 %v7201
    %v7347 = vunpack.c.l.b16 %v7202
    %v7348 = vunpack.c.l.b16 %v7203
    %v7349 = vunpack.c.l.b16 %v7204
    %v7350 = vunpack.c.l.b16 %v7205
    %v7351 = vunpack.c.l.b16 %v7206
    %v7352 = vunpack.c.l.b16 %v7207
    %v7353 = vunpack.c.l.b16 %v7208
    %v7354 = vunpack.c.l.b16 %v7209
    %v7355 = vunpack.c.l.b16 %v7210
    %v7356 = vunpack.c.l.b16 %v7211
    %v7357 = vunpack.c.l.b16 %v7212
    %v7358 = vunpack.c.l.b16 %v7213
    %v7359 = vunpack.c.l.b16 %v7214
    %v7360 = vunpack.c.l.b16 %v7215
    %v7361 = vunpack.c.l.b16 %v7216
    %v7362 = vunpack.c.l.b16 %v7217
    %v7363 = vunpack.c.l.b16 %v7218
    %v7364 = vunpack.c.l.b16 %v7219
    %v7365 = vunpack.c.l.b16 %v7220
    %v7366 = vunpack.c.l.b16 %v7221
    %v7367 = vunpack.c.l.b16 %v7222
    %v7368 = vunpack.c.l.b16 %v7223
    %v7369 = vunpack.c.l.b16 %v7224
    %v7370 = vunpack.c.l.b16 %v7225
    %v7371 = vunpack.c.l.b16 %v7226
    %v7372 = vunpack.c.l.b16 %v7227
    %v7373 = vunpack.c.l.b16 %v7228
    %v7374 = vunpack.c.l.b16 %v7229
    %v7375 = vunpack.c.l.b16 %v7230
    %v7376 = vunpack.c.l.b16 %v7231
    %v7377 = vunpack.c.l.b16 %v7232
    %v7378 = vunpack.c.l.b16 %v7233
    %v7379 = vunpack.c.l.b16 %v7234
    %v7380 = vunpack.c.l.b16 %v7235
    %v7381 = vunpack.c.l.b16 %v7236
    %v7382 = vunpack.c.l.b16 %v7237
    %v7383 = vunpack.c.l.b16 %v7238
    %v7384 = vpack.c.b16 %v7321, %v7320
    %v7385 = vpack.c.b16 %v7323, %v7322
    %v7386 = vpack.c.b16 %v7325, %v7324
    %v7387 = vpack.c.b16 %v7327, %v7326
    %v7388 = vpack.c.b16 %v7329, %v7328
    %v7389 = vpack.c.b16 %v7331, %v7330
    %v7390 = vpack.c.b16 %v7333, %v7332
    %v7391 = vpack.c.b16 %v7335, %v7334
    %v7392 = vpack.c.b16 %v7337, %v7336
    %v7393 = vpack.c.b16 %v7339, %v7338
    %v7394 = vpack.c.b16 %v7341, %v7340
    %v7395 = vpack.c.b16 %v7343, %v7342
    %v7396 = vpack.c.b16 %v7345, %v7344
    %v7397 = vpack.c.b16 %v7347, %v7346
    %v7398 = vpack.c.b16 %v7349, %v7348
    %v7399 = vpack.c.b16 %v7351, %v7350
    %v7400 = vpack.c.b16 %v7353, %v7352
    %v7401 = vpack.c.b16 %v7355, %v7354
    %v7402 = vpack.c.b16 %v7357, %v7356
    %v7403 = vpack.c.b16 %v7359, %v7358
    %v7404 = vpack.c.b16 %v7361, %v7360
    %v7405 = vpack.c.b16 %v7363, %v7362
    %v7406 = vpack.c.b16 %v7365, %v7364
    %v7407 = vpack.c.b16 %v7367, %v7366
    %v7408 = vpack.c.b16 %v7369, %v7368
    %v7409 = vpack.c.b16 %v7371, %v7370
    %v7410 = vpack.c.b16 %v7373, %v7372
    %v7411 = vpack.c.b16 %v7375, %v7374
    %v7412 = vpack.c.b16 %v7377, %v7376
    %v7413 = vpack.c.b16 %v7379, %v7378
    %v7414 = vpack.c.b16 %v7381, %v7380
    %v7415 = vpack.c.b16 %v7383, %v7382
    %v7464 = vunpack.c.l.b16 %v7240
    %v7465 = vunpack.c.l.b16 %v7241
    %v7466 = vunpack.c.l.b16 %v7242
    %v7467 = vunpack.c.l.b16 %v7243
    %v7468 = vunpack.c.l.b16 %v7244
    %v7469 = vunpack.c.l.b16 %v7245
    %v7470 = vunpack.c.l.b16 %v7246
    %v7471 = vunpack.c.l.b16 %v7247
    %v7472 = vunpack.c.l.b16 %v7248
    %v7473 = vunpack.c.l.b16 %v7249
    %v7474 = vunpack.c.l.b16 %v7250
    %v7475 = vunpack.c.l.b16 %v7251
    %v7476 = vunpack.c.l.b16 %v7252
    %v7477 = vunpack.c.l.b16 %v7253
    %v7478 = vunpack.c.l.b16 %v7254
    %v7479 = vunpack.c.l.b16 %v7255
    %v7480 = vpack.c.b16 %v7465, %v7464
    %v7481 = vpack.c.b16 %v7467, %v7466
    %v7482 = vpack.c.b16 %v7469, %v7468
    %v7483 = vpack.c.b16 %v7471, %v7470
    %v7484 = vpack.c.b16 %v7473, %v7472
    %v7485 = vpack.c.b16 %v7475, %v7474
    %v7486 = vpack.c.b16 %v7477, %v7476
    %v7487 = vpack.c.b16 %v7479, %v7478
    %7496 = vmatpush.bf16.msra.mxu0 %v7487
    %7497 = vmatpush.bf16.msra.mxu0 %v7486
    %7498 = vmatpush.bf16.msra.mxu0 %v7485
    %7499 = vmatpush.bf16.msra.mxu0 %v7484
    %7500 = vmatpush.bf16.msra.mxu0 %v7483
    %7501 = vmatpush.bf16.msra.mxu0 %v7482
    %7502 = vmatpush.bf16.msra.mxu0 %v7481
    %7503 = vmatpush.bf16.msra.mxu0 %v7480
    %7504 = vmatmul.bf16.gmra.mxu0 %v7384
    %v7505 = vpop.f32.mrf.mxu0
    %v7506 = vadd.f32 0.0, %v7505
    %v7507 = vpop.f32.mrf.mxu0
    %v7508 = vadd.f32 0.0, %v7507
    %7509 = vmatmul.bf16.gmra.mxu0 %v7385
    %v7510 = vpop.f32.mrf.mxu0
    %v7511 = vadd.f32 0.0, %v7510
    %v7512 = vpop.f32.mrf.mxu0
    %v7513 = vadd.f32 0.0, %v7512
    %7514 = vmatmul.bf16.gmra.mxu0 %v7386
    %v7515 = vpop.f32.mrf.mxu0
    %v7516 = vadd.f32 0.0, %v7515
    %v7517 = vpop.f32.mrf.mxu0
    %v7518 = vadd.f32 0.0, %v7517
    %7519 = vmatmul.bf16.gmra.mxu0 %v7387
    %v7520 = vpop.f32.mrf.mxu0
    %v7521 = vadd.f32 0.0, %v7520
    %v7522 = vpop.f32.mrf.mxu0
    %v7523 = vadd.f32 0.0, %v7522
    %7524 = vmatmul.bf16.gmra.mxu0 %v7388
    %v7525 = vpop.f32.mrf.mxu0
    %v7526 = vadd.f32 0.0, %v7525
    %v7527 = vpop.f32.mrf.mxu0
    %v7528 = vadd.f32 0.0, %v7527
    %7529 = vmatmul.bf16.gmra.mxu0 %v7389
    %v7530 = vpop.f32.mrf.mxu0
    %v7531 = vadd.f32 0.0, %v7530
    %v7532 = vpop.f32.mrf.mxu0
    %v7533 = vadd.f32 0.0, %v7532
    %7534 = vmatmul.bf16.gmra.mxu0 %v7390
    %v7535 = vpop.f32.mrf.mxu0
    %v7536 = vadd.f32 0.0, %v7535
    %v7537 = vpop.f32.mrf.mxu0
    %v7538 = vadd.f32 0.0, %v7537
    %7539 = vmatmul.bf16.gmra.mxu0 %v7391
    %v7540 = vpop.f32.mrf.mxu0
    %v7541 = vadd.f32 0.0, %v7540
    %v7542 = vpop.f32.mrf.mxu0
    %v7543 = vadd.f32 0.0, %v7542
    %7544 = vmatmul.bf16.gmra.mxu0 %v7392
    %v7545 = vpop.f32.mrf.mxu0
    %v7546 = vadd.f32 0.0, %v7545
    %v7547 = vpop.f32.mrf.mxu0
    %v7548 = vadd.f32 0.0, %v7547
    %7549 = vmatmul.bf16.gmra.mxu0 %v7393
    %v7550 = vpop.f32.mrf.mxu0
    %v7551 = vadd.f32 0.0, %v7550
    %v7552 = vpop.f32.mrf.mxu0
    %v7553 = vadd.f32 0.0, %v7552
    %7554 = vmatmul.bf16.gmra.mxu0 %v7394
    %v7555 = vpop.f32.mrf.mxu0
    %v7556 = vadd.f32 0.0, %v7555
    %v7557 = vpop.f32.mrf.mxu0
    %v7558 = vadd.f32 0.0, %v7557
    %7559 = vmatmul.bf16.gmra.mxu0 %v7395
    %v7560 = vpop.f32.mrf.mxu0
    %v7561 = vadd.f32 0.0, %v7560
    %v7562 = vpop.f32.mrf.mxu0
    %v7563 = vadd.f32 0.0, %v7562
    %7564 = vmatmul.bf16.gmra.mxu0 %v7396
    %v7565 = vpop.f32.mrf.mxu0
    %v7566 = vadd.f32 0.0, %v7565
    %v7567 = vpop.f32.mrf.mxu0
    %v7568 = vadd.f32 0.0, %v7567
    %7569 = vmatmul.bf16.gmra.mxu0 %v7397
    %v7570 = vpop.f32.mrf.mxu0
    %v7571 = vadd.f32 0.0, %v7570
    %v7572 = vpop.f32.mrf.mxu0
    %v7573 = vadd.f32 0.0, %v7572
    %7574 = vmatmul.bf16.gmra.mxu0 %v7398
    %v7575 = vpop.f32.mrf.mxu0
    %v7576 = vadd.f32 0.0, %v7575
    %v7577 = vpop.f32.mrf.mxu0
    %v7578 = vadd.f32 0.0, %v7577
    %7579 = vmatmul.bf16.gmra.mxu0 %v7399
    %v7580 = vpop.f32.mrf.mxu0
    %v7581 = vadd.f32 0.0, %v7580
    %v7582 = vpop.f32.mrf.mxu0
    %v7583 = vadd.f32 0.0, %v7582
    %7584 = vmatmul.bf16.gmra.mxu0 %v7400
    %v7585 = vpop.f32.mrf.mxu0
    %v7586 = vadd.f32 0.0, %v7585
    %v7587 = vpop.f32.mrf.mxu0
    %v7588 = vadd.f32 0.0, %v7587
    %7589 = vmatmul.bf16.gmra.mxu0 %v7401
    %v7590 = vpop.f32.mrf.mxu0
    %v7591 = vadd.f32 0.0, %v7590
    %v7592 = vpop.f32.mrf.mxu0
    %v7593 = vadd.f32 0.0, %v7592
    %7594 = vmatmul.bf16.gmra.mxu0 %v7402
    %v7595 = vpop.f32.mrf.mxu0
    %v7596 = vadd.f32 0.0, %v7595
    %v7597 = vpop.f32.mrf.mxu0
    %v7598 = vadd.f32 0.0, %v7597
    %7599 = vmatmul.bf16.gmra.mxu0 %v7403
    %v7600 = vpop.f32.mrf.mxu0
    %v7601 = vadd.f32 0.0, %v7600
    %v7602 = vpop.f32.mrf.mxu0
    %v7603 = vadd.f32 0.0, %v7602
    %7604 = vmatmul.bf16.gmra.mxu0 %v7404
    %v7605 = vpop.f32.mrf.mxu0
    %v7606 = vadd.f32 0.0, %v7605
    %v7607 = vpop.f32.mrf.mxu0
    %v7608 = vadd.f32 0.0, %v7607
    %7609 = vmatmul.bf16.gmra.mxu0 %v7405
    %v7610 = vpop.f32.mrf.mxu0
    %v7611 = vadd.f32 0.0, %v7610
    %v7612 = vpop.f32.mrf.mxu0
    %v7613 = vadd.f32 0.0, %v7612
    %7614 = vmatmul.bf16.gmra.mxu0 %v7406
    %v7615 = vpop.f32.mrf.mxu0
    %v7616 = vadd.f32 0.0, %v7615
    %v7617 = vpop.f32.mrf.mxu0
    %v7618 = vadd.f32 0.0, %v7617
    %7619 = vmatmul.bf16.gmra.mxu0 %v7407
    %v7620 = vpop.f32.mrf.mxu0
    %v7621 = vadd.f32 0.0, %v7620
    %v7622 = vpop.f32.mrf.mxu0
    %v7623 = vadd.f32 0.0, %v7622
    %7624 = vmatmul.bf16.gmra.mxu0 %v7408
    %v7625 = vpop.f32.mrf.mxu0
    %v7626 = vadd.f32 0.0, %v7625
    %v7627 = vpop.f32.mrf.mxu0
    %v7628 = vadd.f32 0.0, %v7627
    %7629 = vmatmul.bf16.gmra.mxu0 %v7409
    %v7630 = vpop.f32.mrf.mxu0
    %v7631 = vadd.f32 0.0, %v7630
    %v7632 = vpop.f32.mrf.mxu0
    %v7633 = vadd.f32 0.0, %v7632
    %7634 = vmatmul.bf16.gmra.mxu0 %v7410
    %v7635 = vpop.f32.mrf.mxu0
    %v7636 = vadd.f32 0.0, %v7635
    %v7637 = vpop.f32.mrf.mxu0
    %v7638 = vadd.f32 0.0, %v7637
    %7639 = vmatmul.bf16.gmra.mxu0 %v7411
    %v7640 = vpop.f32.mrf.mxu0
    %v7641 = vadd.f32 0.0, %v7640
    %v7642 = vpop.f32.mrf.mxu0
    %v7643 = vadd.f32 0.0, %v7642
    %7644 = vmatmul.bf16.gmra.mxu0 %v7412
    %v7645 = vpop.f32.mrf.mxu0
    %v7646 = vadd.f32 0.0, %v7645
    %v7647 = vpop.f32.mrf.mxu0
    %v7648 = vadd.f32 0.0, %v7647
    %7649 = vmatmul.bf16.gmra.mxu0 %v7413
    %v7650 = vpop.f32.mrf.mxu0
    %v7651 = vadd.f32 0.0, %v7650
    %v7652 = vpop.f32.mrf.mxu0
    %v7653 = vadd.f32 0.0, %v7652
    %7654 = vmatmul.bf16.gmra.mxu0 %v7414
    %v7655 = vpop.f32.mrf.mxu0
    %v7656 = vadd.f32 0.0, %v7655
    %v7657 = vpop.f32.mrf.mxu0
    %v7658 = vadd.f32 0.0, %v7657
    %7659 = vmatmul.bf16.gmra.mxu0 %v7415
    %v7660 = vpop.f32.mrf.mxu0
    %v7661 = vadd.f32 0.0, %v7660
    %v7662 = vpop.f32.mrf.mxu0
    %v7663 = vadd.f32 0.0, %v7662
    %7664 = vdwg.mxu0
    %v7665 = vadd.f32 %v7110, %v7506
    %v7666 = vadd.f32 %v7111, %v7508
    %v7667 = vadd.f32 %v7112, %v7511
    %v7668 = vadd.f32 %v7113, %v7513
    %v7669 = vadd.f32 %v7114, %v7516
    %v7670 = vadd.f32 %v7115, %v7518
    %v7671 = vadd.f32 %v7116, %v7521
    %v7672 = vadd.f32 %v7117, %v7523
    %v7673 = vadd.f32 %v7118, %v7526
    %v7674 = vadd.f32 %v7119, %v7528
    %v7675 = vadd.f32 %v7120, %v7531
    %v7676 = vadd.f32 %v7121, %v7533
    %v7677 = vadd.f32 %v7122, %v7536
    %v7678 = vadd.f32 %v7123, %v7538
    %v7679 = vadd.f32 %v7124, %v7541
    %v7680 = vadd.f32 %v7125, %v7543
    %v7681 = vadd.f32 %v7126, %v7546
    %v7682 = vadd.f32 %v7127, %v7548
    %v7683 = vadd.f32 %v7128, %v7551
    %v7684 = vadd.f32 %v7129, %v7553
    %v7685 = vadd.f32 %v7130, %v7556
    %v7686 = vadd.f32 %v7131, %v7558
    %v7687 = vadd.f32 %v7132, %v7561
    %v7688 = vadd.f32 %v7133, %v7563
    %v7689 = vadd.f32 %v7134, %v7566
    %v7690 = vadd.f32 %v7135, %v7568
    %v7691 = vadd.f32 %v7136, %v7571
    %v7692 = vadd.f32 %v7137, %v7573
    %v7693 = vadd.f32 %v7138, %v7576
    %v7694 = vadd.f32 %v7139, %v7578
    %v7695 = vadd.f32 %v7140, %v7581
    %v7696 = vadd.f32 %v7141, %v7583
    %v7697 = vadd.f32 %v7142, %v7586
    %v7698 = vadd.f32 %v7143, %v7588
    %v7699 = vadd.f32 %v7144, %v7591
    %v7700 = vadd.f32 %v7145, %v7593
    %v7701 = vadd.f32 %v7146, %v7596
    %v7702 = vadd.f32 %v7147, %v7598
    %v7703 = vadd.f32 %v7148, %v7601
    %v7704 = vadd.f32 %v7149, %v7603
    %v7705 = vadd.f32 %v7150, %v7606
    %v7706 = vadd.f32 %v7151, %v7608
    %v7707 = vadd.f32 %v7152, %v7611
    %v7708 = vadd.f32 %v7153, %v7613
    %v7709 = vadd.f32 %v7154, %v7616
    %v7710 = vadd.f32 %v7155, %v7618
    %v7711 = vadd.f32 %v7156, %v7621
    %v7712 = vadd.f32 %v7157, %v7623
    %v7713 = vadd.f32 %v7158, %v7626
    %v7714 = vadd.f32 %v7159, %v7628
    %v7715 = vadd.f32 %v7160, %v7631
    %v7716 = vadd.f32 %v7161, %v7633
    %v7717 = vadd.f32 %v7162, %v7636
    %v7718 = vadd.f32 %v7163, %v7638
    %v7719 = vadd.f32 %v7164, %v7641
    %v7720 = vadd.f32 %v7165, %v7643
    %v7721 = vadd.f32 %v7166, %v7646
    %v7722 = vadd.f32 %v7167, %v7648
    %v7723 = vadd.f32 %v7168, %v7651
    %v7724 = vadd.f32 %v7169, %v7653
    %v7725 = vadd.f32 %v7170, %v7656
    %v7726 = vadd.f32 %v7171, %v7658
    %v7727 = vadd.f32 %v7172, %v7661
    %v7728 = vadd.f32 %v7173, %v7663
    %v7729 = vld [vmem:[%s7174] sm:$0xf]
    %v7730 = vld [vmem:[%s7174 + $0x4] sm:$0xf]
    %v7731 = vld [vmem:[%s7174 + $0x8] sm:$0x1]
    %v7732 = vld [vmem:[%s7174 + $0xc] sm:$0xf]
    %v7733 = vld [vmem:[%s7174 + $0x10] sm:$0xf]
    %v7734 = vld [vmem:[%s7174 + $0x14] sm:$0x1]
    %v7735 = vld [vmem:[%s7174 + $0x18] sm:$0xf]
    %v7736 = vld [vmem:[%s7174 + $0x1c] sm:$0xf]
    %v7737 = vld [vmem:[%s7174 + $0x20] sm:$0x1]
    %v7738 = vld [vmem:[%s7174 + $0x24] sm:$0xf]
    %v7739 = vld [vmem:[%s7174 + $0x28] sm:$0xf]
    %v7740 = vld [vmem:[%s7174 + $0x2c] sm:$0x1]
    %v7741 = vld [vmem:[%s7174 + $0x30] sm:$0xf]
    %v7742 = vld [vmem:[%s7174 + $0x34] sm:$0xf]
    %v7743 = vld [vmem:[%s7174 + $0x38] sm:$0x1]
    %v7744 = vld [vmem:[%s7174 + $0x3c] sm:$0xf]
    %v7745 = vld [vmem:[%s7174 + $0x40] sm:$0xf]
    %v7746 = vld [vmem:[%s7174 + $0x44] sm:$0x1]
    %v7747 = vld [vmem:[%s7174 + $0x48] sm:$0xf]
    %v7748 = vld [vmem:[%s7174 + $0x4c] sm:$0xf]
    %v7749 = vld [vmem:[%s7174 + $0x50] sm:$0x1]
    %v7750 = vld [vmem:[%s7174 + $0x54] sm:$0xf]
    %v7751 = vld [vmem:[%s7174 + $0x58] sm:$0xf]
    %v7752 = vld [vmem:[%s7174 + $0x5c] sm:$0x1]
    %v7753 = vld [vmem:[%s7174 + $0x60] sm:$0xf]
    %v7754 = vld [vmem:[%s7174 + $0x64] sm:$0xf]
    %v7755 = vld [vmem:[%s7174 + $0x68] sm:$0x1]
    %v7756 = vld [vmem:[%s7174 + $0x6c] sm:$0xf]
    %v7757 = vld [vmem:[%s7174 + $0x70] sm:$0xf]
    %v7758 = vld [vmem:[%s7174 + $0x74] sm:$0x1]
    %v7759 = vld [vmem:[%s7174 + $0x78] sm:$0xf]
    %v7760 = vld [vmem:[%s7174 + $0x7c] sm:$0xf]
    %v7761 = vld [vmem:[%s7174 + $0x80] sm:$0x1]
    %v7762 = vld [vmem:[%s7174 + $0x84] sm:$0xf]
    %v7763 = vld [vmem:[%s7174 + $0x88] sm:$0xf]
    %v7764 = vld [vmem:[%s7174 + $0x8c] sm:$0x1]
    %v7765 = vld [vmem:[%s7174 + $0x90] sm:$0xf]
    %v7766 = vld [vmem:[%s7174 + $0x94] sm:$0xf]
    %v7767 = vld [vmem:[%s7174 + $0x98] sm:$0x1]
    %v7768 = vld [vmem:[%s7174 + $0x9c] sm:$0xf]
    %v7769 = vld [vmem:[%s7174 + $0xa0] sm:$0xf]
    %v7770 = vld [vmem:[%s7174 + $0xa4] sm:$0x1]
    %v7771 = vld [vmem:[%s7174 + $0xa8] sm:$0xf]
    %v7772 = vld [vmem:[%s7174 + $0xac] sm:$0xf]
    %v7773 = vld [vmem:[%s7174 + $0xb0] sm:$0x1]
    %v7774 = vld [vmem:[%s7174 + $0xb4] sm:$0xf]
    %v7775 = vld [vmem:[%s7174 + $0xb8] sm:$0xf]
    %v7776 = vld [vmem:[%s7174 + $0xbc] sm:$0x1]
    %v7777 = vld [vmem:[%s7174 + $0xd8] sm:$0xf]
    %v7778 = vld [vmem:[%s7174 + $0xdc] sm:$0xf]
    %v7779 = vld [vmem:[%s7174 + $0xe0] sm:$0x1]
    %v7780 = vld [vmem:[%s7174 + $0xe4] sm:$0xf]
    %v7781 = vld [vmem:[%s7174 + $0xe8] sm:$0xf]
    %v7782 = vld [vmem:[%s7174 + $0xec] sm:$0x1]
    %v7783 = vld [vmem:[%s7174 + $0xf0] sm:$0xf]
    %v7784 = vld [vmem:[%s7174 + $0xf4] sm:$0xf]
    %v7785 = vld [vmem:[%s7174 + $0xf8] sm:$0x1]
    %v7786 = vld [vmem:[%s7174 + $0xfc] sm:$0xf]
    %v7787 = vld [vmem:[%s7174 + $0x100] sm:$0xf]
    %v7788 = vld [vmem:[%s7174 + $0x104] sm:$0x1]
    %v7789 = vld [vmem:[%s7174 + $0x108] sm:$0xf]
    %v7790 = vld [vmem:[%s7174 + $0x10c] sm:$0xf]
    %v7791 = vld [vmem:[%s7174 + $0x110] sm:$0x1]
    %v7792 = vld [vmem:[%s7174 + $0x114] sm:$0xf]
    %v7793 = vld [vmem:[%s7174 + $0x118] sm:$0xf]
    %v7794 = vld [vmem:[%s7174 + $0x11c] sm:$0x1]
    %v7795 = vld [vmem:[%s7174 + $0x120] sm:$0xf]
    %v7796 = vld [vmem:[%s7174 + $0x124] sm:$0xf]
    %v7797 = vld [vmem:[%s7174 + $0x128] sm:$0x1]
    %v7798 = vld [vmem:[%s7174 + $0x12c] sm:$0xf]
    %v7799 = vld [vmem:[%s7174 + $0x130] sm:$0xf]
    %v7800 = vld [vmem:[%s7174 + $0x134] sm:$0x1]
    %v7801 = vld [vmem:[%s7174 + $0x138] sm:$0xf]
    %v7802 = vld [vmem:[%s7174 + $0x13c] sm:$0xf]
    %v7803 = vld [vmem:[%s7174 + $0x140] sm:$0x1]
    %v7804 = vld [vmem:[%s7174 + $0x144] sm:$0xf]
    %v7805 = vld [vmem:[%s7174 + $0x148] sm:$0xf]
    %v7806 = vld [vmem:[%s7174 + $0x14c] sm:$0x1]
    %v7807 = vld [vmem:[%s7174 + $0x150] sm:$0xf]
    %v7808 = vld [vmem:[%s7174 + $0x154] sm:$0xf]
    %v7809 = vld [vmem:[%s7174 + $0x158] sm:$0x1]
    %v7810 = vld [vmem:[%s7174 + $0x15c] sm:$0xf]
    %v7811 = vld [vmem:[%s7174 + $0x160] sm:$0xf]
    %v7812 = vld [vmem:[%s7174 + $0x164] sm:$0x1]
    %v7813 = vld [vmem:[%s7174 + $0x168] sm:$0xf]
    %v7814 = vld [vmem:[%s7174 + $0x16c] sm:$0xf]
    %v7815 = vld [vmem:[%s7174 + $0x170] sm:$0x1]
    %v7816 = vld [vmem:[%s7174 + $0x174] sm:$0xf]
    %v7817 = vld [vmem:[%s7174 + $0x178] sm:$0xf]
    %v7818 = vld [vmem:[%s7174 + $0x17c] sm:$0x1]
    %v7819 = vld [vmem:[%s7174 + $0x180] sm:$0xf]
    %v7820 = vld [vmem:[%s7174 + $0x184] sm:$0xf]
    %v7821 = vld [vmem:[%s7174 + $0x188] sm:$0x1]
    %v7822 = vld [vmem:[%s7174 + $0x18c] sm:$0xf]
    %v7823 = vld [vmem:[%s7174 + $0x190] sm:$0xf]
    %v7824 = vld [vmem:[%s7174 + $0x194] sm:$0x1]
    %v7826 = vshrl.u32 %v7729, 16
    %v7828 = vrot.slane %v7826, 4
    %v7829 = vshll.u32 %v7729, 16
    %v7831 = vrot.slane %v7829, 5
    %v7832 = vor.u32 %v7828, %v7831
    %v7833 = vrot.slane %v7832, 4
    %v7835 = vshll.u32 %v7730, 16
    %v7837 = vrot.slane %v7835, 5
    %v7838 = vsel %vm2263, %v7833, %v7837
    %v7839 = vshrl.u32 %v7730, 16
    %v7841 = vrot.slane %v7839, 4
    %v7842 = vor.u32 %v7841, %v7837
    %v7843 = vrot.slane %v7842, 4
    %v7845 = vshll.u32 %v7731, 16
    %v7847 = vrot.slane %v7845, 5
    %v7848 = vsel %vm2263, %v7843, %v7847
    %v7850 = vshrl.u32 %v7732, 16
    %v7852 = vrot.slane %v7850, 4
    %v7853 = vshll.u32 %v7732, 16
    %v7855 = vrot.slane %v7853, 5
    %v7856 = vor.u32 %v7852, %v7855
    %v7857 = vrot.slane %v7856, 4
    %v7859 = vshll.u32 %v7733, 16
    %v7861 = vrot.slane %v7859, 5
    %v7862 = vsel %vm2263, %v7857, %v7861
    %v7863 = vshrl.u32 %v7733, 16
    %v7865 = vrot.slane %v7863, 4
    %v7866 = vor.u32 %v7865, %v7861
    %v7867 = vrot.slane %v7866, 4
    %v7869 = vshll.u32 %v7734, 16
    %v7871 = vrot.slane %v7869, 5
    %v7872 = vsel %vm2263, %v7867, %v7871
    %v7874 = vshrl.u32 %v7735, 16
    %v7876 = vrot.slane %v7874, 4
    %v7877 = vshll.u32 %v7735, 16
    %v7879 = vrot.slane %v7877, 5
    %v7880 = vor.u32 %v7876, %v7879
    %v7881 = vrot.slane %v7880, 4
    %v7883 = vshll.u32 %v7736, 16
    %v7885 = vrot.slane %v7883, 5
    %v7886 = vsel %vm2263, %v7881, %v7885
    %v7887 = vshrl.u32 %v7736, 16
    %v7889 = vrot.slane %v7887, 4
    %v7890 = vor.u32 %v7889, %v7885
    %v7891 = vrot.slane %v7890, 4
    %v7893 = vshll.u32 %v7737, 16
    %v7895 = vrot.slane %v7893, 5
    %v7896 = vsel %vm2263, %v7891, %v7895
    %v7898 = vshrl.u32 %v7738, 16
    %v7900 = vrot.slane %v7898, 4
    %v7901 = vshll.u32 %v7738, 16
    %v7903 = vrot.slane %v7901, 5
    %v7904 = vor.u32 %v7900, %v7903
    %v7905 = vrot.slane %v7904, 4
    %v7907 = vshll.u32 %v7739, 16
    %v7909 = vrot.slane %v7907, 5
    %v7910 = vsel %vm2263, %v7905, %v7909
    %v7911 = vshrl.u32 %v7739, 16
    %v7913 = vrot.slane %v7911, 4
    %v7914 = vor.u32 %v7913, %v7909
    %v7915 = vrot.slane %v7914, 4
    %v7917 = vshll.u32 %v7740, 16
    %v7919 = vrot.slane %v7917, 5
    %v7920 = vsel %vm2263, %v7915, %v7919
    %v7922 = vshrl.u32 %v7741, 16
    %v7924 = vrot.slane %v7922, 4
    %v7925 = vshll.u32 %v7741, 16
    %v7927 = vrot.slane %v7925, 5
    %v7928 = vor.u32 %v7924, %v7927
    %v7929 = vrot.slane %v7928, 4
    %v7931 = vshll.u32 %v7742, 16
    %v7933 = vrot.slane %v7931, 5
    %v7934 = vsel %vm2263, %v7929, %v7933
    %v7935 = vshrl.u32 %v7742, 16
    %v7937 = vrot.slane %v7935, 4
    %v7938 = vor.u32 %v7937, %v7933
    %v7939 = vrot.slane %v7938, 4
    %v7941 = vshll.u32 %v7743, 16
    %v7943 = vrot.slane %v7941, 5
    %v7944 = vsel %vm2263, %v7939, %v7943
    %v7946 = vshrl.u32 %v7744, 16
    %v7948 = vrot.slane %v7946, 4
    %v7949 = vshll.u32 %v7744, 16
    %v7951 = vrot.slane %v7949, 5
    %v7952 = vor.u32 %v7948, %v7951
    %v7953 = vrot.slane %v7952, 4
    %v7955 = vshll.u32 %v7745, 16
    %v7957 = vrot.slane %v7955, 5
    %v7958 = vsel %vm2263, %v7953, %v7957
    %v7959 = vshrl.u32 %v7745, 16
    %v7961 = vrot.slane %v7959, 4
    %v7962 = vor.u32 %v7961, %v7957
    %v7963 = vrot.slane %v7962, 4
    %v7965 = vshll.u32 %v7746, 16
    %v7967 = vrot.slane %v7965, 5
    %v7968 = vsel %vm2263, %v7963, %v7967
    %v7970 = vshrl.u32 %v7747, 16
    %v7972 = vrot.slane %v7970, 4
    %v7973 = vshll.u32 %v7747, 16
    %v7975 = vrot.slane %v7973, 5
    %v7976 = vor.u32 %v7972, %v7975
    %v7977 = vrot.slane %v7976, 4
    %v7979 = vshll.u32 %v7748, 16
    %v7981 = vrot.slane %v7979, 5
    %v7982 = vsel %vm2263, %v7977, %v7981
    %v7983 = vshrl.u32 %v7748, 16
    %v7985 = vrot.slane %v7983, 4
    %v7986 = vor.u32 %v7985, %v7981
    %v7987 = vrot.slane %v7986, 4
    %v7989 = vshll.u32 %v7749, 16
    %v7991 = vrot.slane %v7989, 5
    %v7992 = vsel %vm2263, %v7987, %v7991
    %v7994 = vshrl.u32 %v7750, 16
    %v7996 = vrot.slane %v7994, 4
    %v7997 = vshll.u32 %v7750, 16
    %v7999 = vrot.slane %v7997, 5
    %v8000 = vor.u32 %v7996, %v7999
    %v8001 = vrot.slane %v8000, 4
    %v8003 = vshll.u32 %v7751, 16
    %v8005 = vrot.slane %v8003, 5
    %v8006 = vsel %vm2263, %v8001, %v8005
    %v8007 = vshrl.u32 %v7751, 16
    %v8009 = vrot.slane %v8007, 4
    %v8010 = vor.u32 %v8009, %v8005
    %v8011 = vrot.slane %v8010, 4
    %v8013 = vshll.u32 %v7752, 16
    %v8015 = vrot.slane %v8013, 5
    %v8016 = vsel %vm2263, %v8011, %v8015
    %v8018 = vshrl.u32 %v7753, 16
    %v8020 = vrot.slane %v8018, 4
    %v8021 = vshll.u32 %v7753, 16
    %v8023 = vrot.slane %v8021, 5
    %v8024 = vor.u32 %v8020, %v8023
    %v8025 = vrot.slane %v8024, 4
    %v8027 = vshll.u32 %v7754, 16
    %v8029 = vrot.slane %v8027, 5
    %v8030 = vsel %vm2263, %v8025, %v8029
    %v8031 = vshrl.u32 %v7754, 16
    %v8033 = vrot.slane %v8031, 4
    %v8034 = vor.u32 %v8033, %v8029
    %v8035 = vrot.slane %v8034, 4
    %v8037 = vshll.u32 %v7755, 16
    %v8039 = vrot.slane %v8037, 5
    %v8040 = vsel %vm2263, %v8035, %v8039
    %v8042 = vshrl.u32 %v7756, 16
    %v8044 = vrot.slane %v8042, 4
    %v8045 = vshll.u32 %v7756, 16
    %v8047 = vrot.slane %v8045, 5
    %v8048 = vor.u32 %v8044, %v8047
    %v8049 = vrot.slane %v8048, 4
    %v8051 = vshll.u32 %v7757, 16
    %v8053 = vrot.slane %v8051, 5
    %v8054 = vsel %vm2263, %v8049, %v8053
    %v8055 = vshrl.u32 %v7757, 16
    %v8057 = vrot.slane %v8055, 4
    %v8058 = vor.u32 %v8057, %v8053
    %v8059 = vrot.slane %v8058, 4
    %v8061 = vshll.u32 %v7758, 16
    %v8063 = vrot.slane %v8061, 5
    %v8064 = vsel %vm2263, %v8059, %v8063
    %v8066 = vshrl.u32 %v7759, 16
    %v8068 = vrot.slane %v8066, 4
    %v8069 = vshll.u32 %v7759, 16
    %v8071 = vrot.slane %v8069, 5
    %v8072 = vor.u32 %v8068, %v8071
    %v8073 = vrot.slane %v8072, 4
    %v8075 = vshll.u32 %v7760, 16
    %v8077 = vrot.slane %v8075, 5
    %v8078 = vsel %vm2263, %v8073, %v8077
    %v8079 = vshrl.u32 %v7760, 16
    %v8081 = vrot.slane %v8079, 4
    %v8082 = vor.u32 %v8081, %v8077
    %v8083 = vrot.slane %v8082, 4
    %v8085 = vshll.u32 %v7761, 16
    %v8087 = vrot.slane %v8085, 5
    %v8088 = vsel %vm2263, %v8083, %v8087
    %v8090 = vshrl.u32 %v7762, 16
    %v8092 = vrot.slane %v8090, 4
    %v8093 = vshll.u32 %v7762, 16
    %v8095 = vrot.slane %v8093, 5
    %v8096 = vor.u32 %v8092, %v8095
    %v8097 = vrot.slane %v8096, 4
    %v8099 = vshll.u32 %v7763, 16
    %v8101 = vrot.slane %v8099, 5
    %v8102 = vsel %vm2263, %v8097, %v8101
    %v8103 = vshrl.u32 %v7763, 16
    %v8105 = vrot.slane %v8103, 4
    %v8106 = vor.u32 %v8105, %v8101
    %v8107 = vrot.slane %v8106, 4
    %v8109 = vshll.u32 %v7764, 16
    %v8111 = vrot.slane %v8109, 5
    %v8112 = vsel %vm2263, %v8107, %v8111
    %v8114 = vshrl.u32 %v7765, 16
    %v8116 = vrot.slane %v8114, 4
    %v8117 = vshll.u32 %v7765, 16
    %v8119 = vrot.slane %v8117, 5
    %v8120 = vor.u32 %v8116, %v8119
    %v8121 = vrot.slane %v8120, 4
    %v8123 = vshll.u32 %v7766, 16
    %v8125 = vrot.slane %v8123, 5
    %v8126 = vsel %vm2263, %v8121, %v8125
    %v8127 = vshrl.u32 %v7766, 16
    %v8129 = vrot.slane %v8127, 4
    %v8130 = vor.u32 %v8129, %v8125
    %v8131 = vrot.slane %v8130, 4
    %v8133 = vshll.u32 %v7767, 16
    %v8135 = vrot.slane %v8133, 5
    %v8136 = vsel %vm2263, %v8131, %v8135
    %v8138 = vshrl.u32 %v7768, 16
    %v8140 = vrot.slane %v8138, 4
    %v8141 = vshll.u32 %v7768, 16
    %v8143 = vrot.slane %v8141, 5
    %v8144 = vor.u32 %v8140, %v8143
    %v8145 = vrot.slane %v8144, 4
    %v8147 = vshll.u32 %v7769, 16
    %v8149 = vrot.slane %v8147, 5
    %v8150 = vsel %vm2263, %v8145, %v8149
    %v8151 = vshrl.u32 %v7769, 16
    %v8153 = vrot.slane %v8151, 4
    %v8154 = vor.u32 %v8153, %v8149
    %v8155 = vrot.slane %v8154, 4
    %v8157 = vshll.u32 %v7770, 16
    %v8159 = vrot.slane %v8157, 5
    %v8160 = vsel %vm2263, %v8155, %v8159
    %v8162 = vshrl.u32 %v7771, 16
    %v8164 = vrot.slane %v8162, 4
    %v8165 = vshll.u32 %v7771, 16
    %v8167 = vrot.slane %v8165, 5
    %v8168 = vor.u32 %v8164, %v8167
    %v8169 = vrot.slane %v8168, 4
    %v8171 = vshll.u32 %v7772, 16
    %v8173 = vrot.slane %v8171, 5
    %v8174 = vsel %vm2263, %v8169, %v8173
    %v8175 = vshrl.u32 %v7772, 16
    %v8177 = vrot.slane %v8175, 4
    %v8178 = vor.u32 %v8177, %v8173
    %v8179 = vrot.slane %v8178, 4
    %v8181 = vshll.u32 %v7773, 16
    %v8183 = vrot.slane %v8181, 5
    %v8184 = vsel %vm2263, %v8179, %v8183
    %v8186 = vshrl.u32 %v7774, 16
    %v8188 = vrot.slane %v8186, 4
    %v8189 = vshll.u32 %v7774, 16
    %v8191 = vrot.slane %v8189, 5
    %v8192 = vor.u32 %v8188, %v8191
    %v8193 = vrot.slane %v8192, 4
    %v8195 = vshll.u32 %v7775, 16
    %v8197 = vrot.slane %v8195, 5
    %v8198 = vsel %vm2263, %v8193, %v8197
    %v8199 = vshrl.u32 %v7775, 16
    %v8201 = vrot.slane %v8199, 4
    %v8202 = vor.u32 %v8201, %v8197
    %v8203 = vrot.slane %v8202, 4
    %v8205 = vshll.u32 %v7776, 16
    %v8207 = vrot.slane %v8205, 5
    %v8208 = vsel %vm2263, %v8203, %v8207
    %v8210 = vshrl.u32 %v7777, 16
    %v8212 = vrot.slane %v8210, 4
    %v8213 = vshll.u32 %v7777, 16
    %v8215 = vrot.slane %v8213, 5
    %v8216 = vor.u32 %v8212, %v8215
    %v8217 = vrot.slane %v8216, 4
    %v8219 = vshll.u32 %v7778, 16
    %v8221 = vrot.slane %v8219, 5
    %v8222 = vsel %vm2263, %v8217, %v8221
    %v8223 = vshrl.u32 %v7778, 16
    %v8225 = vrot.slane %v8223, 4
    %v8226 = vor.u32 %v8225, %v8221
    %v8227 = vrot.slane %v8226, 4
    %v8229 = vshll.u32 %v7779, 16
    %v8231 = vrot.slane %v8229, 5
    %v8232 = vsel %vm2263, %v8227, %v8231
    %v8234 = vshrl.u32 %v7780, 16
    %v8236 = vrot.slane %v8234, 4
    %v8237 = vshll.u32 %v7780, 16
    %v8239 = vrot.slane %v8237, 5
    %v8240 = vor.u32 %v8236, %v8239
    %v8241 = vrot.slane %v8240, 4
    %v8243 = vshll.u32 %v7781, 16
    %v8245 = vrot.slane %v8243, 5
    %v8246 = vsel %vm2263, %v8241, %v8245
    %v8247 = vshrl.u32 %v7781, 16
    %v8249 = vrot.slane %v8247, 4
    %v8250 = vor.u32 %v8249, %v8245
    %v8251 = vrot.slane %v8250, 4
    %v8253 = vshll.u32 %v7782, 16
    %v8255 = vrot.slane %v8253, 5
    %v8256 = vsel %vm2263, %v8251, %v8255
    %v8258 = vshrl.u32 %v7783, 16
    %v8260 = vrot.slane %v8258, 4
    %v8261 = vshll.u32 %v7783, 16
    %v8263 = vrot.slane %v8261, 5
    %v8264 = vor.u32 %v8260, %v8263
    %v8265 = vrot.slane %v8264, 4
    %v8267 = vshll.u32 %v7784, 16
    %v8269 = vrot.slane %v8267, 5
    %v8270 = vsel %vm2263, %v8265, %v8269
    %v8271 = vshrl.u32 %v7784, 16
    %v8273 = vrot.slane %v8271, 4
    %v8274 = vor.u32 %v8273, %v8269
    %v8275 = vrot.slane %v8274, 4
    %v8277 = vshll.u32 %v7785, 16
    %v8279 = vrot.slane %v8277, 5
    %v8280 = vsel %vm2263, %v8275, %v8279
    %v8282 = vshrl.u32 %v7786, 16
    %v8284 = vrot.slane %v8282, 4
    %v8285 = vshll.u32 %v7786, 16
    %v8287 = vrot.slane %v8285, 5
    %v8288 = vor.u32 %v8284, %v8287
    %v8289 = vrot.slane %v8288, 4
    %v8291 = vshll.u32 %v7787, 16
    %v8293 = vrot.slane %v8291, 5
    %v8294 = vsel %vm2263, %v8289, %v8293
    %v8295 = vshrl.u32 %v7787, 16
    %v8297 = vrot.slane %v8295, 4
    %v8298 = vor.u32 %v8297, %v8293
    %v8299 = vrot.slane %v8298, 4
    %v8301 = vshll.u32 %v7788, 16
    %v8303 = vrot.slane %v8301, 5
    %v8304 = vsel %vm2263, %v8299, %v8303
    %v8306 = vshrl.u32 %v7789, 16
    %v8308 = vrot.slane %v8306, 4
    %v8309 = vshll.u32 %v7789, 16
    %v8311 = vrot.slane %v8309, 5
    %v8312 = vor.u32 %v8308, %v8311
    %v8313 = vrot.slane %v8312, 4
    %v8315 = vshll.u32 %v7790, 16
    %v8317 = vrot.slane %v8315, 5
    %v8318 = vsel %vm2263, %v8313, %v8317
    %v8319 = vshrl.u32 %v7790, 16
    %v8321 = vrot.slane %v8319, 4
    %v8322 = vor.u32 %v8321, %v8317
    %v8323 = vrot.slane %v8322, 4
    %v8325 = vshll.u32 %v7791, 16
    %v8327 = vrot.slane %v8325, 5
    %v8328 = vsel %vm2263, %v8323, %v8327
    %v8330 = vshrl.u32 %v7792, 16
    %v8332 = vrot.slane %v8330, 4
    %v8333 = vshll.u32 %v7792, 16
    %v8335 = vrot.slane %v8333, 5
    %v8336 = vor.u32 %v8332, %v8335
    %v8337 = vrot.slane %v8336, 4
    %v8339 = vshll.u32 %v7793, 16
    %v8341 = vrot.slane %v8339, 5
    %v8342 = vsel %vm2263, %v8337, %v8341
    %v8343 = vshrl.u32 %v7793, 16
    %v8345 = vrot.slane %v8343, 4
    %v8346 = vor.u32 %v8345, %v8341
    %v8347 = vrot.slane %v8346, 4
    %v8349 = vshll.u32 %v7794, 16
    %v8351 = vrot.slane %v8349, 5
    %v8352 = vsel %vm2263, %v8347, %v8351
    %v8354 = vshrl.u32 %v7795, 16
    %v8356 = vrot.slane %v8354, 4
    %v8357 = vshll.u32 %v7795, 16
    %v8359 = vrot.slane %v8357, 5
    %v8360 = vor.u32 %v8356, %v8359
    %v8361 = vrot.slane %v8360, 4
    %v8363 = vshll.u32 %v7796, 16
    %v8365 = vrot.slane %v8363, 5
    %v8366 = vsel %vm2263, %v8361, %v8365
    %v8367 = vshrl.u32 %v7796, 16
    %v8369 = vrot.slane %v8367, 4
    %v8370 = vor.u32 %v8369, %v8365
    %v8371 = vrot.slane %v8370, 4
    %v8373 = vshll.u32 %v7797, 16
    %v8375 = vrot.slane %v8373, 5
    %v8376 = vsel %vm2263, %v8371, %v8375
    %v8378 = vshrl.u32 %v7798, 16
    %v8380 = vrot.slane %v8378, 4
    %v8381 = vshll.u32 %v7798, 16
    %v8383 = vrot.slane %v8381, 5
    %v8384 = vor.u32 %v8380, %v8383
    %v8385 = vrot.slane %v8384, 4
    %v8387 = vshll.u32 %v7799, 16
    %v8389 = vrot.slane %v8387, 5
    %v8390 = vsel %vm2263, %v8385, %v8389
    %v8391 = vshrl.u32 %v7799, 16
    %v8393 = vrot.slane %v8391, 4
    %v8394 = vor.u32 %v8393, %v8389
    %v8395 = vrot.slane %v8394, 4
    %v8397 = vshll.u32 %v7800, 16
    %v8399 = vrot.slane %v8397, 5
    %v8400 = vsel %vm2263, %v8395, %v8399
    %v8402 = vshrl.u32 %v7801, 16
    %v8404 = vrot.slane %v8402, 4
    %v8405 = vshll.u32 %v7801, 16
    %v8407 = vrot.slane %v8405, 5
    %v8408 = vor.u32 %v8404, %v8407
    %v8409 = vrot.slane %v8408, 4
    %v8411 = vshll.u32 %v7802, 16
    %v8413 = vrot.slane %v8411, 5
    %v8414 = vsel %vm2263, %v8409, %v8413
    %v8415 = vshrl.u32 %v7802, 16
    %v8417 = vrot.slane %v8415, 4
    %v8418 = vor.u32 %v8417, %v8413
    %v8419 = vrot.slane %v8418, 4
    %v8421 = vshll.u32 %v7803, 16
    %v8423 = vrot.slane %v8421, 5
    %v8424 = vsel %vm2263, %v8419, %v8423
    %v8426 = vshrl.u32 %v7804, 16
    %v8428 = vrot.slane %v8426, 4
    %v8429 = vshll.u32 %v7804, 16
    %v8431 = vrot.slane %v8429, 5
    %v8432 = vor.u32 %v8428, %v8431
    %v8433 = vrot.slane %v8432, 4
    %v8435 = vshll.u32 %v7805, 16
    %v8437 = vrot.slane %v8435, 5
    %v8438 = vsel %vm2263, %v8433, %v8437
    %v8439 = vshrl.u32 %v7805, 16
    %v8441 = vrot.slane %v8439, 4
    %v8442 = vor.u32 %v8441, %v8437
    %v8443 = vrot.slane %v8442, 4
    %v8445 = vshll.u32 %v7806, 16
    %v8447 = vrot.slane %v8445, 5
    %v8448 = vsel %vm2263, %v8443, %v8447
    %v8450 = vshrl.u32 %v7807, 16
    %v8452 = vrot.slane %v8450, 4
    %v8453 = vshll.u32 %v7807, 16
    %v8455 = vrot.slane %v8453, 5
    %v8456 = vor.u32 %v8452, %v8455
    %v8457 = vrot.slane %v8456, 4
    %v8459 = vshll.u32 %v7808, 16
    %v8461 = vrot.slane %v8459, 5
    %v8462 = vsel %vm2263, %v8457, %v8461
    %v8463 = vshrl.u32 %v7808, 16
    %v8465 = vrot.slane %v8463, 4
    %v8466 = vor.u32 %v8465, %v8461
    %v8467 = vrot.slane %v8466, 4
    %v8469 = vshll.u32 %v7809, 16
    %v8471 = vrot.slane %v8469, 5
    %v8472 = vsel %vm2263, %v8467, %v8471
    %v8474 = vshrl.u32 %v7810, 16
    %v8476 = vrot.slane %v8474, 4
    %v8477 = vshll.u32 %v7810, 16
    %v8479 = vrot.slane %v8477, 5
    %v8480 = vor.u32 %v8476, %v8479
    %v8481 = vrot.slane %v8480, 4
    %v8483 = vshll.u32 %v7811, 16
    %v8485 = vrot.slane %v8483, 5
    %v8486 = vsel %vm2263, %v8481, %v8485
    %v8487 = vshrl.u32 %v7811, 16
    %v8489 = vrot.slane %v8487, 4
    %v8490 = vor.u32 %v8489, %v8485
    %v8491 = vrot.slane %v8490, 4
    %v8493 = vshll.u32 %v7812, 16
    %v8495 = vrot.slane %v8493, 5
    %v8496 = vsel %vm2263, %v8491, %v8495
    %v8498 = vshrl.u32 %v7813, 16
    %v8500 = vrot.slane %v8498, 4
    %v8501 = vshll.u32 %v7813, 16
    %v8503 = vrot.slane %v8501, 5
    %v8504 = vor.u32 %v8500, %v8503
    %v8505 = vrot.slane %v8504, 4
    %v8507 = vshll.u32 %v7814, 16
    %v8509 = vrot.slane %v8507, 5
    %v8510 = vsel %vm2263, %v8505, %v8509
    %v8511 = vshrl.u32 %v7814, 16
    %v8513 = vrot.slane %v8511, 4
    %v8514 = vor.u32 %v8513, %v8509
    %v8515 = vrot.slane %v8514, 4
    %v8517 = vshll.u32 %v7815, 16
    %v8519 = vrot.slane %v8517, 5
    %v8520 = vsel %vm2263, %v8515, %v8519
    %v8522 = vshrl.u32 %v7816, 16
    %v8524 = vrot.slane %v8522, 4
    %v8525 = vshll.u32 %v7816, 16
    %v8527 = vrot.slane %v8525, 5
    %v8528 = vor.u32 %v8524, %v8527
    %v8529 = vrot.slane %v8528, 4
    %v8531 = vshll.u32 %v7817, 16
    %v8533 = vrot.slane %v8531, 5
    %v8534 = vsel %vm2263, %v8529, %v8533
    %v8535 = vshrl.u32 %v7817, 16
    %v8537 = vrot.slane %v8535, 4
    %v8538 = vor.u32 %v8537, %v8533
    %v8539 = vrot.slane %v8538, 4
    %v8541 = vshll.u32 %v7818, 16
    %v8543 = vrot.slane %v8541, 5
    %v8544 = vsel %vm2263, %v8539, %v8543
    %v8546 = vshrl.u32 %v7819, 16
    %v8548 = vrot.slane %v8546, 4
    %v8549 = vshll.u32 %v7819, 16
    %v8551 = vrot.slane %v8549, 5
    %v8552 = vor.u32 %v8548, %v8551
    %v8553 = vrot.slane %v8552, 4
    %v8555 = vshll.u32 %v7820, 16
    %v8557 = vrot.slane %v8555, 5
    %v8558 = vsel %vm2263, %v8553, %v8557
    %v8559 = vshrl.u32 %v7820, 16
    %v8561 = vrot.slane %v8559, 4
    %v8562 = vor.u32 %v8561, %v8557
    %v8563 = vrot.slane %v8562, 4
    %v8565 = vshll.u32 %v7821, 16
    %v8567 = vrot.slane %v8565, 5
    %v8568 = vsel %vm2263, %v8563, %v8567
    %v8570 = vshrl.u32 %v7822, 16
    %v8572 = vrot.slane %v8570, 4
    %v8573 = vshll.u32 %v7822, 16
    %v8575 = vrot.slane %v8573, 5
    %v8576 = vor.u32 %v8572, %v8575
    %v8577 = vrot.slane %v8576, 4
    %v8579 = vshll.u32 %v7823, 16
    %v8581 = vrot.slane %v8579, 5
    %v8582 = vsel %vm2263, %v8577, %v8581
    %v8583 = vshrl.u32 %v7823, 16
    %v8585 = vrot.slane %v8583, 4
    %v8586 = vor.u32 %v8585, %v8581
    %v8587 = vrot.slane %v8586, 4
    %v8589 = vshll.u32 %v7824, 16
    %v8591 = vrot.slane %v8589, 5
    %v8592 = vsel %vm2263, %v8587, %v8591
    %s8593 = scalar_lea.vmem [#allocation8], 448
    %v8594 = vld [vmem:[%s8593] sm:$0xf]
    %v8595 = vld [vmem:[%s8593 + $0x4] sm:$0xf]
    %v8596 = vld [vmem:[%s8593 + $0x8] sm:$0xf]
    %v8597 = vld [vmem:[%s8593 + $0xc] sm:$0xf]
    %v8598 = vld [vmem:[%s8593 + $0x10] sm:$0xf]
    %v8599 = vld [vmem:[%s8593 + $0x14] sm:$0xf]
    %v8600 = vld [vmem:[%s8593 + $0x18] sm:$0xf]
    %v8601 = vld [vmem:[%s8593 + $0x1c] sm:$0xf]
    %v8602 = vld [vmem:[%s8593 + $0x20] sm:$0xf]
    %v8603 = vld [vmem:[%s8593 + $0x24] sm:$0xf]
    %v8604 = vld [vmem:[%s8593 + $0x28] sm:$0xf]
    %v8605 = vld [vmem:[%s8593 + $0x2c] sm:$0xf]
    %v8606 = vld [vmem:[%s8593 + $0x30] sm:$0xf]
    %v8607 = vld [vmem:[%s8593 + $0x34] sm:$0xf]
    %v8608 = vld [vmem:[%s8593 + $0x38] sm:$0xf]
    %v8609 = vld [vmem:[%s8593 + $0x3c] sm:$0xf]
    %v8610 = vunpack.c.l.b16 %v7838
    %v8611 = vunpack.c.l.b16 %v7848
    %v8612 = vunpack.c.l.b16 %v7862
    %v8613 = vunpack.c.l.b16 %v7872
    %v8614 = vunpack.c.l.b16 %v7886
    %v8615 = vunpack.c.l.b16 %v7896
    %v8616 = vunpack.c.l.b16 %v7910
    %v8617 = vunpack.c.l.b16 %v7920
    %v8618 = vunpack.c.l.b16 %v7934
    %v8619 = vunpack.c.l.b16 %v7944
    %v8620 = vunpack.c.l.b16 %v7958
    %v8621 = vunpack.c.l.b16 %v7968
    %v8622 = vunpack.c.l.b16 %v7982
    %v8623 = vunpack.c.l.b16 %v7992
    %v8624 = vunpack.c.l.b16 %v8006
    %v8625 = vunpack.c.l.b16 %v8016
    %v8626 = vunpack.c.l.b16 %v8030
    %v8627 = vunpack.c.l.b16 %v8040
    %v8628 = vunpack.c.l.b16 %v8054
    %v8629 = vunpack.c.l.b16 %v8064
    %v8630 = vunpack.c.l.b16 %v8078
    %v8631 = vunpack.c.l.b16 %v8088
    %v8632 = vunpack.c.l.b16 %v8102
    %v8633 = vunpack.c.l.b16 %v8112
    %v8634 = vunpack.c.l.b16 %v8126
    %v8635 = vunpack.c.l.b16 %v8136
    %v8636 = vunpack.c.l.b16 %v8150
    %v8637 = vunpack.c.l.b16 %v8160
    %v8638 = vunpack.c.l.b16 %v8174
    %v8639 = vunpack.c.l.b16 %v8184
    %v8640 = vunpack.c.l.b16 %v8198
    %v8641 = vunpack.c.l.b16 %v8208
    %v8642 = vunpack.c.l.b16 %v8222
    %v8643 = vunpack.c.l.b16 %v8232
    %v8644 = vunpack.c.l.b16 %v8246
    %v8645 = vunpack.c.l.b16 %v8256
    %v8646 = vunpack.c.l.b16 %v8270
    %v8647 = vunpack.c.l.b16 %v8280
    %v8648 = vunpack.c.l.b16 %v8294
    %v8649 = vunpack.c.l.b16 %v8304
    %v8650 = vunpack.c.l.b16 %v8318
    %v8651 = vunpack.c.l.b16 %v8328
    %v8652 = vunpack.c.l.b16 %v8342
    %v8653 = vunpack.c.l.b16 %v8352
    %v8654 = vunpack.c.l.b16 %v8366
    %v8655 = vunpack.c.l.b16 %v8376
    %v8656 = vunpack.c.l.b16 %v8390
    %v8657 = vunpack.c.l.b16 %v8400
    %v8658 = vunpack.c.l.b16 %v8414
    %v8659 = vunpack.c.l.b16 %v8424
    %v8660 = vunpack.c.l.b16 %v8438
    %v8661 = vunpack.c.l.b16 %v8448
    %v8662 = vunpack.c.l.b16 %v8462
    %v8663 = vunpack.c.l.b16 %v8472
    %v8664 = vunpack.c.l.b16 %v8486
    %v8665 = vunpack.c.l.b16 %v8496
    %v8666 = vunpack.c.l.b16 %v8510
    %v8667 = vunpack.c.l.b16 %v8520
    %v8668 = vunpack.c.l.b16 %v8534
    %v8669 = vunpack.c.l.b16 %v8544
    %v8670 = vunpack.c.l.b16 %v8558
    %v8671 = vunpack.c.l.b16 %v8568
    %v8672 = vunpack.c.l.b16 %v8582
    %v8673 = vunpack.c.l.b16 %v8592
    %v8674 = vpack.c.b16 %v8611, %v8610
    %v8675 = vpack.c.b16 %v8613, %v8612
    %v8676 = vpack.c.b16 %v8615, %v8614
    %v8677 = vpack.c.b16 %v8617, %v8616
    %v8678 = vpack.c.b16 %v8619, %v8618
    %v8679 = vpack.c.b16 %v8621, %v8620
    %v8680 = vpack.c.b16 %v8623, %v8622
    %v8681 = vpack.c.b16 %v8625, %v8624
    %v8682 = vpack.c.b16 %v8627, %v8626
    %v8683 = vpack.c.b16 %v8629, %v8628
    %v8684 = vpack.c.b16 %v8631, %v8630
    %v8685 = vpack.c.b16 %v8633, %v8632
    %v8686 = vpack.c.b16 %v8635, %v8634
    %v8687 = vpack.c.b16 %v8637, %v8636
    %v8688 = vpack.c.b16 %v8639, %v8638
    %v8689 = vpack.c.b16 %v8641, %v8640
    %v8690 = vpack.c.b16 %v8643, %v8642
    %v8691 = vpack.c.b16 %v8645, %v8644
    %v8692 = vpack.c.b16 %v8647, %v8646
    %v8693 = vpack.c.b16 %v8649, %v8648
    %v8694 = vpack.c.b16 %v8651, %v8650
    %v8695 = vpack.c.b16 %v8653, %v8652
    %v8696 = vpack.c.b16 %v8655, %v8654
    %v8697 = vpack.c.b16 %v8657, %v8656
    %v8698 = vpack.c.b16 %v8659, %v8658
    %v8699 = vpack.c.b16 %v8661, %v8660
    %v8700 = vpack.c.b16 %v8663, %v8662
    %v8701 = vpack.c.b16 %v8665, %v8664
    %v8702 = vpack.c.b16 %v8667, %v8666
    %v8703 = vpack.c.b16 %v8669, %v8668
    %v8704 = vpack.c.b16 %v8671, %v8670
    %v8705 = vpack.c.b16 %v8673, %v8672
    %v8754 = vunpack.c.l.b16 %v8594
    %v8755 = vunpack.c.l.b16 %v8595
    %v8756 = vunpack.c.l.b16 %v8596
    %v8757 = vunpack.c.l.b16 %v8597
    %v8758 = vunpack.c.l.b16 %v8598
    %v8759 = vunpack.c.l.b16 %v8599
    %v8760 = vunpack.c.l.b16 %v8600
    %v8761 = vunpack.c.l.b16 %v8601
    %v8762 = vunpack.c.l.b16 %v8602
    %v8763 = vunpack.c.l.b16 %v8603
    %v8764 = vunpack.c.l.b16 %v8604
    %v8765 = vunpack.c.l.b16 %v8605
    %v8766 = vunpack.c.l.b16 %v8606
    %v8767 = vunpack.c.l.b16 %v8607
    %v8768 = vunpack.c.l.b16 %v8608
    %v8769 = vunpack.c.l.b16 %v8609
    %v8770 = vpack.c.b16 %v8755, %v8754
    %v8771 = vpack.c.b16 %v8757, %v8756
    %v8772 = vpack.c.b16 %v8759, %v8758
    %v8773 = vpack.c.b16 %v8761, %v8760
    %v8774 = vpack.c.b16 %v8763, %v8762
    %v8775 = vpack.c.b16 %v8765, %v8764
    %v8776 = vpack.c.b16 %v8767, %v8766
    %v8777 = vpack.c.b16 %v8769, %v8768
    %8786 = vmatpush.bf16.msra.mxu0 %v8777
    %8787 = vmatpush.bf16.msra.mxu0 %v8776
    %8788 = vmatpush.bf16.msra.mxu0 %v8775
    %8789 = vmatpush.bf16.msra.mxu0 %v8774
    %8790 = vmatpush.bf16.msra.mxu0 %v8773
    %8791 = vmatpush.bf16.msra.mxu0 %v8772
    %8792 = vmatpush.bf16.msra.mxu0 %v8771
    %8793 = vmatpush.bf16.msra.mxu0 %v8770
    %8794 = vmatmul.bf16.gmra.mxu0 %v8674
    %v8795 = vpop.f32.mrf.mxu0
    %v8796 = vadd.f32 0.0, %v8795
    %v8797 = vpop.f32.mrf.mxu0
    %v8798 = vadd.f32 0.0, %v8797
    %8799 = vmatmul.bf16.gmra.mxu0 %v8675
    %v8800 = vpop.f32.mrf.mxu0
    %v8801 = vadd.f32 0.0, %v8800
    %v8802 = vpop.f32.mrf.mxu0
    %v8803 = vadd.f32 0.0, %v8802
    %8804 = vmatmul.bf16.gmra.mxu0 %v8676
    %v8805 = vpop.f32.mrf.mxu0
    %v8806 = vadd.f32 0.0, %v8805
    %v8807 = vpop.f32.mrf.mxu0
    %v8808 = vadd.f32 0.0, %v8807
    %8809 = vmatmul.bf16.gmra.mxu0 %v8677
    %v8810 = vpop.f32.mrf.mxu0
    %v8811 = vadd.f32 0.0, %v8810
    %v8812 = vpop.f32.mrf.mxu0
    %v8813 = vadd.f32 0.0, %v8812
    %8814 = vmatmul.bf16.gmra.mxu0 %v8678
    %v8815 = vpop.f32.mrf.mxu0
    %v8816 = vadd.f32 0.0, %v8815
    %v8817 = vpop.f32.mrf.mxu0
    %v8818 = vadd.f32 0.0, %v8817
    %8819 = vmatmul.bf16.gmra.mxu0 %v8679
    %v8820 = vpop.f32.mrf.mxu0
    %v8821 = vadd.f32 0.0, %v8820
    %v8822 = vpop.f32.mrf.mxu0
    %v8823 = vadd.f32 0.0, %v8822
    %8824 = vmatmul.bf16.gmra.mxu0 %v8680
    %v8825 = vpop.f32.mrf.mxu0
    %v8826 = vadd.f32 0.0, %v8825
    %v8827 = vpop.f32.mrf.mxu0
    %v8828 = vadd.f32 0.0, %v8827
    %8829 = vmatmul.bf16.gmra.mxu0 %v8681
    %v8830 = vpop.f32.mrf.mxu0
    %v8831 = vadd.f32 0.0, %v8830
    %v8832 = vpop.f32.mrf.mxu0
    %v8833 = vadd.f32 0.0, %v8832
    %8834 = vmatmul.bf16.gmra.mxu0 %v8682
    %v8835 = vpop.f32.mrf.mxu0
    %v8836 = vadd.f32 0.0, %v8835
    %v8837 = vpop.f32.mrf.mxu0
    %v8838 = vadd.f32 0.0, %v8837
    %8839 = vmatmul.bf16.gmra.mxu0 %v8683
    %v8840 = vpop.f32.mrf.mxu0
    %v8841 = vadd.f32 0.0, %v8840
    %v8842 = vpop.f32.mrf.mxu0
    %v8843 = vadd.f32 0.0, %v8842
    %8844 = vmatmul.bf16.gmra.mxu0 %v8684
    %v8845 = vpop.f32.mrf.mxu0
    %v8846 = vadd.f32 0.0, %v8845
    %v8847 = vpop.f32.mrf.mxu0
    %v8848 = vadd.f32 0.0, %v8847
    %8849 = vmatmul.bf16.gmra.mxu0 %v8685
    %v8850 = vpop.f32.mrf.mxu0
    %v8851 = vadd.f32 0.0, %v8850
    %v8852 = vpop.f32.mrf.mxu0
    %v8853 = vadd.f32 0.0, %v8852
    %8854 = vmatmul.bf16.gmra.mxu0 %v8686
    %v8855 = vpop.f32.mrf.mxu0
    %v8856 = vadd.f32 0.0, %v8855
    %v8857 = vpop.f32.mrf.mxu0
    %v8858 = vadd.f32 0.0, %v8857
    %8859 = vmatmul.bf16.gmra.mxu0 %v8687
    %v8860 = vpop.f32.mrf.mxu0
    %v8861 = vadd.f32 0.0, %v8860
    %v8862 = vpop.f32.mrf.mxu0
    %v8863 = vadd.f32 0.0, %v8862
    %8864 = vmatmul.bf16.gmra.mxu0 %v8688
    %v8865 = vpop.f32.mrf.mxu0
    %v8866 = vadd.f32 0.0, %v8865
    %v8867 = vpop.f32.mrf.mxu0
    %v8868 = vadd.f32 0.0, %v8867
    %8869 = vmatmul.bf16.gmra.mxu0 %v8689
    %v8870 = vpop.f32.mrf.mxu0
    %v8871 = vadd.f32 0.0, %v8870
    %v8872 = vpop.f32.mrf.mxu0
    %v8873 = vadd.f32 0.0, %v8872
    %8874 = vmatmul.bf16.gmra.mxu0 %v8690
    %v8875 = vpop.f32.mrf.mxu0
    %v8876 = vadd.f32 0.0, %v8875
    %v8877 = vpop.f32.mrf.mxu0
    %v8878 = vadd.f32 0.0, %v8877
    %8879 = vmatmul.bf16.gmra.mxu0 %v8691
    %v8880 = vpop.f32.mrf.mxu0
    %v8881 = vadd.f32 0.0, %v8880
    %v8882 = vpop.f32.mrf.mxu0
    %v8883 = vadd.f32 0.0, %v8882
    %8884 = vmatmul.bf16.gmra.mxu0 %v8692
    %v8885 = vpop.f32.mrf.mxu0
    %v8886 = vadd.f32 0.0, %v8885
    %v8887 = vpop.f32.mrf.mxu0
    %v8888 = vadd.f32 0.0, %v8887
    %8889 = vmatmul.bf16.gmra.mxu0 %v8693
    %v8890 = vpop.f32.mrf.mxu0
    %v8891 = vadd.f32 0.0, %v8890
    %v8892 = vpop.f32.mrf.mxu0
    %v8893 = vadd.f32 0.0, %v8892
    %8894 = vmatmul.bf16.gmra.mxu0 %v8694
    %v8895 = vpop.f32.mrf.mxu0
    %v8896 = vadd.f32 0.0, %v8895
    %v8897 = vpop.f32.mrf.mxu0
    %v8898 = vadd.f32 0.0, %v8897
    %8899 = vmatmul.bf16.gmra.mxu0 %v8695
    %v8900 = vpop.f32.mrf.mxu0
    %v8901 = vadd.f32 0.0, %v8900
    %v8902 = vpop.f32.mrf.mxu0
    %v8903 = vadd.f32 0.0, %v8902
    %8904 = vmatmul.bf16.gmra.mxu0 %v8696
    %v8905 = vpop.f32.mrf.mxu0
    %v8906 = vadd.f32 0.0, %v8905
    %v8907 = vpop.f32.mrf.mxu0
    %v8908 = vadd.f32 0.0, %v8907
    %8909 = vmatmul.bf16.gmra.mxu0 %v8697
    %v8910 = vpop.f32.mrf.mxu0
    %v8911 = vadd.f32 0.0, %v8910
    %v8912 = vpop.f32.mrf.mxu0
    %v8913 = vadd.f32 0.0, %v8912
    %8914 = vmatmul.bf16.gmra.mxu0 %v8698
    %v8915 = vpop.f32.mrf.mxu0
    %v8916 = vadd.f32 0.0, %v8915
    %v8917 = vpop.f32.mrf.mxu0
    %v8918 = vadd.f32 0.0, %v8917
    %8919 = vmatmul.bf16.gmra.mxu0 %v8699
    %v8920 = vpop.f32.mrf.mxu0
    %v8921 = vadd.f32 0.0, %v8920
    %v8922 = vpop.f32.mrf.mxu0
    %v8923 = vadd.f32 0.0, %v8922
    %8924 = vmatmul.bf16.gmra.mxu0 %v8700
    %v8925 = vpop.f32.mrf.mxu0
    %v8926 = vadd.f32 0.0, %v8925
    %v8927 = vpop.f32.mrf.mxu0
    %v8928 = vadd.f32 0.0, %v8927
    %8929 = vmatmul.bf16.gmra.mxu0 %v8701
    %v8930 = vpop.f32.mrf.mxu0
    %v8931 = vadd.f32 0.0, %v8930
    %v8932 = vpop.f32.mrf.mxu0
    %v8933 = vadd.f32 0.0, %v8932
    %8934 = vmatmul.bf16.gmra.mxu0 %v8702
    %v8935 = vpop.f32.mrf.mxu0
    %v8936 = vadd.f32 0.0, %v8935
    %v8937 = vpop.f32.mrf.mxu0
    %v8938 = vadd.f32 0.0, %v8937
    %8939 = vmatmul.bf16.gmra.mxu0 %v8703
    %v8940 = vpop.f32.mrf.mxu0
    %v8941 = vadd.f32 0.0, %v8940
    %v8942 = vpop.f32.mrf.mxu0
    %v8943 = vadd.f32 0.0, %v8942
    %8944 = vmatmul.bf16.gmra.mxu0 %v8704
    %v8945 = vpop.f32.mrf.mxu0
    %v8946 = vadd.f32 0.0, %v8945
    %v8947 = vpop.f32.mrf.mxu0
    %v8948 = vadd.f32 0.0, %v8947
    %8949 = vmatmul.bf16.gmra.mxu0 %v8705
    %v8950 = vpop.f32.mrf.mxu0
    %v8951 = vadd.f32 0.0, %v8950
    %v8952 = vpop.f32.mrf.mxu0
    %v8953 = vadd.f32 0.0, %v8952
    %8954 = vdwg.mxu0
    %v8955 = vadd.f32 %v7665, %v8796
    %v8956 = vadd.f32 %v7666, %v8798
    %v8957 = vadd.f32 %v7667, %v8801
    %v8958 = vadd.f32 %v7668, %v8803
    %v8959 = vadd.f32 %v7669, %v8806
    %v8960 = vadd.f32 %v7670, %v8808
    %v8961 = vadd.f32 %v7671, %v8811
    %v8962 = vadd.f32 %v7672, %v8813
    %v8963 = vadd.f32 %v7673, %v8816
    %v8964 = vadd.f32 %v7674, %v8818
    %v8965 = vadd.f32 %v7675, %v8821
    %v8966 = vadd.f32 %v7676, %v8823
    %v8967 = vadd.f32 %v7677, %v8826
    %v8968 = vadd.f32 %v7678, %v8828
    %v8969 = vadd.f32 %v7679, %v8831
    %v8970 = vadd.f32 %v7680, %v8833
    %v8971 = vadd.f32 %v7681, %v8836
    %v8972 = vadd.f32 %v7682, %v8838
    %v8973 = vadd.f32 %v7683, %v8841
    %v8974 = vadd.f32 %v7684, %v8843
    %v8975 = vadd.f32 %v7685, %v8846
    %v8976 = vadd.f32 %v7686, %v8848
    %v8977 = vadd.f32 %v7687, %v8851
    %v8978 = vadd.f32 %v7688, %v8853
    %v8979 = vadd.f32 %v7689, %v8856
    %v8980 = vadd.f32 %v7690, %v8858
    %v8981 = vadd.f32 %v7691, %v8861
    %v8982 = vadd.f32 %v7692, %v8863
    %v8983 = vadd.f32 %v7693, %v8866
    %v8984 = vadd.f32 %v7694, %v8868
    %v8985 = vadd.f32 %v7695, %v8871
    %v8986 = vadd.f32 %v7696, %v8873
    %v8987 = vadd.f32 %v7697, %v8876
    %v8988 = vadd.f32 %v7698, %v8878
    %v8989 = vadd.f32 %v7699, %v8881
    %v8990 = vadd.f32 %v7700, %v8883
    %v8991 = vadd.f32 %v7701, %v8886
    %v8992 = vadd.f32 %v7702, %v8888
    %v8993 = vadd.f32 %v7703, %v8891
    %v8994 = vadd.f32 %v7704, %v8893
    %v8995 = vadd.f32 %v7705, %v8896
    %v8996 = vadd.f32 %v7706, %v8898
    %v8997 = vadd.f32 %v7707, %v8901
    %v8998 = vadd.f32 %v7708, %v8903
    %v8999 = vadd.f32 %v7709, %v8906
    %v9000 = vadd.f32 %v7710, %v8908
    %v9001 = vadd.f32 %v7711, %v8911
    %v9002 = vadd.f32 %v7712, %v8913
    %v9003 = vadd.f32 %v7713, %v8916
    %v9004 = vadd.f32 %v7714, %v8918
    %v9005 = vadd.f32 %v7715, %v8921
    %v9006 = vadd.f32 %v7716, %v8923
    %v9007 = vadd.f32 %v7717, %v8926
    %v9008 = vadd.f32 %v7718, %v8928
    %v9009 = vadd.f32 %v7719, %v8931
    %v9010 = vadd.f32 %v7720, %v8933
    %v9011 = vadd.f32 %v7721, %v8936
    %v9012 = vadd.f32 %v7722, %v8938
    %v9013 = vadd.f32 %v7723, %v8941
    %v9014 = vadd.f32 %v7724, %v8943
    %v9015 = vadd.f32 %v7725, %v8946
    %v9016 = vadd.f32 %v7726, %v8948
    %v9017 = vadd.f32 %v7727, %v8951
    %v9018 = vadd.f32 %v7728, %v8953
    %v9019 = vld [vmem:[%s7174] sm:$0xe]
    %v9020 = vld [vmem:[%s7174 + $0xc] sm:$0xe]
    %v9021 = vld [vmem:[%s7174 + $0x18] sm:$0xe]
    %v9022 = vld [vmem:[%s7174 + $0x24] sm:$0xe]
    %v9023 = vld [vmem:[%s7174 + $0x30] sm:$0xe]
    %v9024 = vld [vmem:[%s7174 + $0x3c] sm:$0xe]
    %v9025 = vld [vmem:[%s7174 + $0x48] sm:$0xe]
    %v9026 = vld [vmem:[%s7174 + $0x54] sm:$0xe]
    %v9027 = vld [vmem:[%s7174 + $0x60] sm:$0xe]
    %v9028 = vld [vmem:[%s7174 + $0x6c] sm:$0xe]
    %v9029 = vld [vmem:[%s7174 + $0x78] sm:$0xe]
    %v9030 = vld [vmem:[%s7174 + $0x84] sm:$0xe]
    %v9031 = vld [vmem:[%s7174 + $0x90] sm:$0xe]
    %v9032 = vld [vmem:[%s7174 + $0x9c] sm:$0xe]
    %v9033 = vld [vmem:[%s7174 + $0xa8] sm:$0xe]
    %v9034 = vld [vmem:[%s7174 + $0xb4] sm:$0xe]
    %v9035 = vld [vmem:[%s7174 + $0xd8] sm:$0xe]
    %v9036 = vld [vmem:[%s7174 + $0xe4] sm:$0xe]
    %v9037 = vld [vmem:[%s7174 + $0xf0] sm:$0xe]
    %v9038 = vld [vmem:[%s7174 + $0xfc] sm:$0xe]
    %v9039 = vld [vmem:[%s7174 + $0x108] sm:$0xe]
    %v9040 = vld [vmem:[%s7174 + $0x114] sm:$0xe]
    %v9041 = vld [vmem:[%s7174 + $0x120] sm:$0xe]
    %v9042 = vld [vmem:[%s7174 + $0x12c] sm:$0xe]
    %v9043 = vld [vmem:[%s7174 + $0x138] sm:$0xe]
    %v9044 = vld [vmem:[%s7174 + $0x144] sm:$0xe]
    %v9045 = vld [vmem:[%s7174 + $0x150] sm:$0xe]
    %v9046 = vld [vmem:[%s7174 + $0x15c] sm:$0xe]
    %v9047 = vld [vmem:[%s7174 + $0x168] sm:$0xe]
    %v9048 = vld [vmem:[%s7174 + $0x174] sm:$0xe]
    %v9049 = vld [vmem:[%s7174 + $0x180] sm:$0xe]
    %v9050 = vld [vmem:[%s7174 + $0x18c] sm:$0xe]
    %v9147 = vrot.slane %v9019, 5
    %v9148 = vrot.slane %v9147, 4
    %v9149 = vrot.slane %v7730, 5
    %v9150 = vsel %vm3901, %v9148, %v9149
    %v9151 = vrot.slane %v9149, 4
    %v9152 = vrot.slane %v7731, 5
    %v9153 = vsel %vm3901, %v9151, %v9152
    %v9154 = vrot.slane %v9020, 5
    %v9155 = vrot.slane %v9154, 4
    %v9156 = vrot.slane %v7733, 5
    %v9157 = vsel %vm3901, %v9155, %v9156
    %v9158 = vrot.slane %v9156, 4
    %v9159 = vrot.slane %v7734, 5
    %v9160 = vsel %vm3901, %v9158, %v9159
    %v9161 = vrot.slane %v9021, 5
    %v9162 = vrot.slane %v9161, 4
    %v9163 = vrot.slane %v7736, 5
    %v9164 = vsel %vm3901, %v9162, %v9163
    %v9165 = vrot.slane %v9163, 4
    %v9166 = vrot.slane %v7737, 5
    %v9167 = vsel %vm3901, %v9165, %v9166
    %v9168 = vrot.slane %v9022, 5
    %v9169 = vrot.slane %v9168, 4
    %v9170 = vrot.slane %v7739, 5
    %v9171 = vsel %vm3901, %v9169, %v9170
    %v9172 = vrot.slane %v9170, 4
    %v9173 = vrot.slane %v7740, 5
    %v9174 = vsel %vm3901, %v9172, %v9173
    %v9175 = vrot.slane %v9023, 5
    %v9176 = vrot.slane %v9175, 4
    %v9177 = vrot.slane %v7742, 5
    %v9178 = vsel %vm3901, %v9176, %v9177
    %v9179 = vrot.slane %v9177, 4
    %v9180 = vrot.slane %v7743, 5
    %v9181 = vsel %vm3901, %v9179, %v9180
    %v9182 = vrot.slane %v9024, 5
    %v9183 = vrot.slane %v9182, 4
    %v9184 = vrot.slane %v7745, 5
    %v9185 = vsel %vm3901, %v9183, %v9184
    %v9186 = vrot.slane %v9184, 4
    %v9187 = vrot.slane %v7746, 5
    %v9188 = vsel %vm3901, %v9186, %v9187
    %v9189 = vrot.slane %v9025, 5
    %v9190 = vrot.slane %v9189, 4
    %v9191 = vrot.slane %v7748, 5
    %v9192 = vsel %vm3901, %v9190, %v9191
    %v9193 = vrot.slane %v9191, 4
    %v9194 = vrot.slane %v7749, 5
    %v9195 = vsel %vm3901, %v9193, %v9194
    %v9196 = vrot.slane %v9026, 5
    %v9197 = vrot.slane %v9196, 4
    %v9198 = vrot.slane %v7751, 5
    %v9199 = vsel %vm3901, %v9197, %v9198
    %v9200 = vrot.slane %v9198, 4
    %v9201 = vrot.slane %v7752, 5
    %v9202 = vsel %vm3901, %v9200, %v9201
    %v9203 = vrot.slane %v9027, 5
    %v9204 = vrot.slane %v9203, 4
    %v9205 = vrot.slane %v7754, 5
    %v9206 = vsel %vm3901, %v9204, %v9205
    %v9207 = vrot.slane %v9205, 4
    %v9208 = vrot.slane %v7755, 5
    %v9209 = vsel %vm3901, %v9207, %v9208
    %v9210 = vrot.slane %v9028, 5
    %v9211 = vrot.slane %v9210, 4
    %v9212 = vrot.slane %v7757, 5
    %v9213 = vsel %vm3901, %v9211, %v9212
    %v9214 = vrot.slane %v9212, 4
    %v9215 = vrot.slane %v7758, 5
    %v9216 = vsel %vm3901, %v9214, %v9215
    %v9217 = vrot.slane %v9029, 5
    %v9218 = vrot.slane %v9217, 4
    %v9219 = vrot.slane %v7760, 5
    %v9220 = vsel %vm3901, %v9218, %v9219
    %v9221 = vrot.slane %v9219, 4
    %v9222 = vrot.slane %v7761, 5
    %v9223 = vsel %vm3901, %v9221, %v9222
    %v9224 = vrot.slane %v9030, 5
    %v9225 = vrot.slane %v9224, 4
    %v9226 = vrot.slane %v7763, 5
    %v9227 = vsel %vm3901, %v9225, %v9226
    %v9228 = vrot.slane %v9226, 4
    %v9229 = vrot.slane %v7764, 5
    %v9230 = vsel %vm3901, %v9228, %v9229
    %v9231 = vrot.slane %v9031, 5
    %v9232 = vrot.slane %v9231, 4
    %v9233 = vrot.slane %v7766, 5
    %v9234 = vsel %vm3901, %v9232, %v9233
    %v9235 = vrot.slane %v9233, 4
    %v9236 = vrot.slane %v7767, 5
    %v9237 = vsel %vm3901, %v9235, %v9236
    %v9238 = vrot.slane %v9032, 5
    %v9239 = vrot.slane %v9238, 4
    %v9240 = vrot.slane %v7769, 5
    %v9241 = vsel %vm3901, %v9239, %v9240
    %v9242 = vrot.slane %v9240, 4
    %v9243 = vrot.slane %v7770, 5
    %v9244 = vsel %vm3901, %v9242, %v9243
    %v9245 = vrot.slane %v9033, 5
    %v9246 = vrot.slane %v9245, 4
    %v9247 = vrot.slane %v7772, 5
    %v9248 = vsel %vm3901, %v9246, %v9247
    %v9249 = vrot.slane %v9247, 4
    %v9250 = vrot.slane %v7773, 5
    %v9251 = vsel %vm3901, %v9249, %v9250
    %v9252 = vrot.slane %v9034, 5
    %v9253 = vrot.slane %v9252, 4
    %v9254 = vrot.slane %v7775, 5
    %v9255 = vsel %vm3901, %v9253, %v9254
    %v9256 = vrot.slane %v9254, 4
    %v9257 = vrot.slane %v7776, 5
    %v9258 = vsel %vm3901, %v9256, %v9257
    %v9259 = vrot.slane %v9035, 5
    %v9260 = vrot.slane %v9259, 4
    %v9261 = vrot.slane %v7778, 5
    %v9262 = vsel %vm3901, %v9260, %v9261
    %v9263 = vrot.slane %v9261, 4
    %v9264 = vrot.slane %v7779, 5
    %v9265 = vsel %vm3901, %v9263, %v9264
    %v9266 = vrot.slane %v9036, 5
    %v9267 = vrot.slane %v9266, 4
    %v9268 = vrot.slane %v7781, 5
    %v9269 = vsel %vm3901, %v9267, %v9268
    %v9270 = vrot.slane %v9268, 4
    %v9271 = vrot.slane %v7782, 5
    %v9272 = vsel %vm3901, %v9270, %v9271
    %v9273 = vrot.slane %v9037, 5
    %v9274 = vrot.slane %v9273, 4
    %v9275 = vrot.slane %v7784, 5
    %v9276 = vsel %vm3901, %v9274, %v9275
    %v9277 = vrot.slane %v9275, 4
    %v9278 = vrot.slane %v7785, 5
    %v9279 = vsel %vm3901, %v9277, %v9278
    %v9280 = vrot.slane %v9038, 5
    %v9281 = vrot.slane %v9280, 4
    %v9282 = vrot.slane %v7787, 5
    %v9283 = vsel %vm3901, %v9281, %v9282
    %v9284 = vrot.slane %v9282, 4
    %v9285 = vrot.slane %v7788, 5
    %v9286 = vsel %vm3901, %v9284, %v9285
    %v9287 = vrot.slane %v9039, 5
    %v9288 = vrot.slane %v9287, 4
    %v9289 = vrot.slane %v7790, 5
    %v9290 = vsel %vm3901, %v9288, %v9289
    %v9291 = vrot.slane %v9289, 4
    %v9292 = vrot.slane %v7791, 5
    %v9293 = vsel %vm3901, %v9291, %v9292
    %v9294 = vrot.slane %v9040, 5
    %v9295 = vrot.slane %v9294, 4
    %v9296 = vrot.slane %v7793, 5
    %v9297 = vsel %vm3901, %v9295, %v9296
    %v9298 = vrot.slane %v9296, 4
    %v9299 = vrot.slane %v7794, 5
    %v9300 = vsel %vm3901, %v9298, %v9299
    %v9301 = vrot.slane %v9041, 5
    %v9302 = vrot.slane %v9301, 4
    %v9303 = vrot.slane %v7796, 5
    %v9304 = vsel %vm3901, %v9302, %v9303
    %v9305 = vrot.slane %v9303, 4
    %v9306 = vrot.slane %v7797, 5
    %v9307 = vsel %vm3901, %v9305, %v9306
    %v9308 = vrot.slane %v9042, 5
    %v9309 = vrot.slane %v9308, 4
    %v9310 = vrot.slane %v7799, 5
    %v9311 = vsel %vm3901, %v9309, %v9310
    %v9312 = vrot.slane %v9310, 4
    %v9313 = vrot.slane %v7800, 5
    %v9314 = vsel %vm3901, %v9312, %v9313
    %v9315 = vrot.slane %v9043, 5
    %v9316 = vrot.slane %v9315, 4
    %v9317 = vrot.slane %v7802, 5
    %v9318 = vsel %vm3901, %v9316, %v9317
    %v9319 = vrot.slane %v9317, 4
    %v9320 = vrot.slane %v7803, 5
    %v9321 = vsel %vm3901, %v9319, %v9320
    %v9322 = vrot.slane %v9044, 5
    %v9323 = vrot.slane %v9322, 4
    %v9324 = vrot.slane %v7805, 5
    %v9325 = vsel %vm3901, %v9323, %v9324
    %v9326 = vrot.slane %v9324, 4
    %v9327 = vrot.slane %v7806, 5
    %v9328 = vsel %vm3901, %v9326, %v9327
    %v9329 = vrot.slane %v9045, 5
    %v9330 = vrot.slane %v9329, 4
    %v9331 = vrot.slane %v7808, 5
    %v9332 = vsel %vm3901, %v9330, %v9331
    %v9333 = vrot.slane %v9331, 4
    %v9334 = vrot.slane %v7809, 5
    %v9335 = vsel %vm3901, %v9333, %v9334
    %v9336 = vrot.slane %v9046, 5
    %v9337 = vrot.slane %v9336, 4
    %v9338 = vrot.slane %v7811, 5
    %v9339 = vsel %vm3901, %v9337, %v9338
    %v9340 = vrot.slane %v9338, 4
    %v9341 = vrot.slane %v7812, 5
    %v9342 = vsel %vm3901, %v9340, %v9341
    %v9343 = vrot.slane %v9047, 5
    %v9344 = vrot.slane %v9343, 4
    %v9345 = vrot.slane %v7814, 5
    %v9346 = vsel %vm3901, %v9344, %v9345
    %v9347 = vrot.slane %v9345, 4
    %v9348 = vrot.slane %v7815, 5
    %v9349 = vsel %vm3901, %v9347, %v9348
    %v9350 = vrot.slane %v9048, 5
    %v9351 = vrot.slane %v9350, 4
    %v9352 = vrot.slane %v7817, 5
    %v9353 = vsel %vm3901, %v9351, %v9352
    %v9354 = vrot.slane %v9352, 4
    %v9355 = vrot.slane %v7818, 5
    %v9356 = vsel %vm3901, %v9354, %v9355
    %v9357 = vrot.slane %v9049, 5
    %v9358 = vrot.slane %v9357, 4
    %v9359 = vrot.slane %v7820, 5
    %v9360 = vsel %vm3901, %v9358, %v9359
    %v9361 = vrot.slane %v9359, 4
    %v9362 = vrot.slane %v7821, 5
    %v9363 = vsel %vm3901, %v9361, %v9362
    %v9364 = vrot.slane %v9050, 5
    %v9365 = vrot.slane %v9364, 4
    %v9366 = vrot.slane %v7823, 5
    %v9367 = vsel %vm3901, %v9365, %v9366
    %v9368 = vrot.slane %v9366, 4
    %v9369 = vrot.slane %v7824, 5
    %v9370 = vsel %vm3901, %v9368, %v9369
    %s9371 = scalar_lea.vmem [#allocation8], 512
    %v9372 = vld [vmem:[%s9371] sm:$0xf]
    %v9373 = vld [vmem:[%s9371 + $0x4] sm:$0xf]
    %v9374 = vld [vmem:[%s9371 + $0x8] sm:$0xf]
    %v9375 = vld [vmem:[%s9371 + $0xc] sm:$0xf]
    %v9376 = vld [vmem:[%s9371 + $0x10] sm:$0xf]
    %v9377 = vld [vmem:[%s9371 + $0x14] sm:$0xf]
    %v9378 = vld [vmem:[%s9371 + $0x18] sm:$0xf]
    %v9379 = vld [vmem:[%s9371 + $0x1c] sm:$0xf]
    %v9380 = vld [vmem:[%s9371 + $0x20] sm:$0xf]
    %v9381 = vld [vmem:[%s9371 + $0x24] sm:$0xf]
    %v9382 = vld [vmem:[%s9371 + $0x28] sm:$0xf]
    %v9383 = vld [vmem:[%s9371 + $0x2c] sm:$0xf]
    %v9384 = vld [vmem:[%s9371 + $0x30] sm:$0xf]
    %v9385 = vld [vmem:[%s9371 + $0x34] sm:$0xf]
    %v9386 = vld [vmem:[%s9371 + $0x38] sm:$0xf]
    %v9387 = vld [vmem:[%s9371 + $0x3c] sm:$0xf]
    %v9388 = vunpack.c.l.b16 %v9150
    %v9389 = vunpack.c.l.b16 %v9153
    %v9390 = vunpack.c.l.b16 %v9157
    %v9391 = vunpack.c.l.b16 %v9160
    %v9392 = vunpack.c.l.b16 %v9164
    %v9393 = vunpack.c.l.b16 %v9167
    %v9394 = vunpack.c.l.b16 %v9171
    %v9395 = vunpack.c.l.b16 %v9174
    %v9396 = vunpack.c.l.b16 %v9178
    %v9397 = vunpack.c.l.b16 %v9181
    %v9398 = vunpack.c.l.b16 %v9185
    %v9399 = vunpack.c.l.b16 %v9188
    %v9400 = vunpack.c.l.b16 %v9192
    %v9401 = vunpack.c.l.b16 %v9195
    %v9402 = vunpack.c.l.b16 %v9199
    %v9403 = vunpack.c.l.b16 %v9202
    %v9404 = vunpack.c.l.b16 %v9206
    %v9405 = vunpack.c.l.b16 %v9209
    %v9406 = vunpack.c.l.b16 %v9213
    %v9407 = vunpack.c.l.b16 %v9216
    %v9408 = vunpack.c.l.b16 %v9220
    %v9409 = vunpack.c.l.b16 %v9223
    %v9410 = vunpack.c.l.b16 %v9227
    %v9411 = vunpack.c.l.b16 %v9230
    %v9412 = vunpack.c.l.b16 %v9234
    %v9413 = vunpack.c.l.b16 %v9237
    %v9414 = vunpack.c.l.b16 %v9241
    %v9415 = vunpack.c.l.b16 %v9244
    %v9416 = vunpack.c.l.b16 %v9248
    %v9417 = vunpack.c.l.b16 %v9251
    %v9418 = vunpack.c.l.b16 %v9255
    %v9419 = vunpack.c.l.b16 %v9258
    %v9420 = vunpack.c.l.b16 %v9262
    %v9421 = vunpack.c.l.b16 %v9265
    %v9422 = vunpack.c.l.b16 %v9269
    %v9423 = vunpack.c.l.b16 %v9272
    %v9424 = vunpack.c.l.b16 %v9276
    %v9425 = vunpack.c.l.b16 %v9279
    %v9426 = vunpack.c.l.b16 %v9283
    %v9427 = vunpack.c.l.b16 %v9286
    %v9428 = vunpack.c.l.b16 %v9290
    %v9429 = vunpack.c.l.b16 %v9293
    %v9430 = vunpack.c.l.b16 %v9297
    %v9431 = vunpack.c.l.b16 %v9300
    %v9432 = vunpack.c.l.b16 %v9304
    %v9433 = vunpack.c.l.b16 %v9307
    %v9434 = vunpack.c.l.b16 %v9311
    %v9435 = vunpack.c.l.b16 %v9314
    %v9436 = vunpack.c.l.b16 %v9318
    %v9437 = vunpack.c.l.b16 %v9321
    %v9438 = vunpack.c.l.b16 %v9325
    %v9439 = vunpack.c.l.b16 %v9328
    %v9440 = vunpack.c.l.b16 %v9332
    %v9441 = vunpack.c.l.b16 %v9335
    %v9442 = vunpack.c.l.b16 %v9339
    %v9443 = vunpack.c.l.b16 %v9342
    %v9444 = vunpack.c.l.b16 %v9346
    %v9445 = vunpack.c.l.b16 %v9349
    %v9446 = vunpack.c.l.b16 %v9353
    %v9447 = vunpack.c.l.b16 %v9356
    %v9448 = vunpack.c.l.b16 %v9360
    %v9449 = vunpack.c.l.b16 %v9363
    %v9450 = vunpack.c.l.b16 %v9367
    %v9451 = vunpack.c.l.b16 %v9370
    %v9452 = vpack.c.b16 %v9389, %v9388
    %v9453 = vpack.c.b16 %v9391, %v9390
    %v9454 = vpack.c.b16 %v9393, %v9392
    %v9455 = vpack.c.b16 %v9395, %v9394
    %v9456 = vpack.c.b16 %v9397, %v9396
    %v9457 = vpack.c.b16 %v9399, %v9398
    %v9458 = vpack.c.b16 %v9401, %v9400
    %v9459 = vpack.c.b16 %v9403, %v9402
    %v9460 = vpack.c.b16 %v9405, %v9404
    %v9461 = vpack.c.b16 %v9407, %v9406
    %v9462 = vpack.c.b16 %v9409, %v9408
    %v9463 = vpack.c.b16 %v9411, %v9410
    %v9464 = vpack.c.b16 %v9413, %v9412
    %v9465 = vpack.c.b16 %v9415, %v9414
    %v9466 = vpack.c.b16 %v9417, %v9416
    %v9467 = vpack.c.b16 %v9419, %v9418
    %v9468 = vpack.c.b16 %v9421, %v9420
    %v9469 = vpack.c.b16 %v9423, %v9422
    %v9470 = vpack.c.b16 %v9425, %v9424
    %v9471 = vpack.c.b16 %v9427, %v9426
    %v9472 = vpack.c.b16 %v9429, %v9428
    %v9473 = vpack.c.b16 %v9431, %v9430
    %v9474 = vpack.c.b16 %v9433, %v9432
    %v9475 = vpack.c.b16 %v9435, %v9434
    %v9476 = vpack.c.b16 %v9437, %v9436
    %v9477 = vpack.c.b16 %v9439, %v9438
    %v9478 = vpack.c.b16 %v9441, %v9440
    %v9479 = vpack.c.b16 %v9443, %v9442
    %v9480 = vpack.c.b16 %v9445, %v9444
    %v9481 = vpack.c.b16 %v9447, %v9446
    %v9482 = vpack.c.b16 %v9449, %v9448
    %v9483 = vpack.c.b16 %v9451, %v9450
    %v9532 = vunpack.c.l.b16 %v9372
    %v9533 = vunpack.c.l.b16 %v9373
    %v9534 = vunpack.c.l.b16 %v9374
    %v9535 = vunpack.c.l.b16 %v9375
    %v9536 = vunpack.c.l.b16 %v9376
    %v9537 = vunpack.c.l.b16 %v9377
    %v9538 = vunpack.c.l.b16 %v9378
    %v9539 = vunpack.c.l.b16 %v9379
    %v9540 = vunpack.c.l.b16 %v9380
    %v9541 = vunpack.c.l.b16 %v9381
    %v9542 = vunpack.c.l.b16 %v9382
    %v9543 = vunpack.c.l.b16 %v9383
    %v9544 = vunpack.c.l.b16 %v9384
    %v9545 = vunpack.c.l.b16 %v9385
    %v9546 = vunpack.c.l.b16 %v9386
    %v9547 = vunpack.c.l.b16 %v9387
    %v9548 = vpack.c.b16 %v9533, %v9532
    %v9549 = vpack.c.b16 %v9535, %v9534
    %v9550 = vpack.c.b16 %v9537, %v9536
    %v9551 = vpack.c.b16 %v9539, %v9538
    %v9552 = vpack.c.b16 %v9541, %v9540
    %v9553 = vpack.c.b16 %v9543, %v9542
    %v9554 = vpack.c.b16 %v9545, %v9544
    %v9555 = vpack.c.b16 %v9547, %v9546
    %9564 = vmatpush.bf16.msra.mxu0 %v9555
    %9565 = vmatpush.bf16.msra.mxu0 %v9554
    %9566 = vmatpush.bf16.msra.mxu0 %v9553
    %9567 = vmatpush.bf16.msra.mxu0 %v9552
    %9568 = vmatpush.bf16.msra.mxu0 %v9551
    %9569 = vmatpush.bf16.msra.mxu0 %v9550
    %9570 = vmatpush.bf16.msra.mxu0 %v9549
    %9571 = vmatpush.bf16.msra.mxu0 %v9548
    %9572 = vmatmul.bf16.gmra.mxu0 %v9452
    %v9573 = vpop.f32.mrf.mxu0
    %v9574 = vadd.f32 0.0, %v9573
    %v9575 = vpop.f32.mrf.mxu0
    %v9576 = vadd.f32 0.0, %v9575
    %9577 = vmatmul.bf16.gmra.mxu0 %v9453
    %v9578 = vpop.f32.mrf.mxu0
    %v9579 = vadd.f32 0.0, %v9578
    %v9580 = vpop.f32.mrf.mxu0
    %v9581 = vadd.f32 0.0, %v9580
    %9582 = vmatmul.bf16.gmra.mxu0 %v9454
    %v9583 = vpop.f32.mrf.mxu0
    %v9584 = vadd.f32 0.0, %v9583
    %v9585 = vpop.f32.mrf.mxu0
    %v9586 = vadd.f32 0.0, %v9585
    %9587 = vmatmul.bf16.gmra.mxu0 %v9455
    %v9588 = vpop.f32.mrf.mxu0
    %v9589 = vadd.f32 0.0, %v9588
    %v9590 = vpop.f32.mrf.mxu0
    %v9591 = vadd.f32 0.0, %v9590
    %9592 = vmatmul.bf16.gmra.mxu0 %v9456
    %v9593 = vpop.f32.mrf.mxu0
    %v9594 = vadd.f32 0.0, %v9593
    %v9595 = vpop.f32.mrf.mxu0
    %v9596 = vadd.f32 0.0, %v9595
    %9597 = vmatmul.bf16.gmra.mxu0 %v9457
    %v9598 = vpop.f32.mrf.mxu0
    %v9599 = vadd.f32 0.0, %v9598
    %v9600 = vpop.f32.mrf.mxu0
    %v9601 = vadd.f32 0.0, %v9600
    %9602 = vmatmul.bf16.gmra.mxu0 %v9458
    %v9603 = vpop.f32.mrf.mxu0
    %v9604 = vadd.f32 0.0, %v9603
    %v9605 = vpop.f32.mrf.mxu0
    %v9606 = vadd.f32 0.0, %v9605
    %9607 = vmatmul.bf16.gmra.mxu0 %v9459
    %v9608 = vpop.f32.mrf.mxu0
    %v9609 = vadd.f32 0.0, %v9608
    %v9610 = vpop.f32.mrf.mxu0
    %v9611 = vadd.f32 0.0, %v9610
    %9612 = vmatmul.bf16.gmra.mxu0 %v9460
    %v9613 = vpop.f32.mrf.mxu0
    %v9614 = vadd.f32 0.0, %v9613
    %v9615 = vpop.f32.mrf.mxu0
    %v9616 = vadd.f32 0.0, %v9615
    %9617 = vmatmul.bf16.gmra.mxu0 %v9461
    %v9618 = vpop.f32.mrf.mxu0
    %v9619 = vadd.f32 0.0, %v9618
    %v9620 = vpop.f32.mrf.mxu0
    %v9621 = vadd.f32 0.0, %v9620
    %9622 = vmatmul.bf16.gmra.mxu0 %v9462
    %v9623 = vpop.f32.mrf.mxu0
    %v9624 = vadd.f32 0.0, %v9623
    %v9625 = vpop.f32.mrf.mxu0
    %v9626 = vadd.f32 0.0, %v9625
    %9627 = vmatmul.bf16.gmra.mxu0 %v9463
    %v9628 = vpop.f32.mrf.mxu0
    %v9629 = vadd.f32 0.0, %v9628
    %v9630 = vpop.f32.mrf.mxu0
    %v9631 = vadd.f32 0.0, %v9630
    %9632 = vmatmul.bf16.gmra.mxu0 %v9464
    %v9633 = vpop.f32.mrf.mxu0
    %v9634 = vadd.f32 0.0, %v9633
    %v9635 = vpop.f32.mrf.mxu0
    %v9636 = vadd.f32 0.0, %v9635
    %9637 = vmatmul.bf16.gmra.mxu0 %v9465
    %v9638 = vpop.f32.mrf.mxu0
    %v9639 = vadd.f32 0.0, %v9638
    %v9640 = vpop.f32.mrf.mxu0
    %v9641 = vadd.f32 0.0, %v9640
    %9642 = vmatmul.bf16.gmra.mxu0 %v9466
    %v9643 = vpop.f32.mrf.mxu0
    %v9644 = vadd.f32 0.0, %v9643
    %v9645 = vpop.f32.mrf.mxu0
    %v9646 = vadd.f32 0.0, %v9645
    %9647 = vmatmul.bf16.gmra.mxu0 %v9467
    %v9648 = vpop.f32.mrf.mxu0
    %v9649 = vadd.f32 0.0, %v9648
    %v9650 = vpop.f32.mrf.mxu0
    %v9651 = vadd.f32 0.0, %v9650
    %9652 = vmatmul.bf16.gmra.mxu0 %v9468
    %v9653 = vpop.f32.mrf.mxu0
    %v9654 = vadd.f32 0.0, %v9653
    %v9655 = vpop.f32.mrf.mxu0
    %v9656 = vadd.f32 0.0, %v9655
    %9657 = vmatmul.bf16.gmra.mxu0 %v9469
    %v9658 = vpop.f32.mrf.mxu0
    %v9659 = vadd.f32 0.0, %v9658
    %v9660 = vpop.f32.mrf.mxu0
    %v9661 = vadd.f32 0.0, %v9660
    %9662 = vmatmul.bf16.gmra.mxu0 %v9470
    %v9663 = vpop.f32.mrf.mxu0
    %v9664 = vadd.f32 0.0, %v9663
    %v9665 = vpop.f32.mrf.mxu0
    %v9666 = vadd.f32 0.0, %v9665
    %9667 = vmatmul.bf16.gmra.mxu0 %v9471
    %v9668 = vpop.f32.mrf.mxu0
    %v9669 = vadd.f32 0.0, %v9668
    %v9670 = vpop.f32.mrf.mxu0
    %v9671 = vadd.f32 0.0, %v9670
    %9672 = vmatmul.bf16.gmra.mxu0 %v9472
    %v9673 = vpop.f32.mrf.mxu0
    %v9674 = vadd.f32 0.0, %v9673
    %v9675 = vpop.f32.mrf.mxu0
    %v9676 = vadd.f32 0.0, %v9675
    %9677 = vmatmul.bf16.gmra.mxu0 %v9473
    %v9678 = vpop.f32.mrf.mxu0
    %v9679 = vadd.f32 0.0, %v9678
    %v9680 = vpop.f32.mrf.mxu0
    %v9681 = vadd.f32 0.0, %v9680
    %9682 = vmatmul.bf16.gmra.mxu0 %v9474
    %v9683 = vpop.f32.mrf.mxu0
    %v9684 = vadd.f32 0.0, %v9683
    %v9685 = vpop.f32.mrf.mxu0
    %v9686 = vadd.f32 0.0, %v9685
    %9687 = vmatmul.bf16.gmra.mxu0 %v9475
    %v9688 = vpop.f32.mrf.mxu0
    %v9689 = vadd.f32 0.0, %v9688
    %v9690 = vpop.f32.mrf.mxu0
    %v9691 = vadd.f32 0.0, %v9690
    %9692 = vmatmul.bf16.gmra.mxu0 %v9476
    %v9693 = vpop.f32.mrf.mxu0
    %v9694 = vadd.f32 0.0, %v9693
    %v9695 = vpop.f32.mrf.mxu0
    %v9696 = vadd.f32 0.0, %v9695
    %9697 = vmatmul.bf16.gmra.mxu0 %v9477
    %v9698 = vpop.f32.mrf.mxu0
    %v9699 = vadd.f32 0.0, %v9698
    %v9700 = vpop.f32.mrf.mxu0
    %v9701 = vadd.f32 0.0, %v9700
    %9702 = vmatmul.bf16.gmra.mxu0 %v9478
    %v9703 = vpop.f32.mrf.mxu0
    %v9704 = vadd.f32 0.0, %v9703
    %v9705 = vpop.f32.mrf.mxu0
    %v9706 = vadd.f32 0.0, %v9705
    %9707 = vmatmul.bf16.gmra.mxu0 %v9479
    %v9708 = vpop.f32.mrf.mxu0
    %v9709 = vadd.f32 0.0, %v9708
    %v9710 = vpop.f32.mrf.mxu0
    %v9711 = vadd.f32 0.0, %v9710
    %9712 = vmatmul.bf16.gmra.mxu0 %v9480
    %v9713 = vpop.f32.mrf.mxu0
    %v9714 = vadd.f32 0.0, %v9713
    %v9715 = vpop.f32.mrf.mxu0
    %v9716 = vadd.f32 0.0, %v9715
    %9717 = vmatmul.bf16.gmra.mxu0 %v9481
    %v9718 = vpop.f32.mrf.mxu0
    %v9719 = vadd.f32 0.0, %v9718
    %v9720 = vpop.f32.mrf.mxu0
    %v9721 = vadd.f32 0.0, %v9720
    %9722 = vmatmul.bf16.gmra.mxu0 %v9482
    %v9723 = vpop.f32.mrf.mxu0
    %v9724 = vadd.f32 0.0, %v9723
    %v9725 = vpop.f32.mrf.mxu0
    %v9726 = vadd.f32 0.0, %v9725
    %9727 = vmatmul.bf16.gmra.mxu0 %v9483
    %v9728 = vpop.f32.mrf.mxu0
    %v9729 = vadd.f32 0.0, %v9728
    %v9730 = vpop.f32.mrf.mxu0
    %v9731 = vadd.f32 0.0, %v9730
    %9732 = vdwg.mxu0
    %v9733 = vadd.f32 %v8955, %v9574
    %v9734 = vadd.f32 %v8956, %v9576
    %v9735 = vadd.f32 %v8957, %v9579
    %v9736 = vadd.f32 %v8958, %v9581
    %v9737 = vadd.f32 %v8959, %v9584
    %v9738 = vadd.f32 %v8960, %v9586
    %v9739 = vadd.f32 %v8961, %v9589
    %v9740 = vadd.f32 %v8962, %v9591
    %v9741 = vadd.f32 %v8963, %v9594
    %v9742 = vadd.f32 %v8964, %v9596
    %v9743 = vadd.f32 %v8965, %v9599
    %v9744 = vadd.f32 %v8966, %v9601
    %v9745 = vadd.f32 %v8967, %v9604
    %v9746 = vadd.f32 %v8968, %v9606
    %v9747 = vadd.f32 %v8969, %v9609
    %v9748 = vadd.f32 %v8970, %v9611
    %v9749 = vadd.f32 %v8971, %v9614
    %v9750 = vadd.f32 %v8972, %v9616
    %v9751 = vadd.f32 %v8973, %v9619
    %v9752 = vadd.f32 %v8974, %v9621
    %v9753 = vadd.f32 %v8975, %v9624
    %v9754 = vadd.f32 %v8976, %v9626
    %v9755 = vadd.f32 %v8977, %v9629
    %v9756 = vadd.f32 %v8978, %v9631
    %v9757 = vadd.f32 %v8979, %v9634
    %v9758 = vadd.f32 %v8980, %v9636
    %v9759 = vadd.f32 %v8981, %v9639
    %v9760 = vadd.f32 %v8982, %v9641
    %v9761 = vadd.f32 %v8983, %v9644
    %v9762 = vadd.f32 %v8984, %v9646
    %v9763 = vadd.f32 %v8985, %v9649
    %v9764 = vadd.f32 %v8986, %v9651
    %v9765 = vadd.f32 %v8987, %v9654
    %v9766 = vadd.f32 %v8988, %v9656
    %v9767 = vadd.f32 %v8989, %v9659
    %v9768 = vadd.f32 %v8990, %v9661
    %v9769 = vadd.f32 %v8991, %v9664
    %v9770 = vadd.f32 %v8992, %v9666
    %v9771 = vadd.f32 %v8993, %v9669
    %v9772 = vadd.f32 %v8994, %v9671
    %v9773 = vadd.f32 %v8995, %v9674
    %v9774 = vadd.f32 %v8996, %v9676
    %v9775 = vadd.f32 %v8997, %v9679
    %v9776 = vadd.f32 %v8998, %v9681
    %v9777 = vadd.f32 %v8999, %v9684
    %v9778 = vadd.f32 %v9000, %v9686
    %v9779 = vadd.f32 %v9001, %v9689
    %v9780 = vadd.f32 %v9002, %v9691
    %v9781 = vadd.f32 %v9003, %v9694
    %v9782 = vadd.f32 %v9004, %v9696
    %v9783 = vadd.f32 %v9005, %v9699
    %v9784 = vadd.f32 %v9006, %v9701
    %v9785 = vadd.f32 %v9007, %v9704
    %v9786 = vadd.f32 %v9008, %v9706
    %v9787 = vadd.f32 %v9009, %v9709
    %v9788 = vadd.f32 %v9010, %v9711
    %v9789 = vadd.f32 %v9011, %v9714
    %v9790 = vadd.f32 %v9012, %v9716
    %v9791 = vadd.f32 %v9013, %v9719
    %v9792 = vadd.f32 %v9014, %v9721
    %v9793 = vadd.f32 %v9015, %v9724
    %v9794 = vadd.f32 %v9016, %v9726
    %v9795 = vadd.f32 %v9017, %v9729
    %v9796 = vadd.f32 %v9018, %v9731
    %v9797 = vld [vmem:[%s6] sm:$0x1]
    %v9798 = vld [vmem:[%s7] sm:$0x1]
    %v9799 = vadd.f32 %v9733, %v9734
    %v9800 = vadd.f32 %v9799, %v9735
    %v9801 = vadd.f32 %v9800, %v9736
    %v9802 = vadd.f32 %v9801, %v9737
    %v9803 = vadd.f32 %v9802, %v9738
    %v9804 = vadd.f32 %v9803, %v9739
    %v9805 = vadd.f32 %v9804, %v9740
    %v9806 = vadd.f32 %v9805, %v9741
    %v9807 = vadd.f32 %v9806, %v9742
    %v9808 = vadd.f32 %v9807, %v9743
    %v9809 = vadd.f32 %v9808, %v9744
    %v9810 = vadd.f32 %v9809, %v9745
    %v9811 = vadd.f32 %v9810, %v9746
    %v9812 = vadd.f32 %v9811, %v9747
    %v9813 = vadd.f32 %v9812, %v9748
    %v9814 = vadd.f32 %v9813, %v9749
    %v9815 = vadd.f32 %v9814, %v9750
    %v9816 = vadd.f32 %v9815, %v9751
    %v9817 = vadd.f32 %v9816, %v9752
    %v9818 = vadd.f32 %v9817, %v9753
    %v9819 = vadd.f32 %v9818, %v9754
    %v9820 = vadd.f32 %v9819, %v9755
    %v9821 = vadd.f32 %v9820, %v9756
    %v9822 = vadd.f32 %v9821, %v9757
    %v9823 = vadd.f32 %v9822, %v9758
    %v9824 = vadd.f32 %v9823, %v9759
    %v9825 = vadd.f32 %v9824, %v9760
    %v9826 = vadd.f32 %v9825, %v9761
    %v9827 = vadd.f32 %v9826, %v9762
    %v9828 = vadd.f32 %v9827, %v9763
    %v9829 = vadd.f32 %v9828, %v9764
    %v9830 = vadd.f32 %v9829, %v9765
    %v9831 = vadd.f32 %v9830, %v9766
    %v9832 = vadd.f32 %v9831, %v9767
    %v9833 = vadd.f32 %v9832, %v9768
    %v9834 = vadd.f32 %v9833, %v9769
    %v9835 = vadd.f32 %v9834, %v9770
    %v9836 = vadd.f32 %v9835, %v9771
    %v9837 = vadd.f32 %v9836, %v9772
    %v9838 = vadd.f32 %v9837, %v9773
    %v9839 = vadd.f32 %v9838, %v9774
    %v9840 = vadd.f32 %v9839, %v9775
    %v9841 = vadd.f32 %v9840, %v9776
    %v9842 = vadd.f32 %v9841, %v9777
    %v9843 = vadd.f32 %v9842, %v9778
    %v9844 = vadd.f32 %v9843, %v9779
    %v9845 = vadd.f32 %v9844, %v9780
    %v9846 = vadd.f32 %v9845, %v9781
    %v9847 = vadd.f32 %v9846, %v9782
    %v9848 = vadd.f32 %v9847, %v9783
    %v9849 = vadd.f32 %v9848, %v9784
    %v9850 = vadd.f32 %v9849, %v9785
    %v9851 = vadd.f32 %v9850, %v9786
    %v9852 = vadd.f32 %v9851, %v9787
    %v9853 = vadd.f32 %v9852, %v9788
    %v9854 = vadd.f32 %v9853, %v9789
    %v9855 = vadd.f32 %v9854, %v9790
    %v9856 = vadd.f32 %v9855, %v9791
    %v9857 = vadd.f32 %v9856, %v9792
    %v9858 = vadd.f32 %v9857, %v9793
    %v9859 = vadd.f32 %v9858, %v9794
    %v9860 = vadd.f32 %v9859, %v9795
    %v9861 = vadd.f32 %v9860, %v9796
    %v9862 = vrot.slane %v9861, 4
    %v9863 = vadd.f32 %v9861, %v9862
    %v9864 = vrot.slane %v9863, 2
    %v9865 = vadd.f32 %v9863, %v9864
    %v9866 = vrot.slane %v9865, 1
    %v9867 = vadd.f32 %v9865, %v9866
    %v9868 = vmul.f32 %v9867, %v506
    %v9869 = vmul.f32 %v9733, %v9733
    %v9870 = vmul.f32 %v9734, %v9734
    %v9871 = vmul.f32 %v9735, %v9735
    %v9872 = vmul.f32 %v9736, %v9736
    %v9873 = vmul.f32 %v9737, %v9737
    %v9874 = vmul.f32 %v9738, %v9738
    %v9875 = vmul.f32 %v9739, %v9739
    %v9876 = vmul.f32 %v9740, %v9740
    %v9877 = vmul.f32 %v9741, %v9741
    %v9878 = vmul.f32 %v9742, %v9742
    %v9879 = vmul.f32 %v9743, %v9743
    %v9880 = vmul.f32 %v9744, %v9744
    %v9881 = vmul.f32 %v9745, %v9745
    %v9882 = vmul.f32 %v9746, %v9746
    %v9883 = vmul.f32 %v9747, %v9747
    %v9884 = vmul.f32 %v9748, %v9748
    %v9885 = vmul.f32 %v9749, %v9749
    %v9886 = vmul.f32 %v9750, %v9750
    %v9887 = vmul.f32 %v9751, %v9751
    %v9888 = vmul.f32 %v9752, %v9752
    %v9889 = vmul.f32 %v9753, %v9753
    %v9890 = vmul.f32 %v9754, %v9754
    %v9891 = vmul.f32 %v9755, %v9755
    %v9892 = vmul.f32 %v9756, %v9756
    %v9893 = vmul.f32 %v9757, %v9757
    %v9894 = vmul.f32 %v9758, %v9758
    %v9895 = vmul.f32 %v9759, %v9759
    %v9896 = vmul.f32 %v9760, %v9760
    %v9897 = vmul.f32 %v9761, %v9761
    %v9898 = vmul.f32 %v9762, %v9762
    %v9899 = vmul.f32 %v9763, %v9763
    %v9900 = vmul.f32 %v9764, %v9764
    %v9901 = vmul.f32 %v9765, %v9765
    %v9902 = vmul.f32 %v9766, %v9766
    %v9903 = vmul.f32 %v9767, %v9767
    %v9904 = vmul.f32 %v9768, %v9768
    %v9905 = vmul.f32 %v9769, %v9769
    %v9906 = vmul.f32 %v9770, %v9770
    %v9907 = vmul.f32 %v9771, %v9771
    %v9908 = vmul.f32 %v9772, %v9772
    %v9909 = vmul.f32 %v9773, %v9773
    %v9910 = vmul.f32 %v9774, %v9774
    %v9911 = vmul.f32 %v9775, %v9775
    %v9912 = vmul.f32 %v9776, %v9776
    %v9913 = vmul.f32 %v9777, %v9777
    %v9914 = vmul.f32 %v9778, %v9778
    %v9915 = vmul.f32 %v9779, %v9779
    %v9916 = vmul.f32 %v9780, %v9780
    %v9917 = vmul.f32 %v9781, %v9781
    %v9918 = vmul.f32 %v9782, %v9782
    %v9919 = vmul.f32 %v9783, %v9783
    %v9920 = vmul.f32 %v9784, %v9784
    %v9921 = vmul.f32 %v9785, %v9785
    %v9922 = vmul.f32 %v9786, %v9786
    %v9923 = vmul.f32 %v9787, %v9787
    %v9924 = vmul.f32 %v9788, %v9788
    %v9925 = vmul.f32 %v9789, %v9789
    %v9926 = vmul.f32 %v9790, %v9790
    %v9927 = vmul.f32 %v9791, %v9791
    %v9928 = vmul.f32 %v9792, %v9792
    %v9929 = vmul.f32 %v9793, %v9793
    %v9930 = vmul.f32 %v9794, %v9794
    %v9931 = vmul.f32 %v9795, %v9795
    %v9932 = vmul.f32 %v9796, %v9796
    %v9933 = vadd.f32 %v9869, %v9870
    %v9934 = vadd.f32 %v9933, %v9871
    %v9935 = vadd.f32 %v9934, %v9872
    %v9936 = vadd.f32 %v9935, %v9873
    %v9937 = vadd.f32 %v9936, %v9874
    %v9938 = vadd.f32 %v9937, %v9875
    %v9939 = vadd.f32 %v9938, %v9876
    %v9940 = vadd.f32 %v9939, %v9877
    %v9941 = vadd.f32 %v9940, %v9878
    %v9942 = vadd.f32 %v9941, %v9879
    %v9943 = vadd.f32 %v9942, %v9880
    %v9944 = vadd.f32 %v9943, %v9881
    %v9945 = vadd.f32 %v9944, %v9882
    %v9946 = vadd.f32 %v9945, %v9883
    %v9947 = vadd.f32 %v9946, %v9884
    %v9948 = vadd.f32 %v9947, %v9885
    %v9949 = vadd.f32 %v9948, %v9886
    %v9950 = vadd.f32 %v9949, %v9887
    %v9951 = vadd.f32 %v9950, %v9888
    %v9952 = vadd.f32 %v9951, %v9889
    %v9953 = vadd.f32 %v9952, %v9890
    %v9954 = vadd.f32 %v9953, %v9891
    %v9955 = vadd.f32 %v9954, %v9892
    %v9956 = vadd.f32 %v9955, %v9893
    %v9957 = vadd.f32 %v9956, %v9894
    %v9958 = vadd.f32 %v9957, %v9895
    %v9959 = vadd.f32 %v9958, %v9896
    %v9960 = vadd.f32 %v9959, %v9897
    %v9961 = vadd.f32 %v9960, %v9898
    %v9962 = vadd.f32 %v9961, %v9899
    %v9963 = vadd.f32 %v9962, %v9900
    %v9964 = vadd.f32 %v9963, %v9901
    %v9965 = vadd.f32 %v9964, %v9902
    %v9966 = vadd.f32 %v9965, %v9903
    %v9967 = vadd.f32 %v9966, %v9904
    %v9968 = vadd.f32 %v9967, %v9905
    %v9969 = vadd.f32 %v9968, %v9906
    %v9970 = vadd.f32 %v9969, %v9907
    %v9971 = vadd.f32 %v9970, %v9908
    %v9972 = vadd.f32 %v9971, %v9909
    %v9973 = vadd.f32 %v9972, %v9910
    %v9974 = vadd.f32 %v9973, %v9911
    %v9975 = vadd.f32 %v9974, %v9912
    %v9976 = vadd.f32 %v9975, %v9913
    %v9977 = vadd.f32 %v9976, %v9914
    %v9978 = vadd.f32 %v9977, %v9915
    %v9979 = vadd.f32 %v9978, %v9916
    %v9980 = vadd.f32 %v9979, %v9917
    %v9981 = vadd.f32 %v9980, %v9918
    %v9982 = vadd.f32 %v9981, %v9919
    %v9983 = vadd.f32 %v9982, %v9920
    %v9984 = vadd.f32 %v9983, %v9921
    %v9985 = vadd.f32 %v9984, %v9922
    %v9986 = vadd.f32 %v9985, %v9923
    %v9987 = vadd.f32 %v9986, %v9924
    %v9988 = vadd.f32 %v9987, %v9925
    %v9989 = vadd.f32 %v9988, %v9926
    %v9990 = vadd.f32 %v9989, %v9927
    %v9991 = vadd.f32 %v9990, %v9928
    %v9992 = vadd.f32 %v9991, %v9929
    %v9993 = vadd.f32 %v9992, %v9930
    %v9994 = vadd.f32 %v9993, %v9931
    %v9995 = vadd.f32 %v9994, %v9932
    %v9996 = vrot.slane %v9995, 4
    %v9997 = vadd.f32 %v9995, %v9996
    %v9998 = vrot.slane %v9997, 2
    %v9999 = vadd.f32 %v9997, %v9998
    %v10000 = vrot.slane %v9999, 1
    %v10001 = vadd.f32 %v9999, %v10000
    %v10002 = vmul.f32 %v10001, %v506
    %v10003 = vmul.f32 %v9868, %v9868
    %v10004 = vsub.f32 %v10002, %v10003
    %v10005 = vmax.f32 %v10004, 0.0
    %v10006 = vsub.f32 %v9733, %v9868
    %v10007 = vsub.f32 %v9734, %v9868
    %v10008 = vsub.f32 %v9735, %v9868
    %v10009 = vsub.f32 %v9736, %v9868
    %v10010 = vsub.f32 %v9737, %v9868
    %v10011 = vsub.f32 %v9738, %v9868
    %v10012 = vsub.f32 %v9739, %v9868
    %v10013 = vsub.f32 %v9740, %v9868
    %v10014 = vsub.f32 %v9741, %v9868
    %v10015 = vsub.f32 %v9742, %v9868
    %v10016 = vsub.f32 %v9743, %v9868
    %v10017 = vsub.f32 %v9744, %v9868
    %v10018 = vsub.f32 %v9745, %v9868
    %v10019 = vsub.f32 %v9746, %v9868
    %v10020 = vsub.f32 %v9747, %v9868
    %v10021 = vsub.f32 %v9748, %v9868
    %v10022 = vsub.f32 %v9749, %v9868
    %v10023 = vsub.f32 %v9750, %v9868
    %v10024 = vsub.f32 %v9751, %v9868
    %v10025 = vsub.f32 %v9752, %v9868
    %v10026 = vsub.f32 %v9753, %v9868
    %v10027 = vsub.f32 %v9754, %v9868
    %v10028 = vsub.f32 %v9755, %v9868
    %v10029 = vsub.f32 %v9756, %v9868
    %v10030 = vsub.f32 %v9757, %v9868
    %v10031 = vsub.f32 %v9758, %v9868
    %v10032 = vsub.f32 %v9759, %v9868
    %v10033 = vsub.f32 %v9760, %v9868
    %v10034 = vsub.f32 %v9761, %v9868
    %v10035 = vsub.f32 %v9762, %v9868
    %v10036 = vsub.f32 %v9763, %v9868
    %v10037 = vsub.f32 %v9764, %v9868
    %v10038 = vsub.f32 %v9765, %v9868
    %v10039 = vsub.f32 %v9766, %v9868
    %v10040 = vsub.f32 %v9767, %v9868
    %v10041 = vsub.f32 %v9768, %v9868
    %v10042 = vsub.f32 %v9769, %v9868
    %v10043 = vsub.f32 %v9770, %v9868
    %v10044 = vsub.f32 %v9771, %v9868
    %v10045 = vsub.f32 %v9772, %v9868
    %v10046 = vsub.f32 %v9773, %v9868
    %v10047 = vsub.f32 %v9774, %v9868
    %v10048 = vsub.f32 %v9775, %v9868
    %v10049 = vsub.f32 %v9776, %v9868
    %v10050 = vsub.f32 %v9777, %v9868
    %v10051 = vsub.f32 %v9778, %v9868
    %v10052 = vsub.f32 %v9779, %v9868
    %v10053 = vsub.f32 %v9780, %v9868
    %v10054 = vsub.f32 %v9781, %v9868
    %v10055 = vsub.f32 %v9782, %v9868
    %v10056 = vsub.f32 %v9783, %v9868
    %v10057 = vsub.f32 %v9784, %v9868
    %v10058 = vsub.f32 %v9785, %v9868
    %v10059 = vsub.f32 %v9786, %v9868
    %v10060 = vsub.f32 %v9787, %v9868
    %v10061 = vsub.f32 %v9788, %v9868
    %v10062 = vsub.f32 %v9789, %v9868
    %v10063 = vsub.f32 %v9790, %v9868
    %v10064 = vsub.f32 %v9791, %v9868
    %v10065 = vsub.f32 %v9792, %v9868
    %v10066 = vsub.f32 %v9793, %v9868
    %v10067 = vsub.f32 %v9794, %v9868
    %v10068 = vsub.f32 %v9795, %v9868
    %v10069 = vsub.f32 %v9796, %v9868
    %v10070 = vadd.f32 %v10005, 1e-05
    %v10071 = vrsqrt.pop %v10070
    %v10072 = vmul.f32 %v10071, %v10070
    %v10073 = vmul.f32 %v10072, %v10071
    %v10074 = vmul.f32 0.5, %v10073
    %v10075 = vsub.f32 1.5, %v10074
    %v10076 = vmul.f32 %v10071, %v10075
    %vm10077 = vweird.f32 %v10070
    %vm10078 = vweird.f32 %v10071
    %vm10079 = vmor %vm10077, %vm10078
    %v10080 = vsel %vm10079, %v10071, %v10076
    %v10081 = vmul.f32 %v10006, %v10080
    %v10082 = vmul.f32 %v10007, %v10080
    %v10083 = vmul.f32 %v10008, %v10080
    %v10084 = vmul.f32 %v10009, %v10080
    %v10085 = vmul.f32 %v10010, %v10080
    %v10086 = vmul.f32 %v10011, %v10080
    %v10087 = vmul.f32 %v10012, %v10080
    %v10088 = vmul.f32 %v10013, %v10080
    %v10089 = vmul.f32 %v10014, %v10080
    %v10090 = vmul.f32 %v10015, %v10080
    %v10091 = vmul.f32 %v10016, %v10080
    %v10092 = vmul.f32 %v10017, %v10080
    %v10093 = vmul.f32 %v10018, %v10080
    %v10094 = vmul.f32 %v10019, %v10080
    %v10095 = vmul.f32 %v10020, %v10080
    %v10096 = vmul.f32 %v10021, %v10080
    %v10097 = vmul.f32 %v10022, %v10080
    %v10098 = vmul.f32 %v10023, %v10080
    %v10099 = vmul.f32 %v10024, %v10080
    %v10100 = vmul.f32 %v10025, %v10080
    %v10101 = vmul.f32 %v10026, %v10080
    %v10102 = vmul.f32 %v10027, %v10080
    %v10103 = vmul.f32 %v10028, %v10080
    %v10104 = vmul.f32 %v10029, %v10080
    %v10105 = vmul.f32 %v10030, %v10080
    %v10106 = vmul.f32 %v10031, %v10080
    %v10107 = vmul.f32 %v10032, %v10080
    %v10108 = vmul.f32 %v10033, %v10080
    %v10109 = vmul.f32 %v10034, %v10080
    %v10110 = vmul.f32 %v10035, %v10080
    %v10111 = vmul.f32 %v10036, %v10080
    %v10112 = vmul.f32 %v10037, %v10080
    %v10113 = vmul.f32 %v10038, %v10080
    %v10114 = vmul.f32 %v10039, %v10080
    %v10115 = vmul.f32 %v10040, %v10080
    %v10116 = vmul.f32 %v10041, %v10080
    %v10117 = vmul.f32 %v10042, %v10080
    %v10118 = vmul.f32 %v10043, %v10080
    %v10119 = vmul.f32 %v10044, %v10080
    %v10120 = vmul.f32 %v10045, %v10080
    %v10121 = vmul.f32 %v10046, %v10080
    %v10122 = vmul.f32 %v10047, %v10080
    %v10123 = vmul.f32 %v10048, %v10080
    %v10124 = vmul.f32 %v10049, %v10080
    %v10125 = vmul.f32 %v10050, %v10080
    %v10126 = vmul.f32 %v10051, %v10080
    %v10127 = vmul.f32 %v10052, %v10080
    %v10128 = vmul.f32 %v10053, %v10080
    %v10129 = vmul.f32 %v10054, %v10080
    %v10130 = vmul.f32 %v10055, %v10080
    %v10131 = vmul.f32 %v10056, %v10080
    %v10132 = vmul.f32 %v10057, %v10080
    %v10133 = vmul.f32 %v10058, %v10080
    %v10134 = vmul.f32 %v10059, %v10080
    %v10135 = vmul.f32 %v10060, %v10080
    %v10136 = vmul.f32 %v10061, %v10080
    %v10137 = vmul.f32 %v10062, %v10080
    %v10138 = vmul.f32 %v10063, %v10080
    %v10139 = vmul.f32 %v10064, %v10080
    %v10140 = vmul.f32 %v10065, %v10080
    %v10141 = vmul.f32 %v10066, %v10080
    %v10142 = vmul.f32 %v10067, %v10080
    %v10143 = vmul.f32 %v10068, %v10080
    %v10144 = vmul.f32 %v10069, %v10080
    %v10146 = vperm.slane %v9797, 0
    %v10148 = vmul.f32 %v10081, %v10146
    %v10149 = vmul.f32 %v10082, %v10146
    %v10150 = vmul.f32 %v10083, %v10146
    %v10151 = vmul.f32 %v10084, %v10146
    %v10152 = vmul.f32 %v10085, %v10146
    %v10153 = vmul.f32 %v10086, %v10146
    %v10154 = vmul.f32 %v10087, %v10146
    %v10155 = vmul.f32 %v10088, %v10146
    %v10156 = vmul.f32 %v10089, %v10146
    %v10157 = vmul.f32 %v10090, %v10146
    %v10158 = vmul.f32 %v10091, %v10146
    %v10159 = vmul.f32 %v10092, %v10146
    %v10160 = vmul.f32 %v10093, %v10146
    %v10161 = vmul.f32 %v10094, %v10146
    %v10162 = vmul.f32 %v10095, %v10146
    %v10163 = vmul.f32 %v10096, %v10146
    %v10164 = vmul.f32 %v10097, %v10146
    %v10165 = vmul.f32 %v10098, %v10146
    %v10166 = vmul.f32 %v10099, %v10146
    %v10167 = vmul.f32 %v10100, %v10146
    %v10168 = vmul.f32 %v10101, %v10146
    %v10169 = vmul.f32 %v10102, %v10146
    %v10170 = vmul.f32 %v10103, %v10146
    %v10171 = vmul.f32 %v10104, %v10146
    %v10172 = vmul.f32 %v10105, %v10146
    %v10173 = vmul.f32 %v10106, %v10146
    %v10174 = vmul.f32 %v10107, %v10146
    %v10175 = vmul.f32 %v10108, %v10146
    %v10176 = vmul.f32 %v10109, %v10146
    %v10177 = vmul.f32 %v10110, %v10146
    %v10178 = vmul.f32 %v10111, %v10146
    %v10179 = vmul.f32 %v10112, %v10146
    %v10180 = vmul.f32 %v10113, %v10146
    %v10181 = vmul.f32 %v10114, %v10146
    %v10182 = vmul.f32 %v10115, %v10146
    %v10183 = vmul.f32 %v10116, %v10146
    %v10184 = vmul.f32 %v10117, %v10146
    %v10185 = vmul.f32 %v10118, %v10146
    %v10186 = vmul.f32 %v10119, %v10146
    %v10187 = vmul.f32 %v10120, %v10146
    %v10188 = vmul.f32 %v10121, %v10146
    %v10189 = vmul.f32 %v10122, %v10146
    %v10190 = vmul.f32 %v10123, %v10146
    %v10191 = vmul.f32 %v10124, %v10146
    %v10192 = vmul.f32 %v10125, %v10146
    %v10193 = vmul.f32 %v10126, %v10146
    %v10194 = vmul.f32 %v10127, %v10146
    %v10195 = vmul.f32 %v10128, %v10146
    %v10196 = vmul.f32 %v10129, %v10146
    %v10197 = vmul.f32 %v10130, %v10146
    %v10198 = vmul.f32 %v10131, %v10146
    %v10199 = vmul.f32 %v10132, %v10146
    %v10200 = vmul.f32 %v10133, %v10146
    %v10201 = vmul.f32 %v10134, %v10146
    %v10202 = vmul.f32 %v10135, %v10146
    %v10203 = vmul.f32 %v10136, %v10146
    %v10204 = vmul.f32 %v10137, %v10146
    %v10205 = vmul.f32 %v10138, %v10146
    %v10206 = vmul.f32 %v10139, %v10146
    %v10207 = vmul.f32 %v10140, %v10146
    %v10208 = vmul.f32 %v10141, %v10146
    %v10209 = vmul.f32 %v10142, %v10146
    %v10210 = vmul.f32 %v10143, %v10146
    %v10211 = vmul.f32 %v10144, %v10146
    %v10213 = vperm.slane %v9798, 0
    %v10215 = vadd.f32 %v10148, %v10213
    %v10216 = vadd.f32 %v10149, %v10213
    %v10217 = vadd.f32 %v10150, %v10213
    %v10218 = vadd.f32 %v10151, %v10213
    %v10219 = vadd.f32 %v10152, %v10213
    %v10220 = vadd.f32 %v10153, %v10213
    %v10221 = vadd.f32 %v10154, %v10213
    %v10222 = vadd.f32 %v10155, %v10213
    %v10223 = vadd.f32 %v10156, %v10213
    %v10224 = vadd.f32 %v10157, %v10213
    %v10225 = vadd.f32 %v10158, %v10213
    %v10226 = vadd.f32 %v10159, %v10213
    %v10227 = vadd.f32 %v10160, %v10213
    %v10228 = vadd.f32 %v10161, %v10213
    %v10229 = vadd.f32 %v10162, %v10213
    %v10230 = vadd.f32 %v10163, %v10213
    %v10231 = vadd.f32 %v10164, %v10213
    %v10232 = vadd.f32 %v10165, %v10213
    %v10233 = vadd.f32 %v10166, %v10213
    %v10234 = vadd.f32 %v10167, %v10213
    %v10235 = vadd.f32 %v10168, %v10213
    %v10236 = vadd.f32 %v10169, %v10213
    %v10237 = vadd.f32 %v10170, %v10213
    %v10238 = vadd.f32 %v10171, %v10213
    %v10239 = vadd.f32 %v10172, %v10213
    %v10240 = vadd.f32 %v10173, %v10213
    %v10241 = vadd.f32 %v10174, %v10213
    %v10242 = vadd.f32 %v10175, %v10213
    %v10243 = vadd.f32 %v10176, %v10213
    %v10244 = vadd.f32 %v10177, %v10213
    %v10245 = vadd.f32 %v10178, %v10213
    %v10246 = vadd.f32 %v10179, %v10213
    %v10247 = vadd.f32 %v10180, %v10213
    %v10248 = vadd.f32 %v10181, %v10213
    %v10249 = vadd.f32 %v10182, %v10213
    %v10250 = vadd.f32 %v10183, %v10213
    %v10251 = vadd.f32 %v10184, %v10213
    %v10252 = vadd.f32 %v10185, %v10213
    %v10253 = vadd.f32 %v10186, %v10213
    %v10254 = vadd.f32 %v10187, %v10213
    %v10255 = vadd.f32 %v10188, %v10213
    %v10256 = vadd.f32 %v10189, %v10213
    %v10257 = vadd.f32 %v10190, %v10213
    %v10258 = vadd.f32 %v10191, %v10213
    %v10259 = vadd.f32 %v10192, %v10213
    %v10260 = vadd.f32 %v10193, %v10213
    %v10261 = vadd.f32 %v10194, %v10213
    %v10262 = vadd.f32 %v10195, %v10213
    %v10263 = vadd.f32 %v10196, %v10213
    %v10264 = vadd.f32 %v10197, %v10213
    %v10265 = vadd.f32 %v10198, %v10213
    %v10266 = vadd.f32 %v10199, %v10213
    %v10267 = vadd.f32 %v10200, %v10213
    %v10268 = vadd.f32 %v10201, %v10213
    %v10269 = vadd.f32 %v10202, %v10213
    %v10270 = vadd.f32 %v10203, %v10213
    %v10271 = vadd.f32 %v10204, %v10213
    %v10272 = vadd.f32 %v10205, %v10213
    %v10273 = vadd.f32 %v10206, %v10213
    %v10274 = vadd.f32 %v10207, %v10213
    %v10275 = vadd.f32 %v10208, %v10213
    %v10276 = vadd.f32 %v10209, %v10213
    %v10277 = vadd.f32 %v10210, %v10213
    %v10278 = vadd.f32 %v10211, %v10213
    %v10279 = vmax.f32 %v10215, 0.0
    %v10280 = vmax.f32 %v10216, 0.0
    %v10281 = vmax.f32 %v10217, 0.0
    %v10282 = vmax.f32 %v10218, 0.0
    %v10283 = vmax.f32 %v10219, 0.0
    %v10284 = vmax.f32 %v10220, 0.0
    %v10285 = vmax.f32 %v10221, 0.0
    %v10286 = vmax.f32 %v10222, 0.0
    %v10287 = vmax.f32 %v10223, 0.0
    %v10288 = vmax.f32 %v10224, 0.0
    %v10289 = vmax.f32 %v10225, 0.0
    %v10290 = vmax.f32 %v10226, 0.0
    %v10291 = vmax.f32 %v10227, 0.0
    %v10292 = vmax.f32 %v10228, 0.0
    %v10293 = vmax.f32 %v10229, 0.0
    %v10294 = vmax.f32 %v10230, 0.0
    %v10295 = vmax.f32 %v10231, 0.0
    %v10296 = vmax.f32 %v10232, 0.0
    %v10297 = vmax.f32 %v10233, 0.0
    %v10298 = vmax.f32 %v10234, 0.0
    %v10299 = vmax.f32 %v10235, 0.0
    %v10300 = vmax.f32 %v10236, 0.0
    %v10301 = vmax.f32 %v10237, 0.0
    %v10302 = vmax.f32 %v10238, 0.0
    %v10303 = vmax.f32 %v10239, 0.0
    %v10304 = vmax.f32 %v10240, 0.0
    %v10305 = vmax.f32 %v10241, 0.0
    %v10306 = vmax.f32 %v10242, 0.0
    %v10307 = vmax.f32 %v10243, 0.0
    %v10308 = vmax.f32 %v10244, 0.0
    %v10309 = vmax.f32 %v10245, 0.0
    %v10310 = vmax.f32 %v10246, 0.0
    %v10311 = vmax.f32 %v10247, 0.0
    %v10312 = vmax.f32 %v10248, 0.0
    %v10313 = vmax.f32 %v10249, 0.0
    %v10314 = vmax.f32 %v10250, 0.0
    %v10315 = vmax.f32 %v10251, 0.0
    %v10316 = vmax.f32 %v10252, 0.0
    %v10317 = vmax.f32 %v10253, 0.0
    %v10318 = vmax.f32 %v10254, 0.0
    %v10319 = vmax.f32 %v10255, 0.0
    %v10320 = vmax.f32 %v10256, 0.0
    %v10321 = vmax.f32 %v10257, 0.0
    %v10322 = vmax.f32 %v10258, 0.0
    %v10323 = vmax.f32 %v10259, 0.0
    %v10324 = vmax.f32 %v10260, 0.0
    %v10325 = vmax.f32 %v10261, 0.0
    %v10326 = vmax.f32 %v10262, 0.0
    %v10327 = vmax.f32 %v10263, 0.0
    %v10328 = vmax.f32 %v10264, 0.0
    %v10329 = vmax.f32 %v10265, 0.0
    %v10330 = vmax.f32 %v10266, 0.0
    %v10331 = vmax.f32 %v10267, 0.0
    %v10332 = vmax.f32 %v10268, 0.0
    %v10333 = vmax.f32 %v10269, 0.0
    %v10334 = vmax.f32 %v10270, 0.0
    %v10335 = vmax.f32 %v10271, 0.0
    %v10336 = vmax.f32 %v10272, 0.0
    %v10337 = vmax.f32 %v10273, 0.0
    %v10338 = vmax.f32 %v10274, 0.0
    %v10339 = vmax.f32 %v10275, 0.0
    %v10340 = vmax.f32 %v10276, 0.0
    %v10341 = vmax.f32 %v10277, 0.0
    %v10342 = vmax.f32 %v10278, 0.0
    %v10343 = vpack.c.bf16 %v10280, %v10279
    %v10344 = vpack.c.bf16 %v10282, %v10281
    %v10345 = vpack.c.bf16 %v10284, %v10283
    %v10346 = vpack.c.bf16 %v10286, %v10285
    %v10347 = vpack.c.bf16 %v10288, %v10287
    %v10348 = vpack.c.bf16 %v10290, %v10289
    %v10349 = vpack.c.bf16 %v10292, %v10291
    %v10350 = vpack.c.bf16 %v10294, %v10293
    %v10351 = vpack.c.bf16 %v10296, %v10295
    %v10352 = vpack.c.bf16 %v10298, %v10297
    %v10353 = vpack.c.bf16 %v10300, %v10299
    %v10354 = vpack.c.bf16 %v10302, %v10301
    %v10355 = vpack.c.bf16 %v10304, %v10303
    %v10356 = vpack.c.bf16 %v10306, %v10305
    %v10357 = vpack.c.bf16 %v10308, %v10307
    %v10358 = vpack.c.bf16 %v10310, %v10309
    %v10359 = vpack.c.bf16 %v10312, %v10311
    %v10360 = vpack.c.bf16 %v10314, %v10313
    %v10361 = vpack.c.bf16 %v10316, %v10315
    %v10362 = vpack.c.bf16 %v10318, %v10317
    %v10363 = vpack.c.bf16 %v10320, %v10319
    %v10364 = vpack.c.bf16 %v10322, %v10321
    %v10365 = vpack.c.bf16 %v10324, %v10323
    %v10366 = vpack.c.bf16 %v10326, %v10325
    %v10367 = vpack.c.bf16 %v10328, %v10327
    %v10368 = vpack.c.bf16 %v10330, %v10329
    %v10369 = vpack.c.bf16 %v10332, %v10331
    %v10370 = vpack.c.bf16 %v10334, %v10333
    %v10371 = vpack.c.bf16 %v10336, %v10335
    %v10372 = vpack.c.bf16 %v10338, %v10337
    %v10373 = vpack.c.bf16 %v10340, %v10339
    %v10374 = vpack.c.bf16 %v10342, %v10341
    %v10375 = vld [vmem:[#allocation9] sm:$0xf]
    %v10376 = vld [vmem:[#allocation9 + $0x4] sm:$0xf]
    %v10377 = vld [vmem:[#allocation9 + $0x8] sm:$0xf]
    %v10378 = vld [vmem:[#allocation9 + $0xc] sm:$0xf]
    %v10379 = vld [vmem:[#allocation9 + $0x10] sm:$0xf]
    %v10380 = vld [vmem:[#allocation9 + $0x14] sm:$0xf]
    %v10381 = vld [vmem:[#allocation9 + $0x18] sm:$0xf]
    %v10382 = vld [vmem:[#allocation9 + $0x1c] sm:$0xf]
    %v10383 = vld [vmem:[#allocation9 + $0x20] sm:$0xf]
    %v10384 = vld [vmem:[#allocation9 + $0x24] sm:$0xf]
    %v10385 = vld [vmem:[#allocation9 + $0x28] sm:$0xf]
    %v10386 = vld [vmem:[#allocation9 + $0x2c] sm:$0xf]
    %v10387 = vld [vmem:[#allocation9 + $0x30] sm:$0xf]
    %v10388 = vld [vmem:[#allocation9 + $0x34] sm:$0xf]
    %v10389 = vld [vmem:[#allocation9 + $0x38] sm:$0xf]
    %v10390 = vld [vmem:[#allocation9 + $0x3c] sm:$0xf]
    %v10407 = vunpack.c.l.b16 %v10375
    %v10408 = vunpack.c.l.b16 %v10376
    %v10409 = vunpack.c.l.b16 %v10377
    %v10410 = vunpack.c.l.b16 %v10378
    %v10411 = vunpack.c.l.b16 %v10379
    %v10412 = vunpack.c.l.b16 %v10380
    %v10413 = vunpack.c.l.b16 %v10381
    %v10414 = vunpack.c.l.b16 %v10382
    %v10415 = vunpack.c.l.b16 %v10383
    %v10416 = vunpack.c.l.b16 %v10384
    %v10417 = vunpack.c.l.b16 %v10385
    %v10418 = vunpack.c.l.b16 %v10386
    %v10419 = vunpack.c.l.b16 %v10387
    %v10420 = vunpack.c.l.b16 %v10388
    %v10421 = vunpack.c.l.b16 %v10389
    %v10422 = vunpack.c.l.b16 %v10390
    %v10423 = vpack.c.b16 %v10408, %v10407
    %v10424 = vpack.c.b16 %v10410, %v10409
    %v10425 = vpack.c.b16 %v10412, %v10411
    %v10426 = vpack.c.b16 %v10414, %v10413
    %v10427 = vpack.c.b16 %v10416, %v10415
    %v10428 = vpack.c.b16 %v10418, %v10417
    %v10429 = vpack.c.b16 %v10420, %v10419
    %v10430 = vpack.c.b16 %v10422, %v10421
    %10439 = vmatpush.bf16.msra.mxu0 %v10430
    %10440 = vmatpush.bf16.msra.mxu0 %v10429
    %10441 = vmatpush.bf16.msra.mxu0 %v10428
    %10442 = vmatpush.bf16.msra.mxu0 %v10427
    %10443 = vmatpush.bf16.msra.mxu0 %v10426
    %10444 = vmatpush.bf16.msra.mxu0 %v10425
    %10445 = vmatpush.bf16.msra.mxu0 %v10424
    %10446 = vmatpush.bf16.msra.mxu0 %v10423
    %10447 = vmatmul.bf16.gmra.mxu0 %v10343
    %v10448 = vpop.f32.mrf.mxu0
    %v10449 = vadd.f32 0.0, %v10448
    %v10450 = vpop.f32.mrf.mxu0
    %v10451 = vadd.f32 0.0, %v10450
    %10452 = vmatmul.bf16.gmra.mxu0 %v10344
    %v10453 = vpop.f32.mrf.mxu0
    %v10454 = vadd.f32 0.0, %v10453
    %v10455 = vpop.f32.mrf.mxu0
    %v10456 = vadd.f32 0.0, %v10455
    %10457 = vmatmul.bf16.gmra.mxu0 %v10345
    %v10458 = vpop.f32.mrf.mxu0
    %v10459 = vadd.f32 0.0, %v10458
    %v10460 = vpop.f32.mrf.mxu0
    %v10461 = vadd.f32 0.0, %v10460
    %10462 = vmatmul.bf16.gmra.mxu0 %v10346
    %v10463 = vpop.f32.mrf.mxu0
    %v10464 = vadd.f32 0.0, %v10463
    %v10465 = vpop.f32.mrf.mxu0
    %v10466 = vadd.f32 0.0, %v10465
    %10467 = vmatmul.bf16.gmra.mxu0 %v10347
    %v10468 = vpop.f32.mrf.mxu0
    %v10469 = vadd.f32 0.0, %v10468
    %v10470 = vpop.f32.mrf.mxu0
    %v10471 = vadd.f32 0.0, %v10470
    %10472 = vmatmul.bf16.gmra.mxu0 %v10348
    %v10473 = vpop.f32.mrf.mxu0
    %v10474 = vadd.f32 0.0, %v10473
    %v10475 = vpop.f32.mrf.mxu0
    %v10476 = vadd.f32 0.0, %v10475
    %10477 = vmatmul.bf16.gmra.mxu0 %v10349
    %v10478 = vpop.f32.mrf.mxu0
    %v10479 = vadd.f32 0.0, %v10478
    %v10480 = vpop.f32.mrf.mxu0
    %v10481 = vadd.f32 0.0, %v10480
    %10482 = vmatmul.bf16.gmra.mxu0 %v10350
    %v10483 = vpop.f32.mrf.mxu0
    %v10484 = vadd.f32 0.0, %v10483
    %v10485 = vpop.f32.mrf.mxu0
    %v10486 = vadd.f32 0.0, %v10485
    %10487 = vmatmul.bf16.gmra.mxu0 %v10351
    %v10488 = vpop.f32.mrf.mxu0
    %v10489 = vadd.f32 0.0, %v10488
    %v10490 = vpop.f32.mrf.mxu0
    %v10491 = vadd.f32 0.0, %v10490
    %10492 = vmatmul.bf16.gmra.mxu0 %v10352
    %v10493 = vpop.f32.mrf.mxu0
    %v10494 = vadd.f32 0.0, %v10493
    %v10495 = vpop.f32.mrf.mxu0
    %v10496 = vadd.f32 0.0, %v10495
    %10497 = vmatmul.bf16.gmra.mxu0 %v10353
    %v10498 = vpop.f32.mrf.mxu0
    %v10499 = vadd.f32 0.0, %v10498
    %v10500 = vpop.f32.mrf.mxu0
    %v10501 = vadd.f32 0.0, %v10500
    %10502 = vmatmul.bf16.gmra.mxu0 %v10354
    %v10503 = vpop.f32.mrf.mxu0
    %v10504 = vadd.f32 0.0, %v10503
    %v10505 = vpop.f32.mrf.mxu0
    %v10506 = vadd.f32 0.0, %v10505
    %10507 = vmatmul.bf16.gmra.mxu0 %v10355
    %v10508 = vpop.f32.mrf.mxu0
    %v10509 = vadd.f32 0.0, %v10508
    %v10510 = vpop.f32.mrf.mxu0
    %v10511 = vadd.f32 0.0, %v10510
    %10512 = vmatmul.bf16.gmra.mxu0 %v10356
    %v10513 = vpop.f32.mrf.mxu0
    %v10514 = vadd.f32 0.0, %v10513
    %v10515 = vpop.f32.mrf.mxu0
    %v10516 = vadd.f32 0.0, %v10515
    %10517 = vmatmul.bf16.gmra.mxu0 %v10357
    %v10518 = vpop.f32.mrf.mxu0
    %v10519 = vadd.f32 0.0, %v10518
    %v10520 = vpop.f32.mrf.mxu0
    %v10521 = vadd.f32 0.0, %v10520
    %10522 = vmatmul.bf16.gmra.mxu0 %v10358
    %v10523 = vpop.f32.mrf.mxu0
    %v10524 = vadd.f32 0.0, %v10523
    %v10525 = vpop.f32.mrf.mxu0
    %v10526 = vadd.f32 0.0, %v10525
    %10527 = vmatmul.bf16.gmra.mxu0 %v10359
    %v10528 = vpop.f32.mrf.mxu0
    %v10529 = vadd.f32 0.0, %v10528
    %v10530 = vpop.f32.mrf.mxu0
    %v10531 = vadd.f32 0.0, %v10530
    %10532 = vmatmul.bf16.gmra.mxu0 %v10360
    %v10533 = vpop.f32.mrf.mxu0
    %v10534 = vadd.f32 0.0, %v10533
    %v10535 = vpop.f32.mrf.mxu0
    %v10536 = vadd.f32 0.0, %v10535
    %10537 = vmatmul.bf16.gmra.mxu0 %v10361
    %v10538 = vpop.f32.mrf.mxu0
    %v10539 = vadd.f32 0.0, %v10538
    %v10540 = vpop.f32.mrf.mxu0
    %v10541 = vadd.f32 0.0, %v10540
    %10542 = vmatmul.bf16.gmra.mxu0 %v10362
    %v10543 = vpop.f32.mrf.mxu0
    %v10544 = vadd.f32 0.0, %v10543
    %v10545 = vpop.f32.mrf.mxu0
    %v10546 = vadd.f32 0.0, %v10545
    %10547 = vmatmul.bf16.gmra.mxu0 %v10363
    %v10548 = vpop.f32.mrf.mxu0
    %v10549 = vadd.f32 0.0, %v10548
    %v10550 = vpop.f32.mrf.mxu0
    %v10551 = vadd.f32 0.0, %v10550
    %10552 = vmatmul.bf16.gmra.mxu0 %v10364
    %v10553 = vpop.f32.mrf.mxu0
    %v10554 = vadd.f32 0.0, %v10553
    %v10555 = vpop.f32.mrf.mxu0
    %v10556 = vadd.f32 0.0, %v10555
    %10557 = vmatmul.bf16.gmra.mxu0 %v10365
    %v10558 = vpop.f32.mrf.mxu0
    %v10559 = vadd.f32 0.0, %v10558
    %v10560 = vpop.f32.mrf.mxu0
    %v10561 = vadd.f32 0.0, %v10560
    %10562 = vmatmul.bf16.gmra.mxu0 %v10366
    %v10563 = vpop.f32.mrf.mxu0
    %v10564 = vadd.f32 0.0, %v10563
    %v10565 = vpop.f32.mrf.mxu0
    %v10566 = vadd.f32 0.0, %v10565
    %10567 = vmatmul.bf16.gmra.mxu0 %v10367
    %v10568 = vpop.f32.mrf.mxu0
    %v10569 = vadd.f32 0.0, %v10568
    %v10570 = vpop.f32.mrf.mxu0
    %v10571 = vadd.f32 0.0, %v10570
    %10572 = vmatmul.bf16.gmra.mxu0 %v10368
    %v10573 = vpop.f32.mrf.mxu0
    %v10574 = vadd.f32 0.0, %v10573
    %v10575 = vpop.f32.mrf.mxu0
    %v10576 = vadd.f32 0.0, %v10575
    %10577 = vmatmul.bf16.gmra.mxu0 %v10369
    %v10578 = vpop.f32.mrf.mxu0
    %v10579 = vadd.f32 0.0, %v10578
    %v10580 = vpop.f32.mrf.mxu0
    %v10581 = vadd.f32 0.0, %v10580
    %10582 = vmatmul.bf16.gmra.mxu0 %v10370
    %v10583 = vpop.f32.mrf.mxu0
    %v10584 = vadd.f32 0.0, %v10583
    %v10585 = vpop.f32.mrf.mxu0
    %v10586 = vadd.f32 0.0, %v10585
    %10587 = vmatmul.bf16.gmra.mxu0 %v10371
    %v10588 = vpop.f32.mrf.mxu0
    %v10589 = vadd.f32 0.0, %v10588
    %v10590 = vpop.f32.mrf.mxu0
    %v10591 = vadd.f32 0.0, %v10590
    %10592 = vmatmul.bf16.gmra.mxu0 %v10372
    %v10593 = vpop.f32.mrf.mxu0
    %v10594 = vadd.f32 0.0, %v10593
    %v10595 = vpop.f32.mrf.mxu0
    %v10596 = vadd.f32 0.0, %v10595
    %10597 = vmatmul.bf16.gmra.mxu0 %v10373
    %v10598 = vpop.f32.mrf.mxu0
    %v10599 = vadd.f32 0.0, %v10598
    %v10600 = vpop.f32.mrf.mxu0
    %v10601 = vadd.f32 0.0, %v10600
    %10602 = vmatmul.bf16.gmra.mxu0 %v10374
    %v10603 = vpop.f32.mrf.mxu0
    %v10604 = vadd.f32 0.0, %v10603
    %v10605 = vpop.f32.mrf.mxu0
    %v10606 = vadd.f32 0.0, %v10605
    %10607 = vdwg.mxu0
    %v10608 = vld [vmem:[%s8] sm:$0x1]
    %v10609 = vld [vmem:[%s9] sm:$0x1]
    %v10610 = vadd.f32 %v10449, %v10451
    %v10611 = vadd.f32 %v10610, %v10454
    %v10612 = vadd.f32 %v10611, %v10456
    %v10613 = vadd.f32 %v10612, %v10459
    %v10614 = vadd.f32 %v10613, %v10461
    %v10615 = vadd.f32 %v10614, %v10464
    %v10616 = vadd.f32 %v10615, %v10466
    %v10617 = vadd.f32 %v10616, %v10469
    %v10618 = vadd.f32 %v10617, %v10471
    %v10619 = vadd.f32 %v10618, %v10474
    %v10620 = vadd.f32 %v10619, %v10476
    %v10621 = vadd.f32 %v10620, %v10479
    %v10622 = vadd.f32 %v10621, %v10481
    %v10623 = vadd.f32 %v10622, %v10484
    %v10624 = vadd.f32 %v10623, %v10486
    %v10625 = vadd.f32 %v10624, %v10489
    %v10626 = vadd.f32 %v10625, %v10491
    %v10627 = vadd.f32 %v10626, %v10494
    %v10628 = vadd.f32 %v10627, %v10496
    %v10629 = vadd.f32 %v10628, %v10499
    %v10630 = vadd.f32 %v10629, %v10501
    %v10631 = vadd.f32 %v10630, %v10504
    %v10632 = vadd.f32 %v10631, %v10506
    %v10633 = vadd.f32 %v10632, %v10509
    %v10634 = vadd.f32 %v10633, %v10511
    %v10635 = vadd.f32 %v10634, %v10514
    %v10636 = vadd.f32 %v10635, %v10516
    %v10637 = vadd.f32 %v10636, %v10519
    %v10638 = vadd.f32 %v10637, %v10521
    %v10639 = vadd.f32 %v10638, %v10524
    %v10640 = vadd.f32 %v10639, %v10526
    %v10641 = vadd.f32 %v10640, %v10529
    %v10642 = vadd.f32 %v10641, %v10531
    %v10643 = vadd.f32 %v10642, %v10534
    %v10644 = vadd.f32 %v10643, %v10536
    %v10645 = vadd.f32 %v10644, %v10539
    %v10646 = vadd.f32 %v10645, %v10541
    %v10647 = vadd.f32 %v10646, %v10544
    %v10648 = vadd.f32 %v10647, %v10546
    %v10649 = vadd.f32 %v10648, %v10549
    %v10650 = vadd.f32 %v10649, %v10551
    %v10651 = vadd.f32 %v10650, %v10554
    %v10652 = vadd.f32 %v10651, %v10556
    %v10653 = vadd.f32 %v10652, %v10559
    %v10654 = vadd.f32 %v10653, %v10561
    %v10655 = vadd.f32 %v10654, %v10564
    %v10656 = vadd.f32 %v10655, %v10566
    %v10657 = vadd.f32 %v10656, %v10569
    %v10658 = vadd.f32 %v10657, %v10571
    %v10659 = vadd.f32 %v10658, %v10574
    %v10660 = vadd.f32 %v10659, %v10576
    %v10661 = vadd.f32 %v10660, %v10579
    %v10662 = vadd.f32 %v10661, %v10581
    %v10663 = vadd.f32 %v10662, %v10584
    %v10664 = vadd.f32 %v10663, %v10586
    %v10665 = vadd.f32 %v10664, %v10589
    %v10666 = vadd.f32 %v10665, %v10591
    %v10667 = vadd.f32 %v10666, %v10594
    %v10668 = vadd.f32 %v10667, %v10596
    %v10669 = vadd.f32 %v10668, %v10599
    %v10670 = vadd.f32 %v10669, %v10601
    %v10671 = vadd.f32 %v10670, %v10604
    %v10672 = vadd.f32 %v10671, %v10606
    %v10673 = vrot.slane %v10672, 4
    %v10674 = vadd.f32 %v10672, %v10673
    %v10675 = vrot.slane %v10674, 2
    %v10676 = vadd.f32 %v10674, %v10675
    %v10677 = vrot.slane %v10676, 1
    %v10678 = vadd.f32 %v10676, %v10677
    %v10679 = vmul.f32 %v10678, %v506
    %v10680 = vmul.f32 %v10449, %v10449
    %v10681 = vmul.f32 %v10451, %v10451
    %v10682 = vmul.f32 %v10454, %v10454
    %v10683 = vmul.f32 %v10456, %v10456
    %v10684 = vmul.f32 %v10459, %v10459
    %v10685 = vmul.f32 %v10461, %v10461
    %v10686 = vmul.f32 %v10464, %v10464
    %v10687 = vmul.f32 %v10466, %v10466
    %v10688 = vmul.f32 %v10469, %v10469
    %v10689 = vmul.f32 %v10471, %v10471
    %v10690 = vmul.f32 %v10474, %v10474
    %v10691 = vmul.f32 %v10476, %v10476
    %v10692 = vmul.f32 %v10479, %v10479
    %v10693 = vmul.f32 %v10481, %v10481
    %v10694 = vmul.f32 %v10484, %v10484
    %v10695 = vmul.f32 %v10486, %v10486
    %v10696 = vmul.f32 %v10489, %v10489
    %v10697 = vmul.f32 %v10491, %v10491
    %v10698 = vmul.f32 %v10494, %v10494
    %v10699 = vmul.f32 %v10496, %v10496
    %v10700 = vmul.f32 %v10499, %v10499
    %v10701 = vmul.f32 %v10501, %v10501
    %v10702 = vmul.f32 %v10504, %v10504
    %v10703 = vmul.f32 %v10506, %v10506
    %v10704 = vmul.f32 %v10509, %v10509
    %v10705 = vmul.f32 %v10511, %v10511
    %v10706 = vmul.f32 %v10514, %v10514
    %v10707 = vmul.f32 %v10516, %v10516
    %v10708 = vmul.f32 %v10519, %v10519
    %v10709 = vmul.f32 %v10521, %v10521
    %v10710 = vmul.f32 %v10524, %v10524
    %v10711 = vmul.f32 %v10526, %v10526
    %v10712 = vmul.f32 %v10529, %v10529
    %v10713 = vmul.f32 %v10531, %v10531
    %v10714 = vmul.f32 %v10534, %v10534
    %v10715 = vmul.f32 %v10536, %v10536
    %v10716 = vmul.f32 %v10539, %v10539
    %v10717 = vmul.f32 %v10541, %v10541
    %v10718 = vmul.f32 %v10544, %v10544
    %v10719 = vmul.f32 %v10546, %v10546
    %v10720 = vmul.f32 %v10549, %v10549
    %v10721 = vmul.f32 %v10551, %v10551
    %v10722 = vmul.f32 %v10554, %v10554
    %v10723 = vmul.f32 %v10556, %v10556
    %v10724 = vmul.f32 %v10559, %v10559
    %v10725 = vmul.f32 %v10561, %v10561
    %v10726 = vmul.f32 %v10564, %v10564
    %v10727 = vmul.f32 %v10566, %v10566
    %v10728 = vmul.f32 %v10569, %v10569
    %v10729 = vmul.f32 %v10571, %v10571
    %v10730 = vmul.f32 %v10574, %v10574
    %v10731 = vmul.f32 %v10576, %v10576
    %v10732 = vmul.f32 %v10579, %v10579
    %v10733 = vmul.f32 %v10581, %v10581
    %v10734 = vmul.f32 %v10584, %v10584
    %v10735 = vmul.f32 %v10586, %v10586
    %v10736 = vmul.f32 %v10589, %v10589
    %v10737 = vmul.f32 %v10591, %v10591
    %v10738 = vmul.f32 %v10594, %v10594
    %v10739 = vmul.f32 %v10596, %v10596
    %v10740 = vmul.f32 %v10599, %v10599
    %v10741 = vmul.f32 %v10601, %v10601
    %v10742 = vmul.f32 %v10604, %v10604
    %v10743 = vmul.f32 %v10606, %v10606
    %v10744 = vadd.f32 %v10680, %v10681
    %v10745 = vadd.f32 %v10744, %v10682
    %v10746 = vadd.f32 %v10745, %v10683
    %v10747 = vadd.f32 %v10746, %v10684
    %v10748 = vadd.f32 %v10747, %v10685
    %v10749 = vadd.f32 %v10748, %v10686
    %v10750 = vadd.f32 %v10749, %v10687
    %v10751 = vadd.f32 %v10750, %v10688
    %v10752 = vadd.f32 %v10751, %v10689
    %v10753 = vadd.f32 %v10752, %v10690
    %v10754 = vadd.f32 %v10753, %v10691
    %v10755 = vadd.f32 %v10754, %v10692
    %v10756 = vadd.f32 %v10755, %v10693
    %v10757 = vadd.f32 %v10756, %v10694
    %v10758 = vadd.f32 %v10757, %v10695
    %v10759 = vadd.f32 %v10758, %v10696
    %v10760 = vadd.f32 %v10759, %v10697
    %v10761 = vadd.f32 %v10760, %v10698
    %v10762 = vadd.f32 %v10761, %v10699
    %v10763 = vadd.f32 %v10762, %v10700
    %v10764 = vadd.f32 %v10763, %v10701
    %v10765 = vadd.f32 %v10764, %v10702
    %v10766 = vadd.f32 %v10765, %v10703
    %v10767 = vadd.f32 %v10766, %v10704
    %v10768 = vadd.f32 %v10767, %v10705
    %v10769 = vadd.f32 %v10768, %v10706
    %v10770 = vadd.f32 %v10769, %v10707
    %v10771 = vadd.f32 %v10770, %v10708
    %v10772 = vadd.f32 %v10771, %v10709
    %v10773 = vadd.f32 %v10772, %v10710
    %v10774 = vadd.f32 %v10773, %v10711
    %v10775 = vadd.f32 %v10774, %v10712
    %v10776 = vadd.f32 %v10775, %v10713
    %v10777 = vadd.f32 %v10776, %v10714
    %v10778 = vadd.f32 %v10777, %v10715
    %v10779 = vadd.f32 %v10778, %v10716
    %v10780 = vadd.f32 %v10779, %v10717
    %v10781 = vadd.f32 %v10780, %v10718
    %v10782 = vadd.f32 %v10781, %v10719
    %v10783 = vadd.f32 %v10782, %v10720
    %v10784 = vadd.f32 %v10783, %v10721
    %v10785 = vadd.f32 %v10784, %v10722
    %v10786 = vadd.f32 %v10785, %v10723
    %v10787 = vadd.f32 %v10786, %v10724
    %v10788 = vadd.f32 %v10787, %v10725
    %v10789 = vadd.f32 %v10788, %v10726
    %v10790 = vadd.f32 %v10789, %v10727
    %v10791 = vadd.f32 %v10790, %v10728
    %v10792 = vadd.f32 %v10791, %v10729
    %v10793 = vadd.f32 %v10792, %v10730
    %v10794 = vadd.f32 %v10793, %v10731
    %v10795 = vadd.f32 %v10794, %v10732
    %v10796 = vadd.f32 %v10795, %v10733
    %v10797 = vadd.f32 %v10796, %v10734
    %v10798 = vadd.f32 %v10797, %v10735
    %v10799 = vadd.f32 %v10798, %v10736
    %v10800 = vadd.f32 %v10799, %v10737
    %v10801 = vadd.f32 %v10800, %v10738
    %v10802 = vadd.f32 %v10801, %v10739
    %v10803 = vadd.f32 %v10802, %v10740
    %v10804 = vadd.f32 %v10803, %v10741
    %v10805 = vadd.f32 %v10804, %v10742
    %v10806 = vadd.f32 %v10805, %v10743
    %v10807 = vrot.slane %v10806, 4
    %v10808 = vadd.f32 %v10806, %v10807
    %v10809 = vrot.slane %v10808, 2
    %v10810 = vadd.f32 %v10808, %v10809
    %v10811 = vrot.slane %v10810, 1
    %v10812 = vadd.f32 %v10810, %v10811
    %v10813 = vmul.f32 %v10812, %v506
    %v10814 = vmul.f32 %v10679, %v10679
    %v10815 = vsub.f32 %v10813, %v10814
    %v10816 = vmax.f32 %v10815, 0.0
    %v10817 = vsub.f32 %v10449, %v10679
    %v10818 = vsub.f32 %v10451, %v10679
    %v10819 = vsub.f32 %v10454, %v10679
    %v10820 = vsub.f32 %v10456, %v10679
    %v10821 = vsub.f32 %v10459, %v10679
    %v10822 = vsub.f32 %v10461, %v10679
    %v10823 = vsub.f32 %v10464, %v10679
    %v10824 = vsub.f32 %v10466, %v10679
    %v10825 = vsub.f32 %v10469, %v10679
    %v10826 = vsub.f32 %v10471, %v10679
    %v10827 = vsub.f32 %v10474, %v10679
    %v10828 = vsub.f32 %v10476, %v10679
    %v10829 = vsub.f32 %v10479, %v10679
    %v10830 = vsub.f32 %v10481, %v10679
    %v10831 = vsub.f32 %v10484, %v10679
    %v10832 = vsub.f32 %v10486, %v10679
    %v10833 = vsub.f32 %v10489, %v10679
    %v10834 = vsub.f32 %v10491, %v10679
    %v10835 = vsub.f32 %v10494, %v10679
    %v10836 = vsub.f32 %v10496, %v10679
    %v10837 = vsub.f32 %v10499, %v10679
    %v10838 = vsub.f32 %v10501, %v10679
    %v10839 = vsub.f32 %v10504, %v10679
    %v10840 = vsub.f32 %v10506, %v10679
    %v10841 = vsub.f32 %v10509, %v10679
    %v10842 = vsub.f32 %v10511, %v10679
    %v10843 = vsub.f32 %v10514, %v10679
    %v10844 = vsub.f32 %v10516, %v10679
    %v10845 = vsub.f32 %v10519, %v10679
    %v10846 = vsub.f32 %v10521, %v10679
    %v10847 = vsub.f32 %v10524, %v10679
    %v10848 = vsub.f32 %v10526, %v10679
    %v10849 = vsub.f32 %v10529, %v10679
    %v10850 = vsub.f32 %v10531, %v10679
    %v10851 = vsub.f32 %v10534, %v10679
    %v10852 = vsub.f32 %v10536, %v10679
    %v10853 = vsub.f32 %v10539, %v10679
    %v10854 = vsub.f32 %v10541, %v10679
    %v10855 = vsub.f32 %v10544, %v10679
    %v10856 = vsub.f32 %v10546, %v10679
    %v10857 = vsub.f32 %v10549, %v10679
    %v10858 = vsub.f32 %v10551, %v10679
    %v10859 = vsub.f32 %v10554, %v10679
    %v10860 = vsub.f32 %v10556, %v10679
    %v10861 = vsub.f32 %v10559, %v10679
    %v10862 = vsub.f32 %v10561, %v10679
    %v10863 = vsub.f32 %v10564, %v10679
    %v10864 = vsub.f32 %v10566, %v10679
    %v10865 = vsub.f32 %v10569, %v10679
    %v10866 = vsub.f32 %v10571, %v10679
    %v10867 = vsub.f32 %v10574, %v10679
    %v10868 = vsub.f32 %v10576, %v10679
    %v10869 = vsub.f32 %v10579, %v10679
    %v10870 = vsub.f32 %v10581, %v10679
    %v10871 = vsub.f32 %v10584, %v10679
    %v10872 = vsub.f32 %v10586, %v10679
    %v10873 = vsub.f32 %v10589, %v10679
    %v10874 = vsub.f32 %v10591, %v10679
    %v10875 = vsub.f32 %v10594, %v10679
    %v10876 = vsub.f32 %v10596, %v10679
    %v10877 = vsub.f32 %v10599, %v10679
    %v10878 = vsub.f32 %v10601, %v10679
    %v10879 = vsub.f32 %v10604, %v10679
    %v10880 = vsub.f32 %v10606, %v10679
    %v10881 = vadd.f32 %v10816, 1e-05
    %v10882 = vrsqrt.pop %v10881
    %v10883 = vmul.f32 %v10882, %v10881
    %v10884 = vmul.f32 %v10883, %v10882
    %v10885 = vmul.f32 0.5, %v10884
    %v10886 = vsub.f32 1.5, %v10885
    %v10887 = vmul.f32 %v10882, %v10886
    %vm10888 = vweird.f32 %v10881
    %vm10889 = vweird.f32 %v10882
    %vm10890 = vmor %vm10888, %vm10889
    %v10891 = vsel %vm10890, %v10882, %v10887
    %v10892 = vmul.f32 %v10817, %v10891
    %v10893 = vmul.f32 %v10818, %v10891
    %v10894 = vmul.f32 %v10819, %v10891
    %v10895 = vmul.f32 %v10820, %v10891
    %v10896 = vmul.f32 %v10821, %v10891
    %v10897 = vmul.f32 %v10822, %v10891
    %v10898 = vmul.f32 %v10823, %v10891
    %v10899 = vmul.f32 %v10824, %v10891
    %v10900 = vmul.f32 %v10825, %v10891
    %v10901 = vmul.f32 %v10826, %v10891
    %v10902 = vmul.f32 %v10827, %v10891
    %v10903 = vmul.f32 %v10828, %v10891
    %v10904 = vmul.f32 %v10829, %v10891
    %v10905 = vmul.f32 %v10830, %v10891
    %v10906 = vmul.f32 %v10831, %v10891
    %v10907 = vmul.f32 %v10832, %v10891
    %v10908 = vmul.f32 %v10833, %v10891
    %v10909 = vmul.f32 %v10834, %v10891
    %v10910 = vmul.f32 %v10835, %v10891
    %v10911 = vmul.f32 %v10836, %v10891
    %v10912 = vmul.f32 %v10837, %v10891
    %v10913 = vmul.f32 %v10838, %v10891
    %v10914 = vmul.f32 %v10839, %v10891
    %v10915 = vmul.f32 %v10840, %v10891
    %v10916 = vmul.f32 %v10841, %v10891
    %v10917 = vmul.f32 %v10842, %v10891
    %v10918 = vmul.f32 %v10843, %v10891
    %v10919 = vmul.f32 %v10844, %v10891
    %v10920 = vmul.f32 %v10845, %v10891
    %v10921 = vmul.f32 %v10846, %v10891
    %v10922 = vmul.f32 %v10847, %v10891
    %v10923 = vmul.f32 %v10848, %v10891
    %v10924 = vmul.f32 %v10849, %v10891
    %v10925 = vmul.f32 %v10850, %v10891
    %v10926 = vmul.f32 %v10851, %v10891
    %v10927 = vmul.f32 %v10852, %v10891
    %v10928 = vmul.f32 %v10853, %v10891
    %v10929 = vmul.f32 %v10854, %v10891
    %v10930 = vmul.f32 %v10855, %v10891
    %v10931 = vmul.f32 %v10856, %v10891
    %v10932 = vmul.f32 %v10857, %v10891
    %v10933 = vmul.f32 %v10858, %v10891
    %v10934 = vmul.f32 %v10859, %v10891
    %v10935 = vmul.f32 %v10860, %v10891
    %v10936 = vmul.f32 %v10861, %v10891
    %v10937 = vmul.f32 %v10862, %v10891
    %v10938 = vmul.f32 %v10863, %v10891
    %v10939 = vmul.f32 %v10864, %v10891
    %v10940 = vmul.f32 %v10865, %v10891
    %v10941 = vmul.f32 %v10866, %v10891
    %v10942 = vmul.f32 %v10867, %v10891
    %v10943 = vmul.f32 %v10868, %v10891
    %v10944 = vmul.f32 %v10869, %v10891
    %v10945 = vmul.f32 %v10870, %v10891
    %v10946 = vmul.f32 %v10871, %v10891
    %v10947 = vmul.f32 %v10872, %v10891
    %v10948 = vmul.f32 %v10873, %v10891
    %v10949 = vmul.f32 %v10874, %v10891
    %v10950 = vmul.f32 %v10875, %v10891
    %v10951 = vmul.f32 %v10876, %v10891
    %v10952 = vmul.f32 %v10877, %v10891
    %v10953 = vmul.f32 %v10878, %v10891
    %v10954 = vmul.f32 %v10879, %v10891
    %v10955 = vmul.f32 %v10880, %v10891
    %v10957 = vperm.slane %v10608, 0
    %v10959 = vmul.f32 %v10892, %v10957
    %v10960 = vmul.f32 %v10893, %v10957
    %v10961 = vmul.f32 %v10894, %v10957
    %v10962 = vmul.f32 %v10895, %v10957
    %v10963 = vmul.f32 %v10896, %v10957
    %v10964 = vmul.f32 %v10897, %v10957
    %v10965 = vmul.f32 %v10898, %v10957
    %v10966 = vmul.f32 %v10899, %v10957
    %v10967 = vmul.f32 %v10900, %v10957
    %v10968 = vmul.f32 %v10901, %v10957
    %v10969 = vmul.f32 %v10902, %v10957
    %v10970 = vmul.f32 %v10903, %v10957
    %v10971 = vmul.f32 %v10904, %v10957
    %v10972 = vmul.f32 %v10905, %v10957
    %v10973 = vmul.f32 %v10906, %v10957
    %v10974 = vmul.f32 %v10907, %v10957
    %v10975 = vmul.f32 %v10908, %v10957
    %v10976 = vmul.f32 %v10909, %v10957
    %v10977 = vmul.f32 %v10910, %v10957
    %v10978 = vmul.f32 %v10911, %v10957
    %v10979 = vmul.f32 %v10912, %v10957
    %v10980 = vmul.f32 %v10913, %v10957
    %v10981 = vmul.f32 %v10914, %v10957
    %v10982 = vmul.f32 %v10915, %v10957
    %v10983 = vmul.f32 %v10916, %v10957
    %v10984 = vmul.f32 %v10917, %v10957
    %v10985 = vmul.f32 %v10918, %v10957
    %v10986 = vmul.f32 %v10919, %v10957
    %v10987 = vmul.f32 %v10920, %v10957
    %v10988 = vmul.f32 %v10921, %v10957
    %v10989 = vmul.f32 %v10922, %v10957
    %v10990 = vmul.f32 %v10923, %v10957
    %v10991 = vmul.f32 %v10924, %v10957
    %v10992 = vmul.f32 %v10925, %v10957
    %v10993 = vmul.f32 %v10926, %v10957
    %v10994 = vmul.f32 %v10927, %v10957
    %v10995 = vmul.f32 %v10928, %v10957
    %v10996 = vmul.f32 %v10929, %v10957
    %v10997 = vmul.f32 %v10930, %v10957
    %v10998 = vmul.f32 %v10931, %v10957
    %v10999 = vmul.f32 %v10932, %v10957
    %v11000 = vmul.f32 %v10933, %v10957
    %v11001 = vmul.f32 %v10934, %v10957
    %v11002 = vmul.f32 %v10935, %v10957
    %v11003 = vmul.f32 %v10936, %v10957
    %v11004 = vmul.f32 %v10937, %v10957
    %v11005 = vmul.f32 %v10938, %v10957
    %v11006 = vmul.f32 %v10939, %v10957
    %v11007 = vmul.f32 %v10940, %v10957
    %v11008 = vmul.f32 %v10941, %v10957
    %v11009 = vmul.f32 %v10942, %v10957
    %v11010 = vmul.f32 %v10943, %v10957
    %v11011 = vmul.f32 %v10944, %v10957
    %v11012 = vmul.f32 %v10945, %v10957
    %v11013 = vmul.f32 %v10946, %v10957
    %v11014 = vmul.f32 %v10947, %v10957
    %v11015 = vmul.f32 %v10948, %v10957
    %v11016 = vmul.f32 %v10949, %v10957
    %v11017 = vmul.f32 %v10950, %v10957
    %v11018 = vmul.f32 %v10951, %v10957
    %v11019 = vmul.f32 %v10952, %v10957
    %v11020 = vmul.f32 %v10953, %v10957
    %v11021 = vmul.f32 %v10954, %v10957
    %v11022 = vmul.f32 %v10955, %v10957
    %v11024 = vperm.slane %v10609, 0
    %v11026 = vadd.f32 %v10959, %v11024
    %v11027 = vadd.f32 %v10960, %v11024
    %v11028 = vadd.f32 %v10961, %v11024
    %v11029 = vadd.f32 %v10962, %v11024
    %v11030 = vadd.f32 %v10963, %v11024
    %v11031 = vadd.f32 %v10964, %v11024
    %v11032 = vadd.f32 %v10965, %v11024
    %v11033 = vadd.f32 %v10966, %v11024
    %v11034 = vadd.f32 %v10967, %v11024
    %v11035 = vadd.f32 %v10968, %v11024
    %v11036 = vadd.f32 %v10969, %v11024
    %v11037 = vadd.f32 %v10970, %v11024
    %v11038 = vadd.f32 %v10971, %v11024
    %v11039 = vadd.f32 %v10972, %v11024
    %v11040 = vadd.f32 %v10973, %v11024
    %v11041 = vadd.f32 %v10974, %v11024
    %v11042 = vadd.f32 %v10975, %v11024
    %v11043 = vadd.f32 %v10976, %v11024
    %v11044 = vadd.f32 %v10977, %v11024
    %v11045 = vadd.f32 %v10978, %v11024
    %v11046 = vadd.f32 %v10979, %v11024
    %v11047 = vadd.f32 %v10980, %v11024
    %v11048 = vadd.f32 %v10981, %v11024
    %v11049 = vadd.f32 %v10982, %v11024
    %v11050 = vadd.f32 %v10983, %v11024
    %v11051 = vadd.f32 %v10984, %v11024
    %v11052 = vadd.f32 %v10985, %v11024
    %v11053 = vadd.f32 %v10986, %v11024
    %v11054 = vadd.f32 %v10987, %v11024
    %v11055 = vadd.f32 %v10988, %v11024
    %v11056 = vadd.f32 %v10989, %v11024
    %v11057 = vadd.f32 %v10990, %v11024
    %v11058 = vadd.f32 %v10991, %v11024
    %v11059 = vadd.f32 %v10992, %v11024
    %v11060 = vadd.f32 %v10993, %v11024
    %v11061 = vadd.f32 %v10994, %v11024
    %v11062 = vadd.f32 %v10995, %v11024
    %v11063 = vadd.f32 %v10996, %v11024
    %v11064 = vadd.f32 %v10997, %v11024
    %v11065 = vadd.f32 %v10998, %v11024
    %v11066 = vadd.f32 %v10999, %v11024
    %v11067 = vadd.f32 %v11000, %v11024
    %v11068 = vadd.f32 %v11001, %v11024
    %v11069 = vadd.f32 %v11002, %v11024
    %v11070 = vadd.f32 %v11003, %v11024
    %v11071 = vadd.f32 %v11004, %v11024
    %v11072 = vadd.f32 %v11005, %v11024
    %v11073 = vadd.f32 %v11006, %v11024
    %v11074 = vadd.f32 %v11007, %v11024
    %v11075 = vadd.f32 %v11008, %v11024
    %v11076 = vadd.f32 %v11009, %v11024
    %v11077 = vadd.f32 %v11010, %v11024
    %v11078 = vadd.f32 %v11011, %v11024
    %v11079 = vadd.f32 %v11012, %v11024
    %v11080 = vadd.f32 %v11013, %v11024
    %v11081 = vadd.f32 %v11014, %v11024
    %v11082 = vadd.f32 %v11015, %v11024
    %v11083 = vadd.f32 %v11016, %v11024
    %v11084 = vadd.f32 %v11017, %v11024
    %v11085 = vadd.f32 %v11018, %v11024
    %v11086 = vadd.f32 %v11019, %v11024
    %v11087 = vadd.f32 %v11020, %v11024
    %v11088 = vadd.f32 %v11021, %v11024
    %v11089 = vadd.f32 %v11022, %v11024
    %v11090 = vadd.f32 %v11026, %v100
    %v11091 = vadd.f32 %v11027, %v101
    %v11092 = vadd.f32 %v11028, %v102
    %v11093 = vadd.f32 %v11029, %v103
    %v11094 = vadd.f32 %v11030, %v104
    %v11095 = vadd.f32 %v11031, %v105
    %v11096 = vadd.f32 %v11032, %v106
    %v11097 = vadd.f32 %v11033, %v107
    %v11098 = vadd.f32 %v11034, %v108
    %v11099 = vadd.f32 %v11035, %v109
    %v11100 = vadd.f32 %v11036, %v110
    %v11101 = vadd.f32 %v11037, %v111
    %v11102 = vadd.f32 %v11038, %v112
    %v11103 = vadd.f32 %v11039, %v113
    %v11104 = vadd.f32 %v11040, %v114
    %v11105 = vadd.f32 %v11041, %v115
    %v11106 = vadd.f32 %v11042, %v116
    %v11107 = vadd.f32 %v11043, %v117
    %v11108 = vadd.f32 %v11044, %v118
    %v11109 = vadd.f32 %v11045, %v119
    %v11110 = vadd.f32 %v11046, %v120
    %v11111 = vadd.f32 %v11047, %v121
    %v11112 = vadd.f32 %v11048, %v122
    %v11113 = vadd.f32 %v11049, %v123
    %v11114 = vadd.f32 %v11050, %v124
    %v11115 = vadd.f32 %v11051, %v125
    %v11116 = vadd.f32 %v11052, %v126
    %v11117 = vadd.f32 %v11053, %v127
    %v11118 = vadd.f32 %v11054, %v128
    %v11119 = vadd.f32 %v11055, %v129
    %v11120 = vadd.f32 %v11056, %v130
    %v11121 = vadd.f32 %v11057, %v131
    %v11122 = vadd.f32 %v11058, %v132
    %v11123 = vadd.f32 %v11059, %v133
    %v11124 = vadd.f32 %v11060, %v134
    %v11125 = vadd.f32 %v11061, %v135
    %v11126 = vadd.f32 %v11062, %v136
    %v11127 = vadd.f32 %v11063, %v137
    %v11128 = vadd.f32 %v11064, %v138
    %v11129 = vadd.f32 %v11065, %v139
    %v11130 = vadd.f32 %v11066, %v140
    %v11131 = vadd.f32 %v11067, %v141
    %v11132 = vadd.f32 %v11068, %v142
    %v11133 = vadd.f32 %v11069, %v143
    %v11134 = vadd.f32 %v11070, %v144
    %v11135 = vadd.f32 %v11071, %v145
    %v11136 = vadd.f32 %v11072, %v146
    %v11137 = vadd.f32 %v11073, %v147
    %v11138 = vadd.f32 %v11074, %v148
    %v11139 = vadd.f32 %v11075, %v149
    %v11140 = vadd.f32 %v11076, %v150
    %v11141 = vadd.f32 %v11077, %v151
    %v11142 = vadd.f32 %v11078, %v152
    %v11143 = vadd.f32 %v11079, %v153
    %v11144 = vadd.f32 %v11080, %v154
    %v11145 = vadd.f32 %v11081, %v155
    %v11146 = vadd.f32 %v11082, %v156
    %v11147 = vadd.f32 %v11083, %v157
    %v11148 = vadd.f32 %v11084, %v158
    %v11149 = vadd.f32 %v11085, %v159
    %v11150 = vadd.f32 %v11086, %v160
    %v11151 = vadd.f32 %v11087, %v161
    %v11152 = vadd.f32 %v11088, %v162
    %v11153 = vadd.f32 %v11089, %v163
    %v11154 = vmax.f32 %v11090, 0.0
    %v11155 = vmax.f32 %v11091, 0.0
    %v11156 = vmax.f32 %v11092, 0.0
    %v11157 = vmax.f32 %v11093, 0.0
    %v11158 = vmax.f32 %v11094, 0.0
    %v11159 = vmax.f32 %v11095, 0.0
    %v11160 = vmax.f32 %v11096, 0.0
    %v11161 = vmax.f32 %v11097, 0.0
    %v11162 = vmax.f32 %v11098, 0.0
    %v11163 = vmax.f32 %v11099, 0.0
    %v11164 = vmax.f32 %v11100, 0.0
    %v11165 = vmax.f32 %v11101, 0.0
    %v11166 = vmax.f32 %v11102, 0.0
    %v11167 = vmax.f32 %v11103, 0.0
    %v11168 = vmax.f32 %v11104, 0.0
    %v11169 = vmax.f32 %v11105, 0.0
    %v11170 = vmax.f32 %v11106, 0.0
    %v11171 = vmax.f32 %v11107, 0.0
    %v11172 = vmax.f32 %v11108, 0.0
    %v11173 = vmax.f32 %v11109, 0.0
    %v11174 = vmax.f32 %v11110, 0.0
    %v11175 = vmax.f32 %v11111, 0.0
    %v11176 = vmax.f32 %v11112, 0.0
    %v11177 = vmax.f32 %v11113, 0.0
    %v11178 = vmax.f32 %v11114, 0.0
    %v11179 = vmax.f32 %v11115, 0.0
    %v11180 = vmax.f32 %v11116, 0.0
    %v11181 = vmax.f32 %v11117, 0.0
    %v11182 = vmax.f32 %v11118, 0.0
    %v11183 = vmax.f32 %v11119, 0.0
    %v11184 = vmax.f32 %v11120, 0.0
    %v11185 = vmax.f32 %v11121, 0.0
    %v11186 = vmax.f32 %v11122, 0.0
    %v11187 = vmax.f32 %v11123, 0.0
    %v11188 = vmax.f32 %v11124, 0.0
    %v11189 = vmax.f32 %v11125, 0.0
    %v11190 = vmax.f32 %v11126, 0.0
    %v11191 = vmax.f32 %v11127, 0.0
    %v11192 = vmax.f32 %v11128, 0.0
    %v11193 = vmax.f32 %v11129, 0.0
    %v11194 = vmax.f32 %v11130, 0.0
    %v11195 = vmax.f32 %v11131, 0.0
    %v11196 = vmax.f32 %v11132, 0.0
    %v11197 = vmax.f32 %v11133, 0.0
    %v11198 = vmax.f32 %v11134, 0.0
    %v11199 = vmax.f32 %v11135, 0.0
    %v11200 = vmax.f32 %v11136, 0.0
    %v11201 = vmax.f32 %v11137, 0.0
    %v11202 = vmax.f32 %v11138, 0.0
    %v11203 = vmax.f32 %v11139, 0.0
    %v11204 = vmax.f32 %v11140, 0.0
    %v11205 = vmax.f32 %v11141, 0.0
    %v11206 = vmax.f32 %v11142, 0.0
    %v11207 = vmax.f32 %v11143, 0.0
    %v11208 = vmax.f32 %v11144, 0.0
    %v11209 = vmax.f32 %v11145, 0.0
    %v11210 = vmax.f32 %v11146, 0.0
    %v11211 = vmax.f32 %v11147, 0.0
    %v11212 = vmax.f32 %v11148, 0.0
    %v11213 = vmax.f32 %v11149, 0.0
    %v11214 = vmax.f32 %v11150, 0.0
    %v11215 = vmax.f32 %v11151, 0.0
    %v11216 = vmax.f32 %v11152, 0.0
    %v11217 = vmax.f32 %v11153, 0.0
    %11218 = vst [vmem:[#allocation11] sm:$0xff] %v11154
    %11219 = vst [vmem:[#allocation11 + $0x8] sm:$0xff] %v11155
    %11220 = vst [vmem:[#allocation11 + $0x10] sm:$0xff] %v11156
    %11221 = vst [vmem:[#allocation11 + $0x18] sm:$0xff] %v11157
    %11222 = vst [vmem:[#allocation11 + $0x20] sm:$0xff] %v11158
    %11223 = vst [vmem:[#allocation11 + $0x28] sm:$0xff] %v11159
    %11224 = vst [vmem:[#allocation11 + $0x30] sm:$0xff] %v11160
    %11225 = vst [vmem:[#allocation11 + $0x38] sm:$0xff] %v11161
    %11226 = vst [vmem:[#allocation11 + $0x40] sm:$0xff] %v11162
    %11227 = vst [vmem:[#allocation11 + $0x48] sm:$0xff] %v11163
    %11228 = vst [vmem:[#allocation11 + $0x50] sm:$0xff] %v11164
    %11229 = vst [vmem:[#allocation11 + $0x58] sm:$0xff] %v11165
    %11230 = vst [vmem:[#allocation11 + $0x60] sm:$0xff] %v11166
    %11231 = vst [vmem:[#allocation11 + $0x68] sm:$0xff] %v11167
    %11232 = vst [vmem:[#allocation11 + $0x70] sm:$0xff] %v11168
    %11233 = vst [vmem:[#allocation11 + $0x78] sm:$0xff] %v11169
    %11234 = vst [vmem:[#allocation11 + $0x80] sm:$0xff] %v11170
    %11235 = vst [vmem:[#allocation11 + $0x88] sm:$0xff] %v11171
    %11236 = vst [vmem:[#allocation11 + $0x90] sm:$0xff] %v11172
    %11237 = vst [vmem:[#allocation11 + $0x98] sm:$0xff] %v11173
    %11238 = vst [vmem:[#allocation11 + $0xa0] sm:$0xff] %v11174
    %11239 = vst [vmem:[#allocation11 + $0xa8] sm:$0xff] %v11175
    %11240 = vst [vmem:[#allocation11 + $0xb0] sm:$0xff] %v11176
    %11241 = vst [vmem:[#allocation11 + $0xb8] sm:$0xff] %v11177
    %11242 = vst [vmem:[#allocation11 + $0xc0] sm:$0xff] %v11178
    %11243 = vst [vmem:[#allocation11 + $0xc8] sm:$0xff] %v11179
    %11244 = vst [vmem:[#allocation11 + $0xd0] sm:$0xff] %v11180
    %11245 = vst [vmem:[#allocation11 + $0xd8] sm:$0xff] %v11181
    %11246 = vst [vmem:[#allocation11 + $0xe0] sm:$0xff] %v11182
    %11247 = vst [vmem:[#allocation11 + $0xe8] sm:$0xff] %v11183
    %11248 = vst [vmem:[#allocation11 + $0xf0] sm:$0xff] %v11184
    %11249 = vst [vmem:[#allocation11 + $0xf8] sm:$0xff] %v11185
    %11250 = vst [vmem:[#allocation11 + $0x100] sm:$0xff] %v11186
    %11251 = vst [vmem:[#allocation11 + $0x108] sm:$0xff] %v11187
    %11252 = vst [vmem:[#allocation11 + $0x110] sm:$0xff] %v11188
    %11253 = vst [vmem:[#allocation11 + $0x118] sm:$0xff] %v11189
    %11254 = vst [vmem:[#allocation11 + $0x120] sm:$0xff] %v11190
    %11255 = vst [vmem:[#allocation11 + $0x128] sm:$0xff] %v11191
    %11256 = vst [vmem:[#allocation11 + $0x130] sm:$0xff] %v11192
    %11257 = vst [vmem:[#allocation11 + $0x138] sm:$0xff] %v11193
    %11258 = vst [vmem:[#allocation11 + $0x140] sm:$0xff] %v11194
    %11259 = vst [vmem:[#allocation11 + $0x148] sm:$0xff] %v11195
    %11260 = vst [vmem:[#allocation11 + $0x150] sm:$0xff] %v11196
    %11261 = vst [vmem:[#allocation11 + $0x158] sm:$0xff] %v11197
    %11262 = vst [vmem:[#allocation11 + $0x160] sm:$0xff] %v11198
    %11263 = vst [vmem:[#allocation11 + $0x168] sm:$0xff] %v11199
    %11264 = vst [vmem:[#allocation11 + $0x170] sm:$0xff] %v11200
    %11265 = vst [vmem:[#allocation11 + $0x178] sm:$0xff] %v11201
    %11266 = vst [vmem:[#allocation11 + $0x180] sm:$0xff] %v11202
    %11267 = vst [vmem:[#allocation11 + $0x188] sm:$0xff] %v11203
    %11268 = vst [vmem:[#allocation11 + $0x190] sm:$0xff] %v11204
    %11269 = vst [vmem:[#allocation11 + $0x198] sm:$0xff] %v11205
    %11270 = vst [vmem:[#allocation11 + $0x1a0] sm:$0xff] %v11206
    %11271 = vst [vmem:[#allocation11 + $0x1a8] sm:$0xff] %v11207
    %11272 = vst [vmem:[#allocation11 + $0x1b0] sm:$0xff] %v11208
    %11273 = vst [vmem:[#allocation11 + $0x1b8] sm:$0xff] %v11209
    %11274 = vst [vmem:[#allocation11 + $0x1c0] sm:$0xff] %v11210
    %11275 = vst [vmem:[#allocation11 + $0x1c8] sm:$0xff] %v11211
    %11276 = vst [vmem:[#allocation11 + $0x1d0] sm:$0xff] %v11212
    %11277 = vst [vmem:[#allocation11 + $0x1d8] sm:$0xff] %v11213
    %11278 = vst [vmem:[#allocation11 + $0x1e0] sm:$0xff] %v11214
    %11279 = vst [vmem:[#allocation11 + $0x1e8] sm:$0xff] %v11215
    %11280 = vst [vmem:[#allocation11 + $0x1f0] sm:$0xff] %v11216
    %11281 = vst [vmem:[#allocation11 + $0x1f8] sm:$0xff] %v11217
    // Predicated region
    $region58: #{tpu_custom_call.1} parent=1 // pred_check
      _
    $region59: #{tpu_custom_call.1} parent=1 // pred_check_branch
      %11283 = sbr.rel (0) target = $region61
    $region60: #{tpu_custom_call.1} parent=1 // pred_region
      %11285 = vsyncadd [#allocation5], 0
      %s11286 = sshll.u32 [#allocation11], 4
      %s11287 = int_to_ptr.vmem [resolvable:$true] %s11286
      %s11288 = sshll.u32 %s10, 4
      %s11289 = int_to_ptr.hbm [resolvable:$true] %s11288
      %11294 = dma.vmem_to_hbm [thread:$0]  %s11287, 8192, %s11289, [#allocation5], 128, 128, 8
    $region61: #{tpu_custom_call.1} parent=1 // pred_fallthru
      _
    // Predicated region
    $region62: #{tpu_custom_call.1} parent=1 // pred_check
      _
    $region63: #{tpu_custom_call.1} parent=1 // pred_check_branch
      %11296 = sbr.rel (0) target = $region65
    $region64: #{tpu_custom_call.1} parent=1 // pred_region
      %11298 = dma.done [#allocation5], 8192
    $region65: #{tpu_custom_call.1} parent=1 // pred_fallthru
      _
    %11299 = vsyncpa [#allocation4], 1
    %11300 = vsyncpa [#allocation7], 1
    %11301 = vsyncpa [#allocation10], 1
    %11302 = vsyncpa [#allocation5], 1

</llo_original>
